<compile_context>
chip_gen: v6e
topology: v6e:2x2x1
jax: 0.10.0
libtpu: 0.0.40
codegen_flags: <defaults>
</compile_context>

<pallas_src>
import math

import numpy as np
import jax
import jax.numpy as jnp
from jax.experimental import pallas as pl
from jax.experimental.pallas import tpu as pltpu


def _round_up(v, m):
    return ((v + m - 1) // m) * m


def _geometry(H, W):
    """Flat padded-row geometry for the three conv stages."""
    g = {}
    Hs, Ws = H, W
    for i in (1, 2, 3):
        Wp = _round_up(Ws + 2, 8)   # padded row width (>= W+2, sublane friendly)
        Hp = Hs + 3                 # 1 top + 2 bottom zero rows (slice safety)
        g[f"H{i}"], g[f"W{i}"] = Hs, Ws
        g[f"Hp{i}"], g[f"Wp{i}"] = Hp, Wp
        g[f"M{i}"] = Hs * Wp        # flat conv-output rows per stage
        Hs, Ws = Hs // 2, Ws // 2
    g["H8"], g["W8"] = Hs, Ws       # spatial dims after the three /2 pools
    return g


def _pool_gather_matrix(g, i):
    """One-hot matrix S so that  z_{i+1} = S @ hp_i  gathers the valid 2x2
    max-pooled rows of stage i and scatters them (with a 1-pixel zero border)
    directly into stage i+1's padded flat layout."""
    Wp_in, Wp_out = g[f"Wp{i}"], g[f"Wp{i+1}"]
    Hp_out = g[f"Hp{i+1}"]
    H_out, W_out = g[f"H{i+1}"], g[f"W{i+1}"]
    n_in = g[f"M{i}"] - Wp_in - 1                  # rows of the hp value
    S = np.zeros((Hp_out * Wp_out, n_in), np.float32)
    for h in range(H_out):
        for w in range(W_out):
            S[(h + 1) * Wp_out + (w + 1), 2 * h * Wp_in + 2 * w] = 1.0
    return jnp.asarray(S, jnp.bfloat16)


def _avgpool_matrix(g):
    """0.25-weighted one-hot matrix P: pooled = P @ y3 is the exact 2x2 average
    pool of the conv3 output, rows in NHWC (i, j) order."""
    Wp3, M3 = g["Wp3"], g["M3"]
    H8, W8 = g["H8"], g["W8"]
    P = np.zeros((H8 * W8, M3), np.float32)
    for i in range(H8):
        for j in range(W8):
            r = 2 * i * Wp3 + 2 * j
            for off in (0, 1, Wp3, Wp3 + 1):
                P[i * W8 + j, r + off] = 0.25
    return jnp.asarray(P, jnp.bfloat16)


# --------------------------- fully fused forward kernel ----------------------

def _make_fused_kernel(g):
    Wp1, M1 = g["Wp1"], g["M1"]
    Wp2, M2 = g["Wp2"], g["M2"]
    Wp3, M3 = g["Wp3"], g["M3"]
    nHW = g["H8"] * g["W8"]

    def kernel(zp_ref, w1_ref, t1_ref, s1_ref, w2_ref, t2_ref, s2_ref,
               w3_ref, t3_ref, p3_ref, fw1_ref, fb1_ref, fw2_ref, fb2_ref,
               o_ref, a1_ref, z2_ref, z3_ref):
        # ---- stage 1: 3x3 conv (Cin=1) + folded BN + ReLU + 2x2 max pool ----
        # Cin=1 would waste the MXU: 9 broadcast FMAs on the VPU, accumulated
        # in a (M1, 32) f32 scratch (too large for the vreg file, per review).
        for t in range(9):
            lhs = zp_ref[0, pl.ds((t // 3) * Wp1 + (t % 3), M1), :]   # (M1, 1)
            contrib = lhs.astype(jnp.float32) * w1_ref[t].astype(jnp.float32)
            if t == 0:
                a1_ref[...] = contrib
            else:
                a1_ref[...] += contrib
        a1_ref[...] = jnp.maximum(a1_ref[...] + t1_ref[...], 0.0)
        wp = jnp.maximum(a1_ref[pl.ds(0, M1 - 1), :], a1_ref[pl.ds(1, M1 - 1), :])
        hp = jnp.maximum(wp[: M1 - Wp1 - 1], wp[Wp1:])   # valid at even (h, w)
        # gather valid pooled rows + re-pad into stage 2's padded flat layout
        # with ONE one-hot MXU matmul (no HBM round trip, no strided stores).
        z2_ref[...] = jnp.dot(s1_ref[...], hp.astype(jnp.bfloat16),
                              preferred_element_type=jnp.float32
                              ).astype(z2_ref.dtype)

        # ---- stage 2: conv(32->64) + folded BN + ReLU + 2x2 max pool --------
        acc = None
        for t in range(9):
            lhs = z2_ref[pl.ds((t // 3) * Wp2 + (t % 3), M2), :]      # (M2, 32)
            c = jnp.dot(lhs, w2_ref[t], preferred_element_type=jnp.float32)
            acc = c if acc is None else acc + c                       # vreg acc
        y = jnp.maximum(acc + t2_ref[...], 0.0)
        wp = jnp.maximum(y[: M2 - 1], y[1:])
        hp = jnp.maximum(wp[: M2 - Wp2 - 1], wp[Wp2:])
        z3_ref[...] = jnp.dot(s2_ref[...], hp.astype(jnp.bfloat16),
                              preferred_element_type=jnp.float32
                              ).astype(z3_ref.dtype)

        # ---- stage 3: conv(64->128) + folded BN + ReLU + 2x2 avg pool -------
        acc = None
        for t in range(9):
            lhs = z3_ref[pl.ds((t // 3) * Wp3 + (t % 3), M3), :]      # (M3, 64)
            c = jnp.dot(lhs, w3_ref[t], preferred_element_type=jnp.float32)
            acc = c if acc is None else acc + c
        y = jnp.maximum(acc + t3_ref[...], 0.0)                       # (M3, 128)
        # AdaptiveAvgPool2d((H/8, W/8)) == exact 2x2 average (H, W % 8 == 0),
        # done as a 0.25-weighted one-hot matmul -> (H8*W8, 128) NHWC rows.
        pooled = jnp.dot(p3_ref[...], y.astype(jnp.bfloat16),
                         preferred_element_type=jnp.float32)

        # ---- fused 2-layer MLP (fc1 rows pre-permuted -> no NCHW transpose) -
        h1 = fb1_ref[...]
        for k in range(nHW):
            h1 = h1 + jnp.dot(pooled[k:k + 1, :].astype(jnp.bfloat16),
                              fw1_ref[k], preferred_element_type=jnp.float32)
        h1 = jnp.maximum(h1, 0.0)
        out = jnp.dot(h1.astype(jnp.bfloat16), fw2_ref[...],
                      preferred_element_type=jnp.float32) + fb2_ref[...]
        o_ref[0] = out.astype(o_ref.dtype)

    return kernel


def another_cnn_forward(x, params):
    """x: (B, segment_len, input_dim) f32  ->  (B, num_speakers) f32 logits."""
    B, H, W = x.shape
    assert H % 8 == 0 and W % 8 == 0, (
        "H and W must be divisible by 8 (AdaptiveAvgPool2d == exact 2x2 pool)")
    g = _geometry(H, W)
    S_out = params["fw2"].shape[-1]
    Hp1, Wp1 = g["Hp1"], g["Wp1"]

    # pad the raw input once (tiny, fuses with the cast) into the flat
    # padded-row layout consumed by the kernel.
    zp = jnp.pad(x.astype(jnp.bfloat16)[..., None],
                 ((0, 0), (1, Hp1 - H - 1), (1, Wp1 - W - 1), (0, 0)))
    zp = zp.reshape(B, Hp1 * Wp1, 1)

    sel1 = _pool_gather_matrix(g, 1)    # (Hp2*Wp2, M1-Wp1-1)
    sel2 = _pool_gather_matrix(g, 2)    # (Hp3*Wp3, M2-Wp2-1)
    p3 = _avgpool_matrix(g)             # (H8*W8, M3)

    flops = 2 * B * (
        g["M1"] * 9 * 32 + g["M2"] * 9 * 32 * 64 + g["M3"] * 9 * 64 * 128
        + sel1.shape[0] * sel1.shape[1] * 32 + sel2.shape[0] * sel2.shape[1] * 64
        + p3.shape[0] * p3.shape[1] * 128
        + g["H8"] * g["W8"] * 128 * 256 + 256 * S_out)
    bytes_accessed = int(
        2 * (zp.size + params["w1"].size + params["w2"].size + params["w3"].size
             + params["fw1"].size + params["fw2"].size + sel1.size + sel2.size
             + p3.size)
        + 4 * (params["t1"].size + params["t2"].size + params["t3"].size
               + params["fb1"].size + params["fb2"].size + B * S_out))

    def full(a):
        return pl.BlockSpec(a.shape, lambda b, _nd=a.ndim: (0,) * _nd)

    out = pl.pallas_call(
        _make_fused_kernel(g),
        out_shape=jax.ShapeDtypeStruct((B, 1, S_out), jnp.float32),
        grid=(B,),
        in_specs=[
            pl.BlockSpec((1, Hp1 * Wp1, 1), lambda b: (b, 0, 0)),
            full(params["w1"]), full(params["t1"]), full(sel1),
            full(params["w2"]), full(params["t2"]), full(sel2),
            full(params["w3"]), full(params["t3"]), full(p3),
            full(params["fw1"]), full(params["fb1"]),
            full(params["fw2"]), full(params["fb2"]),
        ],
        out_specs=pl.BlockSpec((1, 1, S_out), lambda b: (b, 0, 0)),
        scratch_shapes=[
            pltpu.VMEM((g["M1"], 32), jnp.float32),              # conv1 acc
            pltpu.VMEM((g["Hp2"] * g["Wp2"], 32), jnp.bfloat16),  # layer-2 input
            pltpu.VMEM((g["Hp3"] * g["Wp3"], 64), jnp.bfloat16),  # layer-3 input
        ],
        compiler_params=pltpu.CompilerParams(
            dimension_semantics=("parallel",),
            vmem_limit_bytes=32 * 1024 * 1024),
        cost_estimate=pl.CostEstimate(flops=int(flops), transcendentals=0,
                                      bytes_accessed=bytes_accessed),
    )(zp, params["w1"], params["t1"], sel1, params["w2"], params["t2"], sel2,
      params["w3"], params["t3"], p3, params["fw1"], params["fb1"],
      params["fw2"], params["fb2"])

    return out.reshape(B, S_out)


# --------------------------- deterministic params ----------------------------

def init_params(key, num_speakers, input_dim, segment_len):
    eps = 1e-5
    bn_scale = 1.0 / math.sqrt(1.0 + eps)   # gamma=1, running mean=0, var=1
    keys = jax.random.split(key, 8)

    def conv_p(kw, kb, cin, cout):
        w = jax.random.normal(kw, (3, 3, cin, cout), jnp.float32) / math.sqrt(9.0 * cin)
        b = jax.random.normal(kb, (cout,), jnp.float32) * 0.01
        # fold eval-mode BN scale into the conv weight; shift = bias * scale
        w9 = (w * bn_scale).reshape(9, cin, cout).astype(jnp.bfloat16)
        shift = (b * bn_scale).reshape(1, cout).astype(jnp.float32)
        return w9, shift

    w1, t1 = conv_p(keys[0], keys[1], 1, 32)
    w2, t2 = conv_p(keys[2], keys[3], 32, 64)
    w3, t3 = conv_p(keys[4], keys[5], 64, 128)

    H8, W8 = segment_len // 8, input_dim // 8
    feat_dim = 128 * H8 * W8
    k6a, k6b = jax.random.split(keys[6])
    k7a, k7b = jax.random.split(keys[7])
    fw1 = jax.random.normal(k6a, (feat_dim, 256), jnp.float32) / math.sqrt(feat_dim)
    # Permute fw1's rows once: PyTorch NCHW .view(B,-1) basis -> NHWC pooled-row
    # basis, blocked by spatial row so the kernel contracts per pooled row.
    p = jnp.arange(feat_dim)
    c = p % 128
    j = (p // 128) % W8
    i = p // (128 * W8)
    fw1 = fw1[c * (H8 * W8) + i * W8 + j].reshape(H8 * W8, 128, 256)
    fb1 = (jax.random.normal(k6b, (256,), jnp.float32) * 0.01).reshape(1, 256)
    fw2 = jax.random.normal(k7a, (256, num_speakers), jnp.float32) / math.sqrt(256.0)
    fb2 = (jax.random.normal(k7b, (num_speakers,), jnp.float32) * 0.01
           ).reshape(1, num_speakers)

    return dict(w1=w1, t1=t1, w2=w2, t2=t2, w3=w3, t3=t3,
                fw1=fw1.astype(jnp.bfloat16), fb1=fb1,
                fw2=fw2.astype(jnp.bfloat16), fb2=fb2)


# ----------------------------------- main -------------------------------------

if __name__ == "__main__":
    B, segment_len, input_dim, num_speakers = 2, 16, 16, 8
    key = jax.random.PRNGKey(0)
    kx, kp = jax.random.split(key)
    x = jax.random.normal(kx, (B, segment_len, input_dim), jnp.float32)
    params = init_params(kp, num_speakers, input_dim, segment_len)

    fwd = jax.jit(lambda inp: another_cnn_forward(inp, params))
    out = fwd(x)
    jax.block_until_ready(out)
    assert out.shape == (B, num_speakers) and out.dtype == jnp.float32
    print("KERNEL_OK")
</pallas_src>

<mosaic_0001>
module attributes {stable_mosaic.version = 11 : i64} {
  func.func @kernel(%arg0: i32, %arg1: memref<1x456x1xbf16, #tpu.memory_space<vmem>>, %arg2: memref<9x1x32xbf16, #tpu.memory_space<vmem>>, %arg3: memref<1x32xf32, #tpu.memory_space<vmem>>, %arg4: memref<176x359xbf16, #tpu.memory_space<vmem>>, %arg5: memref<9x32x64xbf16, #tpu.memory_space<vmem>>, %arg6: memref<1x64xf32, #tpu.memory_space<vmem>>, %arg7: memref<56x111xbf16, #tpu.memory_space<vmem>>, %arg8: memref<9x64x128xbf16, #tpu.memory_space<vmem>>, %arg9: memref<1x128xf32, #tpu.memory_space<vmem>>, %arg10: memref<4x32xbf16, #tpu.memory_space<vmem>>, %arg11: memref<4x128x256xbf16, #tpu.memory_space<vmem>>, %arg12: memref<1x256xf32, #tpu.memory_space<vmem>>, %arg13: memref<256x8xbf16, #tpu.memory_space<vmem>>, %arg14: memref<1x8xf32, #tpu.memory_space<vmem>>, %arg15: memref<1x1x8xf32, #tpu.memory_space<vmem>>, %arg16: memref<384x32xf32, #tpu.memory_space<vmem>>, %arg17: memref<176x32xbf16, #tpu.memory_space<vmem>>, %arg18: memref<56x64xbf16, #tpu.memory_space<vmem>>) attributes {dimension_semantics = [#tpu.dimension_semantics<parallel>], iteration_bounds = array<i64: 2>, scalar_prefetch = 0 : i64, scratch_operands = 3 : i64, tpu.core_type = #tpu.core_type<tc>, window_params = [{transform_indices = @transform_0, window_bounds = array<i64: 1, 456, 1>}, {pipeline_mode = #tpu.pipeline_mode<synchronous>, transform_indices = @transform_1, window_bounds = array<i64: 9, 1, 32>}, {pipeline_mode = #tpu.pipeline_mode<synchronous>, transform_indices = @transform_2, window_bounds = array<i64: 1, 32>}, {pipeline_mode = #tpu.pipeline_mode<synchronous>, transform_indices = @transform_3, window_bounds = array<i64: 176, 359>}, {pipeline_mode = #tpu.pipeline_mode<synchronous>, transform_indices = @transform_4, window_bounds = array<i64: 9, 32, 64>}, {pipeline_mode = #tpu.pipeline_mode<synchronous>, transform_indices = @transform_5, window_bounds = array<i64: 1, 64>}, {pipeline_mode = #tpu.pipeline_mode<synchronous>, transform_indices = @transform_6, window_bounds = array<i64: 56, 111>}, {pipeline_mode = #tpu.pipeline_mode<synchronous>, transform_indices = @transform_7, window_bounds = array<i64: 9, 64, 128>}, {pipeline_mode = #tpu.pipeline_mode<synchronous>, transform_indices = @transform_8, window_bounds = array<i64: 1, 128>}, {pipeline_mode = #tpu.pipeline_mode<synchronous>, transform_indices = @transform_9, window_bounds = array<i64: 4, 32>}, {pipeline_mode = #tpu.pipeline_mode<synchronous>, transform_indices = @transform_10, window_bounds = array<i64: 4, 128, 256>}, {pipeline_mode = #tpu.pipeline_mode<synchronous>, transform_indices = @transform_11, window_bounds = array<i64: 1, 256>}, {pipeline_mode = #tpu.pipeline_mode<synchronous>, transform_indices = @transform_12, window_bounds = array<i64: 256, 8>}, {pipeline_mode = #tpu.pipeline_mode<synchronous>, transform_indices = @transform_13, window_bounds = array<i64: 1, 8>}, {transform_indices = @transform_14, window_bounds = array<i64: 1, 1, 8>}]} {
    %c0 = arith.constant 0 : index
    %c0_0 = arith.constant 0 : index
    %c0_1 = arith.constant 0 : index
    %0 = vector.load %arg1[%c0, %c0_0, %c0_1] : memref<1x456x1xbf16, #tpu.memory_space<vmem>>, vector<1x384x1xbf16>
    %1 = vector.shape_cast %0 : vector<1x384x1xbf16> to vector<384x1xbf16>
    %2 = arith.extf %1 : vector<384x1xbf16> to vector<384x1xf32>
    %c0_2 = arith.constant 0 : index
    %c0_3 = arith.constant 0 : index
    %c0_4 = arith.constant 0 : index
    %3 = vector.load %arg2[%c0_2, %c0_3, %c0_4] : memref<9x1x32xbf16, #tpu.memory_space<vmem>>, vector<1x1x32xbf16>
    %4 = vector.shape_cast %3 : vector<1x1x32xbf16> to vector<1x32xbf16>
    %5 = arith.extf %4 : vector<1x32xbf16> to vector<1x32xf32>
    %6 = vector.broadcast %2 : vector<384x1xf32> to vector<384x32xf32>
    %7 = vector.broadcast %5 : vector<1x32xf32> to vector<384x32xf32>
    %8 = arith.mulf %6, %7 : vector<384x32xf32>
    %c0_5 = arith.constant 0 : index
    %c0_6 = arith.constant 0 : index
    %9 = vector.load %arg16[%c0_5, %c0_6] : memref<384x32xf32, #tpu.memory_space<vmem>>, vector<384x32xf32>
    tpu.vector_store %arg16[%c0_5, %c0_6], %8 {strides = array<i32>} : memref<384x32xf32, #tpu.memory_space<vmem>>, vector<384x32xf32>,
    %c0_7 = arith.constant 0 : index
    %c1 = arith.constant 1 : index
    %c0_8 = arith.constant 0 : index
    %10 = vector.load %arg1[%c0_7, %c1, %c0_8] : memref<1x456x1xbf16, #tpu.memory_space<vmem>>, vector<1x384x1xbf16>
    %11 = vector.shape_cast %10 : vector<1x384x1xbf16> to vector<384x1xbf16>
    %12 = arith.extf %11 : vector<384x1xbf16> to vector<384x1xf32>
    %c1_9 = arith.constant 1 : index
    %c0_10 = arith.constant 0 : index
    %c0_11 = arith.constant 0 : index
    %13 = vector.load %arg2[%c1_9, %c0_10, %c0_11] : memref<9x1x32xbf16, #tpu.memory_space<vmem>>, vector<1x1x32xbf16>
    %14 = vector.shape_cast %13 : vector<1x1x32xbf16> to vector<1x32xbf16>
    %15 = arith.extf %14 : vector<1x32xbf16> to vector<1x32xf32>
    %16 = vector.broadcast %12 : vector<384x1xf32> to vector<384x32xf32>
    %17 = vector.broadcast %15 : vector<1x32xf32> to vector<384x32xf32>
    %18 = arith.mulf %16, %17 : vector<384x32xf32>
    %c0_12 = arith.constant 0 : index
    %c0_13 = arith.constant 0 : index
    %19 = vector.load %arg16[%c0_12, %c0_13] : memref<384x32xf32, #tpu.memory_space<vmem>>, vector<384x32xf32>
    %20 = arith.addf %19, %18 : vector<384x32xf32>
    %c0_14 = arith.constant 0 : index
    %c0_15 = arith.constant 0 : index
    %21 = vector.load %arg16[%c0_14, %c0_15] : memref<384x32xf32, #tpu.memory_space<vmem>>, vector<384x32xf32>
    tpu.vector_store %arg16[%c0_14, %c0_15], %20 {strides = array<i32>} : memref<384x32xf32, #tpu.memory_space<vmem>>, vector<384x32xf32>,
    %c0_16 = arith.constant 0 : index
    %c2 = arith.constant 2 : index
    %c0_17 = arith.constant 0 : index
    %22 = vector.load %arg1[%c0_16, %c2, %c0_17] : memref<1x456x1xbf16, #tpu.memory_space<vmem>>, vector<1x384x1xbf16>
    %23 = vector.shape_cast %22 : vector<1x384x1xbf16> to vector<384x1xbf16>
    %24 = arith.extf %23 : vector<384x1xbf16> to vector<384x1xf32>
    %c2_18 = arith.constant 2 : index
    %c0_19 = arith.constant 0 : index
    %c0_20 = arith.constant 0 : index
    %25 = vector.load %arg2[%c2_18, %c0_19, %c0_20] : memref<9x1x32xbf16, #tpu.memory_space<vmem>>, vector<1x1x32xbf16>
    %26 = vector.shape_cast %25 : vector<1x1x32xbf16> to vector<1x32xbf16>
    %27 = arith.extf %26 : vector<1x32xbf16> to vector<1x32xf32>
    %28 = vector.broadcast %24 : vector<384x1xf32> to vector<384x32xf32>
    %29 = vector.broadcast %27 : vector<1x32xf32> to vector<384x32xf32>
    %30 = arith.mulf %28, %29 : vector<384x32xf32>
    %c0_21 = arith.constant 0 : index
    %c0_22 = arith.constant 0 : index
    %31 = vector.load %arg16[%c0_21, %c0_22] : memref<384x32xf32, #tpu.memory_space<vmem>>, vector<384x32xf32>
    %32 = arith.addf %31, %30 : vector<384x32xf32>
    %c0_23 = arith.constant 0 : index
    %c0_24 = arith.constant 0 : index
    %33 = vector.load %arg16[%c0_23, %c0_24] : memref<384x32xf32, #tpu.memory_space<vmem>>, vector<384x32xf32>
    tpu.vector_store %arg16[%c0_23, %c0_24], %32 {strides = array<i32>} : memref<384x32xf32, #tpu.memory_space<vmem>>, vector<384x32xf32>,
    %c0_25 = arith.constant 0 : index
    %c24 = arith.constant 24 : index
    %c0_26 = arith.constant 0 : index
    %34 = vector.load %arg1[%c0_25, %c24, %c0_26] : memref<1x456x1xbf16, #tpu.memory_space<vmem>>, vector<1x384x1xbf16>
    %35 = vector.shape_cast %34 : vector<1x384x1xbf16> to vector<384x1xbf16>
    %36 = arith.extf %35 : vector<384x1xbf16> to vector<384x1xf32>
    %c3 = arith.constant 3 : index
    %c0_27 = arith.constant 0 : index
    %c0_28 = arith.constant 0 : index
    %37 = vector.load %arg2[%c3, %c0_27, %c0_28] : memref<9x1x32xbf16, #tpu.memory_space<vmem>>, vector<1x1x32xbf16>
    %38 = vector.shape_cast %37 : vector<1x1x32xbf16> to vector<1x32xbf16>
    %39 = arith.extf %38 : vector<1x32xbf16> to vector<1x32xf32>
    %40 = vector.broadcast %36 : vector<384x1xf32> to vector<384x32xf32>
    %41 = vector.broadcast %39 : vector<1x32xf32> to vector<384x32xf32>
    %42 = arith.mulf %40, %41 : vector<384x32xf32>
    %c0_29 = arith.constant 0 : index
    %c0_30 = arith.constant 0 : index
    %43 = vector.load %arg16[%c0_29, %c0_30] : memref<384x32xf32, #tpu.memory_space<vmem>>, vector<384x32xf32>
    %44 = arith.addf %43, %42 : vector<384x32xf32>
    %c0_31 = arith.constant 0 : index
    %c0_32 = arith.constant 0 : index
    %45 = vector.load %arg16[%c0_31, %c0_32] : memref<384x32xf32, #tpu.memory_space<vmem>>, vector<384x32xf32>
    tpu.vector_store %arg16[%c0_31, %c0_32], %44 {strides = array<i32>} : memref<384x32xf32, #tpu.memory_space<vmem>>, vector<384x32xf32>,
    %c0_33 = arith.constant 0 : index
    %c25 = arith.constant 25 : index
    %c0_34 = arith.constant 0 : index
    %46 = vector.load %arg1[%c0_33, %c25, %c0_34] : memref<1x456x1xbf16, #tpu.memory_space<vmem>>, vector<1x384x1xbf16>
    %47 = vector.shape_cast %46 : vector<1x384x1xbf16> to vector<384x1xbf16>
    %48 = arith.extf %47 : vector<384x1xbf16> to vector<384x1xf32>
    %c4 = arith.constant 4 : index
    %c0_35 = arith.constant 0 : index
    %c0_36 = arith.constant 0 : index
    %49 = vector.load %arg2[%c4, %c0_35, %c0_36] : memref<9x1x32xbf16, #tpu.memory_space<vmem>>, vector<1x1x32xbf16>
    %50 = vector.shape_cast %49 : vector<1x1x32xbf16> to vector<1x32xbf16>
    %51 = arith.extf %50 : vector<1x32xbf16> to vector<1x32xf32>
    %52 = vector.broadcast %48 : vector<384x1xf32> to vector<384x32xf32>
    %53 = vector.broadcast %51 : vector<1x32xf32> to vector<384x32xf32>
    %54 = arith.mulf %52, %53 : vector<384x32xf32>
    %c0_37 = arith.constant 0 : index
    %c0_38 = arith.constant 0 : index
    %55 = vector.load %arg16[%c0_37, %c0_38] : memref<384x32xf32, #tpu.memory_space<vmem>>, vector<384x32xf32>
    %56 = arith.addf %55, %54 : vector<384x32xf32>
    %c0_39 = arith.constant 0 : index
    %c0_40 = arith.constant 0 : index
    %57 = vector.load %arg16[%c0_39, %c0_40] : memref<384x32xf32, #tpu.memory_space<vmem>>, vector<384x32xf32>
    tpu.vector_store %arg16[%c0_39, %c0_40], %56 {strides = array<i32>} : memref<384x32xf32, #tpu.memory_space<vmem>>, vector<384x32xf32>,
    %c0_41 = arith.constant 0 : index
    %c26 = arith.constant 26 : index
    %c0_42 = arith.constant 0 : index
    %58 = vector.load %arg1[%c0_41, %c26, %c0_42] : memref<1x456x1xbf16, #tpu.memory_space<vmem>>, vector<1x384x1xbf16>
    %59 = vector.shape_cast %58 : vector<1x384x1xbf16> to vector<384x1xbf16>
    %60 = arith.extf %59 : vector<384x1xbf16> to vector<384x1xf32>
    %c5 = arith.constant 5 : index
    %c0_43 = arith.constant 0 : index
    %c0_44 = arith.constant 0 : index
    %61 = vector.load %arg2[%c5, %c0_43, %c0_44] : memref<9x1x32xbf16, #tpu.memory_space<vmem>>, vector<1x1x32xbf16>
    %62 = vector.shape_cast %61 : vector<1x1x32xbf16> to vector<1x32xbf16>
    %63 = arith.extf %62 : vector<1x32xbf16> to vector<1x32xf32>
    %64 = vector.broadcast %60 : vector<384x1xf32> to vector<384x32xf32>
    %65 = vector.broadcast %63 : vector<1x32xf32> to vector<384x32xf32>
    %66 = arith.mulf %64, %65 : vector<384x32xf32>
    %c0_45 = arith.constant 0 : index
    %c0_46 = arith.constant 0 : index
    %67 = vector.load %arg16[%c0_45, %c0_46] : memref<384x32xf32, #tpu.memory_space<vmem>>, vector<384x32xf32>
    %68 = arith.addf %67, %66 : vector<384x32xf32>
    %c0_47 = arith.constant 0 : index
    %c0_48 = arith.constant 0 : index
    %69 = vector.load %arg16[%c0_47, %c0_48] : memref<384x32xf32, #tpu.memory_space<vmem>>, vector<384x32xf32>
    tpu.vector_store %arg16[%c0_47, %c0_48], %68 {strides = array<i32>} : memref<384x32xf32, #tpu.memory_space<vmem>>, vector<384x32xf32>,
    %c0_49 = arith.constant 0 : index
    %c48 = arith.constant 48 : index
    %c0_50 = arith.constant 0 : index
    %70 = vector.load %arg1[%c0_49, %c48, %c0_50] : memref<1x456x1xbf16, #tpu.memory_space<vmem>>, vector<1x384x1xbf16>
    %71 = vector.shape_cast %70 : vector<1x384x1xbf16> to vector<384x1xbf16>
    %72 = arith.extf %71 : vector<384x1xbf16> to vector<384x1xf32>
    %c6 = arith.constant 6 : index
    %c0_51 = arith.constant 0 : index
    %c0_52 = arith.constant 0 : index
    %73 = vector.load %arg2[%c6, %c0_51, %c0_52] : memref<9x1x32xbf16, #tpu.memory_space<vmem>>, vector<1x1x32xbf16>
    %74 = vector.shape_cast %73 : vector<1x1x32xbf16> to vector<1x32xbf16>
    %75 = arith.extf %74 : vector<1x32xbf16> to vector<1x32xf32>
    %76 = vector.broadcast %72 : vector<384x1xf32> to vector<384x32xf32>
    %77 = vector.broadcast %75 : vector<1x32xf32> to vector<384x32xf32>
    %78 = arith.mulf %76, %77 : vector<384x32xf32>
    %c0_53 = arith.constant 0 : index
    %c0_54 = arith.constant 0 : index
    %79 = vector.load %arg16[%c0_53, %c0_54] : memref<384x32xf32, #tpu.memory_space<vmem>>, vector<384x32xf32>
    %80 = arith.addf %79, %78 : vector<384x32xf32>
    %c0_55 = arith.constant 0 : index
    %c0_56 = arith.constant 0 : index
    %81 = vector.load %arg16[%c0_55, %c0_56] : memref<384x32xf32, #tpu.memory_space<vmem>>, vector<384x32xf32>
    tpu.vector_store %arg16[%c0_55, %c0_56], %80 {strides = array<i32>} : memref<384x32xf32, #tpu.memory_space<vmem>>, vector<384x32xf32>,
    %c0_57 = arith.constant 0 : index
    %c49 = arith.constant 49 : index
    %c0_58 = arith.constant 0 : index
    %82 = vector.load %arg1[%c0_57, %c49, %c0_58] : memref<1x456x1xbf16, #tpu.memory_space<vmem>>, vector<1x384x1xbf16>
    %83 = vector.shape_cast %82 : vector<1x384x1xbf16> to vector<384x1xbf16>
    %84 = arith.extf %83 : vector<384x1xbf16> to vector<384x1xf32>
    %c7 = arith.constant 7 : index
    %c0_59 = arith.constant 0 : index
    %c0_60 = arith.constant 0 : index
    %85 = vector.load %arg2[%c7, %c0_59, %c0_60] : memref<9x1x32xbf16, #tpu.memory_space<vmem>>, vector<1x1x32xbf16>
    %86 = vector.shape_cast %85 : vector<1x1x32xbf16> to vector<1x32xbf16>
    %87 = arith.extf %86 : vector<1x32xbf16> to vector<1x32xf32>
    %88 = vector.broadcast %84 : vector<384x1xf32> to vector<384x32xf32>
    %89 = vector.broadcast %87 : vector<1x32xf32> to vector<384x32xf32>
    %90 = arith.mulf %88, %89 : vector<384x32xf32>
    %c0_61 = arith.constant 0 : index
    %c0_62 = arith.constant 0 : index
    %91 = vector.load %arg16[%c0_61, %c0_62] : memref<384x32xf32, #tpu.memory_space<vmem>>, vector<384x32xf32>
    %92 = arith.addf %91, %90 : vector<384x32xf32>
    %c0_63 = arith.constant 0 : index
    %c0_64 = arith.constant 0 : index
    %93 = vector.load %arg16[%c0_63, %c0_64] : memref<384x32xf32, #tpu.memory_space<vmem>>, vector<384x32xf32>
    tpu.vector_store %arg16[%c0_63, %c0_64], %92 {strides = array<i32>} : memref<384x32xf32, #tpu.memory_space<vmem>>, vector<384x32xf32>,
    %c0_65 = arith.constant 0 : index
    %c50 = arith.constant 50 : index
    %c0_66 = arith.constant 0 : index
    %94 = vector.load %arg1[%c0_65, %c50, %c0_66] : memref<1x456x1xbf16, #tpu.memory_space<vmem>>, vector<1x384x1xbf16>
    %95 = vector.shape_cast %94 : vector<1x384x1xbf16> to vector<384x1xbf16>
    %96 = arith.extf %95 : vector<384x1xbf16> to vector<384x1xf32>
    %c8 = arith.constant 8 : index
    %c0_67 = arith.constant 0 : index
    %c0_68 = arith.constant 0 : index
    %97 = vector.load %arg2[%c8, %c0_67, %c0_68] : memref<9x1x32xbf16, #tpu.memory_space<vmem>>, vector<1x1x32xbf16>
    %98 = vector.shape_cast %97 : vector<1x1x32xbf16> to vector<1x32xbf16>
    %99 = arith.extf %98 : vector<1x32xbf16> to vector<1x32xf32>
    %100 = vector.broadcast %96 : vector<384x1xf32> to vector<384x32xf32>
    %101 = vector.broadcast %99 : vector<1x32xf32> to vector<384x32xf32>
    %102 = arith.mulf %100, %101 : vector<384x32xf32>
    %c0_69 = arith.constant 0 : index
    %c0_70 = arith.constant 0 : index
    %103 = vector.load %arg16[%c0_69, %c0_70] : memref<384x32xf32, #tpu.memory_space<vmem>>, vector<384x32xf32>
    %104 = arith.addf %103, %102 : vector<384x32xf32>
    %c0_71 = arith.constant 0 : index
    %c0_72 = arith.constant 0 : index
    %105 = vector.load %arg16[%c0_71, %c0_72] : memref<384x32xf32, #tpu.memory_space<vmem>>, vector<384x32xf32>
    tpu.vector_store %arg16[%c0_71, %c0_72], %104 {strides = array<i32>} : memref<384x32xf32, #tpu.memory_space<vmem>>, vector<384x32xf32>,
    %c0_73 = arith.constant 0 : index
    %c0_74 = arith.constant 0 : index
    %106 = vector.load %arg16[%c0_73, %c0_74] : memref<384x32xf32, #tpu.memory_space<vmem>>, vector<384x32xf32>
    %c0_75 = arith.constant 0 : index
    %c0_76 = arith.constant 0 : index
    %107 = vector.load %arg3[%c0_75, %c0_76] : memref<1x32xf32, #tpu.memory_space<vmem>>, vector<1x32xf32>
    %108 = vector.broadcast %107 : vector<1x32xf32> to vector<384x32xf32>
    %109 = arith.addf %106, %108 : vector<384x32xf32>
    %cst = arith.constant 0.000000e+00 : f32
    %110 = vector.broadcast %cst : f32 to vector<384x32xf32>
    %111 = arith.maximumf %109, %110 : vector<384x32xf32>
    %c0_77 = arith.constant 0 : index
    %c0_78 = arith.constant 0 : index
    %112 = vector.load %arg16[%c0_77, %c0_78] : memref<384x32xf32, #tpu.memory_space<vmem>>, vector<384x32xf32>
    tpu.vector_store %arg16[%c0_77, %c0_78], %111 {strides = array<i32>} : memref<384x32xf32, #tpu.memory_space<vmem>>, vector<384x32xf32>,
    %c0_79 = arith.constant 0 : index
    %c0_80 = arith.constant 0 : index
    %113 = vector.load %arg16[%c0_79, %c0_80] : memref<384x32xf32, #tpu.memory_space<vmem>>, vector<383x32xf32>
    %c1_81 = arith.constant 1 : index
    %c0_82 = arith.constant 0 : index
    %114 = vector.load %arg16[%c1_81, %c0_82] : memref<384x32xf32, #tpu.memory_space<vmem>>, vector<383x32xf32>
    %115 = arith.maximumf %113, %114 : vector<383x32xf32>
    %116 = vector.extract_strided_slice %115 {offsets = [0, 0], sizes = [359, 32], strides = [1, 1]} : vector<383x32xf32> to vector<359x32xf32>
    %117 = vector.extract_strided_slice %115 {offsets = [24, 0], sizes = [359, 32], strides = [1, 1]} : vector<383x32xf32> to vector<359x32xf32>
    %118 = arith.maximumf %116, %117 : vector<359x32xf32>
    %c0_83 = arith.constant 0 : index
    %c0_84 = arith.constant 0 : index
    %119 = vector.load %arg4[%c0_83, %c0_84] : memref<176x359xbf16, #tpu.memory_space<vmem>>, vector<176x359xbf16>
    %120 = arith.truncf %118 : vector<359x32xf32> to vector<359x32xbf16>
    %cst_85 = arith.constant dense<0.000000e+00> : vector<176x32xf32>
    %121 = tpu.matmul %119, %120, %cst_85 {dimension_numbers = #tpu.dot_dimension_numbers<[1], [0], [0], [1], [0, 0, 1, 1], [], []>} : vector<176x359xbf16>, vector<359x32xbf16>, vector<176x32xf32> -> vector<176x32xf32>
    %122 = arith.truncf %121 : vector<176x32xf32> to vector<176x32xbf16>
    %c0_86 = arith.constant 0 : index
    %c0_87 = arith.constant 0 : index
    %123 = vector.load %arg17[%c0_86, %c0_87] : memref<176x32xbf16, #tpu.memory_space<vmem>>, vector<176x32xbf16>
    tpu.vector_store %arg17[%c0_86, %c0_87], %122 {strides = array<i32>} : memref<176x32xbf16, #tpu.memory_space<vmem>>, vector<176x32xbf16>,
    %c0_88 = arith.constant 0 : index
    %c0_89 = arith.constant 0 : index
    %124 = vector.load %arg17[%c0_88, %c0_89] : memref<176x32xbf16, #tpu.memory_space<vmem>>, vector<128x32xbf16>
    %c0_90 = arith.constant 0 : index
    %c0_91 = arith.constant 0 : index
    %c0_92 = arith.constant 0 : index
    %125 = vector.load %arg5[%c0_90, %c0_91, %c0_92] : memref<9x32x64xbf16, #tpu.memory_space<vmem>>, vector<1x32x64xbf16>
    %126 = vector.shape_cast %125 : vector<1x32x64xbf16> to vector<32x64xbf16>
    %cst_93 = arith.constant dense<0.000000e+00> : vector<128x64xf32>
    %127 = tpu.matmul %124, %126, %cst_93 {dimension_numbers = #tpu.dot_dimension_numbers<[1], [0], [0], [1], [0, 0, 1, 1], [], []>} : vector<128x32xbf16>, vector<32x64xbf16>, vector<128x64xf32> -> vector<128x64xf32>
    %c1_94 = arith.constant 1 : index
    %c0_95 = arith.constant 0 : index
    %128 = vector.load %arg17[%c1_94, %c0_95] : memref<176x32xbf16, #tpu.memory_space<vmem>>, vector<128x32xbf16>
    %c1_96 = arith.constant 1 : index
    %c0_97 = arith.constant 0 : index
    %c0_98 = arith.constant 0 : index
    %129 = vector.load %arg5[%c1_96, %c0_97, %c0_98] : memref<9x32x64xbf16, #tpu.memory_space<vmem>>, vector<1x32x64xbf16>
    %130 = vector.shape_cast %129 : vector<1x32x64xbf16> to vector<32x64xbf16>
    %cst_99 = arith.constant dense<0.000000e+00> : vector<128x64xf32>
    %131 = tpu.matmul %128, %130, %cst_99 {dimension_numbers = #tpu.dot_dimension_numbers<[1], [0], [0], [1], [0, 0, 1, 1], [], []>} : vector<128x32xbf16>, vector<32x64xbf16>, vector<128x64xf32> -> vector<128x64xf32>
    %132 = arith.addf %127, %131 : vector<128x64xf32>
    %c2_100 = arith.constant 2 : index
    %c0_101 = arith.constant 0 : index
    %133 = vector.load %arg17[%c2_100, %c0_101] : memref<176x32xbf16, #tpu.memory_space<vmem>>, vector<128x32xbf16>
    %c2_102 = arith.constant 2 : index
    %c0_103 = arith.constant 0 : index
    %c0_104 = arith.constant 0 : index
    %134 = vector.load %arg5[%c2_102, %c0_103, %c0_104] : memref<9x32x64xbf16, #tpu.memory_space<vmem>>, vector<1x32x64xbf16>
    %135 = vector.shape_cast %134 : vector<1x32x64xbf16> to vector<32x64xbf16>
    %cst_105 = arith.constant dense<0.000000e+00> : vector<128x64xf32>
    %136 = tpu.matmul %133, %135, %cst_105 {dimension_numbers = #tpu.dot_dimension_numbers<[1], [0], [0], [1], [0, 0, 1, 1], [], []>} : vector<128x32xbf16>, vector<32x64xbf16>, vector<128x64xf32> -> vector<128x64xf32>
    %137 = arith.addf %132, %136 : vector<128x64xf32>
    %c16 = arith.constant 16 : index
    %c0_106 = arith.constant 0 : index
    %138 = vector.load %arg17[%c16, %c0_106] : memref<176x32xbf16, #tpu.memory_space<vmem>>, vector<128x32xbf16>
    %c3_107 = arith.constant 3 : index
    %c0_108 = arith.constant 0 : index
    %c0_109 = arith.constant 0 : index
    %139 = vector.load %arg5[%c3_107, %c0_108, %c0_109] : memref<9x32x64xbf16, #tpu.memory_space<vmem>>, vector<1x32x64xbf16>
    %140 = vector.shape_cast %139 : vector<1x32x64xbf16> to vector<32x64xbf16>
    %cst_110 = arith.constant dense<0.000000e+00> : vector<128x64xf32>
    %141 = tpu.matmul %138, %140, %cst_110 {dimension_numbers = #tpu.dot_dimension_numbers<[1], [0], [0], [1], [0, 0, 1, 1], [], []>} : vector<128x32xbf16>, vector<32x64xbf16>, vector<128x64xf32> -> vector<128x64xf32>
    %142 = arith.addf %137, %141 : vector<128x64xf32>
    %c17 = arith.constant 17 : index
    %c0_111 = arith.constant 0 : index
    %143 = vector.load %arg17[%c17, %c0_111] : memref<176x32xbf16, #tpu.memory_space<vmem>>, vector<128x32xbf16>
    %c4_112 = arith.constant 4 : index
    %c0_113 = arith.constant 0 : index
    %c0_114 = arith.constant 0 : index
    %144 = vector.load %arg5[%c4_112, %c0_113, %c0_114] : memref<9x32x64xbf16, #tpu.memory_space<vmem>>, vector<1x32x64xbf16>
    %145 = vector.shape_cast %144 : vector<1x32x64xbf16> to vector<32x64xbf16>
    %cst_115 = arith.constant dense<0.000000e+00> : vector<128x64xf32>
    %146 = tpu.matmul %143, %145, %cst_115 {dimension_numbers = #tpu.dot_dimension_numbers<[1], [0], [0], [1], [0, 0, 1, 1], [], []>} : vector<128x32xbf16>, vector<32x64xbf16>, vector<128x64xf32> -> vector<128x64xf32>
    %147 = arith.addf %142, %146 : vector<128x64xf32>
    %c18 = arith.constant 18 : index
    %c0_116 = arith.constant 0 : index
    %148 = vector.load %arg17[%c18, %c0_116] : memref<176x32xbf16, #tpu.memory_space<vmem>>, vector<128x32xbf16>
    %c5_117 = arith.constant 5 : index
    %c0_118 = arith.constant 0 : index
    %c0_119 = arith.constant 0 : index
    %149 = vector.load %arg5[%c5_117, %c0_118, %c0_119] : memref<9x32x64xbf16, #tpu.memory_space<vmem>>, vector<1x32x64xbf16>
    %150 = vector.shape_cast %149 : vector<1x32x64xbf16> to vector<32x64xbf16>
    %cst_120 = arith.constant dense<0.000000e+00> : vector<128x64xf32>
    %151 = tpu.matmul %148, %150, %cst_120 {dimension_numbers = #tpu.dot_dimension_numbers<[1], [0], [0], [1], [0, 0, 1, 1], [], []>} : vector<128x32xbf16>, vector<32x64xbf16>, vector<128x64xf32> -> vector<128x64xf32>
    %152 = arith.addf %147, %151 : vector<128x64xf32>
    %c32 = arith.constant 32 : index
    %c0_121 = arith.constant 0 : index
    %153 = vector.load %arg17[%c32, %c0_121] : memref<176x32xbf16, #tpu.memory_space<vmem>>, vector<128x32xbf16>
    %c6_122 = arith.constant 6 : index
    %c0_123 = arith.constant 0 : index
    %c0_124 = arith.constant 0 : index
    %154 = vector.load %arg5[%c6_122, %c0_123, %c0_124] : memref<9x32x64xbf16, #tpu.memory_space<vmem>>, vector<1x32x64xbf16>
    %155 = vector.shape_cast %154 : vector<1x32x64xbf16> to vector<32x64xbf16>
    %cst_125 = arith.constant dense<0.000000e+00> : vector<128x64xf32>
    %156 = tpu.matmul %153, %155, %cst_125 {dimension_numbers = #tpu.dot_dimension_numbers<[1], [0], [0], [1], [0, 0, 1, 1], [], []>} : vector<128x32xbf16>, vector<32x64xbf16>, vector<128x64xf32> -> vector<128x64xf32>
    %157 = arith.addf %152, %156 : vector<128x64xf32>
    %c33 = arith.constant 33 : index
    %c0_126 = arith.constant 0 : index
    %158 = vector.load %arg17[%c33, %c0_126] : memref<176x32xbf16, #tpu.memory_space<vmem>>, vector<128x32xbf16>
    %c7_127 = arith.constant 7 : index
    %c0_128 = arith.constant 0 : index
    %c0_129 = arith.constant 0 : index
    %159 = vector.load %arg5[%c7_127, %c0_128, %c0_129] : memref<9x32x64xbf16, #tpu.memory_space<vmem>>, vector<1x32x64xbf16>
    %160 = vector.shape_cast %159 : vector<1x32x64xbf16> to vector<32x64xbf16>
    %cst_130 = arith.constant dense<0.000000e+00> : vector<128x64xf32>
    %161 = tpu.matmul %158, %160, %cst_130 {dimension_numbers = #tpu.dot_dimension_numbers<[1], [0], [0], [1], [0, 0, 1, 1], [], []>} : vector<128x32xbf16>, vector<32x64xbf16>, vector<128x64xf32> -> vector<128x64xf32>
    %162 = arith.addf %157, %161 : vector<128x64xf32>
    %c34 = arith.constant 34 : index
    %c0_131 = arith.constant 0 : index
    %163 = vector.load %arg17[%c34, %c0_131] : memref<176x32xbf16, #tpu.memory_space<vmem>>, vector<128x32xbf16>
    %c8_132 = arith.constant 8 : index
    %c0_133 = arith.constant 0 : index
    %c0_134 = arith.constant 0 : index
    %164 = vector.load %arg5[%c8_132, %c0_133, %c0_134] : memref<9x32x64xbf16, #tpu.memory_space<vmem>>, vector<1x32x64xbf16>
    %165 = vector.shape_cast %164 : vector<1x32x64xbf16> to vector<32x64xbf16>
    %cst_135 = arith.constant dense<0.000000e+00> : vector<128x64xf32>
    %166 = tpu.matmul %163, %165, %cst_135 {dimension_numbers = #tpu.dot_dimension_numbers<[1], [0], [0], [1], [0, 0, 1, 1], [], []>} : vector<128x32xbf16>, vector<32x64xbf16>, vector<128x64xf32> -> vector<128x64xf32>
    %167 = arith.addf %162, %166 : vector<128x64xf32>
    %c0_136 = arith.constant 0 : index
    %c0_137 = arith.constant 0 : index
    %168 = vector.load %arg6[%c0_136, %c0_137] : memref<1x64xf32, #tpu.memory_space<vmem>>, vector<1x64xf32>
    %169 = vector.broadcast %168 : vector<1x64xf32> to vector<128x64xf32>
    %170 = arith.addf %167, %169 : vector<128x64xf32>
    %cst_138 = arith.constant 0.000000e+00 : f32
    %171 = vector.broadcast %cst_138 : f32 to vector<128x64xf32>
    %172 = arith.maximumf %170, %171 : vector<128x64xf32>
    %173 = vector.extract_strided_slice %172 {offsets = [0, 0], sizes = [127, 64], strides = [1, 1]} : vector<128x64xf32> to vector<127x64xf32>
    %174 = vector.extract_strided_slice %172 {offsets = [1, 0], sizes = [127, 64], strides = [1, 1]} : vector<128x64xf32> to vector<127x64xf32>
    %175 = arith.maximumf %173, %174 : vector<127x64xf32>
    %176 = vector.extract_strided_slice %175 {offsets = [0, 0], sizes = [111, 64], strides = [1, 1]} : vector<127x64xf32> to vector<111x64xf32>
    %177 = vector.extract_strided_slice %175 {offsets = [16, 0], sizes = [111, 64], strides = [1, 1]} : vector<127x64xf32> to vector<111x64xf32>
    %178 = arith.maximumf %176, %177 : vector<111x64xf32>
    %c0_139 = arith.constant 0 : index
    %c0_140 = arith.constant 0 : index
    %179 = vector.load %arg7[%c0_139, %c0_140] : memref<56x111xbf16, #tpu.memory_space<vmem>>, vector<56x111xbf16>
    %180 = arith.truncf %178 : vector<111x64xf32> to vector<111x64xbf16>
    %cst_141 = arith.constant dense<0.000000e+00> : vector<56x64xf32>
    %181 = tpu.matmul %179, %180, %cst_141 {dimension_numbers = #tpu.dot_dimension_numbers<[1], [0], [0], [1], [0, 0, 1, 1], [], []>} : vector<56x111xbf16>, vector<111x64xbf16>, vector<56x64xf32> -> vector<56x64xf32>
    %182 = arith.truncf %181 : vector<56x64xf32> to vector<56x64xbf16>
    %c0_142 = arith.constant 0 : index
    %c0_143 = arith.constant 0 : index
    %183 = vector.load %arg18[%c0_142, %c0_143] : memref<56x64xbf16, #tpu.memory_space<vmem>>, vector<56x64xbf16>
    tpu.vector_store %arg18[%c0_142, %c0_143], %182 {strides = array<i32>} : memref<56x64xbf16, #tpu.memory_space<vmem>>, vector<56x64xbf16>,
    %c0_144 = arith.constant 0 : index
    %c0_145 = arith.constant 0 : index
    %184 = vector.load %arg18[%c0_144, %c0_145] : memref<56x64xbf16, #tpu.memory_space<vmem>>, vector<32x64xbf16>
    %c0_146 = arith.constant 0 : index
    %c0_147 = arith.constant 0 : index
    %c0_148 = arith.constant 0 : index
    %185 = vector.load %arg8[%c0_146, %c0_147, %c0_148] : memref<9x64x128xbf16, #tpu.memory_space<vmem>>, vector<1x64x128xbf16>
    %186 = vector.shape_cast %185 : vector<1x64x128xbf16> to vector<64x128xbf16>
    %cst_149 = arith.constant dense<0.000000e+00> : vector<32x128xf32>
    %187 = tpu.matmul %184, %186, %cst_149 {dimension_numbers = #tpu.dot_dimension_numbers<[1], [0], [0], [1], [0, 0, 1, 1], [], []>} : vector<32x64xbf16>, vector<64x128xbf16>, vector<32x128xf32> -> vector<32x128xf32>
    %c1_150 = arith.constant 1 : index
    %c0_151 = arith.constant 0 : index
    %188 = vector.load %arg18[%c1_150, %c0_151] : memref<56x64xbf16, #tpu.memory_space<vmem>>, vector<32x64xbf16>
    %c1_152 = arith.constant 1 : index
    %c0_153 = arith.constant 0 : index
    %c0_154 = arith.constant 0 : index
    %189 = vector.load %arg8[%c1_152, %c0_153, %c0_154] : memref<9x64x128xbf16, #tpu.memory_space<vmem>>, vector<1x64x128xbf16>
    %190 = vector.shape_cast %189 : vector<1x64x128xbf16> to vector<64x128xbf16>
    %cst_155 = arith.constant dense<0.000000e+00> : vector<32x128xf32>
    %191 = tpu.matmul %188, %190, %cst_155 {dimension_numbers = #tpu.dot_dimension_numbers<[1], [0], [0], [1], [0, 0, 1, 1], [], []>} : vector<32x64xbf16>, vector<64x128xbf16>, vector<32x128xf32> -> vector<32x128xf32>
    %192 = arith.addf %187, %191 : vector<32x128xf32>
    %c2_156 = arith.constant 2 : index
    %c0_157 = arith.constant 0 : index
    %193 = vector.load %arg18[%c2_156, %c0_157] : memref<56x64xbf16, #tpu.memory_space<vmem>>, vector<32x64xbf16>
    %c2_158 = arith.constant 2 : index
    %c0_159 = arith.constant 0 : index
    %c0_160 = arith.constant 0 : index
    %194 = vector.load %arg8[%c2_158, %c0_159, %c0_160] : memref<9x64x128xbf16, #tpu.memory_space<vmem>>, vector<1x64x128xbf16>
    %195 = vector.shape_cast %194 : vector<1x64x128xbf16> to vector<64x128xbf16>
    %cst_161 = arith.constant dense<0.000000e+00> : vector<32x128xf32>
    %196 = tpu.matmul %193, %195, %cst_161 {dimension_numbers = #tpu.dot_dimension_numbers<[1], [0], [0], [1], [0, 0, 1, 1], [], []>} : vector<32x64xbf16>, vector<64x128xbf16>, vector<32x128xf32> -> vector<32x128xf32>
    %197 = arith.addf %192, %196 : vector<32x128xf32>
    %c8_162 = arith.constant 8 : index
    %c0_163 = arith.constant 0 : index
    %198 = vector.load %arg18[%c8_162, %c0_163] : memref<56x64xbf16, #tpu.memory_space<vmem>>, vector<32x64xbf16>
    %c3_164 = arith.constant 3 : index
    %c0_165 = arith.constant 0 : index
    %c0_166 = arith.constant 0 : index
    %199 = vector.load %arg8[%c3_164, %c0_165, %c0_166] : memref<9x64x128xbf16, #tpu.memory_space<vmem>>, vector<1x64x128xbf16>
    %200 = vector.shape_cast %199 : vector<1x64x128xbf16> to vector<64x128xbf16>
    %cst_167 = arith.constant dense<0.000000e+00> : vector<32x128xf32>
    %201 = tpu.matmul %198, %200, %cst_167 {dimension_numbers = #tpu.dot_dimension_numbers<[1], [0], [0], [1], [0, 0, 1, 1], [], []>} : vector<32x64xbf16>, vector<64x128xbf16>, vector<32x128xf32> -> vector<32x128xf32>
    %202 = arith.addf %197, %201 : vector<32x128xf32>
    %c9 = arith.constant 9 : index
    %c0_168 = arith.constant 0 : index
    %203 = vector.load %arg18[%c9, %c0_168] : memref<56x64xbf16, #tpu.memory_space<vmem>>, vector<32x64xbf16>
    %c4_169 = arith.constant 4 : index
    %c0_170 = arith.constant 0 : index
    %c0_171 = arith.constant 0 : index
    %204 = vector.load %arg8[%c4_169, %c0_170, %c0_171] : memref<9x64x128xbf16, #tpu.memory_space<vmem>>, vector<1x64x128xbf16>
    %205 = vector.shape_cast %204 : vector<1x64x128xbf16> to vector<64x128xbf16>
    %cst_172 = arith.constant dense<0.000000e+00> : vector<32x128xf32>
    %206 = tpu.matmul %203, %205, %cst_172 {dimension_numbers = #tpu.dot_dimension_numbers<[1], [0], [0], [1], [0, 0, 1, 1], [], []>} : vector<32x64xbf16>, vector<64x128xbf16>, vector<32x128xf32> -> vector<32x128xf32>
    %207 = arith.addf %202, %206 : vector<32x128xf32>
    %c10 = arith.constant 10 : index
    %c0_173 = arith.constant 0 : index
    %208 = vector.load %arg18[%c10, %c0_173] : memref<56x64xbf16, #tpu.memory_space<vmem>>, vector<32x64xbf16>
    %c5_174 = arith.constant 5 : index
    %c0_175 = arith.constant 0 : index
    %c0_176 = arith.constant 0 : index
    %209 = vector.load %arg8[%c5_174, %c0_175, %c0_176] : memref<9x64x128xbf16, #tpu.memory_space<vmem>>, vector<1x64x128xbf16>
    %210 = vector.shape_cast %209 : vector<1x64x128xbf16> to vector<64x128xbf16>
    %cst_177 = arith.constant dense<0.000000e+00> : vector<32x128xf32>
    %211 = tpu.matmul %208, %210, %cst_177 {dimension_numbers = #tpu.dot_dimension_numbers<[1], [0], [0], [1], [0, 0, 1, 1], [], []>} : vector<32x64xbf16>, vector<64x128xbf16>, vector<32x128xf32> -> vector<32x128xf32>
    %212 = arith.addf %207, %211 : vector<32x128xf32>
    %c16_178 = arith.constant 16 : index
    %c0_179 = arith.constant 0 : index
    %213 = vector.load %arg18[%c16_178, %c0_179] : memref<56x64xbf16, #tpu.memory_space<vmem>>, vector<32x64xbf16>
    %c6_180 = arith.constant 6 : index
    %c0_181 = arith.constant 0 : index
    %c0_182 = arith.constant 0 : index
    %214 = vector.load %arg8[%c6_180, %c0_181, %c0_182] : memref<9x64x128xbf16, #tpu.memory_space<vmem>>, vector<1x64x128xbf16>
    %215 = vector.shape_cast %214 : vector<1x64x128xbf16> to vector<64x128xbf16>
    %cst_183 = arith.constant dense<0.000000e+00> : vector<32x128xf32>
    %216 = tpu.matmul %213, %215, %cst_183 {dimension_numbers = #tpu.dot_dimension_numbers<[1], [0], [0], [1], [0, 0, 1, 1], [], []>} : vector<32x64xbf16>, vector<64x128xbf16>, vector<32x128xf32> -> vector<32x128xf32>
    %217 = arith.addf %212, %216 : vector<32x128xf32>
    %c17_184 = arith.constant 17 : index
    %c0_185 = arith.constant 0 : index
    %218 = vector.load %arg18[%c17_184, %c0_185] : memref<56x64xbf16, #tpu.memory_space<vmem>>, vector<32x64xbf16>
    %c7_186 = arith.constant 7 : index
    %c0_187 = arith.constant 0 : index
    %c0_188 = arith.constant 0 : index
    %219 = vector.load %arg8[%c7_186, %c0_187, %c0_188] : memref<9x64x128xbf16, #tpu.memory_space<vmem>>, vector<1x64x128xbf16>
    %220 = vector.shape_cast %219 : vector<1x64x128xbf16> to vector<64x128xbf16>
    %cst_189 = arith.constant dense<0.000000e+00> : vector<32x128xf32>
    %221 = tpu.matmul %218, %220, %cst_189 {dimension_numbers = #tpu.dot_dimension_numbers<[1], [0], [0], [1], [0, 0, 1, 1], [], []>} : vector<32x64xbf16>, vector<64x128xbf16>, vector<32x128xf32> -> vector<32x128xf32>
    %222 = arith.addf %217, %221 : vector<32x128xf32>
    %c18_190 = arith.constant 18 : index
    %c0_191 = arith.constant 0 : index
    %223 = vector.load %arg18[%c18_190, %c0_191] : memref<56x64xbf16, #tpu.memory_space<vmem>>, vector<32x64xbf16>
    %c8_192 = arith.constant 8 : index
    %c0_193 = arith.constant 0 : index
    %c0_194 = arith.constant 0 : index
    %224 = vector.load %arg8[%c8_192, %c0_193, %c0_194] : memref<9x64x128xbf16, #tpu.memory_space<vmem>>, vector<1x64x128xbf16>
    %225 = vector.shape_cast %224 : vector<1x64x128xbf16> to vector<64x128xbf16>
    %cst_195 = arith.constant dense<0.000000e+00> : vector<32x128xf32>
    %226 = tpu.matmul %223, %225, %cst_195 {dimension_numbers = #tpu.dot_dimension_numbers<[1], [0], [0], [1], [0, 0, 1, 1], [], []>} : vector<32x64xbf16>, vector<64x128xbf16>, vector<32x128xf32> -> vector<32x128xf32>
    %227 = arith.addf %222, %226 : vector<32x128xf32>
    %c0_196 = arith.constant 0 : index
    %c0_197 = arith.constant 0 : index
    %228 = vector.load %arg9[%c0_196, %c0_197] : memref<1x128xf32, #tpu.memory_space<vmem>>, vector<1x128xf32>
    %229 = vector.broadcast %228 : vector<1x128xf32> to vector<32x128xf32>
    %230 = arith.addf %227, %229 : vector<32x128xf32>
    %cst_198 = arith.constant 0.000000e+00 : f32
    %231 = vector.broadcast %cst_198 : f32 to vector<32x128xf32>
    %232 = arith.maximumf %230, %231 : vector<32x128xf32>
    %c0_199 = arith.constant 0 : index
    %c0_200 = arith.constant 0 : index
    %233 = vector.load %arg10[%c0_199, %c0_200] : memref<4x32xbf16, #tpu.memory_space<vmem>>, vector<4x32xbf16>
    %234 = arith.truncf %232 : vector<32x128xf32> to vector<32x128xbf16>
    %cst_201 = arith.constant dense<0.000000e+00> : vector<4x128xf32>
    %235 = tpu.matmul %233, %234, %cst_201 {dimension_numbers = #tpu.dot_dimension_numbers<[1], [0], [0], [1], [0, 0, 1, 1], [], []>} : vector<4x32xbf16>, vector<32x128xbf16>, vector<4x128xf32> -> vector<4x128xf32>
    %c0_202 = arith.constant 0 : index
    %c0_203 = arith.constant 0 : index
    %236 = vector.load %arg12[%c0_202, %c0_203] : memref<1x256xf32, #tpu.memory_space<vmem>>, vector<1x256xf32>
    %237 = vector.extract_strided_slice %235 {offsets = [0, 0], sizes = [1, 128], strides = [1, 1]} : vector<4x128xf32> to vector<1x128xf32>
    %238 = arith.truncf %237 : vector<1x128xf32> to vector<1x128xbf16>
    %c0_204 = arith.constant 0 : index
    %c0_205 = arith.constant 0 : index
    %c0_206 = arith.constant 0 : index
    %239 = vector.load %arg11[%c0_204, %c0_205, %c0_206] : memref<4x128x256xbf16, #tpu.memory_space<vmem>>, vector<1x128x256xbf16>
    %240 = vector.shape_cast %239 : vector<1x128x256xbf16> to vector<128x256xbf16>
    %cst_207 = arith.constant dense<0.000000e+00> : vector<1x256xf32>
    %241 = tpu.matmul %238, %240, %cst_207 {dimension_numbers = #tpu.dot_dimension_numbers<[1], [0], [0], [1], [0, 0, 1, 1], [], []>} : vector<1x128xbf16>, vector<128x256xbf16>, vector<1x256xf32> -> vector<1x256xf32>
    %242 = arith.addf %236, %241 : vector<1x256xf32>
    %243 = vector.extract_strided_slice %235 {offsets = [1, 0], sizes = [1, 128], strides = [1, 1]} : vector<4x128xf32> to vector<1x128xf32>
    %244 = arith.truncf %243 : vector<1x128xf32> to vector<1x128xbf16>
    %c1_208 = arith.constant 1 : index
    %c0_209 = arith.constant 0 : index
    %c0_210 = arith.constant 0 : index
    %245 = vector.load %arg11[%c1_208, %c0_209, %c0_210] : memref<4x128x256xbf16, #tpu.memory_space<vmem>>, vector<1x128x256xbf16>
    %246 = vector.shape_cast %245 : vector<1x128x256xbf16> to vector<128x256xbf16>
    %cst_211 = arith.constant dense<0.000000e+00> : vector<1x256xf32>
    %247 = tpu.matmul %244, %246, %cst_211 {dimension_numbers = #tpu.dot_dimension_numbers<[1], [0], [0], [1], [0, 0, 1, 1], [], []>} : vector<1x128xbf16>, vector<128x256xbf16>, vector<1x256xf32> -> vector<1x256xf32>
    %248 = arith.addf %242, %247 : vector<1x256xf32>
    %249 = vector.extract_strided_slice %235 {offsets = [2, 0], sizes = [1, 128], strides = [1, 1]} : vector<4x128xf32> to vector<1x128xf32>
    %250 = arith.truncf %249 : vector<1x128xf32> to vector<1x128xbf16>
    %c2_212 = arith.constant 2 : index
    %c0_213 = arith.constant 0 : index
    %c0_214 = arith.constant 0 : index
    %251 = vector.load %arg11[%c2_212, %c0_213, %c0_214] : memref<4x128x256xbf16, #tpu.memory_space<vmem>>, vector<1x128x256xbf16>
    %252 = vector.shape_cast %251 : vector<1x128x256xbf16> to vector<128x256xbf16>
    %cst_215 = arith.constant dense<0.000000e+00> : vector<1x256xf32>
    %253 = tpu.matmul %250, %252, %cst_215 {dimension_numbers = #tpu.dot_dimension_numbers<[1], [0], [0], [1], [0, 0, 1, 1], [], []>} : vector<1x128xbf16>, vector<128x256xbf16>, vector<1x256xf32> -> vector<1x256xf32>
    %254 = arith.addf %248, %253 : vector<1x256xf32>
    %255 = vector.extract_strided_slice %235 {offsets = [3, 0], sizes = [1, 128], strides = [1, 1]} : vector<4x128xf32> to vector<1x128xf32>
    %256 = arith.truncf %255 : vector<1x128xf32> to vector<1x128xbf16>
    %c3_216 = arith.constant 3 : index
    %c0_217 = arith.constant 0 : index
    %c0_218 = arith.constant 0 : index
    %257 = vector.load %arg11[%c3_216, %c0_217, %c0_218] : memref<4x128x256xbf16, #tpu.memory_space<vmem>>, vector<1x128x256xbf16>
    %258 = vector.shape_cast %257 : vector<1x128x256xbf16> to vector<128x256xbf16>
    %cst_219 = arith.constant dense<0.000000e+00> : vector<1x256xf32>
    %259 = tpu.matmul %256, %258, %cst_219 {dimension_numbers = #tpu.dot_dimension_numbers<[1], [0], [0], [1], [0, 0, 1, 1], [], []>} : vector<1x128xbf16>, vector<128x256xbf16>, vector<1x256xf32> -> vector<1x256xf32>
    %260 = arith.addf %254, %259 : vector<1x256xf32>
    %cst_220 = arith.constant 0.000000e+00 : f32
    %261 = vector.broadcast %cst_220 : f32 to vector<1x256xf32>
    %262 = arith.maximumf %260, %261 : vector<1x256xf32>
    %263 = arith.truncf %262 : vector<1x256xf32> to vector<1x256xbf16>
    %c0_221 = arith.constant 0 : index
    %c0_222 = arith.constant 0 : index
    %264 = vector.load %arg13[%c0_221, %c0_222] : memref<256x8xbf16, #tpu.memory_space<vmem>>, vector<256x8xbf16>
    %cst_223 = arith.constant dense<0.000000e+00> : vector<1x8xf32>
    %265 = tpu.matmul %263, %264, %cst_223 {dimension_numbers = #tpu.dot_dimension_numbers<[1], [0], [0], [1], [0, 0, 1, 1], [], []>} : vector<1x256xbf16>, vector<256x8xbf16>, vector<1x8xf32> -> vector<1x8xf32>
    %c0_224 = arith.constant 0 : index
    %c0_225 = arith.constant 0 : index
    %266 = vector.load %arg14[%c0_224, %c0_225] : memref<1x8xf32, #tpu.memory_space<vmem>>, vector<1x8xf32>
    %267 = arith.addf %265, %266 : vector<1x8xf32>
    %c0_226 = arith.constant 0 : index
    %c0_227 = arith.constant 0 : index
    %c0_228 = arith.constant 0 : index
    %268 = vector.load %arg15[%c0_226, %c0_227, %c0_228] : memref<1x1x8xf32, #tpu.memory_space<vmem>>, vector<1x1x8xf32>
    %269 = vector.shape_cast %268 : vector<1x1x8xf32> to vector<1x8xf32>
    %270 = vector.shape_cast %267 : vector<1x8xf32> to vector<1x1x8xf32>
    tpu.vector_store %arg15[%c0_226, %c0_227, %c0_228], %270 {strides = array<i32>} : memref<1x1x8xf32, #tpu.memory_space<vmem>>, vector<1x1x8xf32>,
    return
  }
  func.func @transform_0(%arg0: i32) -> (i32, i32, i32) {
    %c0_i32 = arith.constant 0 : i32
    %c0_i32_0 = arith.constant 0 : i32
    %c0_i32_1 = arith.constant 0 : i32
    return %arg0, %c0_i32, %c0_i32_0 : i32, i32, i32
  }
  func.func @transform_1(%arg0: i32) -> (i32, i32, i32) {
    %c0_i32 = arith.constant 0 : i32
    %c0_i32_0 = arith.constant 0 : i32
    %c0_i32_1 = arith.constant 0 : i32
    %c0_i32_2 = arith.constant 0 : i32
    return %c0_i32, %c0_i32_0, %c0_i32_1 : i32, i32, i32
  }
  func.func @transform_2(%arg0: i32) -> (i32, i32) {
    %c0_i32 = arith.constant 0 : i32
    %c0_i32_0 = arith.constant 0 : i32
    %c0_i32_1 = arith.constant 0 : i32
    return %c0_i32, %c0_i32_0 : i32, i32
  }
  func.func @transform_3(%arg0: i32) -> (i32, i32) {
    %c0_i32 = arith.constant 0 : i32
    %c0_i32_0 = arith.constant 0 : i32
    %c0_i32_1 = arith.constant 0 : i32
    return %c0_i32, %c0_i32_0 : i32, i32
  }
  func.func @transform_4(%arg0: i32) -> (i32, i32, i32) {
    %c0_i32 = arith.constant 0 : i32
    %c0_i32_0 = arith.constant 0 : i32
    %c0_i32_1 = arith.constant 0 : i32
    %c0_i32_2 = arith.constant 0 : i32
    return %c0_i32, %c0_i32_0, %c0_i32_1 : i32, i32, i32
  }
  func.func @transform_5(%arg0: i32) -> (i32, i32) {
    %c0_i32 = arith.constant 0 : i32
    %c0_i32_0 = arith.constant 0 : i32
    %c0_i32_1 = arith.constant 0 : i32
    return %c0_i32, %c0_i32_0 : i32, i32
  }
  func.func @transform_6(%arg0: i32) -> (i32, i32) {
    %c0_i32 = arith.constant 0 : i32
    %c0_i32_0 = arith.constant 0 : i32
    %c0_i32_1 = arith.constant 0 : i32
    return %c0_i32, %c0_i32_0 : i32, i32
  }
  func.func @transform_7(%arg0: i32) -> (i32, i32, i32) {
    %c0_i32 = arith.constant 0 : i32
    %c0_i32_0 = arith.constant 0 : i32
    %c0_i32_1 = arith.constant 0 : i32
    %c0_i32_2 = arith.constant 0 : i32
    return %c0_i32, %c0_i32_0, %c0_i32_1 : i32, i32, i32
  }
  func.func @transform_8(%arg0: i32) -> (i32, i32) {
    %c0_i32 = arith.constant 0 : i32
    %c0_i32_0 = arith.constant 0 : i32
    %c0_i32_1 = arith.constant 0 : i32
    return %c0_i32, %c0_i32_0 : i32, i32
  }
  func.func @transform_9(%arg0: i32) -> (i32, i32) {
    %c0_i32 = arith.constant 0 : i32
    %c0_i32_0 = arith.constant 0 : i32
    %c0_i32_1 = arith.constant 0 : i32
    return %c0_i32, %c0_i32_0 : i32, i32
  }
  func.func @transform_10(%arg0: i32) -> (i32, i32, i32) {
    %c0_i32 = arith.constant 0 : i32
    %c0_i32_0 = arith.constant 0 : i32
    %c0_i32_1 = arith.constant 0 : i32
    %c0_i32_2 = arith.constant 0 : i32
    return %c0_i32, %c0_i32_0, %c0_i32_1 : i32, i32, i32
  }
  func.func @transform_11(%arg0: i32) -> (i32, i32) {
    %c0_i32 = arith.constant 0 : i32
    %c0_i32_0 = arith.constant 0 : i32
    %c0_i32_1 = arith.constant 0 : i32
    return %c0_i32, %c0_i32_0 : i32, i32
  }
  func.func @transform_12(%arg0: i32) -> (i32, i32) {
    %c0_i32 = arith.constant 0 : i32
    %c0_i32_0 = arith.constant 0 : i32
    %c0_i32_1 = arith.constant 0 : i32
    return %c0_i32, %c0_i32_0 : i32, i32
  }
  func.func @transform_13(%arg0: i32) -> (i32, i32) {
    %c0_i32 = arith.constant 0 : i32
    %c0_i32_0 = arith.constant 0 : i32
    %c0_i32_1 = arith.constant 0 : i32
    return %c0_i32, %c0_i32_0 : i32, i32
  }
  func.func @transform_14(%arg0: i32) -> (i32, i32, i32) {
    %c0_i32 = arith.constant 0 : i32
    %c0_i32_0 = arith.constant 0 : i32
    %c0_i32_1 = arith.constant 0 : i32
    return %arg0, %c0_i32, %c0_i32_0 : i32, i32, i32
  }
}

</mosaic_0001>

<llo_original>
// kernel: _lambda_.1
$region0: #{_lambda_.1}
  #allocation0 [shape = 'u32[]', space=smem, size = 0x4, offset = 0x4, fixed_abs, tag = 'smem constant byte address 0x4 - core index']
  #allocation1 [shape = 'u32[144,128]{1,0:T(1,128)}', space=vmem, size = 0x12000, scoped, tag = 'internal scratch']
  #allocation2 [shape = 'f32[384,32]{1,0:T(8,128)}', space=vmem, size = 0x30000, scoped, tag = 'scratch operand']
  #allocation3 [shape = 'bf16[176,32]{1,0:T(8,128)(2,1)}', space=vmem, size = 0xb000, scoped, tag = 'scratch operand']
  #allocation4 [shape = 'bf16[56,64]{1,0:T(8,128)(2,1)}', space=vmem, size = 0x3800, scoped, tag = 'scratch operand']
  %s0 = inlined_call_operand.vmem [shape: bf16[2,456,1], index: 0, kind: input, shape index: {}]
  %s1 = inlined_call_operand.vmem [shape: bf16[9,1,32], index: 1, kind: input, shape index: {}]
  %s2 = inlined_call_operand.vmem [shape: f32[1,32], index: 2, kind: input, shape index: {}]
  %s3 = inlined_call_operand.hbm [shape: bf16[176,359], index: 3, kind: input, shape index: {}]
  %s4 = inlined_call_operand.hbm [shape: bf16[9,32,64], index: 4, kind: input, shape index: {}]
  %s5 = inlined_call_operand.vmem [shape: f32[1,64], index: 5, kind: input, shape index: {}]
  %s6 = inlined_call_operand.vmem [shape: bf16[56,111], index: 6, kind: input, shape index: {}]
  %s7 = inlined_call_operand.hbm [shape: bf16[9,64,128], index: 7, kind: input, shape index: {}]
  %s8 = inlined_call_operand.vmem [shape: f32[1,128], index: 8, kind: input, shape index: {}]
  %s9 = inlined_call_operand.vmem [shape: bf16[4,32], index: 9, kind: input, shape index: {}]
  %s10 = inlined_call_operand.vmem [shape: bf16[4,128,256], index: 10, kind: input, shape index: {}]
  %s11 = inlined_call_operand.vmem [shape: f32[1,256], index: 11, kind: input, shape index: {}]
  %s12 = inlined_call_operand.hbm [shape: bf16[256,8], index: 12, kind: input, shape index: {}]
  %s13 = inlined_call_operand.vmem [shape: f32[1,8], index: 13, kind: input, shape index: {}]
  %s14 = inlined_call_operand.hbm [shape: f32[2,1,8], index: 14, kind: output, shape index: {}]
  %s15 = sld [smem:[#allocation0]]
  $region105: #{_lambda_.1} parent=0
    _
  %s17 = ssub.s32 1, %s15
  %s18 = scalar_select 0, %s17, %s15
  $region1: #{_lambda_.1} parent=0
    #allocation5 [shape = 'u8[135168]{0}', space=vmem, size = 0x21000, scoped, tag = 'input window, operand 3, single buffered']
    #allocation6 [shape = 's32[2]{0}', space=sflag, size = 0x8, scoped, tag = 'scoped memory for _lambda_.1']
    #allocation7 [shape = 's32[2]{0}', space=sflag, size = 0x8, scoped, tag = 'scoped memory for _lambda_.1']
    #allocation8 [shape = 'u8[73728]{0}', space=vmem, size = 0x12000, scoped, tag = 'input window, operand 4, single buffered']
    #allocation9 [shape = 's32[1]{0}', space=sflag, size = 0x4, scoped, tag = 'scoped memory for _lambda_.1']
    #allocation10 [shape = 'u8[147456]{0}', space=vmem, size = 0x24000, scoped, tag = 'input window, operand 7, single buffered']
    #allocation11 [shape = 'u8[65536]{0}', space=vmem, size = 0x10000, scoped, tag = 'input window, operand 12, single buffered']
    #allocation12 [shape = 's32[1]{0}', space=sflag, size = 0x4, scoped, tag = 'scoped memory for _lambda_.1']
    #allocation13 [shape = 'u8[1024]{0}', space=vmem, size = 0x400, scoped, tag = 'output window, operand 0']
    %19 = vsyncpa [#allocation6], 0
    %20 = vsyncpa [#allocation9], 0
    %21 = vsyncpa [#allocation12], 0
    %22 = vsyncpa [#allocation7], 0
    %s23 = scalar_lea.sflag [#allocation7], 1
    %24 = vsyncpa %s23, 0
    loop: start=0, step=1, limit=4
    $region2: #{_lambda_.1} parent=1 // loop_pre_header
      _
    $region3: #{_lambda_.1} parent=1 // loop_header
      %s26 = sphi 0, %s30
      %p27 = scmp.ge.s32.totalorder %s26, 4
      %s36 = sphi 0, %s38
      %s39 = sphi 0, %s36
      %s40 = sphi 0, %s39
      %s56 = sphi 0, %s40
      %s60 = sphi 0, %s60
      %s62 = sphi 0, %s60
      %s63 = sphi 0, %s62
      %s77 = sphi 0, %s63
      %s81 = sphi 0, %s81
      %s83 = sphi 0, %s81
      %s84 = sphi 0, %s83
      %s98 = sphi 0, %s84
      %s102 = sphi 0, %s102
      %s104 = sphi 0, %s102
      %s105 = sphi 0, %s104
      %s119 = sphi 0, %s105
      %s123 = sphi 0, %s123
      %s125 = sphi 0, %s123
      %s126 = sphi 0, %s125
      %s140 = sphi 0, %s126
      %s144 = sphi 0, %s144
      %s146 = sphi 0, %s144
      %s147 = sphi 0, %s146
      %s161 = sphi 0, %s147
      %s165 = sphi 0, %s165
      %s167 = sphi 0, %s165
      %s168 = sphi 0, %s167
      %s182 = sphi 0, %s168
      %s186 = sphi 0, %s186
      %s188 = sphi 0, %s186
      %s189 = sphi 0, %s188
      %s203 = sphi 0, %s189
      %s207 = sphi 0, %s207
      %s209 = sphi 0, %s207
      %s210 = sphi 0, %s209
      %s224 = sphi 0, %s210
      %s228 = sphi 0, %s228
      %s230 = sphi 0, %s228
      %s231 = sphi 0, %s230
      %s245 = sphi 0, %s231
      %s249 = sphi 0, %s249
      %s251 = sphi 0, %s249
      %s252 = sphi 0, %s251
      %s266 = sphi 0, %s252
      %s270 = sphi 0, %s270
      %s272 = sphi 0, %s270
      %s273 = sphi 0, %s272
      %s287 = sphi 0, %s273
      %s291 = sphi 0, %s291
      %s293 = sphi 0, %s291
      %s294 = sphi 0, %s293
      %s308 = sphi 0, %s294
      %s312 = sphi 0, %s312
      %s314 = sphi 0, %s312
      %s315 = sphi 0, %s314
      %s329 = sphi 0, %s315
      %s335 = sphi 0, %s337
      %s338 = sphi 0, %s335
      %s339 = sphi 0, %s338
      %s355 = sphi 0, %s339
    $region4: #{_lambda_.1} parent=1 // loop_header_branch
      %29 = sbr.rel (%p27) target = $region8
    $region5: #{_lambda_.1} parent=1 // loop_body
      %s31 = ssub.s32 %s26, 1
      %s32 = ssub.s32 %s26, 2
      %s33 = sadd.s32 %s26, 1
      %s34 = ssub.s32 %s26, %s33
      %p35 = scmp.eq.s32.totalorder %s34, 0
      %s37 = sadd.s32 %s36, 1
      %s38 = scalar_select %p35, %s36, %s37
      %p41 = pneg %p35
      %p42 = scmp.eq.s32.totalorder %s26, 1
      %p43 = por %p41, %p42
      %p44 = scmp.ne.s32.totalorder %s36, %s39
      %p45 = scmp.eq.s32.totalorder %s26, 0
      %p46 = por %p44, %p45
      %p47 = scmp.ne.s32.totalorder %s36, %s39
      %p48 = scmp.eq.s32.totalorder %s31, 1
      %p49 = por %p47, %p48
      %p50 = scmp.ne.s32.totalorder %s39, %s40
      %p51 = scmp.eq.s32.totalorder %s31, 0
      %p52 = por %p50, %p51
      %p53 = scmp.ne.s32.totalorder %s39, %s40
      %p54 = scmp.eq.s32.totalorder %s32, 1
      %p55 = por %p53, %p54
      %p57 = scmp.ne.s32.totalorder %s40, %s56
      %p58 = scmp.eq.s32.totalorder %s32, 0
      %p59 = por %p57, %p58
      %s61 = sadd.s32 %s60, 1
      %p64 = scmp.eq.s32.totalorder %s26, 1
      %p65 = scmp.ne.s32.totalorder %s60, %s62
      %p66 = scmp.eq.s32.totalorder %s26, 0
      %p67 = por %p65, %p66
      %p68 = scmp.ne.s32.totalorder %s60, %s62
      %p69 = scmp.eq.s32.totalorder %s31, 1
      %p70 = por %p68, %p69
      %p71 = scmp.ne.s32.totalorder %s62, %s63
      %p72 = scmp.eq.s32.totalorder %s31, 0
      %p73 = por %p71, %p72
      %p74 = scmp.ne.s32.totalorder %s62, %s63
      %p75 = scmp.eq.s32.totalorder %s32, 1
      %p76 = por %p74, %p75
      %p78 = scmp.ne.s32.totalorder %s63, %s77
      %p79 = scmp.eq.s32.totalorder %s32, 0
      %p80 = por %p78, %p79
      %s82 = sadd.s32 %s81, 1
      %p85 = scmp.eq.s32.totalorder %s26, 1
      %p86 = scmp.ne.s32.totalorder %s81, %s83
      %p87 = scmp.eq.s32.totalorder %s26, 0
      %p88 = por %p86, %p87
      %p89 = scmp.ne.s32.totalorder %s81, %s83
      %p90 = scmp.eq.s32.totalorder %s31, 1
      %p91 = por %p89, %p90
      %p92 = scmp.ne.s32.totalorder %s83, %s84
      %p93 = scmp.eq.s32.totalorder %s31, 0
      %p94 = por %p92, %p93
      %p95 = scmp.ne.s32.totalorder %s83, %s84
      %p96 = scmp.eq.s32.totalorder %s32, 1
      %p97 = por %p95, %p96
      %p99 = scmp.ne.s32.totalorder %s84, %s98
      %p100 = scmp.eq.s32.totalorder %s32, 0
      %p101 = por %p99, %p100
      %s103 = sadd.s32 %s102, 1
      %p106 = scmp.eq.s32.totalorder %s26, 1
      %p107 = scmp.ne.s32.totalorder %s102, %s104
      %p108 = scmp.eq.s32.totalorder %s26, 0
      %p109 = por %p107, %p108
      %p110 = scmp.ne.s32.totalorder %s102, %s104
      %p111 = scmp.eq.s32.totalorder %s31, 1
      %p112 = por %p110, %p111
      %p113 = scmp.ne.s32.totalorder %s104, %s105
      %p114 = scmp.eq.s32.totalorder %s31, 0
      %p115 = por %p113, %p114
      %p116 = scmp.ne.s32.totalorder %s104, %s105
      %p117 = scmp.eq.s32.totalorder %s32, 1
      %p118 = por %p116, %p117
      %p120 = scmp.ne.s32.totalorder %s105, %s119
      %p121 = scmp.eq.s32.totalorder %s32, 0
      %p122 = por %p120, %p121
      %s124 = sadd.s32 %s123, 1
      %p127 = scmp.eq.s32.totalorder %s26, 1
      %p128 = scmp.ne.s32.totalorder %s123, %s125
      %p129 = scmp.eq.s32.totalorder %s26, 0
      %p130 = por %p128, %p129
      %p131 = scmp.ne.s32.totalorder %s123, %s125
      %p132 = scmp.eq.s32.totalorder %s31, 1
      %p133 = por %p131, %p132
      %p134 = scmp.ne.s32.totalorder %s125, %s126
      %p135 = scmp.eq.s32.totalorder %s31, 0
      %p136 = por %p134, %p135
      %p137 = scmp.ne.s32.totalorder %s125, %s126
      %p138 = scmp.eq.s32.totalorder %s32, 1
      %p139 = por %p137, %p138
      %p141 = scmp.ne.s32.totalorder %s126, %s140
      %p142 = scmp.eq.s32.totalorder %s32, 0
      %p143 = por %p141, %p142
      %s145 = sadd.s32 %s144, 1
      %p148 = scmp.eq.s32.totalorder %s26, 1
      %p149 = scmp.ne.s32.totalorder %s144, %s146
      %p150 = scmp.eq.s32.totalorder %s26, 0
      %p151 = por %p149, %p150
      %p152 = scmp.ne.s32.totalorder %s144, %s146
      %p153 = scmp.eq.s32.totalorder %s31, 1
      %p154 = por %p152, %p153
      %p155 = scmp.ne.s32.totalorder %s146, %s147
      %p156 = scmp.eq.s32.totalorder %s31, 0
      %p157 = por %p155, %p156
      %p158 = scmp.ne.s32.totalorder %s146, %s147
      %p159 = scmp.eq.s32.totalorder %s32, 1
      %p160 = por %p158, %p159
      %p162 = scmp.ne.s32.totalorder %s147, %s161
      %p163 = scmp.eq.s32.totalorder %s32, 0
      %p164 = por %p162, %p163
      %s166 = sadd.s32 %s165, 1
      %p169 = scmp.eq.s32.totalorder %s26, 1
      %p170 = scmp.ne.s32.totalorder %s165, %s167
      %p171 = scmp.eq.s32.totalorder %s26, 0
      %p172 = por %p170, %p171
      %p173 = scmp.ne.s32.totalorder %s165, %s167
      %p174 = scmp.eq.s32.totalorder %s31, 1
      %p175 = por %p173, %p174
      %p176 = scmp.ne.s32.totalorder %s167, %s168
      %p177 = scmp.eq.s32.totalorder %s31, 0
      %p178 = por %p176, %p177
      %p179 = scmp.ne.s32.totalorder %s167, %s168
      %p180 = scmp.eq.s32.totalorder %s32, 1
      %p181 = por %p179, %p180
      %p183 = scmp.ne.s32.totalorder %s168, %s182
      %p184 = scmp.eq.s32.totalorder %s32, 0
      %p185 = por %p183, %p184
      %s187 = sadd.s32 %s186, 1
      %p190 = scmp.eq.s32.totalorder %s26, 1
      %p191 = scmp.ne.s32.totalorder %s186, %s188
      %p192 = scmp.eq.s32.totalorder %s26, 0
      %p193 = por %p191, %p192
      %p194 = scmp.ne.s32.totalorder %s186, %s188
      %p195 = scmp.eq.s32.totalorder %s31, 1
      %p196 = por %p194, %p195
      %p197 = scmp.ne.s32.totalorder %s188, %s189
      %p198 = scmp.eq.s32.totalorder %s31, 0
      %p199 = por %p197, %p198
      %p200 = scmp.ne.s32.totalorder %s188, %s189
      %p201 = scmp.eq.s32.totalorder %s32, 1
      %p202 = por %p200, %p201
      %p204 = scmp.ne.s32.totalorder %s189, %s203
      %p205 = scmp.eq.s32.totalorder %s32, 0
      %p206 = por %p204, %p205
      %s208 = sadd.s32 %s207, 1
      %p211 = scmp.eq.s32.totalorder %s26, 1
      %p212 = scmp.ne.s32.totalorder %s207, %s209
      %p213 = scmp.eq.s32.totalorder %s26, 0
      %p214 = por %p212, %p213
      %p215 = scmp.ne.s32.totalorder %s207, %s209
      %p216 = scmp.eq.s32.totalorder %s31, 1
      %p217 = por %p215, %p216
      %p218 = scmp.ne.s32.totalorder %s209, %s210
      %p219 = scmp.eq.s32.totalorder %s31, 0
      %p220 = por %p218, %p219
      %p221 = scmp.ne.s32.totalorder %s209, %s210
      %p222 = scmp.eq.s32.totalorder %s32, 1
      %p223 = por %p221, %p222
      %p225 = scmp.ne.s32.totalorder %s210, %s224
      %p226 = scmp.eq.s32.totalorder %s32, 0
      %p227 = por %p225, %p226
      %s229 = sadd.s32 %s228, 1
      %p232 = scmp.eq.s32.totalorder %s26, 1
      %p233 = scmp.ne.s32.totalorder %s228, %s230
      %p234 = scmp.eq.s32.totalorder %s26, 0
      %p235 = por %p233, %p234
      %p236 = scmp.ne.s32.totalorder %s228, %s230
      %p237 = scmp.eq.s32.totalorder %s31, 1
      %p238 = por %p236, %p237
      %p239 = scmp.ne.s32.totalorder %s230, %s231
      %p240 = scmp.eq.s32.totalorder %s31, 0
      %p241 = por %p239, %p240
      %p242 = scmp.ne.s32.totalorder %s230, %s231
      %p243 = scmp.eq.s32.totalorder %s32, 1
      %p244 = por %p242, %p243
      %p246 = scmp.ne.s32.totalorder %s231, %s245
      %p247 = scmp.eq.s32.totalorder %s32, 0
      %p248 = por %p246, %p247
      %s250 = sadd.s32 %s249, 1
      %p253 = scmp.eq.s32.totalorder %s26, 1
      %p254 = scmp.ne.s32.totalorder %s249, %s251
      %p255 = scmp.eq.s32.totalorder %s26, 0
      %p256 = por %p254, %p255
      %p257 = scmp.ne.s32.totalorder %s249, %s251
      %p258 = scmp.eq.s32.totalorder %s31, 1
      %p259 = por %p257, %p258
      %p260 = scmp.ne.s32.totalorder %s251, %s252
      %p261 = scmp.eq.s32.totalorder %s31, 0
      %p262 = por %p260, %p261
      %p263 = scmp.ne.s32.totalorder %s251, %s252
      %p264 = scmp.eq.s32.totalorder %s32, 1
      %p265 = por %p263, %p264
      %p267 = scmp.ne.s32.totalorder %s252, %s266
      %p268 = scmp.eq.s32.totalorder %s32, 0
      %p269 = por %p267, %p268
      %s271 = sadd.s32 %s270, 1
      %p274 = scmp.eq.s32.totalorder %s26, 1
      %p275 = scmp.ne.s32.totalorder %s270, %s272
      %p276 = scmp.eq.s32.totalorder %s26, 0
      %p277 = por %p275, %p276
      %p278 = scmp.ne.s32.totalorder %s270, %s272
      %p279 = scmp.eq.s32.totalorder %s31, 1
      %p280 = por %p278, %p279
      %p281 = scmp.ne.s32.totalorder %s272, %s273
      %p282 = scmp.eq.s32.totalorder %s31, 0
      %p283 = por %p281, %p282
      %p284 = scmp.ne.s32.totalorder %s272, %s273
      %p285 = scmp.eq.s32.totalorder %s32, 1
      %p286 = por %p284, %p285
      %p288 = scmp.ne.s32.totalorder %s273, %s287
      %p289 = scmp.eq.s32.totalorder %s32, 0
      %p290 = por %p288, %p289
      %s292 = sadd.s32 %s291, 1
      %p295 = scmp.eq.s32.totalorder %s26, 1
      %p296 = scmp.ne.s32.totalorder %s291, %s293
      %p297 = scmp.eq.s32.totalorder %s26, 0
      %p298 = por %p296, %p297
      %p299 = scmp.ne.s32.totalorder %s291, %s293
      %p300 = scmp.eq.s32.totalorder %s31, 1
      %p301 = por %p299, %p300
      %p302 = scmp.ne.s32.totalorder %s293, %s294
      %p303 = scmp.eq.s32.totalorder %s31, 0
      %p304 = por %p302, %p303
      %p305 = scmp.ne.s32.totalorder %s293, %s294
      %p306 = scmp.eq.s32.totalorder %s32, 1
      %p307 = por %p305, %p306
      %p309 = scmp.ne.s32.totalorder %s294, %s308
      %p310 = scmp.eq.s32.totalorder %s32, 0
      %p311 = por %p309, %p310
      %s313 = sadd.s32 %s312, 1
      %p316 = scmp.eq.s32.totalorder %s26, 1
      %p317 = scmp.ne.s32.totalorder %s312, %s314
      %p318 = scmp.eq.s32.totalorder %s26, 0
      %p319 = por %p317, %p318
      %p320 = scmp.ne.s32.totalorder %s312, %s314
      %p321 = scmp.eq.s32.totalorder %s31, 1
      %p322 = por %p320, %p321
      %p323 = scmp.ne.s32.totalorder %s314, %s315
      %p324 = scmp.eq.s32.totalorder %s31, 0
      %p325 = por %p323, %p324
      %p326 = scmp.ne.s32.totalorder %s314, %s315
      %p327 = scmp.eq.s32.totalorder %s32, 1
      %p328 = por %p326, %p327
      %p330 = scmp.ne.s32.totalorder %s315, %s329
      %p331 = scmp.eq.s32.totalorder %s32, 0
      %p332 = por %p330, %p331
      %s333 = ssub.s32 %s26, %s33
      %p334 = scmp.eq.s32.totalorder %s333, 0
      %s336 = sadd.s32 %s335, 1
      %s337 = scalar_select %p334, %s335, %s336
      %p340 = pneg %p334
      %p341 = scmp.eq.s32.totalorder %s26, 1
      %p342 = por %p340, %p341
      %p343 = scmp.ne.s32.totalorder %s335, %s338
      %p344 = scmp.eq.s32.totalorder %s26, 0
      %p345 = por %p343, %p344
      %p346 = scmp.ne.s32.totalorder %s335, %s338
      %p347 = scmp.eq.s32.totalorder %s31, 1
      %p348 = por %p346, %p347
      %p349 = scmp.ne.s32.totalorder %s338, %s339
      %p350 = scmp.eq.s32.totalorder %s31, 0
      %p351 = por %p349, %p350
      %p352 = scmp.ne.s32.totalorder %s338, %s339
      %p353 = scmp.eq.s32.totalorder %s32, 1
      %p354 = por %p352, %p353
      %p356 = scmp.ne.s32.totalorder %s339, %s355
      %p357 = scmp.eq.s32.totalorder %s32, 0
      %p358 = por %p356, %p357
      %p359 = scmp.le.s32.totalorder 1, %s26
      %p360 = scmp.lt.s32.totalorder %s26, 3
      %p361 = pnand %p359, %p360
      %p362 = pneg %p361
      // Predicated region
      $region9: #{_lambda_.1} parent=5 // pred_check
        _
      $region10: #{_lambda_.1} parent=5 // pred_check_branch
        %364 = sbr.rel (%p361) target = $region12
      $region11: #{_lambda_.1} parent=5 // pred_region
        %s365 = ssub.s32 %s26, 1
        // Predicated region
        $region13: #{_lambda_.1} parent=11 // pred_check
          %p366 = pneg %p73
        $region14: #{_lambda_.1} parent=11 // pred_check_branch
          %368 = sbr.rel (%p366) target = $region16
        $region15: #{_lambda_.1} parent=11 // pred_region
          _
        $region16: #{_lambda_.1} parent=11 // pred_fallthru
          _
        // Predicated region
        $region17: #{_lambda_.1} parent=11 // pred_check
          %p369 = pneg %p94
        $region18: #{_lambda_.1} parent=11 // pred_check_branch
          %371 = sbr.rel (%p369) target = $region20
        $region19: #{_lambda_.1} parent=11 // pred_region
          _
        $region20: #{_lambda_.1} parent=11 // pred_fallthru
          _
        // Predicated region
        $region21: #{_lambda_.1} parent=11 // pred_check
          %p372 = pneg %p115
        $region22: #{_lambda_.1} parent=11 // pred_check_branch
          %374 = sbr.rel (%p372) target = $region24
        $region23: #{_lambda_.1} parent=11 // pred_region
          %s376 = ssub.s32 4224, 4224
          %377 = vsyncadd [#allocation6], %s376
          %s378 = sshll.u32 [#allocation5], 4
          %s379 = int_to_ptr.vmem [resolvable:$true] %s378
          %384 = dma.hbm_to_vmem [thread:$0]  %s3, 4224, %s379, [#allocation6], 192, 192, 12
        $region24: #{_lambda_.1} parent=11 // pred_fallthru
          _
        // Predicated region
        $region25: #{_lambda_.1} parent=11 // pred_check
          %p385 = pneg %p136
        $region26: #{_lambda_.1} parent=11 // pred_check_branch
          %387 = sbr.rel (%p385) target = $region28
        $region27: #{_lambda_.1} parent=11 // pred_region
          %s389 = ssub.s32 2304, 2304
          %390 = vsyncadd [#allocation9], %s389
          %s391 = sshll.u32 [#allocation8], 4
          %s392 = int_to_ptr.vmem [resolvable:$true] %s391
          %397 = dma.hbm_to_vmem [thread:$0]  %s4, 2304, %s392, [#allocation9], 64, 64, 4
        $region28: #{_lambda_.1} parent=11 // pred_fallthru
          _
        // Predicated region
        $region29: #{_lambda_.1} parent=11 // pred_check
          %p398 = pneg %p157
        $region30: #{_lambda_.1} parent=11 // pred_check_branch
          %400 = sbr.rel (%p398) target = $region32
        $region31: #{_lambda_.1} parent=11 // pred_region
          _
        $region32: #{_lambda_.1} parent=11 // pred_fallthru
          _
        // Predicated region
        $region33: #{_lambda_.1} parent=11 // pred_check
          %p401 = pneg %p178
        $region34: #{_lambda_.1} parent=11 // pred_check_branch
          %403 = sbr.rel (%p401) target = $region36
        $region35: #{_lambda_.1} parent=11 // pred_region
          _
        $region36: #{_lambda_.1} parent=11 // pred_fallthru
          _
        // Predicated region
        $region37: #{_lambda_.1} parent=11 // pred_check
          %p404 = pneg %p199
        $region38: #{_lambda_.1} parent=11 // pred_check_branch
          %406 = sbr.rel (%p404) target = $region40
        $region39: #{_lambda_.1} parent=11 // pred_region
          %s408 = ssub.s32 4608, 4608
          %409 = vsyncadd [#allocation9], %s408
          %s410 = sshll.u32 [#allocation10], 4
          %s411 = int_to_ptr.vmem [resolvable:$true] %s410
          %416 = dma.hbm_to_vmem [thread:$0]  %s7, 4608, %s411, [#allocation9], 64, 64, 4
        $region40: #{_lambda_.1} parent=11 // pred_fallthru
          _
        // Predicated region
        $region41: #{_lambda_.1} parent=11 // pred_check
          %p417 = pneg %p220
        $region42: #{_lambda_.1} parent=11 // pred_check_branch
          %419 = sbr.rel (%p417) target = $region44
        $region43: #{_lambda_.1} parent=11 // pred_region
          _
        $region44: #{_lambda_.1} parent=11 // pred_fallthru
          _
        // Predicated region
        $region45: #{_lambda_.1} parent=11 // pred_check
          %p420 = pneg %p241
        $region46: #{_lambda_.1} parent=11 // pred_check_branch
          %422 = sbr.rel (%p420) target = $region48
        $region47: #{_lambda_.1} parent=11 // pred_region
          _
        $region48: #{_lambda_.1} parent=11 // pred_fallthru
          _
        // Predicated region
        $region49: #{_lambda_.1} parent=11 // pred_check
          %p423 = pneg %p262
        $region50: #{_lambda_.1} parent=11 // pred_check_branch
          %425 = sbr.rel (%p423) target = $region52
        $region51: #{_lambda_.1} parent=11 // pred_region
          _
        $region52: #{_lambda_.1} parent=11 // pred_fallthru
          _
        // Predicated region
        $region53: #{_lambda_.1} parent=11 // pred_check
          %p426 = pneg %p283
        $region54: #{_lambda_.1} parent=11 // pred_check_branch
          %428 = sbr.rel (%p426) target = $region56
        $region55: #{_lambda_.1} parent=11 // pred_region
          _
        $region56: #{_lambda_.1} parent=11 // pred_fallthru
          _
        // Predicated region
        $region57: #{_lambda_.1} parent=11 // pred_check
          %p429 = pneg %p304
        $region58: #{_lambda_.1} parent=11 // pred_check_branch
          %431 = sbr.rel (%p429) target = $region60
        $region59: #{_lambda_.1} parent=11 // pred_region
          %s433 = ssub.s32 2048, 2048
          %434 = vsyncadd [#allocation12], %s433
          %s435 = sshll.u32 [#allocation11], 4
          %s436 = int_to_ptr.vmem [resolvable:$true] %s435
          %441 = dma.hbm_to_vmem [thread:$0]  %s12, 2048, %s436, [#allocation12], 64, 64, 4
        $region60: #{_lambda_.1} parent=11 // pred_fallthru
          _
        // Predicated region
        $region61: #{_lambda_.1} parent=11 // pred_check
          %p442 = pneg %p325
        $region62: #{_lambda_.1} parent=11 // pred_check_branch
          %444 = sbr.rel (%p442) target = $region64
        $region63: #{_lambda_.1} parent=11 // pred_region
          _
        $region64: #{_lambda_.1} parent=11 // pred_fallthru
          _
      $region12: #{_lambda_.1} parent=5 // pred_fallthru
        _
      %p445 = scmp.lt.s32.totalorder %s26, 2
      // Predicated region
      $region65: #{_lambda_.1} parent=5 // pred_check
        %p446 = pneg %p445
      $region66: #{_lambda_.1} parent=5 // pred_check_branch
        %448 = sbr.rel (%p446) target = $region68
      $region67: #{_lambda_.1} parent=5 // pred_region
        // Predicated region
        $region69: #{_lambda_.1} parent=67 // pred_check
          %p449 = pneg %p46
        $region70: #{_lambda_.1} parent=67 // pred_check_branch
          %451 = sbr.rel (%p449) target = $region72
        $region71: #{_lambda_.1} parent=67 // pred_region
          %p452 = scmp.lt.s32.totalorder %s26, 1
          %s453 = scalar_select %p452, %s26, 1
          %s454 = smul.addr %s453, 57
          %s455 = smul.addr %s454, 4
          %s456 = scalar_lea.vmem %s0, %s455
        $region72: #{_lambda_.1} parent=67 // pred_fallthru
          _
      $region68: #{_lambda_.1} parent=5 // pred_fallthru
        _
      %p457 = scmp.le.s32.totalorder 1, %s26
      %p458 = scmp.lt.s32.totalorder %s26, 3
      %p459 = pnand %p457, %p458
      %p460 = pneg %p459
      // Predicated region
      $region73: #{_lambda_.1} parent=5 // pred_check
        _
      $region74: #{_lambda_.1} parent=5 // pred_check_branch
        %462 = sbr.rel (%p459) target = $region76
      $region75: #{_lambda_.1} parent=5 // pred_region
        %s463 = ssub.s32 %s26, 1
        // Predicated region
        $region77: #{_lambda_.1} parent=75 // pred_check
          %p464 = pneg %p115
        $region78: #{_lambda_.1} parent=75 // pred_check_branch
          %466 = sbr.rel (%p464) target = $region80
        $region79: #{_lambda_.1} parent=75 // pred_region
          %467 = dma.done [#allocation6], 4224
        $region80: #{_lambda_.1} parent=75 // pred_fallthru
          _
        // Predicated region
        $region81: #{_lambda_.1} parent=75 // pred_check
          %p468 = pneg %p136
        $region82: #{_lambda_.1} parent=75 // pred_check_branch
          %470 = sbr.rel (%p468) target = $region84
        $region83: #{_lambda_.1} parent=75 // pred_region
          %471 = dma.done [#allocation9], 2304
        $region84: #{_lambda_.1} parent=75 // pred_fallthru
          _
        // Predicated region
        $region85: #{_lambda_.1} parent=75 // pred_check
          %p472 = pneg %p199
        $region86: #{_lambda_.1} parent=75 // pred_check_branch
          %474 = sbr.rel (%p472) target = $region88
        $region87: #{_lambda_.1} parent=75 // pred_region
          %475 = dma.done [#allocation9], 4608
        $region88: #{_lambda_.1} parent=75 // pred_fallthru
          _
        // Predicated region
        $region89: #{_lambda_.1} parent=75 // pred_check
          %p476 = pneg %p304
        $region90: #{_lambda_.1} parent=75 // pred_check_branch
          %478 = sbr.rel (%p476) target = $region92
        $region91: #{_lambda_.1} parent=75 // pred_region
          %479 = dma.done [#allocation12], 2048
        $region92: #{_lambda_.1} parent=75 // pred_fallthru
          _
        %p480 = scmp.lt.s32.totalorder %s31, 1
        %s481 = scalar_select %p480, %s31, 1
        %s482 = smul.addr %s481, 57
        %s483 = smul.addr %s482, 4
        %s484 = scalar_lea.vmem %s0, %s483
        %p485 = pneg %p52
        %p486 = pneg %p49
        %p487 = pneg %p73
        %p488 = pneg %p70
        %p489 = pneg %p94
        %p490 = pneg %p91
        %p491 = pneg %p115
        %p492 = pneg %p112
        %p493 = pneg %p136
        %p494 = pneg %p133
        %p495 = pneg %p157
        %p496 = pneg %p154
        %p497 = pneg %p178
        %p498 = pneg %p175
        %p499 = pneg %p199
        %p500 = pneg %p196
        %p501 = pneg %p220
        %p502 = pneg %p217
        %p503 = pneg %p241
        %p504 = pneg %p238
        %p505 = pneg %p262
        %p506 = pneg %p259
        %p507 = pneg %p283
        %p508 = pneg %p280
        %p509 = pneg %p304
        %p510 = pneg %p301
        %p511 = pneg %p325
        %p512 = pneg %p322
        %p513 = pneg %p351
        %p514 = pneg %p348
        %s515 = sand.u32 %s338, 1
        %s516 = scalar_lea.sflag [#allocation7], %s515
        %s517 = sand.u32 %s338, 1
        %s518 = scalar_lea.vmem [#allocation13], %s517
        %p519 = scmp.lt.s32.totalorder %s31, 1
        %s520 = scalar_select %p519, %s31, 1
        %s521 = smul.addr %s520, 57
        %s522 = smul.addr %s521, 4
        %s523 = scalar_lea.vmem %s0, %s522
        %v525 = vld [vmem:[%s523] sm:$0xf]
        %v526 = vld [vmem:[%s523 + $0x4] sm:$0xf]
        %v527 = vld [vmem:[%s523 + $0x8] sm:$0xf]
        %v528 = vld [vmem:[%s523 + $0xc] sm:$0xf]
        %v529 = vld [vmem:[%s523 + $0x10] sm:$0xf]
        %v530 = vld [vmem:[%s523 + $0x14] sm:$0xf]
        %v531 = vld [vmem:[%s523 + $0x18] sm:$0xf]
        %v532 = vld [vmem:[%s523 + $0x1c] sm:$0xf]
        %v533 = vld [vmem:[%s523 + $0x20] sm:$0xf]
        %v534 = vld [vmem:[%s523 + $0x24] sm:$0xf]
        %v535 = vld [vmem:[%s523 + $0x28] sm:$0xf]
        %v536 = vld [vmem:[%s523 + $0x2c] sm:$0xf]
        %v537 = vld [vmem:[%s523 + $0x30] sm:$0xf]
        %v538 = vld [vmem:[%s523 + $0x34] sm:$0xf]
        %v539 = vld [vmem:[%s523 + $0x38] sm:$0xf]
        %v540 = vld [vmem:[%s523 + $0x3c] sm:$0xf]
        %v541 = vld [vmem:[%s523 + $0x40] sm:$0xf]
        %v542 = vld [vmem:[%s523 + $0x44] sm:$0xf]
        %v543 = vld [vmem:[%s523 + $0x48] sm:$0xf]
        %v544 = vld [vmem:[%s523 + $0x4c] sm:$0xf]
        %v545 = vld [vmem:[%s523 + $0x50] sm:$0xf]
        %v546 = vld [vmem:[%s523 + $0x54] sm:$0xf]
        %v547 = vld [vmem:[%s523 + $0x58] sm:$0xf]
        %v548 = vld [vmem:[%s523 + $0x5c] sm:$0xf]
        %v549 = vld [vmem:[%s523 + $0x60] sm:$0xf]
        %v550 = vld [vmem:[%s523 + $0x64] sm:$0xf]
        %v551 = vld [vmem:[%s523 + $0x68] sm:$0xf]
        %v552 = vld [vmem:[%s523 + $0x6c] sm:$0xf]
        %v553 = vld [vmem:[%s523 + $0x70] sm:$0xf]
        %v554 = vld [vmem:[%s523 + $0x74] sm:$0xf]
        %v555 = vld [vmem:[%s523 + $0x78] sm:$0xf]
        %v556 = vld [vmem:[%s523 + $0x7c] sm:$0xf]
        %v557 = vld [vmem:[%s523 + $0x80] sm:$0xf]
        %v558 = vld [vmem:[%s523 + $0x84] sm:$0xf]
        %v559 = vld [vmem:[%s523 + $0x88] sm:$0xf]
        %v560 = vld [vmem:[%s523 + $0x8c] sm:$0xf]
        %v561 = vld [vmem:[%s523 + $0x90] sm:$0xf]
        %v562 = vld [vmem:[%s523 + $0x94] sm:$0xf]
        %v563 = vld [vmem:[%s523 + $0x98] sm:$0xf]
        %v564 = vld [vmem:[%s523 + $0x9c] sm:$0xf]
        %v565 = vld [vmem:[%s523 + $0xa0] sm:$0xf]
        %v566 = vld [vmem:[%s523 + $0xa4] sm:$0xf]
        %v567 = vld [vmem:[%s523 + $0xa8] sm:$0xf]
        %v568 = vld [vmem:[%s523 + $0xac] sm:$0xf]
        %v569 = vld [vmem:[%s523 + $0xb0] sm:$0xf]
        %v570 = vld [vmem:[%s523 + $0xb4] sm:$0xf]
        %v571 = vld [vmem:[%s523 + $0xb8] sm:$0xf]
        %v572 = vld [vmem:[%s523 + $0xbc] sm:$0xf]
        %v573 = vunpack.c.l.bf16 %v525
        %v574 = vunpack.c.l.bf16 %v526
        %v575 = vunpack.c.l.bf16 %v527
        %v576 = vunpack.c.l.bf16 %v528
        %v577 = vunpack.c.l.bf16 %v529
        %v578 = vunpack.c.l.bf16 %v530
        %v579 = vunpack.c.l.bf16 %v531
        %v580 = vunpack.c.l.bf16 %v532
        %v581 = vunpack.c.l.bf16 %v533
        %v582 = vunpack.c.l.bf16 %v534
        %v583 = vunpack.c.l.bf16 %v535
        %v584 = vunpack.c.l.bf16 %v536
        %v585 = vunpack.c.l.bf16 %v537
        %v586 = vunpack.c.l.bf16 %v538
        %v587 = vunpack.c.l.bf16 %v539
        %v588 = vunpack.c.l.bf16 %v540
        %v589 = vunpack.c.l.bf16 %v541
        %v590 = vunpack.c.l.bf16 %v542
        %v591 = vunpack.c.l.bf16 %v543
        %v592 = vunpack.c.l.bf16 %v544
        %v593 = vunpack.c.l.bf16 %v545
        %v594 = vunpack.c.l.bf16 %v546
        %v595 = vunpack.c.l.bf16 %v547
        %v596 = vunpack.c.l.bf16 %v548
        %v597 = vunpack.c.l.bf16 %v549
        %v598 = vunpack.c.l.bf16 %v550
        %v599 = vunpack.c.l.bf16 %v551
        %v600 = vunpack.c.l.bf16 %v552
        %v601 = vunpack.c.l.bf16 %v553
        %v602 = vunpack.c.l.bf16 %v554
        %v603 = vunpack.c.l.bf16 %v555
        %v604 = vunpack.c.l.bf16 %v556
        %v605 = vunpack.c.l.bf16 %v557
        %v606 = vunpack.c.l.bf16 %v558
        %v607 = vunpack.c.l.bf16 %v559
        %v608 = vunpack.c.l.bf16 %v560
        %v609 = vunpack.c.l.bf16 %v561
        %v610 = vunpack.c.l.bf16 %v562
        %v611 = vunpack.c.l.bf16 %v563
        %v612 = vunpack.c.l.bf16 %v564
        %v613 = vunpack.c.l.bf16 %v565
        %v614 = vunpack.c.l.bf16 %v566
        %v615 = vunpack.c.l.bf16 %v567
        %v616 = vunpack.c.l.bf16 %v568
        %v617 = vunpack.c.l.bf16 %v569
        %v618 = vunpack.c.l.bf16 %v570
        %v619 = vunpack.c.l.bf16 %v571
        %v620 = vunpack.c.l.bf16 %v572
        %v621 = vld [vmem:[%s1] sm:$0x1]
        %v622 = vunpack.c.l.bf16 %v621
        %624 = vset.pattern.permute.xlu0 0
        %625 = vperm.xlu0 %624, %v573
        %v626 = vpop.permute.xlu0 %625
        %629 = vset.pattern.permute.xlu0 0
        %630 = vperm.xlu0 %629, %v574
        %v631 = vpop.permute.xlu0 %630
        %634 = vset.pattern.permute.xlu0 0
        %635 = vperm.xlu0 %634, %v575
        %v636 = vpop.permute.xlu0 %635
        %639 = vset.pattern.permute.xlu0 0
        %640 = vperm.xlu0 %639, %v576
        %v641 = vpop.permute.xlu0 %640
        %644 = vset.pattern.permute.xlu0 0
        %645 = vperm.xlu0 %644, %v577
        %v646 = vpop.permute.xlu0 %645
        %649 = vset.pattern.permute.xlu0 0
        %650 = vperm.xlu0 %649, %v578
        %v651 = vpop.permute.xlu0 %650
        %654 = vset.pattern.permute.xlu0 0
        %655 = vperm.xlu0 %654, %v579
        %v656 = vpop.permute.xlu0 %655
        %659 = vset.pattern.permute.xlu0 0
        %660 = vperm.xlu0 %659, %v580
        %v661 = vpop.permute.xlu0 %660
        %664 = vset.pattern.permute.xlu0 0
        %665 = vperm.xlu0 %664, %v581
        %v666 = vpop.permute.xlu0 %665
        %669 = vset.pattern.permute.xlu0 0
        %670 = vperm.xlu0 %669, %v582
        %v671 = vpop.permute.xlu0 %670
        %674 = vset.pattern.permute.xlu0 0
        %675 = vperm.xlu0 %674, %v583
        %v676 = vpop.permute.xlu0 %675
        %679 = vset.pattern.permute.xlu0 0
        %680 = vperm.xlu0 %679, %v584
        %v681 = vpop.permute.xlu0 %680
        %684 = vset.pattern.permute.xlu0 0
        %685 = vperm.xlu0 %684, %v585
        %v686 = vpop.permute.xlu0 %685
        %689 = vset.pattern.permute.xlu0 0
        %690 = vperm.xlu0 %689, %v586
        %v691 = vpop.permute.xlu0 %690
        %694 = vset.pattern.permute.xlu0 0
        %695 = vperm.xlu0 %694, %v587
        %v696 = vpop.permute.xlu0 %695
        %699 = vset.pattern.permute.xlu0 0
        %700 = vperm.xlu0 %699, %v588
        %v701 = vpop.permute.xlu0 %700
        %704 = vset.pattern.permute.xlu0 0
        %705 = vperm.xlu0 %704, %v589
        %v706 = vpop.permute.xlu0 %705
        %709 = vset.pattern.permute.xlu0 0
        %710 = vperm.xlu0 %709, %v590
        %v711 = vpop.permute.xlu0 %710
        %714 = vset.pattern.permute.xlu0 0
        %715 = vperm.xlu0 %714, %v591
        %v716 = vpop.permute.xlu0 %715
        %719 = vset.pattern.permute.xlu0 0
        %720 = vperm.xlu0 %719, %v592
        %v721 = vpop.permute.xlu0 %720
        %724 = vset.pattern.permute.xlu0 0
        %725 = vperm.xlu0 %724, %v593
        %v726 = vpop.permute.xlu0 %725
        %729 = vset.pattern.permute.xlu0 0
        %730 = vperm.xlu0 %729, %v594
        %v731 = vpop.permute.xlu0 %730
        %734 = vset.pattern.permute.xlu0 0
        %735 = vperm.xlu0 %734, %v595
        %v736 = vpop.permute.xlu0 %735
        %739 = vset.pattern.permute.xlu0 0
        %740 = vperm.xlu0 %739, %v596
        %v741 = vpop.permute.xlu0 %740
        %744 = vset.pattern.permute.xlu0 0
        %745 = vperm.xlu0 %744, %v597
        %v746 = vpop.permute.xlu0 %745
        %749 = vset.pattern.permute.xlu0 0
        %750 = vperm.xlu0 %749, %v598
        %v751 = vpop.permute.xlu0 %750
        %754 = vset.pattern.permute.xlu0 0
        %755 = vperm.xlu0 %754, %v599
        %v756 = vpop.permute.xlu0 %755
        %759 = vset.pattern.permute.xlu0 0
        %760 = vperm.xlu0 %759, %v600
        %v761 = vpop.permute.xlu0 %760
        %764 = vset.pattern.permute.xlu0 0
        %765 = vperm.xlu0 %764, %v601
        %v766 = vpop.permute.xlu0 %765
        %769 = vset.pattern.permute.xlu0 0
        %770 = vperm.xlu0 %769, %v602
        %v771 = vpop.permute.xlu0 %770
        %774 = vset.pattern.permute.xlu0 0
        %775 = vperm.xlu0 %774, %v603
        %v776 = vpop.permute.xlu0 %775
        %779 = vset.pattern.permute.xlu0 0
        %780 = vperm.xlu0 %779, %v604
        %v781 = vpop.permute.xlu0 %780
        %784 = vset.pattern.permute.xlu0 0
        %785 = vperm.xlu0 %784, %v605
        %v786 = vpop.permute.xlu0 %785
        %789 = vset.pattern.permute.xlu0 0
        %790 = vperm.xlu0 %789, %v606
        %v791 = vpop.permute.xlu0 %790
        %794 = vset.pattern.permute.xlu0 0
        %795 = vperm.xlu0 %794, %v607
        %v796 = vpop.permute.xlu0 %795
        %799 = vset.pattern.permute.xlu0 0
        %800 = vperm.xlu0 %799, %v608
        %v801 = vpop.permute.xlu0 %800
        %804 = vset.pattern.permute.xlu0 0
        %805 = vperm.xlu0 %804, %v609
        %v806 = vpop.permute.xlu0 %805
        %809 = vset.pattern.permute.xlu0 0
        %810 = vperm.xlu0 %809, %v610
        %v811 = vpop.permute.xlu0 %810
        %814 = vset.pattern.permute.xlu0 0
        %815 = vperm.xlu0 %814, %v611
        %v816 = vpop.permute.xlu0 %815
        %819 = vset.pattern.permute.xlu0 0
        %820 = vperm.xlu0 %819, %v612
        %v821 = vpop.permute.xlu0 %820
        %824 = vset.pattern.permute.xlu0 0
        %825 = vperm.xlu0 %824, %v613
        %v826 = vpop.permute.xlu0 %825
        %829 = vset.pattern.permute.xlu0 0
        %830 = vperm.xlu0 %829, %v614
        %v831 = vpop.permute.xlu0 %830
        %834 = vset.pattern.permute.xlu0 0
        %835 = vperm.xlu0 %834, %v615
        %v836 = vpop.permute.xlu0 %835
        %839 = vset.pattern.permute.xlu0 0
        %840 = vperm.xlu0 %839, %v616
        %v841 = vpop.permute.xlu0 %840
        %844 = vset.pattern.permute.xlu0 0
        %845 = vperm.xlu0 %844, %v617
        %v846 = vpop.permute.xlu0 %845
        %849 = vset.pattern.permute.xlu0 0
        %850 = vperm.xlu0 %849, %v618
        %v851 = vpop.permute.xlu0 %850
        %854 = vset.pattern.permute.xlu0 0
        %855 = vperm.xlu0 %854, %v619
        %v856 = vpop.permute.xlu0 %855
        %859 = vset.pattern.permute.xlu0 0
        %860 = vperm.xlu0 %859, %v620
        %v861 = vpop.permute.xlu0 %860
        %v863 = vlaneseq
        %v864 = vshrl.u32 %v863, 7
        %v865 = vsub.s32 0, %v864
        %v866 = vrot.slane %v622, %v865
        %v867 = vmul.f32 %v626, %v866
        %v868 = vmul.f32 %v631, %v866
        %v869 = vmul.f32 %v636, %v866
        %v870 = vmul.f32 %v641, %v866
        %v871 = vmul.f32 %v646, %v866
        %v872 = vmul.f32 %v651, %v866
        %v873 = vmul.f32 %v656, %v866
        %v874 = vmul.f32 %v661, %v866
        %v875 = vmul.f32 %v666, %v866
        %v876 = vmul.f32 %v671, %v866
        %v877 = vmul.f32 %v676, %v866
        %v878 = vmul.f32 %v681, %v866
        %v879 = vmul.f32 %v686, %v866
        %v880 = vmul.f32 %v691, %v866
        %v881 = vmul.f32 %v696, %v866
        %v882 = vmul.f32 %v701, %v866
        %v883 = vmul.f32 %v706, %v866
        %v884 = vmul.f32 %v711, %v866
        %v885 = vmul.f32 %v716, %v866
        %v886 = vmul.f32 %v721, %v866
        %v887 = vmul.f32 %v726, %v866
        %v888 = vmul.f32 %v731, %v866
        %v889 = vmul.f32 %v736, %v866
        %v890 = vmul.f32 %v741, %v866
        %v891 = vmul.f32 %v746, %v866
        %v892 = vmul.f32 %v751, %v866
        %v893 = vmul.f32 %v756, %v866
        %v894 = vmul.f32 %v761, %v866
        %v895 = vmul.f32 %v766, %v866
        %v896 = vmul.f32 %v771, %v866
        %v897 = vmul.f32 %v776, %v866
        %v898 = vmul.f32 %v781, %v866
        %v899 = vmul.f32 %v786, %v866
        %v900 = vmul.f32 %v791, %v866
        %v901 = vmul.f32 %v796, %v866
        %v902 = vmul.f32 %v801, %v866
        %v903 = vmul.f32 %v806, %v866
        %v904 = vmul.f32 %v811, %v866
        %v905 = vmul.f32 %v816, %v866
        %v906 = vmul.f32 %v821, %v866
        %v907 = vmul.f32 %v826, %v866
        %v908 = vmul.f32 %v831, %v866
        %v909 = vmul.f32 %v836, %v866
        %v910 = vmul.f32 %v841, %v866
        %v911 = vmul.f32 %v846, %v866
        %v912 = vmul.f32 %v851, %v866
        %v913 = vmul.f32 %v856, %v866
        %v914 = vmul.f32 %v861, %v866
        %vm915 = vcmask 261120
        %916 = vst.msk [vmem:[#allocation2] sm:$0xff] %vm915, %v867
        %917 = vst.msk [vmem:[#allocation2 + $0x8] sm:$0xff] %vm915, %v868
        %918 = vst.msk [vmem:[#allocation2 + $0x10] sm:$0xff] %vm915, %v869
        %919 = vst.msk [vmem:[#allocation2 + $0x18] sm:$0xff] %vm915, %v870
        %920 = vst.msk [vmem:[#allocation2 + $0x20] sm:$0xff] %vm915, %v871
        %921 = vst.msk [vmem:[#allocation2 + $0x28] sm:$0xff] %vm915, %v872
        %922 = vst.msk [vmem:[#allocation2 + $0x30] sm:$0xff] %vm915, %v873
        %923 = vst.msk [vmem:[#allocation2 + $0x38] sm:$0xff] %vm915, %v874
        %924 = vst.msk [vmem:[#allocation2 + $0x40] sm:$0xff] %vm915, %v875
        %925 = vst.msk [vmem:[#allocation2 + $0x48] sm:$0xff] %vm915, %v876
        %926 = vst.msk [vmem:[#allocation2 + $0x50] sm:$0xff] %vm915, %v877
        %927 = vst.msk [vmem:[#allocation2 + $0x58] sm:$0xff] %vm915, %v878
        %928 = vst.msk [vmem:[#allocation2 + $0x60] sm:$0xff] %vm915, %v879
        %929 = vst.msk [vmem:[#allocation2 + $0x68] sm:$0xff] %vm915, %v880
        %930 = vst.msk [vmem:[#allocation2 + $0x70] sm:$0xff] %vm915, %v881
        %931 = vst.msk [vmem:[#allocation2 + $0x78] sm:$0xff] %vm915, %v882
        %932 = vst.msk [vmem:[#allocation2 + $0x80] sm:$0xff] %vm915, %v883
        %933 = vst.msk [vmem:[#allocation2 + $0x88] sm:$0xff] %vm915, %v884
        %934 = vst.msk [vmem:[#allocation2 + $0x90] sm:$0xff] %vm915, %v885
        %935 = vst.msk [vmem:[#allocation2 + $0x98] sm:$0xff] %vm915, %v886
        %936 = vst.msk [vmem:[#allocation2 + $0xa0] sm:$0xff] %vm915, %v887
        %937 = vst.msk [vmem:[#allocation2 + $0xa8] sm:$0xff] %vm915, %v888
        %938 = vst.msk [vmem:[#allocation2 + $0xb0] sm:$0xff] %vm915, %v889
        %939 = vst.msk [vmem:[#allocation2 + $0xb8] sm:$0xff] %vm915, %v890
        %940 = vst.msk [vmem:[#allocation2 + $0xc0] sm:$0xff] %vm915, %v891
        %941 = vst.msk [vmem:[#allocation2 + $0xc8] sm:$0xff] %vm915, %v892
        %942 = vst.msk [vmem:[#allocation2 + $0xd0] sm:$0xff] %vm915, %v893
        %943 = vst.msk [vmem:[#allocation2 + $0xd8] sm:$0xff] %vm915, %v894
        %944 = vst.msk [vmem:[#allocation2 + $0xe0] sm:$0xff] %vm915, %v895
        %945 = vst.msk [vmem:[#allocation2 + $0xe8] sm:$0xff] %vm915, %v896
        %946 = vst.msk [vmem:[#allocation2 + $0xf0] sm:$0xff] %vm915, %v897
        %947 = vst.msk [vmem:[#allocation2 + $0xf8] sm:$0xff] %vm915, %v898
        %948 = vst.msk [vmem:[#allocation2 + $0x100] sm:$0xff] %vm915, %v899
        %949 = vst.msk [vmem:[#allocation2 + $0x108] sm:$0xff] %vm915, %v900
        %950 = vst.msk [vmem:[#allocation2 + $0x110] sm:$0xff] %vm915, %v901
        %951 = vst.msk [vmem:[#allocation2 + $0x118] sm:$0xff] %vm915, %v902
        %952 = vst.msk [vmem:[#allocation2 + $0x120] sm:$0xff] %vm915, %v903
        %953 = vst.msk [vmem:[#allocation2 + $0x128] sm:$0xff] %vm915, %v904
        %954 = vst.msk [vmem:[#allocation2 + $0x130] sm:$0xff] %vm915, %v905
        %955 = vst.msk [vmem:[#allocation2 + $0x138] sm:$0xff] %vm915, %v906
        %956 = vst.msk [vmem:[#allocation2 + $0x140] sm:$0xff] %vm915, %v907
        %957 = vst.msk [vmem:[#allocation2 + $0x148] sm:$0xff] %vm915, %v908
        %958 = vst.msk [vmem:[#allocation2 + $0x150] sm:$0xff] %vm915, %v909
        %959 = vst.msk [vmem:[#allocation2 + $0x158] sm:$0xff] %vm915, %v910
        %960 = vst.msk [vmem:[#allocation2 + $0x160] sm:$0xff] %vm915, %v911
        %961 = vst.msk [vmem:[#allocation2 + $0x168] sm:$0xff] %vm915, %v912
        %962 = vst.msk [vmem:[#allocation2 + $0x170] sm:$0xff] %vm915, %v913
        %963 = vst.msk [vmem:[#allocation2 + $0x178] sm:$0xff] %vm915, %v914
        %v964 = vld [vmem:[%s523] sm:$0xf]
        %v965 = vld [vmem:[%s523 + $0x4] sm:$0xf]
        %v966 = vld [vmem:[%s523 + $0x8] sm:$0xf]
        %v967 = vld [vmem:[%s523 + $0xc] sm:$0xf]
        %v968 = vld [vmem:[%s523 + $0x10] sm:$0xf]
        %v969 = vld [vmem:[%s523 + $0x14] sm:$0xf]
        %v970 = vld [vmem:[%s523 + $0x18] sm:$0xf]
        %v971 = vld [vmem:[%s523 + $0x1c] sm:$0xf]
        %v972 = vld [vmem:[%s523 + $0x20] sm:$0xf]
        %v973 = vld [vmem:[%s523 + $0x24] sm:$0xf]
        %v974 = vld [vmem:[%s523 + $0x28] sm:$0xf]
        %v975 = vld [vmem:[%s523 + $0x2c] sm:$0xf]
        %v976 = vld [vmem:[%s523 + $0x30] sm:$0xf]
        %v977 = vld [vmem:[%s523 + $0x34] sm:$0xf]
        %v978 = vld [vmem:[%s523 + $0x38] sm:$0xf]
        %v979 = vld [vmem:[%s523 + $0x3c] sm:$0xf]
        %v980 = vld [vmem:[%s523 + $0x40] sm:$0xf]
        %v981 = vld [vmem:[%s523 + $0x44] sm:$0xf]
        %v982 = vld [vmem:[%s523 + $0x48] sm:$0xf]
        %v983 = vld [vmem:[%s523 + $0x4c] sm:$0xf]
        %v984 = vld [vmem:[%s523 + $0x50] sm:$0xf]
        %v985 = vld [vmem:[%s523 + $0x54] sm:$0xf]
        %v986 = vld [vmem:[%s523 + $0x58] sm:$0xf]
        %v987 = vld [vmem:[%s523 + $0x5c] sm:$0xf]
        %v988 = vld [vmem:[%s523 + $0x60] sm:$0xf]
        %v989 = vld [vmem:[%s523 + $0x64] sm:$0xf]
        %v990 = vld [vmem:[%s523 + $0x68] sm:$0xf]
        %v991 = vld [vmem:[%s523 + $0x6c] sm:$0xf]
        %v992 = vld [vmem:[%s523 + $0x70] sm:$0xf]
        %v993 = vld [vmem:[%s523 + $0x74] sm:$0xf]
        %v994 = vld [vmem:[%s523 + $0x78] sm:$0xf]
        %v995 = vld [vmem:[%s523 + $0x7c] sm:$0xf]
        %v996 = vld [vmem:[%s523 + $0x80] sm:$0xf]
        %v997 = vld [vmem:[%s523 + $0x84] sm:$0xf]
        %v998 = vld [vmem:[%s523 + $0x88] sm:$0xf]
        %v999 = vld [vmem:[%s523 + $0x8c] sm:$0xf]
        %v1000 = vld [vmem:[%s523 + $0x90] sm:$0xf]
        %v1001 = vld [vmem:[%s523 + $0x94] sm:$0xf]
        %v1002 = vld [vmem:[%s523 + $0x98] sm:$0xf]
        %v1003 = vld [vmem:[%s523 + $0x9c] sm:$0xf]
        %v1004 = vld [vmem:[%s523 + $0xa0] sm:$0xf]
        %v1005 = vld [vmem:[%s523 + $0xa4] sm:$0xf]
        %v1006 = vld [vmem:[%s523 + $0xa8] sm:$0xf]
        %v1007 = vld [vmem:[%s523 + $0xac] sm:$0xf]
        %v1008 = vld [vmem:[%s523 + $0xb0] sm:$0xf]
        %v1009 = vld [vmem:[%s523 + $0xb4] sm:$0xf]
        %v1010 = vld [vmem:[%s523 + $0xb8] sm:$0xf]
        %v1011 = vld [vmem:[%s523 + $0xbc] sm:$0xf]
        %v1012 = vld [vmem:[%s523 + $0xc0] sm:$0x1]
        %v1013 = vunpack.c.l.bf16 %v964
        %v1014 = vunpack.c.l.bf16 %v965
        %v1015 = vunpack.c.l.bf16 %v966
        %v1016 = vunpack.c.l.bf16 %v967
        %v1017 = vunpack.c.l.bf16 %v968
        %v1018 = vunpack.c.l.bf16 %v969
        %v1019 = vunpack.c.l.bf16 %v970
        %v1020 = vunpack.c.l.bf16 %v971
        %v1021 = vunpack.c.l.bf16 %v972
        %v1022 = vunpack.c.l.bf16 %v973
        %v1023 = vunpack.c.l.bf16 %v974
        %v1024 = vunpack.c.l.bf16 %v975
        %v1025 = vunpack.c.l.bf16 %v976
        %v1026 = vunpack.c.l.bf16 %v977
        %v1027 = vunpack.c.l.bf16 %v978
        %v1028 = vunpack.c.l.bf16 %v979
        %v1029 = vunpack.c.l.bf16 %v980
        %v1030 = vunpack.c.l.bf16 %v981
        %v1031 = vunpack.c.l.bf16 %v982
        %v1032 = vunpack.c.l.bf16 %v983
        %v1033 = vunpack.c.l.bf16 %v984
        %v1034 = vunpack.c.l.bf16 %v985
        %v1035 = vunpack.c.l.bf16 %v986
        %v1036 = vunpack.c.l.bf16 %v987
        %v1037 = vunpack.c.l.bf16 %v988
        %v1038 = vunpack.c.l.bf16 %v989
        %v1039 = vunpack.c.l.bf16 %v990
        %v1040 = vunpack.c.l.bf16 %v991
        %v1041 = vunpack.c.l.bf16 %v992
        %v1042 = vunpack.c.l.bf16 %v993
        %v1043 = vunpack.c.l.bf16 %v994
        %v1044 = vunpack.c.l.bf16 %v995
        %v1045 = vunpack.c.l.bf16 %v996
        %v1046 = vunpack.c.l.bf16 %v997
        %v1047 = vunpack.c.l.bf16 %v998
        %v1048 = vunpack.c.l.bf16 %v999
        %v1049 = vunpack.c.l.bf16 %v1000
        %v1050 = vunpack.c.l.bf16 %v1001
        %v1051 = vunpack.c.l.bf16 %v1002
        %v1052 = vunpack.c.l.bf16 %v1003
        %v1053 = vunpack.c.l.bf16 %v1004
        %v1054 = vunpack.c.l.bf16 %v1005
        %v1055 = vunpack.c.l.bf16 %v1006
        %v1056 = vunpack.c.l.bf16 %v1007
        %v1057 = vunpack.c.l.bf16 %v1008
        %v1058 = vunpack.c.l.bf16 %v1009
        %v1059 = vunpack.c.l.bf16 %v1010
        %v1060 = vunpack.c.l.bf16 %v1011
        %v1061 = vunpack.c.l.bf16 %v1012
        %s1062 = scalar_lea.vmem %s1, 1
        %v1063 = vld [vmem:[%s1062] sm:$0x1]
        %v1064 = vunpack.c.l.bf16 %v1063
        %1066 = vset.pattern.permute.xlu0 0
        %1067 = vperm.xlu0 %1066, %v1013
        %v1068 = vpop.permute.xlu0 %1067
        %1071 = vset.pattern.permute.xlu0 0
        %1072 = vperm.xlu0 %1071, %v1014
        %v1073 = vpop.permute.xlu0 %1072
        %1076 = vset.pattern.permute.xlu0 0
        %1077 = vperm.xlu0 %1076, %v1015
        %v1078 = vpop.permute.xlu0 %1077
        %1081 = vset.pattern.permute.xlu0 0
        %1082 = vperm.xlu0 %1081, %v1016
        %v1083 = vpop.permute.xlu0 %1082
        %1086 = vset.pattern.permute.xlu0 0
        %1087 = vperm.xlu0 %1086, %v1017
        %v1088 = vpop.permute.xlu0 %1087
        %1091 = vset.pattern.permute.xlu0 0
        %1092 = vperm.xlu0 %1091, %v1018
        %v1093 = vpop.permute.xlu0 %1092
        %1096 = vset.pattern.permute.xlu0 0
        %1097 = vperm.xlu0 %1096, %v1019
        %v1098 = vpop.permute.xlu0 %1097
        %1101 = vset.pattern.permute.xlu0 0
        %1102 = vperm.xlu0 %1101, %v1020
        %v1103 = vpop.permute.xlu0 %1102
        %1106 = vset.pattern.permute.xlu0 0
        %1107 = vperm.xlu0 %1106, %v1021
        %v1108 = vpop.permute.xlu0 %1107
        %1111 = vset.pattern.permute.xlu0 0
        %1112 = vperm.xlu0 %1111, %v1022
        %v1113 = vpop.permute.xlu0 %1112
        %1116 = vset.pattern.permute.xlu0 0
        %1117 = vperm.xlu0 %1116, %v1023
        %v1118 = vpop.permute.xlu0 %1117
        %1121 = vset.pattern.permute.xlu0 0
        %1122 = vperm.xlu0 %1121, %v1024
        %v1123 = vpop.permute.xlu0 %1122
        %1126 = vset.pattern.permute.xlu0 0
        %1127 = vperm.xlu0 %1126, %v1025
        %v1128 = vpop.permute.xlu0 %1127
        %1131 = vset.pattern.permute.xlu0 0
        %1132 = vperm.xlu0 %1131, %v1026
        %v1133 = vpop.permute.xlu0 %1132
        %1136 = vset.pattern.permute.xlu0 0
        %1137 = vperm.xlu0 %1136, %v1027
        %v1138 = vpop.permute.xlu0 %1137
        %1141 = vset.pattern.permute.xlu0 0
        %1142 = vperm.xlu0 %1141, %v1028
        %v1143 = vpop.permute.xlu0 %1142
        %1146 = vset.pattern.permute.xlu0 0
        %1147 = vperm.xlu0 %1146, %v1029
        %v1148 = vpop.permute.xlu0 %1147
        %1151 = vset.pattern.permute.xlu0 0
        %1152 = vperm.xlu0 %1151, %v1030
        %v1153 = vpop.permute.xlu0 %1152
        %1156 = vset.pattern.permute.xlu0 0
        %1157 = vperm.xlu0 %1156, %v1031
        %v1158 = vpop.permute.xlu0 %1157
        %1161 = vset.pattern.permute.xlu0 0
        %1162 = vperm.xlu0 %1161, %v1032
        %v1163 = vpop.permute.xlu0 %1162
        %1166 = vset.pattern.permute.xlu0 0
        %1167 = vperm.xlu0 %1166, %v1033
        %v1168 = vpop.permute.xlu0 %1167
        %1171 = vset.pattern.permute.xlu0 0
        %1172 = vperm.xlu0 %1171, %v1034
        %v1173 = vpop.permute.xlu0 %1172
        %1176 = vset.pattern.permute.xlu0 0
        %1177 = vperm.xlu0 %1176, %v1035
        %v1178 = vpop.permute.xlu0 %1177
        %1181 = vset.pattern.permute.xlu0 0
        %1182 = vperm.xlu0 %1181, %v1036
        %v1183 = vpop.permute.xlu0 %1182
        %1186 = vset.pattern.permute.xlu0 0
        %1187 = vperm.xlu0 %1186, %v1037
        %v1188 = vpop.permute.xlu0 %1187
        %1191 = vset.pattern.permute.xlu0 0
        %1192 = vperm.xlu0 %1191, %v1038
        %v1193 = vpop.permute.xlu0 %1192
        %1196 = vset.pattern.permute.xlu0 0
        %1197 = vperm.xlu0 %1196, %v1039
        %v1198 = vpop.permute.xlu0 %1197
        %1201 = vset.pattern.permute.xlu0 0
        %1202 = vperm.xlu0 %1201, %v1040
        %v1203 = vpop.permute.xlu0 %1202
        %1206 = vset.pattern.permute.xlu0 0
        %1207 = vperm.xlu0 %1206, %v1041
        %v1208 = vpop.permute.xlu0 %1207
        %1211 = vset.pattern.permute.xlu0 0
        %1212 = vperm.xlu0 %1211, %v1042
        %v1213 = vpop.permute.xlu0 %1212
        %1216 = vset.pattern.permute.xlu0 0
        %1217 = vperm.xlu0 %1216, %v1043
        %v1218 = vpop.permute.xlu0 %1217
        %1221 = vset.pattern.permute.xlu0 0
        %1222 = vperm.xlu0 %1221, %v1044
        %v1223 = vpop.permute.xlu0 %1222
        %1226 = vset.pattern.permute.xlu0 0
        %1227 = vperm.xlu0 %1226, %v1045
        %v1228 = vpop.permute.xlu0 %1227
        %1231 = vset.pattern.permute.xlu0 0
        %1232 = vperm.xlu0 %1231, %v1046
        %v1233 = vpop.permute.xlu0 %1232
        %1236 = vset.pattern.permute.xlu0 0
        %1237 = vperm.xlu0 %1236, %v1047
        %v1238 = vpop.permute.xlu0 %1237
        %1241 = vset.pattern.permute.xlu0 0
        %1242 = vperm.xlu0 %1241, %v1048
        %v1243 = vpop.permute.xlu0 %1242
        %1246 = vset.pattern.permute.xlu0 0
        %1247 = vperm.xlu0 %1246, %v1049
        %v1248 = vpop.permute.xlu0 %1247
        %1251 = vset.pattern.permute.xlu0 0
        %1252 = vperm.xlu0 %1251, %v1050
        %v1253 = vpop.permute.xlu0 %1252
        %1256 = vset.pattern.permute.xlu0 0
        %1257 = vperm.xlu0 %1256, %v1051
        %v1258 = vpop.permute.xlu0 %1257
        %1261 = vset.pattern.permute.xlu0 0
        %1262 = vperm.xlu0 %1261, %v1052
        %v1263 = vpop.permute.xlu0 %1262
        %1266 = vset.pattern.permute.xlu0 0
        %1267 = vperm.xlu0 %1266, %v1053
        %v1268 = vpop.permute.xlu0 %1267
        %1271 = vset.pattern.permute.xlu0 0
        %1272 = vperm.xlu0 %1271, %v1054
        %v1273 = vpop.permute.xlu0 %1272
        %1276 = vset.pattern.permute.xlu0 0
        %1277 = vperm.xlu0 %1276, %v1055
        %v1278 = vpop.permute.xlu0 %1277
        %1281 = vset.pattern.permute.xlu0 0
        %1282 = vperm.xlu0 %1281, %v1056
        %v1283 = vpop.permute.xlu0 %1282
        %1286 = vset.pattern.permute.xlu0 0
        %1287 = vperm.xlu0 %1286, %v1057
        %v1288 = vpop.permute.xlu0 %1287
        %1291 = vset.pattern.permute.xlu0 0
        %1292 = vperm.xlu0 %1291, %v1058
        %v1293 = vpop.permute.xlu0 %1292
        %1296 = vset.pattern.permute.xlu0 0
        %1297 = vperm.xlu0 %1296, %v1059
        %v1298 = vpop.permute.xlu0 %1297
        %1301 = vset.pattern.permute.xlu0 0
        %1302 = vperm.xlu0 %1301, %v1060
        %v1303 = vpop.permute.xlu0 %1302
        %1306 = vset.pattern.permute.xlu0 0
        %1307 = vperm.xlu0 %1306, %v1061
        %v1308 = vpop.permute.xlu0 %1307
        %v1310 = vlaneseq
        %v1311 = vshrl.u32 %v1310, 7
        %v1312 = vsub.s32 0, %v1311
        %v1313 = vrot.slane %v1064, %v1312
        %v1314 = vmul.f32 %v1068, %v1313
        %v1315 = vmul.f32 %v1073, %v1313
        %v1316 = vmul.f32 %v1078, %v1313
        %v1317 = vmul.f32 %v1083, %v1313
        %v1318 = vmul.f32 %v1088, %v1313
        %v1319 = vmul.f32 %v1093, %v1313
        %v1320 = vmul.f32 %v1098, %v1313
        %v1321 = vmul.f32 %v1103, %v1313
        %v1322 = vmul.f32 %v1108, %v1313
        %v1323 = vmul.f32 %v1113, %v1313
        %v1324 = vmul.f32 %v1118, %v1313
        %v1325 = vmul.f32 %v1123, %v1313
        %v1326 = vmul.f32 %v1128, %v1313
        %v1327 = vmul.f32 %v1133, %v1313
        %v1328 = vmul.f32 %v1138, %v1313
        %v1329 = vmul.f32 %v1143, %v1313
        %v1330 = vmul.f32 %v1148, %v1313
        %v1331 = vmul.f32 %v1153, %v1313
        %v1332 = vmul.f32 %v1158, %v1313
        %v1333 = vmul.f32 %v1163, %v1313
        %v1334 = vmul.f32 %v1168, %v1313
        %v1335 = vmul.f32 %v1173, %v1313
        %v1336 = vmul.f32 %v1178, %v1313
        %v1337 = vmul.f32 %v1183, %v1313
        %v1338 = vmul.f32 %v1188, %v1313
        %v1339 = vmul.f32 %v1193, %v1313
        %v1340 = vmul.f32 %v1198, %v1313
        %v1341 = vmul.f32 %v1203, %v1313
        %v1342 = vmul.f32 %v1208, %v1313
        %v1343 = vmul.f32 %v1213, %v1313
        %v1344 = vmul.f32 %v1218, %v1313
        %v1345 = vmul.f32 %v1223, %v1313
        %v1346 = vmul.f32 %v1228, %v1313
        %v1347 = vmul.f32 %v1233, %v1313
        %v1348 = vmul.f32 %v1238, %v1313
        %v1349 = vmul.f32 %v1243, %v1313
        %v1350 = vmul.f32 %v1248, %v1313
        %v1351 = vmul.f32 %v1253, %v1313
        %v1352 = vmul.f32 %v1258, %v1313
        %v1353 = vmul.f32 %v1263, %v1313
        %v1354 = vmul.f32 %v1268, %v1313
        %v1355 = vmul.f32 %v1273, %v1313
        %v1356 = vmul.f32 %v1278, %v1313
        %v1357 = vmul.f32 %v1283, %v1313
        %v1358 = vmul.f32 %v1288, %v1313
        %v1359 = vmul.f32 %v1293, %v1313
        %v1360 = vmul.f32 %v1298, %v1313
        %v1361 = vmul.f32 %v1303, %v1313
        %v1362 = vmul.f32 %v1308, %v1313
        %v1363 = vld [vmem:[#allocation2] sm:$0xff]
        %v1364 = vld [vmem:[#allocation2 + $0x8] sm:$0xff]
        %v1365 = vld [vmem:[#allocation2 + $0x10] sm:$0xff]
        %v1366 = vld [vmem:[#allocation2 + $0x18] sm:$0xff]
        %v1367 = vld [vmem:[#allocation2 + $0x20] sm:$0xff]
        %v1368 = vld [vmem:[#allocation2 + $0x28] sm:$0xff]
        %v1369 = vld [vmem:[#allocation2 + $0x30] sm:$0xff]
        %v1370 = vld [vmem:[#allocation2 + $0x38] sm:$0xff]
        %v1371 = vld [vmem:[#allocation2 + $0x40] sm:$0xff]
        %v1372 = vld [vmem:[#allocation2 + $0x48] sm:$0xff]
        %v1373 = vld [vmem:[#allocation2 + $0x50] sm:$0xff]
        %v1374 = vld [vmem:[#allocation2 + $0x58] sm:$0xff]
        %v1375 = vld [vmem:[#allocation2 + $0x60] sm:$0xff]
        %v1376 = vld [vmem:[#allocation2 + $0x68] sm:$0xff]
        %v1377 = vld [vmem:[#allocation2 + $0x70] sm:$0xff]
        %v1378 = vld [vmem:[#allocation2 + $0x78] sm:$0xff]
        %v1379 = vld [vmem:[#allocation2 + $0x80] sm:$0xff]
        %v1380 = vld [vmem:[#allocation2 + $0x88] sm:$0xff]
        %v1381 = vld [vmem:[#allocation2 + $0x90] sm:$0xff]
        %v1382 = vld [vmem:[#allocation2 + $0x98] sm:$0xff]
        %v1383 = vld [vmem:[#allocation2 + $0xa0] sm:$0xff]
        %v1384 = vld [vmem:[#allocation2 + $0xa8] sm:$0xff]
        %v1385 = vld [vmem:[#allocation2 + $0xb0] sm:$0xff]
        %v1386 = vld [vmem:[#allocation2 + $0xb8] sm:$0xff]
        %v1387 = vld [vmem:[#allocation2 + $0xc0] sm:$0xff]
        %v1388 = vld [vmem:[#allocation2 + $0xc8] sm:$0xff]
        %v1389 = vld [vmem:[#allocation2 + $0xd0] sm:$0xff]
        %v1390 = vld [vmem:[#allocation2 + $0xd8] sm:$0xff]
        %v1391 = vld [vmem:[#allocation2 + $0xe0] sm:$0xff]
        %v1392 = vld [vmem:[#allocation2 + $0xe8] sm:$0xff]
        %v1393 = vld [vmem:[#allocation2 + $0xf0] sm:$0xff]
        %v1394 = vld [vmem:[#allocation2 + $0xf8] sm:$0xff]
        %v1395 = vld [vmem:[#allocation2 + $0x100] sm:$0xff]
        %v1396 = vld [vmem:[#allocation2 + $0x108] sm:$0xff]
        %v1397 = vld [vmem:[#allocation2 + $0x110] sm:$0xff]
        %v1398 = vld [vmem:[#allocation2 + $0x118] sm:$0xff]
        %v1399 = vld [vmem:[#allocation2 + $0x120] sm:$0xff]
        %v1400 = vld [vmem:[#allocation2 + $0x128] sm:$0xff]
        %v1401 = vld [vmem:[#allocation2 + $0x130] sm:$0xff]
        %v1402 = vld [vmem:[#allocation2 + $0x138] sm:$0xff]
        %v1403 = vld [vmem:[#allocation2 + $0x140] sm:$0xff]
        %v1404 = vld [vmem:[#allocation2 + $0x148] sm:$0xff]
        %v1405 = vld [vmem:[#allocation2 + $0x150] sm:$0xff]
        %v1406 = vld [vmem:[#allocation2 + $0x158] sm:$0xff]
        %v1407 = vld [vmem:[#allocation2 + $0x160] sm:$0xff]
        %v1408 = vld [vmem:[#allocation2 + $0x168] sm:$0xff]
        %v1409 = vld [vmem:[#allocation2 + $0x170] sm:$0xff]
        %v1410 = vld [vmem:[#allocation2 + $0x178] sm:$0xff]
        %vm1460 = vcmask 1046528
        %v1461 = vrot.slane %v1314, 1
        %v1462 = vrot.slane %v1315, 1
        %v1463 = vsel %vm1460, %v1461, %v1462
        %v1464 = vrot.slane %v1316, 1
        %v1465 = vsel %vm1460, %v1462, %v1464
        %v1466 = vrot.slane %v1317, 1
        %v1467 = vsel %vm1460, %v1464, %v1466
        %v1468 = vrot.slane %v1318, 1
        %v1469 = vsel %vm1460, %v1466, %v1468
        %v1470 = vrot.slane %v1319, 1
        %v1471 = vsel %vm1460, %v1468, %v1470
        %v1472 = vrot.slane %v1320, 1
        %v1473 = vsel %vm1460, %v1470, %v1472
        %v1474 = vrot.slane %v1321, 1
        %v1475 = vsel %vm1460, %v1472, %v1474
        %v1476 = vrot.slane %v1322, 1
        %v1477 = vsel %vm1460, %v1474, %v1476
        %v1478 = vrot.slane %v1323, 1
        %v1479 = vsel %vm1460, %v1476, %v1478
        %v1480 = vrot.slane %v1324, 1
        %v1481 = vsel %vm1460, %v1478, %v1480
        %v1482 = vrot.slane %v1325, 1
        %v1483 = vsel %vm1460, %v1480, %v1482
        %v1484 = vrot.slane %v1326, 1
        %v1485 = vsel %vm1460, %v1482, %v1484
        %v1486 = vrot.slane %v1327, 1
        %v1487 = vsel %vm1460, %v1484, %v1486
        %v1488 = vrot.slane %v1328, 1
        %v1489 = vsel %vm1460, %v1486, %v1488
        %v1490 = vrot.slane %v1329, 1
        %v1491 = vsel %vm1460, %v1488, %v1490
        %v1492 = vrot.slane %v1330, 1
        %v1493 = vsel %vm1460, %v1490, %v1492
        %v1494 = vrot.slane %v1331, 1
        %v1495 = vsel %vm1460, %v1492, %v1494
        %v1496 = vrot.slane %v1332, 1
        %v1497 = vsel %vm1460, %v1494, %v1496
        %v1498 = vrot.slane %v1333, 1
        %v1499 = vsel %vm1460, %v1496, %v1498
        %v1500 = vrot.slane %v1334, 1
        %v1501 = vsel %vm1460, %v1498, %v1500
        %v1502 = vrot.slane %v1335, 1
        %v1503 = vsel %vm1460, %v1500, %v1502
        %v1504 = vrot.slane %v1336, 1
        %v1505 = vsel %vm1460, %v1502, %v1504
        %v1506 = vrot.slane %v1337, 1
        %v1507 = vsel %vm1460, %v1504, %v1506
        %v1508 = vrot.slane %v1338, 1
        %v1509 = vsel %vm1460, %v1506, %v1508
        %v1510 = vrot.slane %v1339, 1
        %v1511 = vsel %vm1460, %v1508, %v1510
        %v1512 = vrot.slane %v1340, 1
        %v1513 = vsel %vm1460, %v1510, %v1512
        %v1514 = vrot.slane %v1341, 1
        %v1515 = vsel %vm1460, %v1512, %v1514
        %v1516 = vrot.slane %v1342, 1
        %v1517 = vsel %vm1460, %v1514, %v1516
        %v1518 = vrot.slane %v1343, 1
        %v1519 = vsel %vm1460, %v1516, %v1518
        %v1520 = vrot.slane %v1344, 1
        %v1521 = vsel %vm1460, %v1518, %v1520
        %v1522 = vrot.slane %v1345, 1
        %v1523 = vsel %vm1460, %v1520, %v1522
        %v1524 = vrot.slane %v1346, 1
        %v1525 = vsel %vm1460, %v1522, %v1524
        %v1526 = vrot.slane %v1347, 1
        %v1527 = vsel %vm1460, %v1524, %v1526
        %v1528 = vrot.slane %v1348, 1
        %v1529 = vsel %vm1460, %v1526, %v1528
        %v1530 = vrot.slane %v1349, 1
        %v1531 = vsel %vm1460, %v1528, %v1530
        %v1532 = vrot.slane %v1350, 1
        %v1533 = vsel %vm1460, %v1530, %v1532
        %v1534 = vrot.slane %v1351, 1
        %v1535 = vsel %vm1460, %v1532, %v1534
        %v1536 = vrot.slane %v1352, 1
        %v1537 = vsel %vm1460, %v1534, %v1536
        %v1538 = vrot.slane %v1353, 1
        %v1539 = vsel %vm1460, %v1536, %v1538
        %v1540 = vrot.slane %v1354, 1
        %v1541 = vsel %vm1460, %v1538, %v1540
        %v1542 = vrot.slane %v1355, 1
        %v1543 = vsel %vm1460, %v1540, %v1542
        %v1544 = vrot.slane %v1356, 1
        %v1545 = vsel %vm1460, %v1542, %v1544
        %v1546 = vrot.slane %v1357, 1
        %v1547 = vsel %vm1460, %v1544, %v1546
        %v1548 = vrot.slane %v1358, 1
        %v1549 = vsel %vm1460, %v1546, %v1548
        %v1550 = vrot.slane %v1359, 1
        %v1551 = vsel %vm1460, %v1548, %v1550
        %v1552 = vrot.slane %v1360, 1
        %v1553 = vsel %vm1460, %v1550, %v1552
        %v1554 = vrot.slane %v1361, 1
        %v1555 = vsel %vm1460, %v1552, %v1554
        %v1556 = vrot.slane %v1362, 1
        %v1557 = vsel %vm1460, %v1554, %v1556
        %v1606 = vadd.f32 %v1363, %v1463
        %v1607 = vadd.f32 %v1364, %v1465
        %v1608 = vadd.f32 %v1365, %v1467
        %v1609 = vadd.f32 %v1366, %v1469
        %v1610 = vadd.f32 %v1367, %v1471
        %v1611 = vadd.f32 %v1368, %v1473
        %v1612 = vadd.f32 %v1369, %v1475
        %v1613 = vadd.f32 %v1370, %v1477
        %v1614 = vadd.f32 %v1371, %v1479
        %v1615 = vadd.f32 %v1372, %v1481
        %v1616 = vadd.f32 %v1373, %v1483
        %v1617 = vadd.f32 %v1374, %v1485
        %v1618 = vadd.f32 %v1375, %v1487
        %v1619 = vadd.f32 %v1376, %v1489
        %v1620 = vadd.f32 %v1377, %v1491
        %v1621 = vadd.f32 %v1378, %v1493
        %v1622 = vadd.f32 %v1379, %v1495
        %v1623 = vadd.f32 %v1380, %v1497
        %v1624 = vadd.f32 %v1381, %v1499
        %v1625 = vadd.f32 %v1382, %v1501
        %v1626 = vadd.f32 %v1383, %v1503
        %v1627 = vadd.f32 %v1384, %v1505
        %v1628 = vadd.f32 %v1385, %v1507
        %v1629 = vadd.f32 %v1386, %v1509
        %v1630 = vadd.f32 %v1387, %v1511
        %v1631 = vadd.f32 %v1388, %v1513
        %v1632 = vadd.f32 %v1389, %v1515
        %v1633 = vadd.f32 %v1390, %v1517
        %v1634 = vadd.f32 %v1391, %v1519
        %v1635 = vadd.f32 %v1392, %v1521
        %v1636 = vadd.f32 %v1393, %v1523
        %v1637 = vadd.f32 %v1394, %v1525
        %v1638 = vadd.f32 %v1395, %v1527
        %v1639 = vadd.f32 %v1396, %v1529
        %v1640 = vadd.f32 %v1397, %v1531
        %v1641 = vadd.f32 %v1398, %v1533
        %v1642 = vadd.f32 %v1399, %v1535
        %v1643 = vadd.f32 %v1400, %v1537
        %v1644 = vadd.f32 %v1401, %v1539
        %v1645 = vadd.f32 %v1402, %v1541
        %v1646 = vadd.f32 %v1403, %v1543
        %v1647 = vadd.f32 %v1404, %v1545
        %v1648 = vadd.f32 %v1405, %v1547
        %v1649 = vadd.f32 %v1406, %v1549
        %v1650 = vadd.f32 %v1407, %v1551
        %v1651 = vadd.f32 %v1408, %v1553
        %v1652 = vadd.f32 %v1409, %v1555
        %v1653 = vadd.f32 %v1410, %v1557
        %1654 = vst.msk [vmem:[#allocation2] sm:$0xff] %vm915, %v1606
        %1655 = vst.msk [vmem:[#allocation2 + $0x8] sm:$0xff] %vm915, %v1607
        %1656 = vst.msk [vmem:[#allocation2 + $0x10] sm:$0xff] %vm915, %v1608
        %1657 = vst.msk [vmem:[#allocation2 + $0x18] sm:$0xff] %vm915, %v1609
        %1658 = vst.msk [vmem:[#allocation2 + $0x20] sm:$0xff] %vm915, %v1610
        %1659 = vst.msk [vmem:[#allocation2 + $0x28] sm:$0xff] %vm915, %v1611
        %1660 = vst.msk [vmem:[#allocation2 + $0x30] sm:$0xff] %vm915, %v1612
        %1661 = vst.msk [vmem:[#allocation2 + $0x38] sm:$0xff] %vm915, %v1613
        %1662 = vst.msk [vmem:[#allocation2 + $0x40] sm:$0xff] %vm915, %v1614
        %1663 = vst.msk [vmem:[#allocation2 + $0x48] sm:$0xff] %vm915, %v1615
        %1664 = vst.msk [vmem:[#allocation2 + $0x50] sm:$0xff] %vm915, %v1616
        %1665 = vst.msk [vmem:[#allocation2 + $0x58] sm:$0xff] %vm915, %v1617
        %1666 = vst.msk [vmem:[#allocation2 + $0x60] sm:$0xff] %vm915, %v1618
        %1667 = vst.msk [vmem:[#allocation2 + $0x68] sm:$0xff] %vm915, %v1619
        %1668 = vst.msk [vmem:[#allocation2 + $0x70] sm:$0xff] %vm915, %v1620
        %1669 = vst.msk [vmem:[#allocation2 + $0x78] sm:$0xff] %vm915, %v1621
        %1670 = vst.msk [vmem:[#allocation2 + $0x80] sm:$0xff] %vm915, %v1622
        %1671 = vst.msk [vmem:[#allocation2 + $0x88] sm:$0xff] %vm915, %v1623
        %1672 = vst.msk [vmem:[#allocation2 + $0x90] sm:$0xff] %vm915, %v1624
        %1673 = vst.msk [vmem:[#allocation2 + $0x98] sm:$0xff] %vm915, %v1625
        %1674 = vst.msk [vmem:[#allocation2 + $0xa0] sm:$0xff] %vm915, %v1626
        %1675 = vst.msk [vmem:[#allocation2 + $0xa8] sm:$0xff] %vm915, %v1627
        %1676 = vst.msk [vmem:[#allocation2 + $0xb0] sm:$0xff] %vm915, %v1628
        %1677 = vst.msk [vmem:[#allocation2 + $0xb8] sm:$0xff] %vm915, %v1629
        %1678 = vst.msk [vmem:[#allocation2 + $0xc0] sm:$0xff] %vm915, %v1630
        %1679 = vst.msk [vmem:[#allocation2 + $0xc8] sm:$0xff] %vm915, %v1631
        %1680 = vst.msk [vmem:[#allocation2 + $0xd0] sm:$0xff] %vm915, %v1632
        %1681 = vst.msk [vmem:[#allocation2 + $0xd8] sm:$0xff] %vm915, %v1633
        %1682 = vst.msk [vmem:[#allocation2 + $0xe0] sm:$0xff] %vm915, %v1634
        %1683 = vst.msk [vmem:[#allocation2 + $0xe8] sm:$0xff] %vm915, %v1635
        %1684 = vst.msk [vmem:[#allocation2 + $0xf0] sm:$0xff] %vm915, %v1636
        %1685 = vst.msk [vmem:[#allocation2 + $0xf8] sm:$0xff] %vm915, %v1637
        %1686 = vst.msk [vmem:[#allocation2 + $0x100] sm:$0xff] %vm915, %v1638
        %1687 = vst.msk [vmem:[#allocation2 + $0x108] sm:$0xff] %vm915, %v1639
        %1688 = vst.msk [vmem:[#allocation2 + $0x110] sm:$0xff] %vm915, %v1640
        %1689 = vst.msk [vmem:[#allocation2 + $0x118] sm:$0xff] %vm915, %v1641
        %1690 = vst.msk [vmem:[#allocation2 + $0x120] sm:$0xff] %vm915, %v1642
        %1691 = vst.msk [vmem:[#allocation2 + $0x128] sm:$0xff] %vm915, %v1643
        %1692 = vst.msk [vmem:[#allocation2 + $0x130] sm:$0xff] %vm915, %v1644
        %1693 = vst.msk [vmem:[#allocation2 + $0x138] sm:$0xff] %vm915, %v1645
        %1694 = vst.msk [vmem:[#allocation2 + $0x140] sm:$0xff] %vm915, %v1646
        %1695 = vst.msk [vmem:[#allocation2 + $0x148] sm:$0xff] %vm915, %v1647
        %1696 = vst.msk [vmem:[#allocation2 + $0x150] sm:$0xff] %vm915, %v1648
        %1697 = vst.msk [vmem:[#allocation2 + $0x158] sm:$0xff] %vm915, %v1649
        %1698 = vst.msk [vmem:[#allocation2 + $0x160] sm:$0xff] %vm915, %v1650
        %1699 = vst.msk [vmem:[#allocation2 + $0x168] sm:$0xff] %vm915, %v1651
        %1700 = vst.msk [vmem:[#allocation2 + $0x170] sm:$0xff] %vm915, %v1652
        %1701 = vst.msk [vmem:[#allocation2 + $0x178] sm:$0xff] %vm915, %v1653
        %v1702 = vld [vmem:[%s523] sm:$0xe]
        %v1703 = vld [vmem:[%s523 + $0x4] sm:$0xf]
        %v1704 = vld [vmem:[%s523 + $0x8] sm:$0xf]
        %v1705 = vld [vmem:[%s523 + $0xc] sm:$0xf]
        %v1706 = vld [vmem:[%s523 + $0x10] sm:$0xf]
        %v1707 = vld [vmem:[%s523 + $0x14] sm:$0xf]
        %v1708 = vld [vmem:[%s523 + $0x18] sm:$0xf]
        %v1709 = vld [vmem:[%s523 + $0x1c] sm:$0xf]
        %v1710 = vld [vmem:[%s523 + $0x20] sm:$0xf]
        %v1711 = vld [vmem:[%s523 + $0x24] sm:$0xf]
        %v1712 = vld [vmem:[%s523 + $0x28] sm:$0xf]
        %v1713 = vld [vmem:[%s523 + $0x2c] sm:$0xf]
        %v1714 = vld [vmem:[%s523 + $0x30] sm:$0xf]
        %v1715 = vld [vmem:[%s523 + $0x34] sm:$0xf]
        %v1716 = vld [vmem:[%s523 + $0x38] sm:$0xf]
        %v1717 = vld [vmem:[%s523 + $0x3c] sm:$0xf]
        %v1718 = vld [vmem:[%s523 + $0x40] sm:$0xf]
        %v1719 = vld [vmem:[%s523 + $0x44] sm:$0xf]
        %v1720 = vld [vmem:[%s523 + $0x48] sm:$0xf]
        %v1721 = vld [vmem:[%s523 + $0x4c] sm:$0xf]
        %v1722 = vld [vmem:[%s523 + $0x50] sm:$0xf]
        %v1723 = vld [vmem:[%s523 + $0x54] sm:$0xf]
        %v1724 = vld [vmem:[%s523 + $0x58] sm:$0xf]
        %v1725 = vld [vmem:[%s523 + $0x5c] sm:$0xf]
        %v1726 = vld [vmem:[%s523 + $0x60] sm:$0xf]
        %v1727 = vld [vmem:[%s523 + $0x64] sm:$0xf]
        %v1728 = vld [vmem:[%s523 + $0x68] sm:$0xf]
        %v1729 = vld [vmem:[%s523 + $0x6c] sm:$0xf]
        %v1730 = vld [vmem:[%s523 + $0x70] sm:$0xf]
        %v1731 = vld [vmem:[%s523 + $0x74] sm:$0xf]
        %v1732 = vld [vmem:[%s523 + $0x78] sm:$0xf]
        %v1733 = vld [vmem:[%s523 + $0x7c] sm:$0xf]
        %v1734 = vld [vmem:[%s523 + $0x80] sm:$0xf]
        %v1735 = vld [vmem:[%s523 + $0x84] sm:$0xf]
        %v1736 = vld [vmem:[%s523 + $0x88] sm:$0xf]
        %v1737 = vld [vmem:[%s523 + $0x8c] sm:$0xf]
        %v1738 = vld [vmem:[%s523 + $0x90] sm:$0xf]
        %v1739 = vld [vmem:[%s523 + $0x94] sm:$0xf]
        %v1740 = vld [vmem:[%s523 + $0x98] sm:$0xf]
        %v1741 = vld [vmem:[%s523 + $0x9c] sm:$0xf]
        %v1742 = vld [vmem:[%s523 + $0xa0] sm:$0xf]
        %v1743 = vld [vmem:[%s523 + $0xa4] sm:$0xf]
        %v1744 = vld [vmem:[%s523 + $0xa8] sm:$0xf]
        %v1745 = vld [vmem:[%s523 + $0xac] sm:$0xf]
        %v1746 = vld [vmem:[%s523 + $0xb0] sm:$0xf]
        %v1747 = vld [vmem:[%s523 + $0xb4] sm:$0xf]
        %v1748 = vld [vmem:[%s523 + $0xb8] sm:$0xf]
        %v1749 = vld [vmem:[%s523 + $0xbc] sm:$0xf]
        %v1750 = vld [vmem:[%s523 + $0xc0] sm:$0x1]
        %v1751 = vunpack.c.l.bf16 %v1702
        %v1752 = vunpack.c.l.bf16 %v1703
        %v1753 = vunpack.c.l.bf16 %v1704
        %v1754 = vunpack.c.l.bf16 %v1705
        %v1755 = vunpack.c.l.bf16 %v1706
        %v1756 = vunpack.c.l.bf16 %v1707
        %v1757 = vunpack.c.l.bf16 %v1708
        %v1758 = vunpack.c.l.bf16 %v1709
        %v1759 = vunpack.c.l.bf16 %v1710
        %v1760 = vunpack.c.l.bf16 %v1711
        %v1761 = vunpack.c.l.bf16 %v1712
        %v1762 = vunpack.c.l.bf16 %v1713
        %v1763 = vunpack.c.l.bf16 %v1714
        %v1764 = vunpack.c.l.bf16 %v1715
        %v1765 = vunpack.c.l.bf16 %v1716
        %v1766 = vunpack.c.l.bf16 %v1717
        %v1767 = vunpack.c.l.bf16 %v1718
        %v1768 = vunpack.c.l.bf16 %v1719
        %v1769 = vunpack.c.l.bf16 %v1720
        %v1770 = vunpack.c.l.bf16 %v1721
        %v1771 = vunpack.c.l.bf16 %v1722
        %v1772 = vunpack.c.l.bf16 %v1723
        %v1773 = vunpack.c.l.bf16 %v1724
        %v1774 = vunpack.c.l.bf16 %v1725
        %v1775 = vunpack.c.l.bf16 %v1726
        %v1776 = vunpack.c.l.bf16 %v1727
        %v1777 = vunpack.c.l.bf16 %v1728
        %v1778 = vunpack.c.l.bf16 %v1729
        %v1779 = vunpack.c.l.bf16 %v1730
        %v1780 = vunpack.c.l.bf16 %v1731
        %v1781 = vunpack.c.l.bf16 %v1732
        %v1782 = vunpack.c.l.bf16 %v1733
        %v1783 = vunpack.c.l.bf16 %v1734
        %v1784 = vunpack.c.l.bf16 %v1735
        %v1785 = vunpack.c.l.bf16 %v1736
        %v1786 = vunpack.c.l.bf16 %v1737
        %v1787 = vunpack.c.l.bf16 %v1738
        %v1788 = vunpack.c.l.bf16 %v1739
        %v1789 = vunpack.c.l.bf16 %v1740
        %v1790 = vunpack.c.l.bf16 %v1741
        %v1791 = vunpack.c.l.bf16 %v1742
        %v1792 = vunpack.c.l.bf16 %v1743
        %v1793 = vunpack.c.l.bf16 %v1744
        %v1794 = vunpack.c.l.bf16 %v1745
        %v1795 = vunpack.c.l.bf16 %v1746
        %v1796 = vunpack.c.l.bf16 %v1747
        %v1797 = vunpack.c.l.bf16 %v1748
        %v1798 = vunpack.c.l.bf16 %v1749
        %v1799 = vunpack.c.l.bf16 %v1750
        %s1800 = scalar_lea.vmem %s1, 2
        %v1801 = vld [vmem:[%s1800] sm:$0x1]
        %v1802 = vunpack.c.l.bf16 %v1801
        %1804 = vset.pattern.permute.xlu0 0
        %1805 = vperm.xlu0 %1804, %v1751
        %v1806 = vpop.permute.xlu0 %1805
        %1809 = vset.pattern.permute.xlu0 0
        %1810 = vperm.xlu0 %1809, %v1752
        %v1811 = vpop.permute.xlu0 %1810
        %1814 = vset.pattern.permute.xlu0 0
        %1815 = vperm.xlu0 %1814, %v1753
        %v1816 = vpop.permute.xlu0 %1815
        %1819 = vset.pattern.permute.xlu0 0
        %1820 = vperm.xlu0 %1819, %v1754
        %v1821 = vpop.permute.xlu0 %1820
        %1824 = vset.pattern.permute.xlu0 0
        %1825 = vperm.xlu0 %1824, %v1755
        %v1826 = vpop.permute.xlu0 %1825
        %1829 = vset.pattern.permute.xlu0 0
        %1830 = vperm.xlu0 %1829, %v1756
        %v1831 = vpop.permute.xlu0 %1830
        %1834 = vset.pattern.permute.xlu0 0
        %1835 = vperm.xlu0 %1834, %v1757
        %v1836 = vpop.permute.xlu0 %1835
        %1839 = vset.pattern.permute.xlu0 0
        %1840 = vperm.xlu0 %1839, %v1758
        %v1841 = vpop.permute.xlu0 %1840
        %1844 = vset.pattern.permute.xlu0 0
        %1845 = vperm.xlu0 %1844, %v1759
        %v1846 = vpop.permute.xlu0 %1845
        %1849 = vset.pattern.permute.xlu0 0
        %1850 = vperm.xlu0 %1849, %v1760
        %v1851 = vpop.permute.xlu0 %1850
        %1854 = vset.pattern.permute.xlu0 0
        %1855 = vperm.xlu0 %1854, %v1761
        %v1856 = vpop.permute.xlu0 %1855
        %1859 = vset.pattern.permute.xlu0 0
        %1860 = vperm.xlu0 %1859, %v1762
        %v1861 = vpop.permute.xlu0 %1860
        %1864 = vset.pattern.permute.xlu0 0
        %1865 = vperm.xlu0 %1864, %v1763
        %v1866 = vpop.permute.xlu0 %1865
        %1869 = vset.pattern.permute.xlu0 0
        %1870 = vperm.xlu0 %1869, %v1764
        %v1871 = vpop.permute.xlu0 %1870
        %1874 = vset.pattern.permute.xlu0 0
        %1875 = vperm.xlu0 %1874, %v1765
        %v1876 = vpop.permute.xlu0 %1875
        %1879 = vset.pattern.permute.xlu0 0
        %1880 = vperm.xlu0 %1879, %v1766
        %v1881 = vpop.permute.xlu0 %1880
        %1884 = vset.pattern.permute.xlu0 0
        %1885 = vperm.xlu0 %1884, %v1767
        %v1886 = vpop.permute.xlu0 %1885
        %1889 = vset.pattern.permute.xlu0 0
        %1890 = vperm.xlu0 %1889, %v1768
        %v1891 = vpop.permute.xlu0 %1890
        %1894 = vset.pattern.permute.xlu0 0
        %1895 = vperm.xlu0 %1894, %v1769
        %v1896 = vpop.permute.xlu0 %1895
        %1899 = vset.pattern.permute.xlu0 0
        %1900 = vperm.xlu0 %1899, %v1770
        %v1901 = vpop.permute.xlu0 %1900
        %1904 = vset.pattern.permute.xlu0 0
        %1905 = vperm.xlu0 %1904, %v1771
        %v1906 = vpop.permute.xlu0 %1905
        %1909 = vset.pattern.permute.xlu0 0
        %1910 = vperm.xlu0 %1909, %v1772
        %v1911 = vpop.permute.xlu0 %1910
        %1914 = vset.pattern.permute.xlu0 0
        %1915 = vperm.xlu0 %1914, %v1773
        %v1916 = vpop.permute.xlu0 %1915
        %1919 = vset.pattern.permute.xlu0 0
        %1920 = vperm.xlu0 %1919, %v1774
        %v1921 = vpop.permute.xlu0 %1920
        %1924 = vset.pattern.permute.xlu0 0
        %1925 = vperm.xlu0 %1924, %v1775
        %v1926 = vpop.permute.xlu0 %1925
        %1929 = vset.pattern.permute.xlu0 0
        %1930 = vperm.xlu0 %1929, %v1776
        %v1931 = vpop.permute.xlu0 %1930
        %1934 = vset.pattern.permute.xlu0 0
        %1935 = vperm.xlu0 %1934, %v1777
        %v1936 = vpop.permute.xlu0 %1935
        %1939 = vset.pattern.permute.xlu0 0
        %1940 = vperm.xlu0 %1939, %v1778
        %v1941 = vpop.permute.xlu0 %1940
        %1944 = vset.pattern.permute.xlu0 0
        %1945 = vperm.xlu0 %1944, %v1779
        %v1946 = vpop.permute.xlu0 %1945
        %1949 = vset.pattern.permute.xlu0 0
        %1950 = vperm.xlu0 %1949, %v1780
        %v1951 = vpop.permute.xlu0 %1950
        %1954 = vset.pattern.permute.xlu0 0
        %1955 = vperm.xlu0 %1954, %v1781
        %v1956 = vpop.permute.xlu0 %1955
        %1959 = vset.pattern.permute.xlu0 0
        %1960 = vperm.xlu0 %1959, %v1782
        %v1961 = vpop.permute.xlu0 %1960
        %1964 = vset.pattern.permute.xlu0 0
        %1965 = vperm.xlu0 %1964, %v1783
        %v1966 = vpop.permute.xlu0 %1965
        %1969 = vset.pattern.permute.xlu0 0
        %1970 = vperm.xlu0 %1969, %v1784
        %v1971 = vpop.permute.xlu0 %1970
        %1974 = vset.pattern.permute.xlu0 0
        %1975 = vperm.xlu0 %1974, %v1785
        %v1976 = vpop.permute.xlu0 %1975
        %1979 = vset.pattern.permute.xlu0 0
        %1980 = vperm.xlu0 %1979, %v1786
        %v1981 = vpop.permute.xlu0 %1980
        %1984 = vset.pattern.permute.xlu0 0
        %1985 = vperm.xlu0 %1984, %v1787
        %v1986 = vpop.permute.xlu0 %1985
        %1989 = vset.pattern.permute.xlu0 0
        %1990 = vperm.xlu0 %1989, %v1788
        %v1991 = vpop.permute.xlu0 %1990
        %1994 = vset.pattern.permute.xlu0 0
        %1995 = vperm.xlu0 %1994, %v1789
        %v1996 = vpop.permute.xlu0 %1995
        %1999 = vset.pattern.permute.xlu0 0
        %2000 = vperm.xlu0 %1999, %v1790
        %v2001 = vpop.permute.xlu0 %2000
        %2004 = vset.pattern.permute.xlu0 0
        %2005 = vperm.xlu0 %2004, %v1791
        %v2006 = vpop.permute.xlu0 %2005
        %2009 = vset.pattern.permute.xlu0 0
        %2010 = vperm.xlu0 %2009, %v1792
        %v2011 = vpop.permute.xlu0 %2010
        %2014 = vset.pattern.permute.xlu0 0
        %2015 = vperm.xlu0 %2014, %v1793
        %v2016 = vpop.permute.xlu0 %2015
        %2019 = vset.pattern.permute.xlu0 0
        %2020 = vperm.xlu0 %2019, %v1794
        %v2021 = vpop.permute.xlu0 %2020
        %2024 = vset.pattern.permute.xlu0 0
        %2025 = vperm.xlu0 %2024, %v1795
        %v2026 = vpop.permute.xlu0 %2025
        %2029 = vset.pattern.permute.xlu0 0
        %2030 = vperm.xlu0 %2029, %v1796
        %v2031 = vpop.permute.xlu0 %2030
        %2034 = vset.pattern.permute.xlu0 0
        %2035 = vperm.xlu0 %2034, %v1797
        %v2036 = vpop.permute.xlu0 %2035
        %2039 = vset.pattern.permute.xlu0 0
        %2040 = vperm.xlu0 %2039, %v1798
        %v2041 = vpop.permute.xlu0 %2040
        %2044 = vset.pattern.permute.xlu0 0
        %2045 = vperm.xlu0 %2044, %v1799
        %v2046 = vpop.permute.xlu0 %2045
        %v2048 = vlaneseq
        %v2049 = vshrl.u32 %v2048, 7
        %v2050 = vsub.s32 0, %v2049
        %v2051 = vrot.slane %v1802, %v2050
        %v2052 = vmul.f32 %v1806, %v2051
        %v2053 = vmul.f32 %v1811, %v2051
        %v2054 = vmul.f32 %v1816, %v2051
        %v2055 = vmul.f32 %v1821, %v2051
        %v2056 = vmul.f32 %v1826, %v2051
        %v2057 = vmul.f32 %v1831, %v2051
        %v2058 = vmul.f32 %v1836, %v2051
        %v2059 = vmul.f32 %v1841, %v2051
        %v2060 = vmul.f32 %v1846, %v2051
        %v2061 = vmul.f32 %v1851, %v2051
        %v2062 = vmul.f32 %v1856, %v2051
        %v2063 = vmul.f32 %v1861, %v2051
        %v2064 = vmul.f32 %v1866, %v2051
        %v2065 = vmul.f32 %v1871, %v2051
        %v2066 = vmul.f32 %v1876, %v2051
        %v2067 = vmul.f32 %v1881, %v2051
        %v2068 = vmul.f32 %v1886, %v2051
        %v2069 = vmul.f32 %v1891, %v2051
        %v2070 = vmul.f32 %v1896, %v2051
        %v2071 = vmul.f32 %v1901, %v2051
        %v2072 = vmul.f32 %v1906, %v2051
        %v2073 = vmul.f32 %v1911, %v2051
        %v2074 = vmul.f32 %v1916, %v2051
        %v2075 = vmul.f32 %v1921, %v2051
        %v2076 = vmul.f32 %v1926, %v2051
        %v2077 = vmul.f32 %v1931, %v2051
        %v2078 = vmul.f32 %v1936, %v2051
        %v2079 = vmul.f32 %v1941, %v2051
        %v2080 = vmul.f32 %v1946, %v2051
        %v2081 = vmul.f32 %v1951, %v2051
        %v2082 = vmul.f32 %v1956, %v2051
        %v2083 = vmul.f32 %v1961, %v2051
        %v2084 = vmul.f32 %v1966, %v2051
        %v2085 = vmul.f32 %v1971, %v2051
        %v2086 = vmul.f32 %v1976, %v2051
        %v2087 = vmul.f32 %v1981, %v2051
        %v2088 = vmul.f32 %v1986, %v2051
        %v2089 = vmul.f32 %v1991, %v2051
        %v2090 = vmul.f32 %v1996, %v2051
        %v2091 = vmul.f32 %v2001, %v2051
        %v2092 = vmul.f32 %v2006, %v2051
        %v2093 = vmul.f32 %v2011, %v2051
        %v2094 = vmul.f32 %v2016, %v2051
        %v2095 = vmul.f32 %v2021, %v2051
        %v2096 = vmul.f32 %v2026, %v2051
        %v2097 = vmul.f32 %v2031, %v2051
        %v2098 = vmul.f32 %v2036, %v2051
        %v2099 = vmul.f32 %v2041, %v2051
        %v2100 = vmul.f32 %v2046, %v2051
        %v2101 = vld [vmem:[#allocation2] sm:$0xff]
        %v2102 = vld [vmem:[#allocation2 + $0x8] sm:$0xff]
        %v2103 = vld [vmem:[#allocation2 + $0x10] sm:$0xff]
        %v2104 = vld [vmem:[#allocation2 + $0x18] sm:$0xff]
        %v2105 = vld [vmem:[#allocation2 + $0x20] sm:$0xff]
        %v2106 = vld [vmem:[#allocation2 + $0x28] sm:$0xff]
        %v2107 = vld [vmem:[#allocation2 + $0x30] sm:$0xff]
        %v2108 = vld [vmem:[#allocation2 + $0x38] sm:$0xff]
        %v2109 = vld [vmem:[#allocation2 + $0x40] sm:$0xff]
        %v2110 = vld [vmem:[#allocation2 + $0x48] sm:$0xff]
        %v2111 = vld [vmem:[#allocation2 + $0x50] sm:$0xff]
        %v2112 = vld [vmem:[#allocation2 + $0x58] sm:$0xff]
        %v2113 = vld [vmem:[#allocation2 + $0x60] sm:$0xff]
        %v2114 = vld [vmem:[#allocation2 + $0x68] sm:$0xff]
        %v2115 = vld [vmem:[#allocation2 + $0x70] sm:$0xff]
        %v2116 = vld [vmem:[#allocation2 + $0x78] sm:$0xff]
        %v2117 = vld [vmem:[#allocation2 + $0x80] sm:$0xff]
        %v2118 = vld [vmem:[#allocation2 + $0x88] sm:$0xff]
        %v2119 = vld [vmem:[#allocation2 + $0x90] sm:$0xff]
        %v2120 = vld [vmem:[#allocation2 + $0x98] sm:$0xff]
        %v2121 = vld [vmem:[#allocation2 + $0xa0] sm:$0xff]
        %v2122 = vld [vmem:[#allocation2 + $0xa8] sm:$0xff]
        %v2123 = vld [vmem:[#allocation2 + $0xb0] sm:$0xff]
        %v2124 = vld [vmem:[#allocation2 + $0xb8] sm:$0xff]
        %v2125 = vld [vmem:[#allocation2 + $0xc0] sm:$0xff]
        %v2126 = vld [vmem:[#allocation2 + $0xc8] sm:$0xff]
        %v2127 = vld [vmem:[#allocation2 + $0xd0] sm:$0xff]
        %v2128 = vld [vmem:[#allocation2 + $0xd8] sm:$0xff]
        %v2129 = vld [vmem:[#allocation2 + $0xe0] sm:$0xff]
        %v2130 = vld [vmem:[#allocation2 + $0xe8] sm:$0xff]
        %v2131 = vld [vmem:[#allocation2 + $0xf0] sm:$0xff]
        %v2132 = vld [vmem:[#allocation2 + $0xf8] sm:$0xff]
        %v2133 = vld [vmem:[#allocation2 + $0x100] sm:$0xff]
        %v2134 = vld [vmem:[#allocation2 + $0x108] sm:$0xff]
        %v2135 = vld [vmem:[#allocation2 + $0x110] sm:$0xff]
        %v2136 = vld [vmem:[#allocation2 + $0x118] sm:$0xff]
        %v2137 = vld [vmem:[#allocation2 + $0x120] sm:$0xff]
        %v2138 = vld [vmem:[#allocation2 + $0x128] sm:$0xff]
        %v2139 = vld [vmem:[#allocation2 + $0x130] sm:$0xff]
        %v2140 = vld [vmem:[#allocation2 + $0x138] sm:$0xff]
        %v2141 = vld [vmem:[#allocation2 + $0x140] sm:$0xff]
        %v2142 = vld [vmem:[#allocation2 + $0x148] sm:$0xff]
        %v2143 = vld [vmem:[#allocation2 + $0x150] sm:$0xff]
        %v2144 = vld [vmem:[#allocation2 + $0x158] sm:$0xff]
        %v2145 = vld [vmem:[#allocation2 + $0x160] sm:$0xff]
        %v2146 = vld [vmem:[#allocation2 + $0x168] sm:$0xff]
        %v2147 = vld [vmem:[#allocation2 + $0x170] sm:$0xff]
        %v2148 = vld [vmem:[#allocation2 + $0x178] sm:$0xff]
        %vm2198 = vcmask 1045504
        %v2199 = vrot.slane %v2052, 2
        %v2200 = vrot.slane %v2053, 2
        %v2201 = vsel %vm2198, %v2199, %v2200
        %v2202 = vrot.slane %v2054, 2
        %v2203 = vsel %vm2198, %v2200, %v2202
        %v2204 = vrot.slane %v2055, 2
        %v2205 = vsel %vm2198, %v2202, %v2204
        %v2206 = vrot.slane %v2056, 2
        %v2207 = vsel %vm2198, %v2204, %v2206
        %v2208 = vrot.slane %v2057, 2
        %v2209 = vsel %vm2198, %v2206, %v2208
        %v2210 = vrot.slane %v2058, 2
        %v2211 = vsel %vm2198, %v2208, %v2210
        %v2212 = vrot.slane %v2059, 2
        %v2213 = vsel %vm2198, %v2210, %v2212
        %v2214 = vrot.slane %v2060, 2
        %v2215 = vsel %vm2198, %v2212, %v2214
        %v2216 = vrot.slane %v2061, 2
        %v2217 = vsel %vm2198, %v2214, %v2216
        %v2218 = vrot.slane %v2062, 2
        %v2219 = vsel %vm2198, %v2216, %v2218
        %v2220 = vrot.slane %v2063, 2
        %v2221 = vsel %vm2198, %v2218, %v2220
        %v2222 = vrot.slane %v2064, 2
        %v2223 = vsel %vm2198, %v2220, %v2222
        %v2224 = vrot.slane %v2065, 2
        %v2225 = vsel %vm2198, %v2222, %v2224
        %v2226 = vrot.slane %v2066, 2
        %v2227 = vsel %vm2198, %v2224, %v2226
        %v2228 = vrot.slane %v2067, 2
        %v2229 = vsel %vm2198, %v2226, %v2228
        %v2230 = vrot.slane %v2068, 2
        %v2231 = vsel %vm2198, %v2228, %v2230
        %v2232 = vrot.slane %v2069, 2
        %v2233 = vsel %vm2198, %v2230, %v2232
        %v2234 = vrot.slane %v2070, 2
        %v2235 = vsel %vm2198, %v2232, %v2234
        %v2236 = vrot.slane %v2071, 2
        %v2237 = vsel %vm2198, %v2234, %v2236
        %v2238 = vrot.slane %v2072, 2
        %v2239 = vsel %vm2198, %v2236, %v2238
        %v2240 = vrot.slane %v2073, 2
        %v2241 = vsel %vm2198, %v2238, %v2240
        %v2242 = vrot.slane %v2074, 2
        %v2243 = vsel %vm2198, %v2240, %v2242
        %v2244 = vrot.slane %v2075, 2
        %v2245 = vsel %vm2198, %v2242, %v2244
        %v2246 = vrot.slane %v2076, 2
        %v2247 = vsel %vm2198, %v2244, %v2246
        %v2248 = vrot.slane %v2077, 2
        %v2249 = vsel %vm2198, %v2246, %v2248
        %v2250 = vrot.slane %v2078, 2
        %v2251 = vsel %vm2198, %v2248, %v2250
        %v2252 = vrot.slane %v2079, 2
        %v2253 = vsel %vm2198, %v2250, %v2252
        %v2254 = vrot.slane %v2080, 2
        %v2255 = vsel %vm2198, %v2252, %v2254
        %v2256 = vrot.slane %v2081, 2
        %v2257 = vsel %vm2198, %v2254, %v2256
        %v2258 = vrot.slane %v2082, 2
        %v2259 = vsel %vm2198, %v2256, %v2258
        %v2260 = vrot.slane %v2083, 2
        %v2261 = vsel %vm2198, %v2258, %v2260
        %v2262 = vrot.slane %v2084, 2
        %v2263 = vsel %vm2198, %v2260, %v2262
        %v2264 = vrot.slane %v2085, 2
        %v2265 = vsel %vm2198, %v2262, %v2264
        %v2266 = vrot.slane %v2086, 2
        %v2267 = vsel %vm2198, %v2264, %v2266
        %v2268 = vrot.slane %v2087, 2
        %v2269 = vsel %vm2198, %v2266, %v2268
        %v2270 = vrot.slane %v2088, 2
        %v2271 = vsel %vm2198, %v2268, %v2270
        %v2272 = vrot.slane %v2089, 2
        %v2273 = vsel %vm2198, %v2270, %v2272
        %v2274 = vrot.slane %v2090, 2
        %v2275 = vsel %vm2198, %v2272, %v2274
        %v2276 = vrot.slane %v2091, 2
        %v2277 = vsel %vm2198, %v2274, %v2276
        %v2278 = vrot.slane %v2092, 2
        %v2279 = vsel %vm2198, %v2276, %v2278
        %v2280 = vrot.slane %v2093, 2
        %v2281 = vsel %vm2198, %v2278, %v2280
        %v2282 = vrot.slane %v2094, 2
        %v2283 = vsel %vm2198, %v2280, %v2282
        %v2284 = vrot.slane %v2095, 2
        %v2285 = vsel %vm2198, %v2282, %v2284
        %v2286 = vrot.slane %v2096, 2
        %v2287 = vsel %vm2198, %v2284, %v2286
        %v2288 = vrot.slane %v2097, 2
        %v2289 = vsel %vm2198, %v2286, %v2288
        %v2290 = vrot.slane %v2098, 2
        %v2291 = vsel %vm2198, %v2288, %v2290
        %v2292 = vrot.slane %v2099, 2
        %v2293 = vsel %vm2198, %v2290, %v2292
        %v2294 = vrot.slane %v2100, 2
        %v2295 = vsel %vm2198, %v2292, %v2294
        %v2344 = vadd.f32 %v2101, %v2201
        %v2345 = vadd.f32 %v2102, %v2203
        %v2346 = vadd.f32 %v2103, %v2205
        %v2347 = vadd.f32 %v2104, %v2207
        %v2348 = vadd.f32 %v2105, %v2209
        %v2349 = vadd.f32 %v2106, %v2211
        %v2350 = vadd.f32 %v2107, %v2213
        %v2351 = vadd.f32 %v2108, %v2215
        %v2352 = vadd.f32 %v2109, %v2217
        %v2353 = vadd.f32 %v2110, %v2219
        %v2354 = vadd.f32 %v2111, %v2221
        %v2355 = vadd.f32 %v2112, %v2223
        %v2356 = vadd.f32 %v2113, %v2225
        %v2357 = vadd.f32 %v2114, %v2227
        %v2358 = vadd.f32 %v2115, %v2229
        %v2359 = vadd.f32 %v2116, %v2231
        %v2360 = vadd.f32 %v2117, %v2233
        %v2361 = vadd.f32 %v2118, %v2235
        %v2362 = vadd.f32 %v2119, %v2237
        %v2363 = vadd.f32 %v2120, %v2239
        %v2364 = vadd.f32 %v2121, %v2241
        %v2365 = vadd.f32 %v2122, %v2243
        %v2366 = vadd.f32 %v2123, %v2245
        %v2367 = vadd.f32 %v2124, %v2247
        %v2368 = vadd.f32 %v2125, %v2249
        %v2369 = vadd.f32 %v2126, %v2251
        %v2370 = vadd.f32 %v2127, %v2253
        %v2371 = vadd.f32 %v2128, %v2255
        %v2372 = vadd.f32 %v2129, %v2257
        %v2373 = vadd.f32 %v2130, %v2259
        %v2374 = vadd.f32 %v2131, %v2261
        %v2375 = vadd.f32 %v2132, %v2263
        %v2376 = vadd.f32 %v2133, %v2265
        %v2377 = vadd.f32 %v2134, %v2267
        %v2378 = vadd.f32 %v2135, %v2269
        %v2379 = vadd.f32 %v2136, %v2271
        %v2380 = vadd.f32 %v2137, %v2273
        %v2381 = vadd.f32 %v2138, %v2275
        %v2382 = vadd.f32 %v2139, %v2277
        %v2383 = vadd.f32 %v2140, %v2279
        %v2384 = vadd.f32 %v2141, %v2281
        %v2385 = vadd.f32 %v2142, %v2283
        %v2386 = vadd.f32 %v2143, %v2285
        %v2387 = vadd.f32 %v2144, %v2287
        %v2388 = vadd.f32 %v2145, %v2289
        %v2389 = vadd.f32 %v2146, %v2291
        %v2390 = vadd.f32 %v2147, %v2293
        %v2391 = vadd.f32 %v2148, %v2295
        %2392 = vst.msk [vmem:[#allocation2] sm:$0xff] %vm915, %v2344
        %2393 = vst.msk [vmem:[#allocation2 + $0x8] sm:$0xff] %vm915, %v2345
        %2394 = vst.msk [vmem:[#allocation2 + $0x10] sm:$0xff] %vm915, %v2346
        %2395 = vst.msk [vmem:[#allocation2 + $0x18] sm:$0xff] %vm915, %v2347
        %2396 = vst.msk [vmem:[#allocation2 + $0x20] sm:$0xff] %vm915, %v2348
        %2397 = vst.msk [vmem:[#allocation2 + $0x28] sm:$0xff] %vm915, %v2349
        %2398 = vst.msk [vmem:[#allocation2 + $0x30] sm:$0xff] %vm915, %v2350
        %2399 = vst.msk [vmem:[#allocation2 + $0x38] sm:$0xff] %vm915, %v2351
        %2400 = vst.msk [vmem:[#allocation2 + $0x40] sm:$0xff] %vm915, %v2352
        %2401 = vst.msk [vmem:[#allocation2 + $0x48] sm:$0xff] %vm915, %v2353
        %2402 = vst.msk [vmem:[#allocation2 + $0x50] sm:$0xff] %vm915, %v2354
        %2403 = vst.msk [vmem:[#allocation2 + $0x58] sm:$0xff] %vm915, %v2355
        %2404 = vst.msk [vmem:[#allocation2 + $0x60] sm:$0xff] %vm915, %v2356
        %2405 = vst.msk [vmem:[#allocation2 + $0x68] sm:$0xff] %vm915, %v2357
        %2406 = vst.msk [vmem:[#allocation2 + $0x70] sm:$0xff] %vm915, %v2358
        %2407 = vst.msk [vmem:[#allocation2 + $0x78] sm:$0xff] %vm915, %v2359
        %2408 = vst.msk [vmem:[#allocation2 + $0x80] sm:$0xff] %vm915, %v2360
        %2409 = vst.msk [vmem:[#allocation2 + $0x88] sm:$0xff] %vm915, %v2361
        %2410 = vst.msk [vmem:[#allocation2 + $0x90] sm:$0xff] %vm915, %v2362
        %2411 = vst.msk [vmem:[#allocation2 + $0x98] sm:$0xff] %vm915, %v2363
        %2412 = vst.msk [vmem:[#allocation2 + $0xa0] sm:$0xff] %vm915, %v2364
        %2413 = vst.msk [vmem:[#allocation2 + $0xa8] sm:$0xff] %vm915, %v2365
        %2414 = vst.msk [vmem:[#allocation2 + $0xb0] sm:$0xff] %vm915, %v2366
        %2415 = vst.msk [vmem:[#allocation2 + $0xb8] sm:$0xff] %vm915, %v2367
        %2416 = vst.msk [vmem:[#allocation2 + $0xc0] sm:$0xff] %vm915, %v2368
        %2417 = vst.msk [vmem:[#allocation2 + $0xc8] sm:$0xff] %vm915, %v2369
        %2418 = vst.msk [vmem:[#allocation2 + $0xd0] sm:$0xff] %vm915, %v2370
        %2419 = vst.msk [vmem:[#allocation2 + $0xd8] sm:$0xff] %vm915, %v2371
        %2420 = vst.msk [vmem:[#allocation2 + $0xe0] sm:$0xff] %vm915, %v2372
        %2421 = vst.msk [vmem:[#allocation2 + $0xe8] sm:$0xff] %vm915, %v2373
        %2422 = vst.msk [vmem:[#allocation2 + $0xf0] sm:$0xff] %vm915, %v2374
        %2423 = vst.msk [vmem:[#allocation2 + $0xf8] sm:$0xff] %vm915, %v2375
        %2424 = vst.msk [vmem:[#allocation2 + $0x100] sm:$0xff] %vm915, %v2376
        %2425 = vst.msk [vmem:[#allocation2 + $0x108] sm:$0xff] %vm915, %v2377
        %2426 = vst.msk [vmem:[#allocation2 + $0x110] sm:$0xff] %vm915, %v2378
        %2427 = vst.msk [vmem:[#allocation2 + $0x118] sm:$0xff] %vm915, %v2379
        %2428 = vst.msk [vmem:[#allocation2 + $0x120] sm:$0xff] %vm915, %v2380
        %2429 = vst.msk [vmem:[#allocation2 + $0x128] sm:$0xff] %vm915, %v2381
        %2430 = vst.msk [vmem:[#allocation2 + $0x130] sm:$0xff] %vm915, %v2382
        %2431 = vst.msk [vmem:[#allocation2 + $0x138] sm:$0xff] %vm915, %v2383
        %2432 = vst.msk [vmem:[#allocation2 + $0x140] sm:$0xff] %vm915, %v2384
        %2433 = vst.msk [vmem:[#allocation2 + $0x148] sm:$0xff] %vm915, %v2385
        %2434 = vst.msk [vmem:[#allocation2 + $0x150] sm:$0xff] %vm915, %v2386
        %2435 = vst.msk [vmem:[#allocation2 + $0x158] sm:$0xff] %vm915, %v2387
        %2436 = vst.msk [vmem:[#allocation2 + $0x160] sm:$0xff] %vm915, %v2388
        %2437 = vst.msk [vmem:[#allocation2 + $0x168] sm:$0xff] %vm915, %v2389
        %2438 = vst.msk [vmem:[#allocation2 + $0x170] sm:$0xff] %vm915, %v2390
        %2439 = vst.msk [vmem:[#allocation2 + $0x178] sm:$0xff] %vm915, %v2391
        %v2440 = vld [vmem:[%s523 + $0xc] sm:$0xf]
        %v2441 = vld [vmem:[%s523 + $0x10] sm:$0xf]
        %v2442 = vld [vmem:[%s523 + $0x14] sm:$0xf]
        %v2443 = vld [vmem:[%s523 + $0x18] sm:$0xf]
        %v2444 = vld [vmem:[%s523 + $0x1c] sm:$0xf]
        %v2445 = vld [vmem:[%s523 + $0x20] sm:$0xf]
        %v2446 = vld [vmem:[%s523 + $0x24] sm:$0xf]
        %v2447 = vld [vmem:[%s523 + $0x28] sm:$0xf]
        %v2448 = vld [vmem:[%s523 + $0x2c] sm:$0xf]
        %v2449 = vld [vmem:[%s523 + $0x30] sm:$0xf]
        %v2450 = vld [vmem:[%s523 + $0x34] sm:$0xf]
        %v2451 = vld [vmem:[%s523 + $0x38] sm:$0xf]
        %v2452 = vld [vmem:[%s523 + $0x3c] sm:$0xf]
        %v2453 = vld [vmem:[%s523 + $0x40] sm:$0xf]
        %v2454 = vld [vmem:[%s523 + $0x44] sm:$0xf]
        %v2455 = vld [vmem:[%s523 + $0x48] sm:$0xf]
        %v2456 = vld [vmem:[%s523 + $0x4c] sm:$0xf]
        %v2457 = vld [vmem:[%s523 + $0x50] sm:$0xf]
        %v2458 = vld [vmem:[%s523 + $0x54] sm:$0xf]
        %v2459 = vld [vmem:[%s523 + $0x58] sm:$0xf]
        %v2460 = vld [vmem:[%s523 + $0x5c] sm:$0xf]
        %v2461 = vld [vmem:[%s523 + $0x60] sm:$0xf]
        %v2462 = vld [vmem:[%s523 + $0x64] sm:$0xf]
        %v2463 = vld [vmem:[%s523 + $0x68] sm:$0xf]
        %v2464 = vld [vmem:[%s523 + $0x6c] sm:$0xf]
        %v2465 = vld [vmem:[%s523 + $0x70] sm:$0xf]
        %v2466 = vld [vmem:[%s523 + $0x74] sm:$0xf]
        %v2467 = vld [vmem:[%s523 + $0x78] sm:$0xf]
        %v2468 = vld [vmem:[%s523 + $0x7c] sm:$0xf]
        %v2469 = vld [vmem:[%s523 + $0x80] sm:$0xf]
        %v2470 = vld [vmem:[%s523 + $0x84] sm:$0xf]
        %v2471 = vld [vmem:[%s523 + $0x88] sm:$0xf]
        %v2472 = vld [vmem:[%s523 + $0x8c] sm:$0xf]
        %v2473 = vld [vmem:[%s523 + $0x90] sm:$0xf]
        %v2474 = vld [vmem:[%s523 + $0x94] sm:$0xf]
        %v2475 = vld [vmem:[%s523 + $0x98] sm:$0xf]
        %v2476 = vld [vmem:[%s523 + $0x9c] sm:$0xf]
        %v2477 = vld [vmem:[%s523 + $0xa0] sm:$0xf]
        %v2478 = vld [vmem:[%s523 + $0xa4] sm:$0xf]
        %v2479 = vld [vmem:[%s523 + $0xa8] sm:$0xf]
        %v2480 = vld [vmem:[%s523 + $0xac] sm:$0xf]
        %v2481 = vld [vmem:[%s523 + $0xb0] sm:$0xf]
        %v2482 = vld [vmem:[%s523 + $0xb4] sm:$0xf]
        %v2483 = vld [vmem:[%s523 + $0xb8] sm:$0xf]
        %v2484 = vld [vmem:[%s523 + $0xbc] sm:$0xf]
        %v2485 = vld [vmem:[%s523 + $0xc0] sm:$0xf]
        %v2486 = vld [vmem:[%s523 + $0xc4] sm:$0xf]
        %v2487 = vld [vmem:[%s523 + $0xc8] sm:$0xf]
        %v2488 = vunpack.c.l.bf16 %v2440
        %v2489 = vunpack.c.l.bf16 %v2441
        %v2490 = vunpack.c.l.bf16 %v2442
        %v2491 = vunpack.c.l.bf16 %v2443
        %v2492 = vunpack.c.l.bf16 %v2444
        %v2493 = vunpack.c.l.bf16 %v2445
        %v2494 = vunpack.c.l.bf16 %v2446
        %v2495 = vunpack.c.l.bf16 %v2447
        %v2496 = vunpack.c.l.bf16 %v2448
        %v2497 = vunpack.c.l.bf16 %v2449
        %v2498 = vunpack.c.l.bf16 %v2450
        %v2499 = vunpack.c.l.bf16 %v2451
        %v2500 = vunpack.c.l.bf16 %v2452
        %v2501 = vunpack.c.l.bf16 %v2453
        %v2502 = vunpack.c.l.bf16 %v2454
        %v2503 = vunpack.c.l.bf16 %v2455
        %v2504 = vunpack.c.l.bf16 %v2456
        %v2505 = vunpack.c.l.bf16 %v2457
        %v2506 = vunpack.c.l.bf16 %v2458
        %v2507 = vunpack.c.l.bf16 %v2459
        %v2508 = vunpack.c.l.bf16 %v2460
        %v2509 = vunpack.c.l.bf16 %v2461
        %v2510 = vunpack.c.l.bf16 %v2462
        %v2511 = vunpack.c.l.bf16 %v2463
        %v2512 = vunpack.c.l.bf16 %v2464
        %v2513 = vunpack.c.l.bf16 %v2465
        %v2514 = vunpack.c.l.bf16 %v2466
        %v2515 = vunpack.c.l.bf16 %v2467
        %v2516 = vunpack.c.l.bf16 %v2468
        %v2517 = vunpack.c.l.bf16 %v2469
        %v2518 = vunpack.c.l.bf16 %v2470
        %v2519 = vunpack.c.l.bf16 %v2471
        %v2520 = vunpack.c.l.bf16 %v2472
        %v2521 = vunpack.c.l.bf16 %v2473
        %v2522 = vunpack.c.l.bf16 %v2474
        %v2523 = vunpack.c.l.bf16 %v2475
        %v2524 = vunpack.c.l.bf16 %v2476
        %v2525 = vunpack.c.l.bf16 %v2477
        %v2526 = vunpack.c.l.bf16 %v2478
        %v2527 = vunpack.c.l.bf16 %v2479
        %v2528 = vunpack.c.l.bf16 %v2480
        %v2529 = vunpack.c.l.bf16 %v2481
        %v2530 = vunpack.c.l.bf16 %v2482
        %v2531 = vunpack.c.l.bf16 %v2483
        %v2532 = vunpack.c.l.bf16 %v2484
        %v2533 = vunpack.c.l.bf16 %v2485
        %v2534 = vunpack.c.l.bf16 %v2486
        %v2535 = vunpack.c.l.bf16 %v2487
        %s2536 = scalar_lea.vmem %s1, 3
        %v2537 = vld [vmem:[%s2536] sm:$0x1]
        %v2538 = vunpack.c.l.bf16 %v2537
        %2540 = vset.pattern.permute.xlu0 0
        %2541 = vperm.xlu0 %2540, %v2488
        %v2542 = vpop.permute.xlu0 %2541
        %2545 = vset.pattern.permute.xlu0 0
        %2546 = vperm.xlu0 %2545, %v2489
        %v2547 = vpop.permute.xlu0 %2546
        %2550 = vset.pattern.permute.xlu0 0
        %2551 = vperm.xlu0 %2550, %v2490
        %v2552 = vpop.permute.xlu0 %2551
        %2555 = vset.pattern.permute.xlu0 0
        %2556 = vperm.xlu0 %2555, %v2491
        %v2557 = vpop.permute.xlu0 %2556
        %2560 = vset.pattern.permute.xlu0 0
        %2561 = vperm.xlu0 %2560, %v2492
        %v2562 = vpop.permute.xlu0 %2561
        %2565 = vset.pattern.permute.xlu0 0
        %2566 = vperm.xlu0 %2565, %v2493
        %v2567 = vpop.permute.xlu0 %2566
        %2570 = vset.pattern.permute.xlu0 0
        %2571 = vperm.xlu0 %2570, %v2494
        %v2572 = vpop.permute.xlu0 %2571
        %2575 = vset.pattern.permute.xlu0 0
        %2576 = vperm.xlu0 %2575, %v2495
        %v2577 = vpop.permute.xlu0 %2576
        %2580 = vset.pattern.permute.xlu0 0
        %2581 = vperm.xlu0 %2580, %v2496
        %v2582 = vpop.permute.xlu0 %2581
        %2585 = vset.pattern.permute.xlu0 0
        %2586 = vperm.xlu0 %2585, %v2497
        %v2587 = vpop.permute.xlu0 %2586
        %2590 = vset.pattern.permute.xlu0 0
        %2591 = vperm.xlu0 %2590, %v2498
        %v2592 = vpop.permute.xlu0 %2591
        %2595 = vset.pattern.permute.xlu0 0
        %2596 = vperm.xlu0 %2595, %v2499
        %v2597 = vpop.permute.xlu0 %2596
        %2600 = vset.pattern.permute.xlu0 0
        %2601 = vperm.xlu0 %2600, %v2500
        %v2602 = vpop.permute.xlu0 %2601
        %2605 = vset.pattern.permute.xlu0 0
        %2606 = vperm.xlu0 %2605, %v2501
        %v2607 = vpop.permute.xlu0 %2606
        %2610 = vset.pattern.permute.xlu0 0
        %2611 = vperm.xlu0 %2610, %v2502
        %v2612 = vpop.permute.xlu0 %2611
        %2615 = vset.pattern.permute.xlu0 0
        %2616 = vperm.xlu0 %2615, %v2503
        %v2617 = vpop.permute.xlu0 %2616
        %2620 = vset.pattern.permute.xlu0 0
        %2621 = vperm.xlu0 %2620, %v2504
        %v2622 = vpop.permute.xlu0 %2621
        %2625 = vset.pattern.permute.xlu0 0
        %2626 = vperm.xlu0 %2625, %v2505
        %v2627 = vpop.permute.xlu0 %2626
        %2630 = vset.pattern.permute.xlu0 0
        %2631 = vperm.xlu0 %2630, %v2506
        %v2632 = vpop.permute.xlu0 %2631
        %2635 = vset.pattern.permute.xlu0 0
        %2636 = vperm.xlu0 %2635, %v2507
        %v2637 = vpop.permute.xlu0 %2636
        %2640 = vset.pattern.permute.xlu0 0
        %2641 = vperm.xlu0 %2640, %v2508
        %v2642 = vpop.permute.xlu0 %2641
        %2645 = vset.pattern.permute.xlu0 0
        %2646 = vperm.xlu0 %2645, %v2509
        %v2647 = vpop.permute.xlu0 %2646
        %2650 = vset.pattern.permute.xlu0 0
        %2651 = vperm.xlu0 %2650, %v2510
        %v2652 = vpop.permute.xlu0 %2651
        %2655 = vset.pattern.permute.xlu0 0
        %2656 = vperm.xlu0 %2655, %v2511
        %v2657 = vpop.permute.xlu0 %2656
        %2660 = vset.pattern.permute.xlu0 0
        %2661 = vperm.xlu0 %2660, %v2512
        %v2662 = vpop.permute.xlu0 %2661
        %2665 = vset.pattern.permute.xlu0 0
        %2666 = vperm.xlu0 %2665, %v2513
        %v2667 = vpop.permute.xlu0 %2666
        %2670 = vset.pattern.permute.xlu0 0
        %2671 = vperm.xlu0 %2670, %v2514
        %v2672 = vpop.permute.xlu0 %2671
        %2675 = vset.pattern.permute.xlu0 0
        %2676 = vperm.xlu0 %2675, %v2515
        %v2677 = vpop.permute.xlu0 %2676
        %2680 = vset.pattern.permute.xlu0 0
        %2681 = vperm.xlu0 %2680, %v2516
        %v2682 = vpop.permute.xlu0 %2681
        %2685 = vset.pattern.permute.xlu0 0
        %2686 = vperm.xlu0 %2685, %v2517
        %v2687 = vpop.permute.xlu0 %2686
        %2690 = vset.pattern.permute.xlu0 0
        %2691 = vperm.xlu0 %2690, %v2518
        %v2692 = vpop.permute.xlu0 %2691
        %2695 = vset.pattern.permute.xlu0 0
        %2696 = vperm.xlu0 %2695, %v2519
        %v2697 = vpop.permute.xlu0 %2696
        %2700 = vset.pattern.permute.xlu0 0
        %2701 = vperm.xlu0 %2700, %v2520
        %v2702 = vpop.permute.xlu0 %2701
        %2705 = vset.pattern.permute.xlu0 0
        %2706 = vperm.xlu0 %2705, %v2521
        %v2707 = vpop.permute.xlu0 %2706
        %2710 = vset.pattern.permute.xlu0 0
        %2711 = vperm.xlu0 %2710, %v2522
        %v2712 = vpop.permute.xlu0 %2711
        %2715 = vset.pattern.permute.xlu0 0
        %2716 = vperm.xlu0 %2715, %v2523
        %v2717 = vpop.permute.xlu0 %2716
        %2720 = vset.pattern.permute.xlu0 0
        %2721 = vperm.xlu0 %2720, %v2524
        %v2722 = vpop.permute.xlu0 %2721
        %2725 = vset.pattern.permute.xlu0 0
        %2726 = vperm.xlu0 %2725, %v2525
        %v2727 = vpop.permute.xlu0 %2726
        %2730 = vset.pattern.permute.xlu0 0
        %2731 = vperm.xlu0 %2730, %v2526
        %v2732 = vpop.permute.xlu0 %2731
        %2735 = vset.pattern.permute.xlu0 0
        %2736 = vperm.xlu0 %2735, %v2527
        %v2737 = vpop.permute.xlu0 %2736
        %2740 = vset.pattern.permute.xlu0 0
        %2741 = vperm.xlu0 %2740, %v2528
        %v2742 = vpop.permute.xlu0 %2741
        %2745 = vset.pattern.permute.xlu0 0
        %2746 = vperm.xlu0 %2745, %v2529
        %v2747 = vpop.permute.xlu0 %2746
        %2750 = vset.pattern.permute.xlu0 0
        %2751 = vperm.xlu0 %2750, %v2530
        %v2752 = vpop.permute.xlu0 %2751
        %2755 = vset.pattern.permute.xlu0 0
        %2756 = vperm.xlu0 %2755, %v2531
        %v2757 = vpop.permute.xlu0 %2756
        %2760 = vset.pattern.permute.xlu0 0
        %2761 = vperm.xlu0 %2760, %v2532
        %v2762 = vpop.permute.xlu0 %2761
        %2765 = vset.pattern.permute.xlu0 0
        %2766 = vperm.xlu0 %2765, %v2533
        %v2767 = vpop.permute.xlu0 %2766
        %2770 = vset.pattern.permute.xlu0 0
        %2771 = vperm.xlu0 %2770, %v2534
        %v2772 = vpop.permute.xlu0 %2771
        %2775 = vset.pattern.permute.xlu0 0
        %2776 = vperm.xlu0 %2775, %v2535
        %v2777 = vpop.permute.xlu0 %2776
        %v2779 = vlaneseq
        %v2780 = vshrl.u32 %v2779, 7
        %v2781 = vsub.s32 0, %v2780
        %v2782 = vrot.slane %v2538, %v2781
        %v2783 = vmul.f32 %v2542, %v2782
        %v2784 = vmul.f32 %v2547, %v2782
        %v2785 = vmul.f32 %v2552, %v2782
        %v2786 = vmul.f32 %v2557, %v2782
        %v2787 = vmul.f32 %v2562, %v2782
        %v2788 = vmul.f32 %v2567, %v2782
        %v2789 = vmul.f32 %v2572, %v2782
        %v2790 = vmul.f32 %v2577, %v2782
        %v2791 = vmul.f32 %v2582, %v2782
        %v2792 = vmul.f32 %v2587, %v2782
        %v2793 = vmul.f32 %v2592, %v2782
        %v2794 = vmul.f32 %v2597, %v2782
        %v2795 = vmul.f32 %v2602, %v2782
        %v2796 = vmul.f32 %v2607, %v2782
        %v2797 = vmul.f32 %v2612, %v2782
        %v2798 = vmul.f32 %v2617, %v2782
        %v2799 = vmul.f32 %v2622, %v2782
        %v2800 = vmul.f32 %v2627, %v2782
        %v2801 = vmul.f32 %v2632, %v2782
        %v2802 = vmul.f32 %v2637, %v2782
        %v2803 = vmul.f32 %v2642, %v2782
        %v2804 = vmul.f32 %v2647, %v2782
        %v2805 = vmul.f32 %v2652, %v2782
        %v2806 = vmul.f32 %v2657, %v2782
        %v2807 = vmul.f32 %v2662, %v2782
        %v2808 = vmul.f32 %v2667, %v2782
        %v2809 = vmul.f32 %v2672, %v2782
        %v2810 = vmul.f32 %v2677, %v2782
        %v2811 = vmul.f32 %v2682, %v2782
        %v2812 = vmul.f32 %v2687, %v2782
        %v2813 = vmul.f32 %v2692, %v2782
        %v2814 = vmul.f32 %v2697, %v2782
        %v2815 = vmul.f32 %v2702, %v2782
        %v2816 = vmul.f32 %v2707, %v2782
        %v2817 = vmul.f32 %v2712, %v2782
        %v2818 = vmul.f32 %v2717, %v2782
        %v2819 = vmul.f32 %v2722, %v2782
        %v2820 = vmul.f32 %v2727, %v2782
        %v2821 = vmul.f32 %v2732, %v2782
        %v2822 = vmul.f32 %v2737, %v2782
        %v2823 = vmul.f32 %v2742, %v2782
        %v2824 = vmul.f32 %v2747, %v2782
        %v2825 = vmul.f32 %v2752, %v2782
        %v2826 = vmul.f32 %v2757, %v2782
        %v2827 = vmul.f32 %v2762, %v2782
        %v2828 = vmul.f32 %v2767, %v2782
        %v2829 = vmul.f32 %v2772, %v2782
        %v2830 = vmul.f32 %v2777, %v2782
        %v2831 = vld [vmem:[#allocation2] sm:$0xff]
        %v2832 = vld [vmem:[#allocation2 + $0x8] sm:$0xff]
        %v2833 = vld [vmem:[#allocation2 + $0x10] sm:$0xff]
        %v2834 = vld [vmem:[#allocation2 + $0x18] sm:$0xff]
        %v2835 = vld [vmem:[#allocation2 + $0x20] sm:$0xff]
        %v2836 = vld [vmem:[#allocation2 + $0x28] sm:$0xff]
        %v2837 = vld [vmem:[#allocation2 + $0x30] sm:$0xff]
        %v2838 = vld [vmem:[#allocation2 + $0x38] sm:$0xff]
        %v2839 = vld [vmem:[#allocation2 + $0x40] sm:$0xff]
        %v2840 = vld [vmem:[#allocation2 + $0x48] sm:$0xff]
        %v2841 = vld [vmem:[#allocation2 + $0x50] sm:$0xff]
        %v2842 = vld [vmem:[#allocation2 + $0x58] sm:$0xff]
        %v2843 = vld [vmem:[#allocation2 + $0x60] sm:$0xff]
        %v2844 = vld [vmem:[#allocation2 + $0x68] sm:$0xff]
        %v2845 = vld [vmem:[#allocation2 + $0x70] sm:$0xff]
        %v2846 = vld [vmem:[#allocation2 + $0x78] sm:$0xff]
        %v2847 = vld [vmem:[#allocation2 + $0x80] sm:$0xff]
        %v2848 = vld [vmem:[#allocation2 + $0x88] sm:$0xff]
        %v2849 = vld [vmem:[#allocation2 + $0x90] sm:$0xff]
        %v2850 = vld [vmem:[#allocation2 + $0x98] sm:$0xff]
        %v2851 = vld [vmem:[#allocation2 + $0xa0] sm:$0xff]
        %v2852 = vld [vmem:[#allocation2 + $0xa8] sm:$0xff]
        %v2853 = vld [vmem:[#allocation2 + $0xb0] sm:$0xff]
        %v2854 = vld [vmem:[#allocation2 + $0xb8] sm:$0xff]
        %v2855 = vld [vmem:[#allocation2 + $0xc0] sm:$0xff]
        %v2856 = vld [vmem:[#allocation2 + $0xc8] sm:$0xff]
        %v2857 = vld [vmem:[#allocation2 + $0xd0] sm:$0xff]
        %v2858 = vld [vmem:[#allocation2 + $0xd8] sm:$0xff]
        %v2859 = vld [vmem:[#allocation2 + $0xe0] sm:$0xff]
        %v2860 = vld [vmem:[#allocation2 + $0xe8] sm:$0xff]
        %v2861 = vld [vmem:[#allocation2 + $0xf0] sm:$0xff]
        %v2862 = vld [vmem:[#allocation2 + $0xf8] sm:$0xff]
        %v2863 = vld [vmem:[#allocation2 + $0x100] sm:$0xff]
        %v2864 = vld [vmem:[#allocation2 + $0x108] sm:$0xff]
        %v2865 = vld [vmem:[#allocation2 + $0x110] sm:$0xff]
        %v2866 = vld [vmem:[#allocation2 + $0x118] sm:$0xff]
        %v2867 = vld [vmem:[#allocation2 + $0x120] sm:$0xff]
        %v2868 = vld [vmem:[#allocation2 + $0x128] sm:$0xff]
        %v2869 = vld [vmem:[#allocation2 + $0x130] sm:$0xff]
        %v2870 = vld [vmem:[#allocation2 + $0x138] sm:$0xff]
        %v2871 = vld [vmem:[#allocation2 + $0x140] sm:$0xff]
        %v2872 = vld [vmem:[#allocation2 + $0x148] sm:$0xff]
        %v2873 = vld [vmem:[#allocation2 + $0x150] sm:$0xff]
        %v2874 = vld [vmem:[#allocation2 + $0x158] sm:$0xff]
        %v2875 = vld [vmem:[#allocation2 + $0x160] sm:$0xff]
        %v2876 = vld [vmem:[#allocation2 + $0x168] sm:$0xff]
        %v2877 = vld [vmem:[#allocation2 + $0x170] sm:$0xff]
        %v2878 = vld [vmem:[#allocation2 + $0x178] sm:$0xff]
        %v2879 = vadd.f32 %v2831, %v2783
        %v2880 = vadd.f32 %v2832, %v2784
        %v2881 = vadd.f32 %v2833, %v2785
        %v2882 = vadd.f32 %v2834, %v2786
        %v2883 = vadd.f32 %v2835, %v2787
        %v2884 = vadd.f32 %v2836, %v2788
        %v2885 = vadd.f32 %v2837, %v2789
        %v2886 = vadd.f32 %v2838, %v2790
        %v2887 = vadd.f32 %v2839, %v2791
        %v2888 = vadd.f32 %v2840, %v2792
        %v2889 = vadd.f32 %v2841, %v2793
        %v2890 = vadd.f32 %v2842, %v2794
        %v2891 = vadd.f32 %v2843, %v2795
        %v2892 = vadd.f32 %v2844, %v2796
        %v2893 = vadd.f32 %v2845, %v2797
        %v2894 = vadd.f32 %v2846, %v2798
        %v2895 = vadd.f32 %v2847, %v2799
        %v2896 = vadd.f32 %v2848, %v2800
        %v2897 = vadd.f32 %v2849, %v2801
        %v2898 = vadd.f32 %v2850, %v2802
        %v2899 = vadd.f32 %v2851, %v2803
        %v2900 = vadd.f32 %v2852, %v2804
        %v2901 = vadd.f32 %v2853, %v2805
        %v2902 = vadd.f32 %v2854, %v2806
        %v2903 = vadd.f32 %v2855, %v2807
        %v2904 = vadd.f32 %v2856, %v2808
        %v2905 = vadd.f32 %v2857, %v2809
        %v2906 = vadd.f32 %v2858, %v2810
        %v2907 = vadd.f32 %v2859, %v2811
        %v2908 = vadd.f32 %v2860, %v2812
        %v2909 = vadd.f32 %v2861, %v2813
        %v2910 = vadd.f32 %v2862, %v2814
        %v2911 = vadd.f32 %v2863, %v2815
        %v2912 = vadd.f32 %v2864, %v2816
        %v2913 = vadd.f32 %v2865, %v2817
        %v2914 = vadd.f32 %v2866, %v2818
        %v2915 = vadd.f32 %v2867, %v2819
        %v2916 = vadd.f32 %v2868, %v2820
        %v2917 = vadd.f32 %v2869, %v2821
        %v2918 = vadd.f32 %v2870, %v2822
        %v2919 = vadd.f32 %v2871, %v2823
        %v2920 = vadd.f32 %v2872, %v2824
        %v2921 = vadd.f32 %v2873, %v2825
        %v2922 = vadd.f32 %v2874, %v2826
        %v2923 = vadd.f32 %v2875, %v2827
        %v2924 = vadd.f32 %v2876, %v2828
        %v2925 = vadd.f32 %v2877, %v2829
        %v2926 = vadd.f32 %v2878, %v2830
        %2927 = vst.msk [vmem:[#allocation2] sm:$0xff] %vm915, %v2879
        %2928 = vst.msk [vmem:[#allocation2 + $0x8] sm:$0xff] %vm915, %v2880
        %2929 = vst.msk [vmem:[#allocation2 + $0x10] sm:$0xff] %vm915, %v2881
        %2930 = vst.msk [vmem:[#allocation2 + $0x18] sm:$0xff] %vm915, %v2882
        %2931 = vst.msk [vmem:[#allocation2 + $0x20] sm:$0xff] %vm915, %v2883
        %2932 = vst.msk [vmem:[#allocation2 + $0x28] sm:$0xff] %vm915, %v2884
        %2933 = vst.msk [vmem:[#allocation2 + $0x30] sm:$0xff] %vm915, %v2885
        %2934 = vst.msk [vmem:[#allocation2 + $0x38] sm:$0xff] %vm915, %v2886
        %2935 = vst.msk [vmem:[#allocation2 + $0x40] sm:$0xff] %vm915, %v2887
        %2936 = vst.msk [vmem:[#allocation2 + $0x48] sm:$0xff] %vm915, %v2888
        %2937 = vst.msk [vmem:[#allocation2 + $0x50] sm:$0xff] %vm915, %v2889
        %2938 = vst.msk [vmem:[#allocation2 + $0x58] sm:$0xff] %vm915, %v2890
        %2939 = vst.msk [vmem:[#allocation2 + $0x60] sm:$0xff] %vm915, %v2891
        %2940 = vst.msk [vmem:[#allocation2 + $0x68] sm:$0xff] %vm915, %v2892
        %2941 = vst.msk [vmem:[#allocation2 + $0x70] sm:$0xff] %vm915, %v2893
        %2942 = vst.msk [vmem:[#allocation2 + $0x78] sm:$0xff] %vm915, %v2894
        %2943 = vst.msk [vmem:[#allocation2 + $0x80] sm:$0xff] %vm915, %v2895
        %2944 = vst.msk [vmem:[#allocation2 + $0x88] sm:$0xff] %vm915, %v2896
        %2945 = vst.msk [vmem:[#allocation2 + $0x90] sm:$0xff] %vm915, %v2897
        %2946 = vst.msk [vmem:[#allocation2 + $0x98] sm:$0xff] %vm915, %v2898
        %2947 = vst.msk [vmem:[#allocation2 + $0xa0] sm:$0xff] %vm915, %v2899
        %2948 = vst.msk [vmem:[#allocation2 + $0xa8] sm:$0xff] %vm915, %v2900
        %2949 = vst.msk [vmem:[#allocation2 + $0xb0] sm:$0xff] %vm915, %v2901
        %2950 = vst.msk [vmem:[#allocation2 + $0xb8] sm:$0xff] %vm915, %v2902
        %2951 = vst.msk [vmem:[#allocation2 + $0xc0] sm:$0xff] %vm915, %v2903
        %2952 = vst.msk [vmem:[#allocation2 + $0xc8] sm:$0xff] %vm915, %v2904
        %2953 = vst.msk [vmem:[#allocation2 + $0xd0] sm:$0xff] %vm915, %v2905
        %2954 = vst.msk [vmem:[#allocation2 + $0xd8] sm:$0xff] %vm915, %v2906
        %2955 = vst.msk [vmem:[#allocation2 + $0xe0] sm:$0xff] %vm915, %v2907
        %2956 = vst.msk [vmem:[#allocation2 + $0xe8] sm:$0xff] %vm915, %v2908
        %2957 = vst.msk [vmem:[#allocation2 + $0xf0] sm:$0xff] %vm915, %v2909
        %2958 = vst.msk [vmem:[#allocation2 + $0xf8] sm:$0xff] %vm915, %v2910
        %2959 = vst.msk [vmem:[#allocation2 + $0x100] sm:$0xff] %vm915, %v2911
        %2960 = vst.msk [vmem:[#allocation2 + $0x108] sm:$0xff] %vm915, %v2912
        %2961 = vst.msk [vmem:[#allocation2 + $0x110] sm:$0xff] %vm915, %v2913
        %2962 = vst.msk [vmem:[#allocation2 + $0x118] sm:$0xff] %vm915, %v2914
        %2963 = vst.msk [vmem:[#allocation2 + $0x120] sm:$0xff] %vm915, %v2915
        %2964 = vst.msk [vmem:[#allocation2 + $0x128] sm:$0xff] %vm915, %v2916
        %2965 = vst.msk [vmem:[#allocation2 + $0x130] sm:$0xff] %vm915, %v2917
        %2966 = vst.msk [vmem:[#allocation2 + $0x138] sm:$0xff] %vm915, %v2918
        %2967 = vst.msk [vmem:[#allocation2 + $0x140] sm:$0xff] %vm915, %v2919
        %2968 = vst.msk [vmem:[#allocation2 + $0x148] sm:$0xff] %vm915, %v2920
        %2969 = vst.msk [vmem:[#allocation2 + $0x150] sm:$0xff] %vm915, %v2921
        %2970 = vst.msk [vmem:[#allocation2 + $0x158] sm:$0xff] %vm915, %v2922
        %2971 = vst.msk [vmem:[#allocation2 + $0x160] sm:$0xff] %vm915, %v2923
        %2972 = vst.msk [vmem:[#allocation2 + $0x168] sm:$0xff] %vm915, %v2924
        %2973 = vst.msk [vmem:[#allocation2 + $0x170] sm:$0xff] %vm915, %v2925
        %2974 = vst.msk [vmem:[#allocation2 + $0x178] sm:$0xff] %vm915, %v2926
        %v2975 = vld [vmem:[%s523 + $0xc] sm:$0xf]
        %v2976 = vld [vmem:[%s523 + $0x10] sm:$0xf]
        %v2977 = vld [vmem:[%s523 + $0x14] sm:$0xf]
        %v2978 = vld [vmem:[%s523 + $0x18] sm:$0xf]
        %v2979 = vld [vmem:[%s523 + $0x1c] sm:$0xf]
        %v2980 = vld [vmem:[%s523 + $0x20] sm:$0xf]
        %v2981 = vld [vmem:[%s523 + $0x24] sm:$0xf]
        %v2982 = vld [vmem:[%s523 + $0x28] sm:$0xf]
        %v2983 = vld [vmem:[%s523 + $0x2c] sm:$0xf]
        %v2984 = vld [vmem:[%s523 + $0x30] sm:$0xf]
        %v2985 = vld [vmem:[%s523 + $0x34] sm:$0xf]
        %v2986 = vld [vmem:[%s523 + $0x38] sm:$0xf]
        %v2987 = vld [vmem:[%s523 + $0x3c] sm:$0xf]
        %v2988 = vld [vmem:[%s523 + $0x40] sm:$0xf]
        %v2989 = vld [vmem:[%s523 + $0x44] sm:$0xf]
        %v2990 = vld [vmem:[%s523 + $0x48] sm:$0xf]
        %v2991 = vld [vmem:[%s523 + $0x4c] sm:$0xf]
        %v2992 = vld [vmem:[%s523 + $0x50] sm:$0xf]
        %v2993 = vld [vmem:[%s523 + $0x54] sm:$0xf]
        %v2994 = vld [vmem:[%s523 + $0x58] sm:$0xf]
        %v2995 = vld [vmem:[%s523 + $0x5c] sm:$0xf]
        %v2996 = vld [vmem:[%s523 + $0x60] sm:$0xf]
        %v2997 = vld [vmem:[%s523 + $0x64] sm:$0xf]
        %v2998 = vld [vmem:[%s523 + $0x68] sm:$0xf]
        %v2999 = vld [vmem:[%s523 + $0x6c] sm:$0xf]
        %v3000 = vld [vmem:[%s523 + $0x70] sm:$0xf]
        %v3001 = vld [vmem:[%s523 + $0x74] sm:$0xf]
        %v3002 = vld [vmem:[%s523 + $0x78] sm:$0xf]
        %v3003 = vld [vmem:[%s523 + $0x7c] sm:$0xf]
        %v3004 = vld [vmem:[%s523 + $0x80] sm:$0xf]
        %v3005 = vld [vmem:[%s523 + $0x84] sm:$0xf]
        %v3006 = vld [vmem:[%s523 + $0x88] sm:$0xf]
        %v3007 = vld [vmem:[%s523 + $0x8c] sm:$0xf]
        %v3008 = vld [vmem:[%s523 + $0x90] sm:$0xf]
        %v3009 = vld [vmem:[%s523 + $0x94] sm:$0xf]
        %v3010 = vld [vmem:[%s523 + $0x98] sm:$0xf]
        %v3011 = vld [vmem:[%s523 + $0x9c] sm:$0xf]
        %v3012 = vld [vmem:[%s523 + $0xa0] sm:$0xf]
        %v3013 = vld [vmem:[%s523 + $0xa4] sm:$0xf]
        %v3014 = vld [vmem:[%s523 + $0xa8] sm:$0xf]
        %v3015 = vld [vmem:[%s523 + $0xac] sm:$0xf]
        %v3016 = vld [vmem:[%s523 + $0xb0] sm:$0xf]
        %v3017 = vld [vmem:[%s523 + $0xb4] sm:$0xf]
        %v3018 = vld [vmem:[%s523 + $0xb8] sm:$0xf]
        %v3019 = vld [vmem:[%s523 + $0xbc] sm:$0xf]
        %v3020 = vld [vmem:[%s523 + $0xc0] sm:$0xf]
        %v3021 = vld [vmem:[%s523 + $0xc4] sm:$0xf]
        %v3022 = vld [vmem:[%s523 + $0xc8] sm:$0xf]
        %v3023 = vld [vmem:[%s523 + $0xcc] sm:$0x1]
        %v3024 = vunpack.c.l.bf16 %v2975
        %v3025 = vunpack.c.l.bf16 %v2976
        %v3026 = vunpack.c.l.bf16 %v2977
        %v3027 = vunpack.c.l.bf16 %v2978
        %v3028 = vunpack.c.l.bf16 %v2979
        %v3029 = vunpack.c.l.bf16 %v2980
        %v3030 = vunpack.c.l.bf16 %v2981
        %v3031 = vunpack.c.l.bf16 %v2982
        %v3032 = vunpack.c.l.bf16 %v2983
        %v3033 = vunpack.c.l.bf16 %v2984
        %v3034 = vunpack.c.l.bf16 %v2985
        %v3035 = vunpack.c.l.bf16 %v2986
        %v3036 = vunpack.c.l.bf16 %v2987
        %v3037 = vunpack.c.l.bf16 %v2988
        %v3038 = vunpack.c.l.bf16 %v2989
        %v3039 = vunpack.c.l.bf16 %v2990
        %v3040 = vunpack.c.l.bf16 %v2991
        %v3041 = vunpack.c.l.bf16 %v2992
        %v3042 = vunpack.c.l.bf16 %v2993
        %v3043 = vunpack.c.l.bf16 %v2994
        %v3044 = vunpack.c.l.bf16 %v2995
        %v3045 = vunpack.c.l.bf16 %v2996
        %v3046 = vunpack.c.l.bf16 %v2997
        %v3047 = vunpack.c.l.bf16 %v2998
        %v3048 = vunpack.c.l.bf16 %v2999
        %v3049 = vunpack.c.l.bf16 %v3000
        %v3050 = vunpack.c.l.bf16 %v3001
        %v3051 = vunpack.c.l.bf16 %v3002
        %v3052 = vunpack.c.l.bf16 %v3003
        %v3053 = vunpack.c.l.bf16 %v3004
        %v3054 = vunpack.c.l.bf16 %v3005
        %v3055 = vunpack.c.l.bf16 %v3006
        %v3056 = vunpack.c.l.bf16 %v3007
        %v3057 = vunpack.c.l.bf16 %v3008
        %v3058 = vunpack.c.l.bf16 %v3009
        %v3059 = vunpack.c.l.bf16 %v3010
        %v3060 = vunpack.c.l.bf16 %v3011
        %v3061 = vunpack.c.l.bf16 %v3012
        %v3062 = vunpack.c.l.bf16 %v3013
        %v3063 = vunpack.c.l.bf16 %v3014
        %v3064 = vunpack.c.l.bf16 %v3015
        %v3065 = vunpack.c.l.bf16 %v3016
        %v3066 = vunpack.c.l.bf16 %v3017
        %v3067 = vunpack.c.l.bf16 %v3018
        %v3068 = vunpack.c.l.bf16 %v3019
        %v3069 = vunpack.c.l.bf16 %v3020
        %v3070 = vunpack.c.l.bf16 %v3021
        %v3071 = vunpack.c.l.bf16 %v3022
        %v3072 = vunpack.c.l.bf16 %v3023
        %s3073 = scalar_lea.vmem %s1, 4
        %v3074 = vld [vmem:[%s3073] sm:$0x1]
        %v3075 = vunpack.c.l.bf16 %v3074
        %3077 = vset.pattern.permute.xlu0 0
        %3078 = vperm.xlu0 %3077, %v3024
        %v3079 = vpop.permute.xlu0 %3078
        %3082 = vset.pattern.permute.xlu0 0
        %3083 = vperm.xlu0 %3082, %v3025
        %v3084 = vpop.permute.xlu0 %3083
        %3087 = vset.pattern.permute.xlu0 0
        %3088 = vperm.xlu0 %3087, %v3026
        %v3089 = vpop.permute.xlu0 %3088
        %3092 = vset.pattern.permute.xlu0 0
        %3093 = vperm.xlu0 %3092, %v3027
        %v3094 = vpop.permute.xlu0 %3093
        %3097 = vset.pattern.permute.xlu0 0
        %3098 = vperm.xlu0 %3097, %v3028
        %v3099 = vpop.permute.xlu0 %3098
        %3102 = vset.pattern.permute.xlu0 0
        %3103 = vperm.xlu0 %3102, %v3029
        %v3104 = vpop.permute.xlu0 %3103
        %3107 = vset.pattern.permute.xlu0 0
        %3108 = vperm.xlu0 %3107, %v3030
        %v3109 = vpop.permute.xlu0 %3108
        %3112 = vset.pattern.permute.xlu0 0
        %3113 = vperm.xlu0 %3112, %v3031
        %v3114 = vpop.permute.xlu0 %3113
        %3117 = vset.pattern.permute.xlu0 0
        %3118 = vperm.xlu0 %3117, %v3032
        %v3119 = vpop.permute.xlu0 %3118
        %3122 = vset.pattern.permute.xlu0 0
        %3123 = vperm.xlu0 %3122, %v3033
        %v3124 = vpop.permute.xlu0 %3123
        %3127 = vset.pattern.permute.xlu0 0
        %3128 = vperm.xlu0 %3127, %v3034
        %v3129 = vpop.permute.xlu0 %3128
        %3132 = vset.pattern.permute.xlu0 0
        %3133 = vperm.xlu0 %3132, %v3035
        %v3134 = vpop.permute.xlu0 %3133
        %3137 = vset.pattern.permute.xlu0 0
        %3138 = vperm.xlu0 %3137, %v3036
        %v3139 = vpop.permute.xlu0 %3138
        %3142 = vset.pattern.permute.xlu0 0
        %3143 = vperm.xlu0 %3142, %v3037
        %v3144 = vpop.permute.xlu0 %3143
        %3147 = vset.pattern.permute.xlu0 0
        %3148 = vperm.xlu0 %3147, %v3038
        %v3149 = vpop.permute.xlu0 %3148
        %3152 = vset.pattern.permute.xlu0 0
        %3153 = vperm.xlu0 %3152, %v3039
        %v3154 = vpop.permute.xlu0 %3153
        %3157 = vset.pattern.permute.xlu0 0
        %3158 = vperm.xlu0 %3157, %v3040
        %v3159 = vpop.permute.xlu0 %3158
        %3162 = vset.pattern.permute.xlu0 0
        %3163 = vperm.xlu0 %3162, %v3041
        %v3164 = vpop.permute.xlu0 %3163
        %3167 = vset.pattern.permute.xlu0 0
        %3168 = vperm.xlu0 %3167, %v3042
        %v3169 = vpop.permute.xlu0 %3168
        %3172 = vset.pattern.permute.xlu0 0
        %3173 = vperm.xlu0 %3172, %v3043
        %v3174 = vpop.permute.xlu0 %3173
        %3177 = vset.pattern.permute.xlu0 0
        %3178 = vperm.xlu0 %3177, %v3044
        %v3179 = vpop.permute.xlu0 %3178
        %3182 = vset.pattern.permute.xlu0 0
        %3183 = vperm.xlu0 %3182, %v3045
        %v3184 = vpop.permute.xlu0 %3183
        %3187 = vset.pattern.permute.xlu0 0
        %3188 = vperm.xlu0 %3187, %v3046
        %v3189 = vpop.permute.xlu0 %3188
        %3192 = vset.pattern.permute.xlu0 0
        %3193 = vperm.xlu0 %3192, %v3047
        %v3194 = vpop.permute.xlu0 %3193
        %3197 = vset.pattern.permute.xlu0 0
        %3198 = vperm.xlu0 %3197, %v3048
        %v3199 = vpop.permute.xlu0 %3198
        %3202 = vset.pattern.permute.xlu0 0
        %3203 = vperm.xlu0 %3202, %v3049
        %v3204 = vpop.permute.xlu0 %3203
        %3207 = vset.pattern.permute.xlu0 0
        %3208 = vperm.xlu0 %3207, %v3050
        %v3209 = vpop.permute.xlu0 %3208
        %3212 = vset.pattern.permute.xlu0 0
        %3213 = vperm.xlu0 %3212, %v3051
        %v3214 = vpop.permute.xlu0 %3213
        %3217 = vset.pattern.permute.xlu0 0
        %3218 = vperm.xlu0 %3217, %v3052
        %v3219 = vpop.permute.xlu0 %3218
        %3222 = vset.pattern.permute.xlu0 0
        %3223 = vperm.xlu0 %3222, %v3053
        %v3224 = vpop.permute.xlu0 %3223
        %3227 = vset.pattern.permute.xlu0 0
        %3228 = vperm.xlu0 %3227, %v3054
        %v3229 = vpop.permute.xlu0 %3228
        %3232 = vset.pattern.permute.xlu0 0
        %3233 = vperm.xlu0 %3232, %v3055
        %v3234 = vpop.permute.xlu0 %3233
        %3237 = vset.pattern.permute.xlu0 0
        %3238 = vperm.xlu0 %3237, %v3056
        %v3239 = vpop.permute.xlu0 %3238
        %3242 = vset.pattern.permute.xlu0 0
        %3243 = vperm.xlu0 %3242, %v3057
        %v3244 = vpop.permute.xlu0 %3243
        %3247 = vset.pattern.permute.xlu0 0
        %3248 = vperm.xlu0 %3247, %v3058
        %v3249 = vpop.permute.xlu0 %3248
        %3252 = vset.pattern.permute.xlu0 0
        %3253 = vperm.xlu0 %3252, %v3059
        %v3254 = vpop.permute.xlu0 %3253
        %3257 = vset.pattern.permute.xlu0 0
        %3258 = vperm.xlu0 %3257, %v3060
        %v3259 = vpop.permute.xlu0 %3258
        %3262 = vset.pattern.permute.xlu0 0
        %3263 = vperm.xlu0 %3262, %v3061
        %v3264 = vpop.permute.xlu0 %3263
        %3267 = vset.pattern.permute.xlu0 0
        %3268 = vperm.xlu0 %3267, %v3062
        %v3269 = vpop.permute.xlu0 %3268
        %3272 = vset.pattern.permute.xlu0 0
        %3273 = vperm.xlu0 %3272, %v3063
        %v3274 = vpop.permute.xlu0 %3273
        %3277 = vset.pattern.permute.xlu0 0
        %3278 = vperm.xlu0 %3277, %v3064
        %v3279 = vpop.permute.xlu0 %3278
        %3282 = vset.pattern.permute.xlu0 0
        %3283 = vperm.xlu0 %3282, %v3065
        %v3284 = vpop.permute.xlu0 %3283
        %3287 = vset.pattern.permute.xlu0 0
        %3288 = vperm.xlu0 %3287, %v3066
        %v3289 = vpop.permute.xlu0 %3288
        %3292 = vset.pattern.permute.xlu0 0
        %3293 = vperm.xlu0 %3292, %v3067
        %v3294 = vpop.permute.xlu0 %3293
        %3297 = vset.pattern.permute.xlu0 0
        %3298 = vperm.xlu0 %3297, %v3068
        %v3299 = vpop.permute.xlu0 %3298
        %3302 = vset.pattern.permute.xlu0 0
        %3303 = vperm.xlu0 %3302, %v3069
        %v3304 = vpop.permute.xlu0 %3303
        %3307 = vset.pattern.permute.xlu0 0
        %3308 = vperm.xlu0 %3307, %v3070
        %v3309 = vpop.permute.xlu0 %3308
        %3312 = vset.pattern.permute.xlu0 0
        %3313 = vperm.xlu0 %3312, %v3071
        %v3314 = vpop.permute.xlu0 %3313
        %3317 = vset.pattern.permute.xlu0 0
        %3318 = vperm.xlu0 %3317, %v3072
        %v3319 = vpop.permute.xlu0 %3318
        %v3321 = vlaneseq
        %v3322 = vshrl.u32 %v3321, 7
        %v3323 = vsub.s32 0, %v3322
        %v3324 = vrot.slane %v3075, %v3323
        %v3325 = vmul.f32 %v3079, %v3324
        %v3326 = vmul.f32 %v3084, %v3324
        %v3327 = vmul.f32 %v3089, %v3324
        %v3328 = vmul.f32 %v3094, %v3324
        %v3329 = vmul.f32 %v3099, %v3324
        %v3330 = vmul.f32 %v3104, %v3324
        %v3331 = vmul.f32 %v3109, %v3324
        %v3332 = vmul.f32 %v3114, %v3324
        %v3333 = vmul.f32 %v3119, %v3324
        %v3334 = vmul.f32 %v3124, %v3324
        %v3335 = vmul.f32 %v3129, %v3324
        %v3336 = vmul.f32 %v3134, %v3324
        %v3337 = vmul.f32 %v3139, %v3324
        %v3338 = vmul.f32 %v3144, %v3324
        %v3339 = vmul.f32 %v3149, %v3324
        %v3340 = vmul.f32 %v3154, %v3324
        %v3341 = vmul.f32 %v3159, %v3324
        %v3342 = vmul.f32 %v3164, %v3324
        %v3343 = vmul.f32 %v3169, %v3324
        %v3344 = vmul.f32 %v3174, %v3324
        %v3345 = vmul.f32 %v3179, %v3324
        %v3346 = vmul.f32 %v3184, %v3324
        %v3347 = vmul.f32 %v3189, %v3324
        %v3348 = vmul.f32 %v3194, %v3324
        %v3349 = vmul.f32 %v3199, %v3324
        %v3350 = vmul.f32 %v3204, %v3324
        %v3351 = vmul.f32 %v3209, %v3324
        %v3352 = vmul.f32 %v3214, %v3324
        %v3353 = vmul.f32 %v3219, %v3324
        %v3354 = vmul.f32 %v3224, %v3324
        %v3355 = vmul.f32 %v3229, %v3324
        %v3356 = vmul.f32 %v3234, %v3324
        %v3357 = vmul.f32 %v3239, %v3324
        %v3358 = vmul.f32 %v3244, %v3324
        %v3359 = vmul.f32 %v3249, %v3324
        %v3360 = vmul.f32 %v3254, %v3324
        %v3361 = vmul.f32 %v3259, %v3324
        %v3362 = vmul.f32 %v3264, %v3324
        %v3363 = vmul.f32 %v3269, %v3324
        %v3364 = vmul.f32 %v3274, %v3324
        %v3365 = vmul.f32 %v3279, %v3324
        %v3366 = vmul.f32 %v3284, %v3324
        %v3367 = vmul.f32 %v3289, %v3324
        %v3368 = vmul.f32 %v3294, %v3324
        %v3369 = vmul.f32 %v3299, %v3324
        %v3370 = vmul.f32 %v3304, %v3324
        %v3371 = vmul.f32 %v3309, %v3324
        %v3372 = vmul.f32 %v3314, %v3324
        %v3373 = vmul.f32 %v3319, %v3324
        %v3374 = vld [vmem:[#allocation2] sm:$0xff]
        %v3375 = vld [vmem:[#allocation2 + $0x8] sm:$0xff]
        %v3376 = vld [vmem:[#allocation2 + $0x10] sm:$0xff]
        %v3377 = vld [vmem:[#allocation2 + $0x18] sm:$0xff]
        %v3378 = vld [vmem:[#allocation2 + $0x20] sm:$0xff]
        %v3379 = vld [vmem:[#allocation2 + $0x28] sm:$0xff]
        %v3380 = vld [vmem:[#allocation2 + $0x30] sm:$0xff]
        %v3381 = vld [vmem:[#allocation2 + $0x38] sm:$0xff]
        %v3382 = vld [vmem:[#allocation2 + $0x40] sm:$0xff]
        %v3383 = vld [vmem:[#allocation2 + $0x48] sm:$0xff]
        %v3384 = vld [vmem:[#allocation2 + $0x50] sm:$0xff]
        %v3385 = vld [vmem:[#allocation2 + $0x58] sm:$0xff]
        %v3386 = vld [vmem:[#allocation2 + $0x60] sm:$0xff]
        %v3387 = vld [vmem:[#allocation2 + $0x68] sm:$0xff]
        %v3388 = vld [vmem:[#allocation2 + $0x70] sm:$0xff]
        %v3389 = vld [vmem:[#allocation2 + $0x78] sm:$0xff]
        %v3390 = vld [vmem:[#allocation2 + $0x80] sm:$0xff]
        %v3391 = vld [vmem:[#allocation2 + $0x88] sm:$0xff]
        %v3392 = vld [vmem:[#allocation2 + $0x90] sm:$0xff]
        %v3393 = vld [vmem:[#allocation2 + $0x98] sm:$0xff]
        %v3394 = vld [vmem:[#allocation2 + $0xa0] sm:$0xff]
        %v3395 = vld [vmem:[#allocation2 + $0xa8] sm:$0xff]
        %v3396 = vld [vmem:[#allocation2 + $0xb0] sm:$0xff]
        %v3397 = vld [vmem:[#allocation2 + $0xb8] sm:$0xff]
        %v3398 = vld [vmem:[#allocation2 + $0xc0] sm:$0xff]
        %v3399 = vld [vmem:[#allocation2 + $0xc8] sm:$0xff]
        %v3400 = vld [vmem:[#allocation2 + $0xd0] sm:$0xff]
        %v3401 = vld [vmem:[#allocation2 + $0xd8] sm:$0xff]
        %v3402 = vld [vmem:[#allocation2 + $0xe0] sm:$0xff]
        %v3403 = vld [vmem:[#allocation2 + $0xe8] sm:$0xff]
        %v3404 = vld [vmem:[#allocation2 + $0xf0] sm:$0xff]
        %v3405 = vld [vmem:[#allocation2 + $0xf8] sm:$0xff]
        %v3406 = vld [vmem:[#allocation2 + $0x100] sm:$0xff]
        %v3407 = vld [vmem:[#allocation2 + $0x108] sm:$0xff]
        %v3408 = vld [vmem:[#allocation2 + $0x110] sm:$0xff]
        %v3409 = vld [vmem:[#allocation2 + $0x118] sm:$0xff]
        %v3410 = vld [vmem:[#allocation2 + $0x120] sm:$0xff]
        %v3411 = vld [vmem:[#allocation2 + $0x128] sm:$0xff]
        %v3412 = vld [vmem:[#allocation2 + $0x130] sm:$0xff]
        %v3413 = vld [vmem:[#allocation2 + $0x138] sm:$0xff]
        %v3414 = vld [vmem:[#allocation2 + $0x140] sm:$0xff]
        %v3415 = vld [vmem:[#allocation2 + $0x148] sm:$0xff]
        %v3416 = vld [vmem:[#allocation2 + $0x150] sm:$0xff]
        %v3417 = vld [vmem:[#allocation2 + $0x158] sm:$0xff]
        %v3418 = vld [vmem:[#allocation2 + $0x160] sm:$0xff]
        %v3419 = vld [vmem:[#allocation2 + $0x168] sm:$0xff]
        %v3420 = vld [vmem:[#allocation2 + $0x170] sm:$0xff]
        %v3421 = vld [vmem:[#allocation2 + $0x178] sm:$0xff]
        %v3471 = vrot.slane %v3325, 1
        %v3472 = vrot.slane %v3326, 1
        %v3473 = vsel %vm1460, %v3471, %v3472
        %v3474 = vrot.slane %v3327, 1
        %v3475 = vsel %vm1460, %v3472, %v3474
        %v3476 = vrot.slane %v3328, 1
        %v3477 = vsel %vm1460, %v3474, %v3476
        %v3478 = vrot.slane %v3329, 1
        %v3479 = vsel %vm1460, %v3476, %v3478
        %v3480 = vrot.slane %v3330, 1
        %v3481 = vsel %vm1460, %v3478, %v3480
        %v3482 = vrot.slane %v3331, 1
        %v3483 = vsel %vm1460, %v3480, %v3482
        %v3484 = vrot.slane %v3332, 1
        %v3485 = vsel %vm1460, %v3482, %v3484
        %v3486 = vrot.slane %v3333, 1
        %v3487 = vsel %vm1460, %v3484, %v3486
        %v3488 = vrot.slane %v3334, 1
        %v3489 = vsel %vm1460, %v3486, %v3488
        %v3490 = vrot.slane %v3335, 1
        %v3491 = vsel %vm1460, %v3488, %v3490
        %v3492 = vrot.slane %v3336, 1
        %v3493 = vsel %vm1460, %v3490, %v3492
        %v3494 = vrot.slane %v3337, 1
        %v3495 = vsel %vm1460, %v3492, %v3494
        %v3496 = vrot.slane %v3338, 1
        %v3497 = vsel %vm1460, %v3494, %v3496
        %v3498 = vrot.slane %v3339, 1
        %v3499 = vsel %vm1460, %v3496, %v3498
        %v3500 = vrot.slane %v3340, 1
        %v3501 = vsel %vm1460, %v3498, %v3500
        %v3502 = vrot.slane %v3341, 1
        %v3503 = vsel %vm1460, %v3500, %v3502
        %v3504 = vrot.slane %v3342, 1
        %v3505 = vsel %vm1460, %v3502, %v3504
        %v3506 = vrot.slane %v3343, 1
        %v3507 = vsel %vm1460, %v3504, %v3506
        %v3508 = vrot.slane %v3344, 1
        %v3509 = vsel %vm1460, %v3506, %v3508
        %v3510 = vrot.slane %v3345, 1
        %v3511 = vsel %vm1460, %v3508, %v3510
        %v3512 = vrot.slane %v3346, 1
        %v3513 = vsel %vm1460, %v3510, %v3512
        %v3514 = vrot.slane %v3347, 1
        %v3515 = vsel %vm1460, %v3512, %v3514
        %v3516 = vrot.slane %v3348, 1
        %v3517 = vsel %vm1460, %v3514, %v3516
        %v3518 = vrot.slane %v3349, 1
        %v3519 = vsel %vm1460, %v3516, %v3518
        %v3520 = vrot.slane %v3350, 1
        %v3521 = vsel %vm1460, %v3518, %v3520
        %v3522 = vrot.slane %v3351, 1
        %v3523 = vsel %vm1460, %v3520, %v3522
        %v3524 = vrot.slane %v3352, 1
        %v3525 = vsel %vm1460, %v3522, %v3524
        %v3526 = vrot.slane %v3353, 1
        %v3527 = vsel %vm1460, %v3524, %v3526
        %v3528 = vrot.slane %v3354, 1
        %v3529 = vsel %vm1460, %v3526, %v3528
        %v3530 = vrot.slane %v3355, 1
        %v3531 = vsel %vm1460, %v3528, %v3530
        %v3532 = vrot.slane %v3356, 1
        %v3533 = vsel %vm1460, %v3530, %v3532
        %v3534 = vrot.slane %v3357, 1
        %v3535 = vsel %vm1460, %v3532, %v3534
        %v3536 = vrot.slane %v3358, 1
        %v3537 = vsel %vm1460, %v3534, %v3536
        %v3538 = vrot.slane %v3359, 1
        %v3539 = vsel %vm1460, %v3536, %v3538
        %v3540 = vrot.slane %v3360, 1
        %v3541 = vsel %vm1460, %v3538, %v3540
        %v3542 = vrot.slane %v3361, 1
        %v3543 = vsel %vm1460, %v3540, %v3542
        %v3544 = vrot.slane %v3362, 1
        %v3545 = vsel %vm1460, %v3542, %v3544
        %v3546 = vrot.slane %v3363, 1
        %v3547 = vsel %vm1460, %v3544, %v3546
        %v3548 = vrot.slane %v3364, 1
        %v3549 = vsel %vm1460, %v3546, %v3548
        %v3550 = vrot.slane %v3365, 1
        %v3551 = vsel %vm1460, %v3548, %v3550
        %v3552 = vrot.slane %v3366, 1
        %v3553 = vsel %vm1460, %v3550, %v3552
        %v3554 = vrot.slane %v3367, 1
        %v3555 = vsel %vm1460, %v3552, %v3554
        %v3556 = vrot.slane %v3368, 1
        %v3557 = vsel %vm1460, %v3554, %v3556
        %v3558 = vrot.slane %v3369, 1
        %v3559 = vsel %vm1460, %v3556, %v3558
        %v3560 = vrot.slane %v3370, 1
        %v3561 = vsel %vm1460, %v3558, %v3560
        %v3562 = vrot.slane %v3371, 1
        %v3563 = vsel %vm1460, %v3560, %v3562
        %v3564 = vrot.slane %v3372, 1
        %v3565 = vsel %vm1460, %v3562, %v3564
        %v3566 = vrot.slane %v3373, 1
        %v3567 = vsel %vm1460, %v3564, %v3566
        %v3616 = vadd.f32 %v3374, %v3473
        %v3617 = vadd.f32 %v3375, %v3475
        %v3618 = vadd.f32 %v3376, %v3477
        %v3619 = vadd.f32 %v3377, %v3479
        %v3620 = vadd.f32 %v3378, %v3481
        %v3621 = vadd.f32 %v3379, %v3483
        %v3622 = vadd.f32 %v3380, %v3485
        %v3623 = vadd.f32 %v3381, %v3487
        %v3624 = vadd.f32 %v3382, %v3489
        %v3625 = vadd.f32 %v3383, %v3491
        %v3626 = vadd.f32 %v3384, %v3493
        %v3627 = vadd.f32 %v3385, %v3495
        %v3628 = vadd.f32 %v3386, %v3497
        %v3629 = vadd.f32 %v3387, %v3499
        %v3630 = vadd.f32 %v3388, %v3501
        %v3631 = vadd.f32 %v3389, %v3503
        %v3632 = vadd.f32 %v3390, %v3505
        %v3633 = vadd.f32 %v3391, %v3507
        %v3634 = vadd.f32 %v3392, %v3509
        %v3635 = vadd.f32 %v3393, %v3511
        %v3636 = vadd.f32 %v3394, %v3513
        %v3637 = vadd.f32 %v3395, %v3515
        %v3638 = vadd.f32 %v3396, %v3517
        %v3639 = vadd.f32 %v3397, %v3519
        %v3640 = vadd.f32 %v3398, %v3521
        %v3641 = vadd.f32 %v3399, %v3523
        %v3642 = vadd.f32 %v3400, %v3525
        %v3643 = vadd.f32 %v3401, %v3527
        %v3644 = vadd.f32 %v3402, %v3529
        %v3645 = vadd.f32 %v3403, %v3531
        %v3646 = vadd.f32 %v3404, %v3533
        %v3647 = vadd.f32 %v3405, %v3535
        %v3648 = vadd.f32 %v3406, %v3537
        %v3649 = vadd.f32 %v3407, %v3539
        %v3650 = vadd.f32 %v3408, %v3541
        %v3651 = vadd.f32 %v3409, %v3543
        %v3652 = vadd.f32 %v3410, %v3545
        %v3653 = vadd.f32 %v3411, %v3547
        %v3654 = vadd.f32 %v3412, %v3549
        %v3655 = vadd.f32 %v3413, %v3551
        %v3656 = vadd.f32 %v3414, %v3553
        %v3657 = vadd.f32 %v3415, %v3555
        %v3658 = vadd.f32 %v3416, %v3557
        %v3659 = vadd.f32 %v3417, %v3559
        %v3660 = vadd.f32 %v3418, %v3561
        %v3661 = vadd.f32 %v3419, %v3563
        %v3662 = vadd.f32 %v3420, %v3565
        %v3663 = vadd.f32 %v3421, %v3567
        %3664 = vst.msk [vmem:[#allocation2] sm:$0xff] %vm915, %v3616
        %3665 = vst.msk [vmem:[#allocation2 + $0x8] sm:$0xff] %vm915, %v3617
        %3666 = vst.msk [vmem:[#allocation2 + $0x10] sm:$0xff] %vm915, %v3618
        %3667 = vst.msk [vmem:[#allocation2 + $0x18] sm:$0xff] %vm915, %v3619
        %3668 = vst.msk [vmem:[#allocation2 + $0x20] sm:$0xff] %vm915, %v3620
        %3669 = vst.msk [vmem:[#allocation2 + $0x28] sm:$0xff] %vm915, %v3621
        %3670 = vst.msk [vmem:[#allocation2 + $0x30] sm:$0xff] %vm915, %v3622
        %3671 = vst.msk [vmem:[#allocation2 + $0x38] sm:$0xff] %vm915, %v3623
        %3672 = vst.msk [vmem:[#allocation2 + $0x40] sm:$0xff] %vm915, %v3624
        %3673 = vst.msk [vmem:[#allocation2 + $0x48] sm:$0xff] %vm915, %v3625
        %3674 = vst.msk [vmem:[#allocation2 + $0x50] sm:$0xff] %vm915, %v3626
        %3675 = vst.msk [vmem:[#allocation2 + $0x58] sm:$0xff] %vm915, %v3627
        %3676 = vst.msk [vmem:[#allocation2 + $0x60] sm:$0xff] %vm915, %v3628
        %3677 = vst.msk [vmem:[#allocation2 + $0x68] sm:$0xff] %vm915, %v3629
        %3678 = vst.msk [vmem:[#allocation2 + $0x70] sm:$0xff] %vm915, %v3630
        %3679 = vst.msk [vmem:[#allocation2 + $0x78] sm:$0xff] %vm915, %v3631
        %3680 = vst.msk [vmem:[#allocation2 + $0x80] sm:$0xff] %vm915, %v3632
        %3681 = vst.msk [vmem:[#allocation2 + $0x88] sm:$0xff] %vm915, %v3633
        %3682 = vst.msk [vmem:[#allocation2 + $0x90] sm:$0xff] %vm915, %v3634
        %3683 = vst.msk [vmem:[#allocation2 + $0x98] sm:$0xff] %vm915, %v3635
        %3684 = vst.msk [vmem:[#allocation2 + $0xa0] sm:$0xff] %vm915, %v3636
        %3685 = vst.msk [vmem:[#allocation2 + $0xa8] sm:$0xff] %vm915, %v3637
        %3686 = vst.msk [vmem:[#allocation2 + $0xb0] sm:$0xff] %vm915, %v3638
        %3687 = vst.msk [vmem:[#allocation2 + $0xb8] sm:$0xff] %vm915, %v3639
        %3688 = vst.msk [vmem:[#allocation2 + $0xc0] sm:$0xff] %vm915, %v3640
        %3689 = vst.msk [vmem:[#allocation2 + $0xc8] sm:$0xff] %vm915, %v3641
        %3690 = vst.msk [vmem:[#allocation2 + $0xd0] sm:$0xff] %vm915, %v3642
        %3691 = vst.msk [vmem:[#allocation2 + $0xd8] sm:$0xff] %vm915, %v3643
        %3692 = vst.msk [vmem:[#allocation2 + $0xe0] sm:$0xff] %vm915, %v3644
        %3693 = vst.msk [vmem:[#allocation2 + $0xe8] sm:$0xff] %vm915, %v3645
        %3694 = vst.msk [vmem:[#allocation2 + $0xf0] sm:$0xff] %vm915, %v3646
        %3695 = vst.msk [vmem:[#allocation2 + $0xf8] sm:$0xff] %vm915, %v3647
        %3696 = vst.msk [vmem:[#allocation2 + $0x100] sm:$0xff] %vm915, %v3648
        %3697 = vst.msk [vmem:[#allocation2 + $0x108] sm:$0xff] %vm915, %v3649
        %3698 = vst.msk [vmem:[#allocation2 + $0x110] sm:$0xff] %vm915, %v3650
        %3699 = vst.msk [vmem:[#allocation2 + $0x118] sm:$0xff] %vm915, %v3651
        %3700 = vst.msk [vmem:[#allocation2 + $0x120] sm:$0xff] %vm915, %v3652
        %3701 = vst.msk [vmem:[#allocation2 + $0x128] sm:$0xff] %vm915, %v3653
        %3702 = vst.msk [vmem:[#allocation2 + $0x130] sm:$0xff] %vm915, %v3654
        %3703 = vst.msk [vmem:[#allocation2 + $0x138] sm:$0xff] %vm915, %v3655
        %3704 = vst.msk [vmem:[#allocation2 + $0x140] sm:$0xff] %vm915, %v3656
        %3705 = vst.msk [vmem:[#allocation2 + $0x148] sm:$0xff] %vm915, %v3657
        %3706 = vst.msk [vmem:[#allocation2 + $0x150] sm:$0xff] %vm915, %v3658
        %3707 = vst.msk [vmem:[#allocation2 + $0x158] sm:$0xff] %vm915, %v3659
        %3708 = vst.msk [vmem:[#allocation2 + $0x160] sm:$0xff] %vm915, %v3660
        %3709 = vst.msk [vmem:[#allocation2 + $0x168] sm:$0xff] %vm915, %v3661
        %3710 = vst.msk [vmem:[#allocation2 + $0x170] sm:$0xff] %vm915, %v3662
        %3711 = vst.msk [vmem:[#allocation2 + $0x178] sm:$0xff] %vm915, %v3663
        %v3712 = vld [vmem:[%s523 + $0xc] sm:$0xe]
        %v3713 = vld [vmem:[%s523 + $0x10] sm:$0xf]
        %v3714 = vld [vmem:[%s523 + $0x14] sm:$0xf]
        %v3715 = vld [vmem:[%s523 + $0x18] sm:$0xf]
        %v3716 = vld [vmem:[%s523 + $0x1c] sm:$0xf]
        %v3717 = vld [vmem:[%s523 + $0x20] sm:$0xf]
        %v3718 = vld [vmem:[%s523 + $0x24] sm:$0xf]
        %v3719 = vld [vmem:[%s523 + $0x28] sm:$0xf]
        %v3720 = vld [vmem:[%s523 + $0x2c] sm:$0xf]
        %v3721 = vld [vmem:[%s523 + $0x30] sm:$0xf]
        %v3722 = vld [vmem:[%s523 + $0x34] sm:$0xf]
        %v3723 = vld [vmem:[%s523 + $0x38] sm:$0xf]
        %v3724 = vld [vmem:[%s523 + $0x3c] sm:$0xf]
        %v3725 = vld [vmem:[%s523 + $0x40] sm:$0xf]
        %v3726 = vld [vmem:[%s523 + $0x44] sm:$0xf]
        %v3727 = vld [vmem:[%s523 + $0x48] sm:$0xf]
        %v3728 = vld [vmem:[%s523 + $0x4c] sm:$0xf]
        %v3729 = vld [vmem:[%s523 + $0x50] sm:$0xf]
        %v3730 = vld [vmem:[%s523 + $0x54] sm:$0xf]
        %v3731 = vld [vmem:[%s523 + $0x58] sm:$0xf]
        %v3732 = vld [vmem:[%s523 + $0x5c] sm:$0xf]
        %v3733 = vld [vmem:[%s523 + $0x60] sm:$0xf]
        %v3734 = vld [vmem:[%s523 + $0x64] sm:$0xf]
        %v3735 = vld [vmem:[%s523 + $0x68] sm:$0xf]
        %v3736 = vld [vmem:[%s523 + $0x6c] sm:$0xf]
        %v3737 = vld [vmem:[%s523 + $0x70] sm:$0xf]
        %v3738 = vld [vmem:[%s523 + $0x74] sm:$0xf]
        %v3739 = vld [vmem:[%s523 + $0x78] sm:$0xf]
        %v3740 = vld [vmem:[%s523 + $0x7c] sm:$0xf]
        %v3741 = vld [vmem:[%s523 + $0x80] sm:$0xf]
        %v3742 = vld [vmem:[%s523 + $0x84] sm:$0xf]
        %v3743 = vld [vmem:[%s523 + $0x88] sm:$0xf]
        %v3744 = vld [vmem:[%s523 + $0x8c] sm:$0xf]
        %v3745 = vld [vmem:[%s523 + $0x90] sm:$0xf]
        %v3746 = vld [vmem:[%s523 + $0x94] sm:$0xf]
        %v3747 = vld [vmem:[%s523 + $0x98] sm:$0xf]
        %v3748 = vld [vmem:[%s523 + $0x9c] sm:$0xf]
        %v3749 = vld [vmem:[%s523 + $0xa0] sm:$0xf]
        %v3750 = vld [vmem:[%s523 + $0xa4] sm:$0xf]
        %v3751 = vld [vmem:[%s523 + $0xa8] sm:$0xf]
        %v3752 = vld [vmem:[%s523 + $0xac] sm:$0xf]
        %v3753 = vld [vmem:[%s523 + $0xb0] sm:$0xf]
        %v3754 = vld [vmem:[%s523 + $0xb4] sm:$0xf]
        %v3755 = vld [vmem:[%s523 + $0xb8] sm:$0xf]
        %v3756 = vld [vmem:[%s523 + $0xbc] sm:$0xf]
        %v3757 = vld [vmem:[%s523 + $0xc0] sm:$0xf]
        %v3758 = vld [vmem:[%s523 + $0xc4] sm:$0xf]
        %v3759 = vld [vmem:[%s523 + $0xc8] sm:$0xf]
        %v3760 = vld [vmem:[%s523 + $0xcc] sm:$0x1]
        %v3761 = vunpack.c.l.bf16 %v3712
        %v3762 = vunpack.c.l.bf16 %v3713
        %v3763 = vunpack.c.l.bf16 %v3714
        %v3764 = vunpack.c.l.bf16 %v3715
        %v3765 = vunpack.c.l.bf16 %v3716
        %v3766 = vunpack.c.l.bf16 %v3717
        %v3767 = vunpack.c.l.bf16 %v3718
        %v3768 = vunpack.c.l.bf16 %v3719
        %v3769 = vunpack.c.l.bf16 %v3720
        %v3770 = vunpack.c.l.bf16 %v3721
        %v3771 = vunpack.c.l.bf16 %v3722
        %v3772 = vunpack.c.l.bf16 %v3723
        %v3773 = vunpack.c.l.bf16 %v3724
        %v3774 = vunpack.c.l.bf16 %v3725
        %v3775 = vunpack.c.l.bf16 %v3726
        %v3776 = vunpack.c.l.bf16 %v3727
        %v3777 = vunpack.c.l.bf16 %v3728
        %v3778 = vunpack.c.l.bf16 %v3729
        %v3779 = vunpack.c.l.bf16 %v3730
        %v3780 = vunpack.c.l.bf16 %v3731
        %v3781 = vunpack.c.l.bf16 %v3732
        %v3782 = vunpack.c.l.bf16 %v3733
        %v3783 = vunpack.c.l.bf16 %v3734
        %v3784 = vunpack.c.l.bf16 %v3735
        %v3785 = vunpack.c.l.bf16 %v3736
        %v3786 = vunpack.c.l.bf16 %v3737
        %v3787 = vunpack.c.l.bf16 %v3738
        %v3788 = vunpack.c.l.bf16 %v3739
        %v3789 = vunpack.c.l.bf16 %v3740
        %v3790 = vunpack.c.l.bf16 %v3741
        %v3791 = vunpack.c.l.bf16 %v3742
        %v3792 = vunpack.c.l.bf16 %v3743
        %v3793 = vunpack.c.l.bf16 %v3744
        %v3794 = vunpack.c.l.bf16 %v3745
        %v3795 = vunpack.c.l.bf16 %v3746
        %v3796 = vunpack.c.l.bf16 %v3747
        %v3797 = vunpack.c.l.bf16 %v3748
        %v3798 = vunpack.c.l.bf16 %v3749
        %v3799 = vunpack.c.l.bf16 %v3750
        %v3800 = vunpack.c.l.bf16 %v3751
        %v3801 = vunpack.c.l.bf16 %v3752
        %v3802 = vunpack.c.l.bf16 %v3753
        %v3803 = vunpack.c.l.bf16 %v3754
        %v3804 = vunpack.c.l.bf16 %v3755
        %v3805 = vunpack.c.l.bf16 %v3756
        %v3806 = vunpack.c.l.bf16 %v3757
        %v3807 = vunpack.c.l.bf16 %v3758
        %v3808 = vunpack.c.l.bf16 %v3759
        %v3809 = vunpack.c.l.bf16 %v3760
        %s3810 = scalar_lea.vmem %s1, 5
        %v3811 = vld [vmem:[%s3810] sm:$0x1]
        %v3812 = vunpack.c.l.bf16 %v3811
        %3814 = vset.pattern.permute.xlu0 0
        %3815 = vperm.xlu0 %3814, %v3761
        %v3816 = vpop.permute.xlu0 %3815
        %3819 = vset.pattern.permute.xlu0 0
        %3820 = vperm.xlu0 %3819, %v3762
        %v3821 = vpop.permute.xlu0 %3820
        %3824 = vset.pattern.permute.xlu0 0
        %3825 = vperm.xlu0 %3824, %v3763
        %v3826 = vpop.permute.xlu0 %3825
        %3829 = vset.pattern.permute.xlu0 0
        %3830 = vperm.xlu0 %3829, %v3764
        %v3831 = vpop.permute.xlu0 %3830
        %3834 = vset.pattern.permute.xlu0 0
        %3835 = vperm.xlu0 %3834, %v3765
        %v3836 = vpop.permute.xlu0 %3835
        %3839 = vset.pattern.permute.xlu0 0
        %3840 = vperm.xlu0 %3839, %v3766
        %v3841 = vpop.permute.xlu0 %3840
        %3844 = vset.pattern.permute.xlu0 0
        %3845 = vperm.xlu0 %3844, %v3767
        %v3846 = vpop.permute.xlu0 %3845
        %3849 = vset.pattern.permute.xlu0 0
        %3850 = vperm.xlu0 %3849, %v3768
        %v3851 = vpop.permute.xlu0 %3850
        %3854 = vset.pattern.permute.xlu0 0
        %3855 = vperm.xlu0 %3854, %v3769
        %v3856 = vpop.permute.xlu0 %3855
        %3859 = vset.pattern.permute.xlu0 0
        %3860 = vperm.xlu0 %3859, %v3770
        %v3861 = vpop.permute.xlu0 %3860
        %3864 = vset.pattern.permute.xlu0 0
        %3865 = vperm.xlu0 %3864, %v3771
        %v3866 = vpop.permute.xlu0 %3865
        %3869 = vset.pattern.permute.xlu0 0
        %3870 = vperm.xlu0 %3869, %v3772
        %v3871 = vpop.permute.xlu0 %3870
        %3874 = vset.pattern.permute.xlu0 0
        %3875 = vperm.xlu0 %3874, %v3773
        %v3876 = vpop.permute.xlu0 %3875
        %3879 = vset.pattern.permute.xlu0 0
        %3880 = vperm.xlu0 %3879, %v3774
        %v3881 = vpop.permute.xlu0 %3880
        %3884 = vset.pattern.permute.xlu0 0
        %3885 = vperm.xlu0 %3884, %v3775
        %v3886 = vpop.permute.xlu0 %3885
        %3889 = vset.pattern.permute.xlu0 0
        %3890 = vperm.xlu0 %3889, %v3776
        %v3891 = vpop.permute.xlu0 %3890
        %3894 = vset.pattern.permute.xlu0 0
        %3895 = vperm.xlu0 %3894, %v3777
        %v3896 = vpop.permute.xlu0 %3895
        %3899 = vset.pattern.permute.xlu0 0
        %3900 = vperm.xlu0 %3899, %v3778
        %v3901 = vpop.permute.xlu0 %3900
        %3904 = vset.pattern.permute.xlu0 0
        %3905 = vperm.xlu0 %3904, %v3779
        %v3906 = vpop.permute.xlu0 %3905
        %3909 = vset.pattern.permute.xlu0 0
        %3910 = vperm.xlu0 %3909, %v3780
        %v3911 = vpop.permute.xlu0 %3910
        %3914 = vset.pattern.permute.xlu0 0
        %3915 = vperm.xlu0 %3914, %v3781
        %v3916 = vpop.permute.xlu0 %3915
        %3919 = vset.pattern.permute.xlu0 0
        %3920 = vperm.xlu0 %3919, %v3782
        %v3921 = vpop.permute.xlu0 %3920
        %3924 = vset.pattern.permute.xlu0 0
        %3925 = vperm.xlu0 %3924, %v3783
        %v3926 = vpop.permute.xlu0 %3925
        %3929 = vset.pattern.permute.xlu0 0
        %3930 = vperm.xlu0 %3929, %v3784
        %v3931 = vpop.permute.xlu0 %3930
        %3934 = vset.pattern.permute.xlu0 0
        %3935 = vperm.xlu0 %3934, %v3785
        %v3936 = vpop.permute.xlu0 %3935
        %3939 = vset.pattern.permute.xlu0 0
        %3940 = vperm.xlu0 %3939, %v3786
        %v3941 = vpop.permute.xlu0 %3940
        %3944 = vset.pattern.permute.xlu0 0
        %3945 = vperm.xlu0 %3944, %v3787
        %v3946 = vpop.permute.xlu0 %3945
        %3949 = vset.pattern.permute.xlu0 0
        %3950 = vperm.xlu0 %3949, %v3788
        %v3951 = vpop.permute.xlu0 %3950
        %3954 = vset.pattern.permute.xlu0 0
        %3955 = vperm.xlu0 %3954, %v3789
        %v3956 = vpop.permute.xlu0 %3955
        %3959 = vset.pattern.permute.xlu0 0
        %3960 = vperm.xlu0 %3959, %v3790
        %v3961 = vpop.permute.xlu0 %3960
        %3964 = vset.pattern.permute.xlu0 0
        %3965 = vperm.xlu0 %3964, %v3791
        %v3966 = vpop.permute.xlu0 %3965
        %3969 = vset.pattern.permute.xlu0 0
        %3970 = vperm.xlu0 %3969, %v3792
        %v3971 = vpop.permute.xlu0 %3970
        %3974 = vset.pattern.permute.xlu0 0
        %3975 = vperm.xlu0 %3974, %v3793
        %v3976 = vpop.permute.xlu0 %3975
        %3979 = vset.pattern.permute.xlu0 0
        %3980 = vperm.xlu0 %3979, %v3794
        %v3981 = vpop.permute.xlu0 %3980
        %3984 = vset.pattern.permute.xlu0 0
        %3985 = vperm.xlu0 %3984, %v3795
        %v3986 = vpop.permute.xlu0 %3985
        %3989 = vset.pattern.permute.xlu0 0
        %3990 = vperm.xlu0 %3989, %v3796
        %v3991 = vpop.permute.xlu0 %3990
        %3994 = vset.pattern.permute.xlu0 0
        %3995 = vperm.xlu0 %3994, %v3797
        %v3996 = vpop.permute.xlu0 %3995
        %3999 = vset.pattern.permute.xlu0 0
        %4000 = vperm.xlu0 %3999, %v3798
        %v4001 = vpop.permute.xlu0 %4000
        %4004 = vset.pattern.permute.xlu0 0
        %4005 = vperm.xlu0 %4004, %v3799
        %v4006 = vpop.permute.xlu0 %4005
        %4009 = vset.pattern.permute.xlu0 0
        %4010 = vperm.xlu0 %4009, %v3800
        %v4011 = vpop.permute.xlu0 %4010
        %4014 = vset.pattern.permute.xlu0 0
        %4015 = vperm.xlu0 %4014, %v3801
        %v4016 = vpop.permute.xlu0 %4015
        %4019 = vset.pattern.permute.xlu0 0
        %4020 = vperm.xlu0 %4019, %v3802
        %v4021 = vpop.permute.xlu0 %4020
        %4024 = vset.pattern.permute.xlu0 0
        %4025 = vperm.xlu0 %4024, %v3803
        %v4026 = vpop.permute.xlu0 %4025
        %4029 = vset.pattern.permute.xlu0 0
        %4030 = vperm.xlu0 %4029, %v3804
        %v4031 = vpop.permute.xlu0 %4030
        %4034 = vset.pattern.permute.xlu0 0
        %4035 = vperm.xlu0 %4034, %v3805
        %v4036 = vpop.permute.xlu0 %4035
        %4039 = vset.pattern.permute.xlu0 0
        %4040 = vperm.xlu0 %4039, %v3806
        %v4041 = vpop.permute.xlu0 %4040
        %4044 = vset.pattern.permute.xlu0 0
        %4045 = vperm.xlu0 %4044, %v3807
        %v4046 = vpop.permute.xlu0 %4045
        %4049 = vset.pattern.permute.xlu0 0
        %4050 = vperm.xlu0 %4049, %v3808
        %v4051 = vpop.permute.xlu0 %4050
        %4054 = vset.pattern.permute.xlu0 0
        %4055 = vperm.xlu0 %4054, %v3809
        %v4056 = vpop.permute.xlu0 %4055
        %v4058 = vlaneseq
        %v4059 = vshrl.u32 %v4058, 7
        %v4060 = vsub.s32 0, %v4059
        %v4061 = vrot.slane %v3812, %v4060
        %v4062 = vmul.f32 %v3816, %v4061
        %v4063 = vmul.f32 %v3821, %v4061
        %v4064 = vmul.f32 %v3826, %v4061
        %v4065 = vmul.f32 %v3831, %v4061
        %v4066 = vmul.f32 %v3836, %v4061
        %v4067 = vmul.f32 %v3841, %v4061
        %v4068 = vmul.f32 %v3846, %v4061
        %v4069 = vmul.f32 %v3851, %v4061
        %v4070 = vmul.f32 %v3856, %v4061
        %v4071 = vmul.f32 %v3861, %v4061
        %v4072 = vmul.f32 %v3866, %v4061
        %v4073 = vmul.f32 %v3871, %v4061
        %v4074 = vmul.f32 %v3876, %v4061
        %v4075 = vmul.f32 %v3881, %v4061
        %v4076 = vmul.f32 %v3886, %v4061
        %v4077 = vmul.f32 %v3891, %v4061
        %v4078 = vmul.f32 %v3896, %v4061
        %v4079 = vmul.f32 %v3901, %v4061
        %v4080 = vmul.f32 %v3906, %v4061
        %v4081 = vmul.f32 %v3911, %v4061
        %v4082 = vmul.f32 %v3916, %v4061
        %v4083 = vmul.f32 %v3921, %v4061
        %v4084 = vmul.f32 %v3926, %v4061
        %v4085 = vmul.f32 %v3931, %v4061
        %v4086 = vmul.f32 %v3936, %v4061
        %v4087 = vmul.f32 %v3941, %v4061
        %v4088 = vmul.f32 %v3946, %v4061
        %v4089 = vmul.f32 %v3951, %v4061
        %v4090 = vmul.f32 %v3956, %v4061
        %v4091 = vmul.f32 %v3961, %v4061
        %v4092 = vmul.f32 %v3966, %v4061
        %v4093 = vmul.f32 %v3971, %v4061
        %v4094 = vmul.f32 %v3976, %v4061
        %v4095 = vmul.f32 %v3981, %v4061
        %v4096 = vmul.f32 %v3986, %v4061
        %v4097 = vmul.f32 %v3991, %v4061
        %v4098 = vmul.f32 %v3996, %v4061
        %v4099 = vmul.f32 %v4001, %v4061
        %v4100 = vmul.f32 %v4006, %v4061
        %v4101 = vmul.f32 %v4011, %v4061
        %v4102 = vmul.f32 %v4016, %v4061
        %v4103 = vmul.f32 %v4021, %v4061
        %v4104 = vmul.f32 %v4026, %v4061
        %v4105 = vmul.f32 %v4031, %v4061
        %v4106 = vmul.f32 %v4036, %v4061
        %v4107 = vmul.f32 %v4041, %v4061
        %v4108 = vmul.f32 %v4046, %v4061
        %v4109 = vmul.f32 %v4051, %v4061
        %v4110 = vmul.f32 %v4056, %v4061
        %v4111 = vld [vmem:[#allocation2] sm:$0xff]
        %v4112 = vld [vmem:[#allocation2 + $0x8] sm:$0xff]
        %v4113 = vld [vmem:[#allocation2 + $0x10] sm:$0xff]
        %v4114 = vld [vmem:[#allocation2 + $0x18] sm:$0xff]
        %v4115 = vld [vmem:[#allocation2 + $0x20] sm:$0xff]
        %v4116 = vld [vmem:[#allocation2 + $0x28] sm:$0xff]
        %v4117 = vld [vmem:[#allocation2 + $0x30] sm:$0xff]
        %v4118 = vld [vmem:[#allocation2 + $0x38] sm:$0xff]
        %v4119 = vld [vmem:[#allocation2 + $0x40] sm:$0xff]
        %v4120 = vld [vmem:[#allocation2 + $0x48] sm:$0xff]
        %v4121 = vld [vmem:[#allocation2 + $0x50] sm:$0xff]
        %v4122 = vld [vmem:[#allocation2 + $0x58] sm:$0xff]
        %v4123 = vld [vmem:[#allocation2 + $0x60] sm:$0xff]
        %v4124 = vld [vmem:[#allocation2 + $0x68] sm:$0xff]
        %v4125 = vld [vmem:[#allocation2 + $0x70] sm:$0xff]
        %v4126 = vld [vmem:[#allocation2 + $0x78] sm:$0xff]
        %v4127 = vld [vmem:[#allocation2 + $0x80] sm:$0xff]
        %v4128 = vld [vmem:[#allocation2 + $0x88] sm:$0xff]
        %v4129 = vld [vmem:[#allocation2 + $0x90] sm:$0xff]
        %v4130 = vld [vmem:[#allocation2 + $0x98] sm:$0xff]
        %v4131 = vld [vmem:[#allocation2 + $0xa0] sm:$0xff]
        %v4132 = vld [vmem:[#allocation2 + $0xa8] sm:$0xff]
        %v4133 = vld [vmem:[#allocation2 + $0xb0] sm:$0xff]
        %v4134 = vld [vmem:[#allocation2 + $0xb8] sm:$0xff]
        %v4135 = vld [vmem:[#allocation2 + $0xc0] sm:$0xff]
        %v4136 = vld [vmem:[#allocation2 + $0xc8] sm:$0xff]
        %v4137 = vld [vmem:[#allocation2 + $0xd0] sm:$0xff]
        %v4138 = vld [vmem:[#allocation2 + $0xd8] sm:$0xff]
        %v4139 = vld [vmem:[#allocation2 + $0xe0] sm:$0xff]
        %v4140 = vld [vmem:[#allocation2 + $0xe8] sm:$0xff]
        %v4141 = vld [vmem:[#allocation2 + $0xf0] sm:$0xff]
        %v4142 = vld [vmem:[#allocation2 + $0xf8] sm:$0xff]
        %v4143 = vld [vmem:[#allocation2 + $0x100] sm:$0xff]
        %v4144 = vld [vmem:[#allocation2 + $0x108] sm:$0xff]
        %v4145 = vld [vmem:[#allocation2 + $0x110] sm:$0xff]
        %v4146 = vld [vmem:[#allocation2 + $0x118] sm:$0xff]
        %v4147 = vld [vmem:[#allocation2 + $0x120] sm:$0xff]
        %v4148 = vld [vmem:[#allocation2 + $0x128] sm:$0xff]
        %v4149 = vld [vmem:[#allocation2 + $0x130] sm:$0xff]
        %v4150 = vld [vmem:[#allocation2 + $0x138] sm:$0xff]
        %v4151 = vld [vmem:[#allocation2 + $0x140] sm:$0xff]
        %v4152 = vld [vmem:[#allocation2 + $0x148] sm:$0xff]
        %v4153 = vld [vmem:[#allocation2 + $0x150] sm:$0xff]
        %v4154 = vld [vmem:[#allocation2 + $0x158] sm:$0xff]
        %v4155 = vld [vmem:[#allocation2 + $0x160] sm:$0xff]
        %v4156 = vld [vmem:[#allocation2 + $0x168] sm:$0xff]
        %v4157 = vld [vmem:[#allocation2 + $0x170] sm:$0xff]
        %v4158 = vld [vmem:[#allocation2 + $0x178] sm:$0xff]
        %v4208 = vrot.slane %v4062, 2
        %v4209 = vrot.slane %v4063, 2
        %v4210 = vsel %vm2198, %v4208, %v4209
        %v4211 = vrot.slane %v4064, 2
        %v4212 = vsel %vm2198, %v4209, %v4211
        %v4213 = vrot.slane %v4065, 2
        %v4214 = vsel %vm2198, %v4211, %v4213
        %v4215 = vrot.slane %v4066, 2
        %v4216 = vsel %vm2198, %v4213, %v4215
        %v4217 = vrot.slane %v4067, 2
        %v4218 = vsel %vm2198, %v4215, %v4217
        %v4219 = vrot.slane %v4068, 2
        %v4220 = vsel %vm2198, %v4217, %v4219
        %v4221 = vrot.slane %v4069, 2
        %v4222 = vsel %vm2198, %v4219, %v4221
        %v4223 = vrot.slane %v4070, 2
        %v4224 = vsel %vm2198, %v4221, %v4223
        %v4225 = vrot.slane %v4071, 2
        %v4226 = vsel %vm2198, %v4223, %v4225
        %v4227 = vrot.slane %v4072, 2
        %v4228 = vsel %vm2198, %v4225, %v4227
        %v4229 = vrot.slane %v4073, 2
        %v4230 = vsel %vm2198, %v4227, %v4229
        %v4231 = vrot.slane %v4074, 2
        %v4232 = vsel %vm2198, %v4229, %v4231
        %v4233 = vrot.slane %v4075, 2
        %v4234 = vsel %vm2198, %v4231, %v4233
        %v4235 = vrot.slane %v4076, 2
        %v4236 = vsel %vm2198, %v4233, %v4235
        %v4237 = vrot.slane %v4077, 2
        %v4238 = vsel %vm2198, %v4235, %v4237
        %v4239 = vrot.slane %v4078, 2
        %v4240 = vsel %vm2198, %v4237, %v4239
        %v4241 = vrot.slane %v4079, 2
        %v4242 = vsel %vm2198, %v4239, %v4241
        %v4243 = vrot.slane %v4080, 2
        %v4244 = vsel %vm2198, %v4241, %v4243
        %v4245 = vrot.slane %v4081, 2
        %v4246 = vsel %vm2198, %v4243, %v4245
        %v4247 = vrot.slane %v4082, 2
        %v4248 = vsel %vm2198, %v4245, %v4247
        %v4249 = vrot.slane %v4083, 2
        %v4250 = vsel %vm2198, %v4247, %v4249
        %v4251 = vrot.slane %v4084, 2
        %v4252 = vsel %vm2198, %v4249, %v4251
        %v4253 = vrot.slane %v4085, 2
        %v4254 = vsel %vm2198, %v4251, %v4253
        %v4255 = vrot.slane %v4086, 2
        %v4256 = vsel %vm2198, %v4253, %v4255
        %v4257 = vrot.slane %v4087, 2
        %v4258 = vsel %vm2198, %v4255, %v4257
        %v4259 = vrot.slane %v4088, 2
        %v4260 = vsel %vm2198, %v4257, %v4259
        %v4261 = vrot.slane %v4089, 2
        %v4262 = vsel %vm2198, %v4259, %v4261
        %v4263 = vrot.slane %v4090, 2
        %v4264 = vsel %vm2198, %v4261, %v4263
        %v4265 = vrot.slane %v4091, 2
        %v4266 = vsel %vm2198, %v4263, %v4265
        %v4267 = vrot.slane %v4092, 2
        %v4268 = vsel %vm2198, %v4265, %v4267
        %v4269 = vrot.slane %v4093, 2
        %v4270 = vsel %vm2198, %v4267, %v4269
        %v4271 = vrot.slane %v4094, 2
        %v4272 = vsel %vm2198, %v4269, %v4271
        %v4273 = vrot.slane %v4095, 2
        %v4274 = vsel %vm2198, %v4271, %v4273
        %v4275 = vrot.slane %v4096, 2
        %v4276 = vsel %vm2198, %v4273, %v4275
        %v4277 = vrot.slane %v4097, 2
        %v4278 = vsel %vm2198, %v4275, %v4277
        %v4279 = vrot.slane %v4098, 2
        %v4280 = vsel %vm2198, %v4277, %v4279
        %v4281 = vrot.slane %v4099, 2
        %v4282 = vsel %vm2198, %v4279, %v4281
        %v4283 = vrot.slane %v4100, 2
        %v4284 = vsel %vm2198, %v4281, %v4283
        %v4285 = vrot.slane %v4101, 2
        %v4286 = vsel %vm2198, %v4283, %v4285
        %v4287 = vrot.slane %v4102, 2
        %v4288 = vsel %vm2198, %v4285, %v4287
        %v4289 = vrot.slane %v4103, 2
        %v4290 = vsel %vm2198, %v4287, %v4289
        %v4291 = vrot.slane %v4104, 2
        %v4292 = vsel %vm2198, %v4289, %v4291
        %v4293 = vrot.slane %v4105, 2
        %v4294 = vsel %vm2198, %v4291, %v4293
        %v4295 = vrot.slane %v4106, 2
        %v4296 = vsel %vm2198, %v4293, %v4295
        %v4297 = vrot.slane %v4107, 2
        %v4298 = vsel %vm2198, %v4295, %v4297
        %v4299 = vrot.slane %v4108, 2
        %v4300 = vsel %vm2198, %v4297, %v4299
        %v4301 = vrot.slane %v4109, 2
        %v4302 = vsel %vm2198, %v4299, %v4301
        %v4303 = vrot.slane %v4110, 2
        %v4304 = vsel %vm2198, %v4301, %v4303
        %v4353 = vadd.f32 %v4111, %v4210
        %v4354 = vadd.f32 %v4112, %v4212
        %v4355 = vadd.f32 %v4113, %v4214
        %v4356 = vadd.f32 %v4114, %v4216
        %v4357 = vadd.f32 %v4115, %v4218
        %v4358 = vadd.f32 %v4116, %v4220
        %v4359 = vadd.f32 %v4117, %v4222
        %v4360 = vadd.f32 %v4118, %v4224
        %v4361 = vadd.f32 %v4119, %v4226
        %v4362 = vadd.f32 %v4120, %v4228
        %v4363 = vadd.f32 %v4121, %v4230
        %v4364 = vadd.f32 %v4122, %v4232
        %v4365 = vadd.f32 %v4123, %v4234
        %v4366 = vadd.f32 %v4124, %v4236
        %v4367 = vadd.f32 %v4125, %v4238
        %v4368 = vadd.f32 %v4126, %v4240
        %v4369 = vadd.f32 %v4127, %v4242
        %v4370 = vadd.f32 %v4128, %v4244
        %v4371 = vadd.f32 %v4129, %v4246
        %v4372 = vadd.f32 %v4130, %v4248
        %v4373 = vadd.f32 %v4131, %v4250
        %v4374 = vadd.f32 %v4132, %v4252
        %v4375 = vadd.f32 %v4133, %v4254
        %v4376 = vadd.f32 %v4134, %v4256
        %v4377 = vadd.f32 %v4135, %v4258
        %v4378 = vadd.f32 %v4136, %v4260
        %v4379 = vadd.f32 %v4137, %v4262
        %v4380 = vadd.f32 %v4138, %v4264
        %v4381 = vadd.f32 %v4139, %v4266
        %v4382 = vadd.f32 %v4140, %v4268
        %v4383 = vadd.f32 %v4141, %v4270
        %v4384 = vadd.f32 %v4142, %v4272
        %v4385 = vadd.f32 %v4143, %v4274
        %v4386 = vadd.f32 %v4144, %v4276
        %v4387 = vadd.f32 %v4145, %v4278
        %v4388 = vadd.f32 %v4146, %v4280
        %v4389 = vadd.f32 %v4147, %v4282
        %v4390 = vadd.f32 %v4148, %v4284
        %v4391 = vadd.f32 %v4149, %v4286
        %v4392 = vadd.f32 %v4150, %v4288
        %v4393 = vadd.f32 %v4151, %v4290
        %v4394 = vadd.f32 %v4152, %v4292
        %v4395 = vadd.f32 %v4153, %v4294
        %v4396 = vadd.f32 %v4154, %v4296
        %v4397 = vadd.f32 %v4155, %v4298
        %v4398 = vadd.f32 %v4156, %v4300
        %v4399 = vadd.f32 %v4157, %v4302
        %v4400 = vadd.f32 %v4158, %v4304
        %4401 = vst.msk [vmem:[#allocation2] sm:$0xff] %vm915, %v4353
        %4402 = vst.msk [vmem:[#allocation2 + $0x8] sm:$0xff] %vm915, %v4354
        %4403 = vst.msk [vmem:[#allocation2 + $0x10] sm:$0xff] %vm915, %v4355
        %4404 = vst.msk [vmem:[#allocation2 + $0x18] sm:$0xff] %vm915, %v4356
        %4405 = vst.msk [vmem:[#allocation2 + $0x20] sm:$0xff] %vm915, %v4357
        %4406 = vst.msk [vmem:[#allocation2 + $0x28] sm:$0xff] %vm915, %v4358
        %4407 = vst.msk [vmem:[#allocation2 + $0x30] sm:$0xff] %vm915, %v4359
        %4408 = vst.msk [vmem:[#allocation2 + $0x38] sm:$0xff] %vm915, %v4360
        %4409 = vst.msk [vmem:[#allocation2 + $0x40] sm:$0xff] %vm915, %v4361
        %4410 = vst.msk [vmem:[#allocation2 + $0x48] sm:$0xff] %vm915, %v4362
        %4411 = vst.msk [vmem:[#allocation2 + $0x50] sm:$0xff] %vm915, %v4363
        %4412 = vst.msk [vmem:[#allocation2 + $0x58] sm:$0xff] %vm915, %v4364
        %4413 = vst.msk [vmem:[#allocation2 + $0x60] sm:$0xff] %vm915, %v4365
        %4414 = vst.msk [vmem:[#allocation2 + $0x68] sm:$0xff] %vm915, %v4366
        %4415 = vst.msk [vmem:[#allocation2 + $0x70] sm:$0xff] %vm915, %v4367
        %4416 = vst.msk [vmem:[#allocation2 + $0x78] sm:$0xff] %vm915, %v4368
        %4417 = vst.msk [vmem:[#allocation2 + $0x80] sm:$0xff] %vm915, %v4369
        %4418 = vst.msk [vmem:[#allocation2 + $0x88] sm:$0xff] %vm915, %v4370
        %4419 = vst.msk [vmem:[#allocation2 + $0x90] sm:$0xff] %vm915, %v4371
        %4420 = vst.msk [vmem:[#allocation2 + $0x98] sm:$0xff] %vm915, %v4372
        %4421 = vst.msk [vmem:[#allocation2 + $0xa0] sm:$0xff] %vm915, %v4373
        %4422 = vst.msk [vmem:[#allocation2 + $0xa8] sm:$0xff] %vm915, %v4374
        %4423 = vst.msk [vmem:[#allocation2 + $0xb0] sm:$0xff] %vm915, %v4375
        %4424 = vst.msk [vmem:[#allocation2 + $0xb8] sm:$0xff] %vm915, %v4376
        %4425 = vst.msk [vmem:[#allocation2 + $0xc0] sm:$0xff] %vm915, %v4377
        %4426 = vst.msk [vmem:[#allocation2 + $0xc8] sm:$0xff] %vm915, %v4378
        %4427 = vst.msk [vmem:[#allocation2 + $0xd0] sm:$0xff] %vm915, %v4379
        %4428 = vst.msk [vmem:[#allocation2 + $0xd8] sm:$0xff] %vm915, %v4380
        %4429 = vst.msk [vmem:[#allocation2 + $0xe0] sm:$0xff] %vm915, %v4381
        %4430 = vst.msk [vmem:[#allocation2 + $0xe8] sm:$0xff] %vm915, %v4382
        %4431 = vst.msk [vmem:[#allocation2 + $0xf0] sm:$0xff] %vm915, %v4383
        %4432 = vst.msk [vmem:[#allocation2 + $0xf8] sm:$0xff] %vm915, %v4384
        %4433 = vst.msk [vmem:[#allocation2 + $0x100] sm:$0xff] %vm915, %v4385
        %4434 = vst.msk [vmem:[#allocation2 + $0x108] sm:$0xff] %vm915, %v4386
        %4435 = vst.msk [vmem:[#allocation2 + $0x110] sm:$0xff] %vm915, %v4387
        %4436 = vst.msk [vmem:[#allocation2 + $0x118] sm:$0xff] %vm915, %v4388
        %4437 = vst.msk [vmem:[#allocation2 + $0x120] sm:$0xff] %vm915, %v4389
        %4438 = vst.msk [vmem:[#allocation2 + $0x128] sm:$0xff] %vm915, %v4390
        %4439 = vst.msk [vmem:[#allocation2 + $0x130] sm:$0xff] %vm915, %v4391
        %4440 = vst.msk [vmem:[#allocation2 + $0x138] sm:$0xff] %vm915, %v4392
        %4441 = vst.msk [vmem:[#allocation2 + $0x140] sm:$0xff] %vm915, %v4393
        %4442 = vst.msk [vmem:[#allocation2 + $0x148] sm:$0xff] %vm915, %v4394
        %4443 = vst.msk [vmem:[#allocation2 + $0x150] sm:$0xff] %vm915, %v4395
        %4444 = vst.msk [vmem:[#allocation2 + $0x158] sm:$0xff] %vm915, %v4396
        %4445 = vst.msk [vmem:[#allocation2 + $0x160] sm:$0xff] %vm915, %v4397
        %4446 = vst.msk [vmem:[#allocation2 + $0x168] sm:$0xff] %vm915, %v4398
        %4447 = vst.msk [vmem:[#allocation2 + $0x170] sm:$0xff] %vm915, %v4399
        %4448 = vst.msk [vmem:[#allocation2 + $0x178] sm:$0xff] %vm915, %v4400
        %v4449 = vld [vmem:[%s523 + $0x18] sm:$0xf]
        %v4450 = vld [vmem:[%s523 + $0x1c] sm:$0xf]
        %v4451 = vld [vmem:[%s523 + $0x20] sm:$0xf]
        %v4452 = vld [vmem:[%s523 + $0x24] sm:$0xf]
        %v4453 = vld [vmem:[%s523 + $0x28] sm:$0xf]
        %v4454 = vld [vmem:[%s523 + $0x2c] sm:$0xf]
        %v4455 = vld [vmem:[%s523 + $0x30] sm:$0xf]
        %v4456 = vld [vmem:[%s523 + $0x34] sm:$0xf]
        %v4457 = vld [vmem:[%s523 + $0x38] sm:$0xf]
        %v4458 = vld [vmem:[%s523 + $0x3c] sm:$0xf]
        %v4459 = vld [vmem:[%s523 + $0x40] sm:$0xf]
        %v4460 = vld [vmem:[%s523 + $0x44] sm:$0xf]
        %v4461 = vld [vmem:[%s523 + $0x48] sm:$0xf]
        %v4462 = vld [vmem:[%s523 + $0x4c] sm:$0xf]
        %v4463 = vld [vmem:[%s523 + $0x50] sm:$0xf]
        %v4464 = vld [vmem:[%s523 + $0x54] sm:$0xf]
        %v4465 = vld [vmem:[%s523 + $0x58] sm:$0xf]
        %v4466 = vld [vmem:[%s523 + $0x5c] sm:$0xf]
        %v4467 = vld [vmem:[%s523 + $0x60] sm:$0xf]
        %v4468 = vld [vmem:[%s523 + $0x64] sm:$0xf]
        %v4469 = vld [vmem:[%s523 + $0x68] sm:$0xf]
        %v4470 = vld [vmem:[%s523 + $0x6c] sm:$0xf]
        %v4471 = vld [vmem:[%s523 + $0x70] sm:$0xf]
        %v4472 = vld [vmem:[%s523 + $0x74] sm:$0xf]
        %v4473 = vld [vmem:[%s523 + $0x78] sm:$0xf]
        %v4474 = vld [vmem:[%s523 + $0x7c] sm:$0xf]
        %v4475 = vld [vmem:[%s523 + $0x80] sm:$0xf]
        %v4476 = vld [vmem:[%s523 + $0x84] sm:$0xf]
        %v4477 = vld [vmem:[%s523 + $0x88] sm:$0xf]
        %v4478 = vld [vmem:[%s523 + $0x8c] sm:$0xf]
        %v4479 = vld [vmem:[%s523 + $0x90] sm:$0xf]
        %v4480 = vld [vmem:[%s523 + $0x94] sm:$0xf]
        %v4481 = vld [vmem:[%s523 + $0x98] sm:$0xf]
        %v4482 = vld [vmem:[%s523 + $0x9c] sm:$0xf]
        %v4483 = vld [vmem:[%s523 + $0xa0] sm:$0xf]
        %v4484 = vld [vmem:[%s523 + $0xa4] sm:$0xf]
        %v4485 = vld [vmem:[%s523 + $0xa8] sm:$0xf]
        %v4486 = vld [vmem:[%s523 + $0xac] sm:$0xf]
        %v4487 = vld [vmem:[%s523 + $0xb0] sm:$0xf]
        %v4488 = vld [vmem:[%s523 + $0xb4] sm:$0xf]
        %v4489 = vld [vmem:[%s523 + $0xb8] sm:$0xf]
        %v4490 = vld [vmem:[%s523 + $0xbc] sm:$0xf]
        %v4491 = vld [vmem:[%s523 + $0xc0] sm:$0xf]
        %v4492 = vld [vmem:[%s523 + $0xc4] sm:$0xf]
        %v4493 = vld [vmem:[%s523 + $0xc8] sm:$0xf]
        %v4494 = vld [vmem:[%s523 + $0xcc] sm:$0xf]
        %v4495 = vld [vmem:[%s523 + $0xd0] sm:$0xf]
        %v4496 = vld [vmem:[%s523 + $0xd4] sm:$0xf]
        %v4497 = vunpack.c.l.bf16 %v4449
        %v4498 = vunpack.c.l.bf16 %v4450
        %v4499 = vunpack.c.l.bf16 %v4451
        %v4500 = vunpack.c.l.bf16 %v4452
        %v4501 = vunpack.c.l.bf16 %v4453
        %v4502 = vunpack.c.l.bf16 %v4454
        %v4503 = vunpack.c.l.bf16 %v4455
        %v4504 = vunpack.c.l.bf16 %v4456
        %v4505 = vunpack.c.l.bf16 %v4457
        %v4506 = vunpack.c.l.bf16 %v4458
        %v4507 = vunpack.c.l.bf16 %v4459
        %v4508 = vunpack.c.l.bf16 %v4460
        %v4509 = vunpack.c.l.bf16 %v4461
        %v4510 = vunpack.c.l.bf16 %v4462
        %v4511 = vunpack.c.l.bf16 %v4463
        %v4512 = vunpack.c.l.bf16 %v4464
        %v4513 = vunpack.c.l.bf16 %v4465
        %v4514 = vunpack.c.l.bf16 %v4466
        %v4515 = vunpack.c.l.bf16 %v4467
        %v4516 = vunpack.c.l.bf16 %v4468
        %v4517 = vunpack.c.l.bf16 %v4469
        %v4518 = vunpack.c.l.bf16 %v4470
        %v4519 = vunpack.c.l.bf16 %v4471
        %v4520 = vunpack.c.l.bf16 %v4472
        %v4521 = vunpack.c.l.bf16 %v4473
        %v4522 = vunpack.c.l.bf16 %v4474
        %v4523 = vunpack.c.l.bf16 %v4475
        %v4524 = vunpack.c.l.bf16 %v4476
        %v4525 = vunpack.c.l.bf16 %v4477
        %v4526 = vunpack.c.l.bf16 %v4478
        %v4527 = vunpack.c.l.bf16 %v4479
        %v4528 = vunpack.c.l.bf16 %v4480
        %v4529 = vunpack.c.l.bf16 %v4481
        %v4530 = vunpack.c.l.bf16 %v4482
        %v4531 = vunpack.c.l.bf16 %v4483
        %v4532 = vunpack.c.l.bf16 %v4484
        %v4533 = vunpack.c.l.bf16 %v4485
        %v4534 = vunpack.c.l.bf16 %v4486
        %v4535 = vunpack.c.l.bf16 %v4487
        %v4536 = vunpack.c.l.bf16 %v4488
        %v4537 = vunpack.c.l.bf16 %v4489
        %v4538 = vunpack.c.l.bf16 %v4490
        %v4539 = vunpack.c.l.bf16 %v4491
        %v4540 = vunpack.c.l.bf16 %v4492
        %v4541 = vunpack.c.l.bf16 %v4493
        %v4542 = vunpack.c.l.bf16 %v4494
        %v4543 = vunpack.c.l.bf16 %v4495
        %v4544 = vunpack.c.l.bf16 %v4496
        %s4545 = scalar_lea.vmem %s1, 6
        %v4546 = vld [vmem:[%s4545] sm:$0x1]
        %v4547 = vunpack.c.l.bf16 %v4546
        %4549 = vset.pattern.permute.xlu0 0
        %4550 = vperm.xlu0 %4549, %v4497
        %v4551 = vpop.permute.xlu0 %4550
        %4554 = vset.pattern.permute.xlu0 0
        %4555 = vperm.xlu0 %4554, %v4498
        %v4556 = vpop.permute.xlu0 %4555
        %4559 = vset.pattern.permute.xlu0 0
        %4560 = vperm.xlu0 %4559, %v4499
        %v4561 = vpop.permute.xlu0 %4560
        %4564 = vset.pattern.permute.xlu0 0
        %4565 = vperm.xlu0 %4564, %v4500
        %v4566 = vpop.permute.xlu0 %4565
        %4569 = vset.pattern.permute.xlu0 0
        %4570 = vperm.xlu0 %4569, %v4501
        %v4571 = vpop.permute.xlu0 %4570
        %4574 = vset.pattern.permute.xlu0 0
        %4575 = vperm.xlu0 %4574, %v4502
        %v4576 = vpop.permute.xlu0 %4575
        %4579 = vset.pattern.permute.xlu0 0
        %4580 = vperm.xlu0 %4579, %v4503
        %v4581 = vpop.permute.xlu0 %4580
        %4584 = vset.pattern.permute.xlu0 0
        %4585 = vperm.xlu0 %4584, %v4504
        %v4586 = vpop.permute.xlu0 %4585
        %4589 = vset.pattern.permute.xlu0 0
        %4590 = vperm.xlu0 %4589, %v4505
        %v4591 = vpop.permute.xlu0 %4590
        %4594 = vset.pattern.permute.xlu0 0
        %4595 = vperm.xlu0 %4594, %v4506
        %v4596 = vpop.permute.xlu0 %4595
        %4599 = vset.pattern.permute.xlu0 0
        %4600 = vperm.xlu0 %4599, %v4507
        %v4601 = vpop.permute.xlu0 %4600
        %4604 = vset.pattern.permute.xlu0 0
        %4605 = vperm.xlu0 %4604, %v4508
        %v4606 = vpop.permute.xlu0 %4605
        %4609 = vset.pattern.permute.xlu0 0
        %4610 = vperm.xlu0 %4609, %v4509
        %v4611 = vpop.permute.xlu0 %4610
        %4614 = vset.pattern.permute.xlu0 0
        %4615 = vperm.xlu0 %4614, %v4510
        %v4616 = vpop.permute.xlu0 %4615
        %4619 = vset.pattern.permute.xlu0 0
        %4620 = vperm.xlu0 %4619, %v4511
        %v4621 = vpop.permute.xlu0 %4620
        %4624 = vset.pattern.permute.xlu0 0
        %4625 = vperm.xlu0 %4624, %v4512
        %v4626 = vpop.permute.xlu0 %4625
        %4629 = vset.pattern.permute.xlu0 0
        %4630 = vperm.xlu0 %4629, %v4513
        %v4631 = vpop.permute.xlu0 %4630
        %4634 = vset.pattern.permute.xlu0 0
        %4635 = vperm.xlu0 %4634, %v4514
        %v4636 = vpop.permute.xlu0 %4635
        %4639 = vset.pattern.permute.xlu0 0
        %4640 = vperm.xlu0 %4639, %v4515
        %v4641 = vpop.permute.xlu0 %4640
        %4644 = vset.pattern.permute.xlu0 0
        %4645 = vperm.xlu0 %4644, %v4516
        %v4646 = vpop.permute.xlu0 %4645
        %4649 = vset.pattern.permute.xlu0 0
        %4650 = vperm.xlu0 %4649, %v4517
        %v4651 = vpop.permute.xlu0 %4650
        %4654 = vset.pattern.permute.xlu0 0
        %4655 = vperm.xlu0 %4654, %v4518
        %v4656 = vpop.permute.xlu0 %4655
        %4659 = vset.pattern.permute.xlu0 0
        %4660 = vperm.xlu0 %4659, %v4519
        %v4661 = vpop.permute.xlu0 %4660
        %4664 = vset.pattern.permute.xlu0 0
        %4665 = vperm.xlu0 %4664, %v4520
        %v4666 = vpop.permute.xlu0 %4665
        %4669 = vset.pattern.permute.xlu0 0
        %4670 = vperm.xlu0 %4669, %v4521
        %v4671 = vpop.permute.xlu0 %4670
        %4674 = vset.pattern.permute.xlu0 0
        %4675 = vperm.xlu0 %4674, %v4522
        %v4676 = vpop.permute.xlu0 %4675
        %4679 = vset.pattern.permute.xlu0 0
        %4680 = vperm.xlu0 %4679, %v4523
        %v4681 = vpop.permute.xlu0 %4680
        %4684 = vset.pattern.permute.xlu0 0
        %4685 = vperm.xlu0 %4684, %v4524
        %v4686 = vpop.permute.xlu0 %4685
        %4689 = vset.pattern.permute.xlu0 0
        %4690 = vperm.xlu0 %4689, %v4525
        %v4691 = vpop.permute.xlu0 %4690
        %4694 = vset.pattern.permute.xlu0 0
        %4695 = vperm.xlu0 %4694, %v4526
        %v4696 = vpop.permute.xlu0 %4695
        %4699 = vset.pattern.permute.xlu0 0
        %4700 = vperm.xlu0 %4699, %v4527
        %v4701 = vpop.permute.xlu0 %4700
        %4704 = vset.pattern.permute.xlu0 0
        %4705 = vperm.xlu0 %4704, %v4528
        %v4706 = vpop.permute.xlu0 %4705
        %4709 = vset.pattern.permute.xlu0 0
        %4710 = vperm.xlu0 %4709, %v4529
        %v4711 = vpop.permute.xlu0 %4710
        %4714 = vset.pattern.permute.xlu0 0
        %4715 = vperm.xlu0 %4714, %v4530
        %v4716 = vpop.permute.xlu0 %4715
        %4719 = vset.pattern.permute.xlu0 0
        %4720 = vperm.xlu0 %4719, %v4531
        %v4721 = vpop.permute.xlu0 %4720
        %4724 = vset.pattern.permute.xlu0 0
        %4725 = vperm.xlu0 %4724, %v4532
        %v4726 = vpop.permute.xlu0 %4725
        %4729 = vset.pattern.permute.xlu0 0
        %4730 = vperm.xlu0 %4729, %v4533
        %v4731 = vpop.permute.xlu0 %4730
        %4734 = vset.pattern.permute.xlu0 0
        %4735 = vperm.xlu0 %4734, %v4534
        %v4736 = vpop.permute.xlu0 %4735
        %4739 = vset.pattern.permute.xlu0 0
        %4740 = vperm.xlu0 %4739, %v4535
        %v4741 = vpop.permute.xlu0 %4740
        %4744 = vset.pattern.permute.xlu0 0
        %4745 = vperm.xlu0 %4744, %v4536
        %v4746 = vpop.permute.xlu0 %4745
        %4749 = vset.pattern.permute.xlu0 0
        %4750 = vperm.xlu0 %4749, %v4537
        %v4751 = vpop.permute.xlu0 %4750
        %4754 = vset.pattern.permute.xlu0 0
        %4755 = vperm.xlu0 %4754, %v4538
        %v4756 = vpop.permute.xlu0 %4755
        %4759 = vset.pattern.permute.xlu0 0
        %4760 = vperm.xlu0 %4759, %v4539
        %v4761 = vpop.permute.xlu0 %4760
        %4764 = vset.pattern.permute.xlu0 0
        %4765 = vperm.xlu0 %4764, %v4540
        %v4766 = vpop.permute.xlu0 %4765
        %4769 = vset.pattern.permute.xlu0 0
        %4770 = vperm.xlu0 %4769, %v4541
        %v4771 = vpop.permute.xlu0 %4770
        %4774 = vset.pattern.permute.xlu0 0
        %4775 = vperm.xlu0 %4774, %v4542
        %v4776 = vpop.permute.xlu0 %4775
        %4779 = vset.pattern.permute.xlu0 0
        %4780 = vperm.xlu0 %4779, %v4543
        %v4781 = vpop.permute.xlu0 %4780
        %4784 = vset.pattern.permute.xlu0 0
        %4785 = vperm.xlu0 %4784, %v4544
        %v4786 = vpop.permute.xlu0 %4785
        %v4788 = vlaneseq
        %v4789 = vshrl.u32 %v4788, 7
        %v4790 = vsub.s32 0, %v4789
        %v4791 = vrot.slane %v4547, %v4790
        %v4792 = vmul.f32 %v4551, %v4791
        %v4793 = vmul.f32 %v4556, %v4791
        %v4794 = vmul.f32 %v4561, %v4791
        %v4795 = vmul.f32 %v4566, %v4791
        %v4796 = vmul.f32 %v4571, %v4791
        %v4797 = vmul.f32 %v4576, %v4791
        %v4798 = vmul.f32 %v4581, %v4791
        %v4799 = vmul.f32 %v4586, %v4791
        %v4800 = vmul.f32 %v4591, %v4791
        %v4801 = vmul.f32 %v4596, %v4791
        %v4802 = vmul.f32 %v4601, %v4791
        %v4803 = vmul.f32 %v4606, %v4791
        %v4804 = vmul.f32 %v4611, %v4791
        %v4805 = vmul.f32 %v4616, %v4791
        %v4806 = vmul.f32 %v4621, %v4791
        %v4807 = vmul.f32 %v4626, %v4791
        %v4808 = vmul.f32 %v4631, %v4791
        %v4809 = vmul.f32 %v4636, %v4791
        %v4810 = vmul.f32 %v4641, %v4791
        %v4811 = vmul.f32 %v4646, %v4791
        %v4812 = vmul.f32 %v4651, %v4791
        %v4813 = vmul.f32 %v4656, %v4791
        %v4814 = vmul.f32 %v4661, %v4791
        %v4815 = vmul.f32 %v4666, %v4791
        %v4816 = vmul.f32 %v4671, %v4791
        %v4817 = vmul.f32 %v4676, %v4791
        %v4818 = vmul.f32 %v4681, %v4791
        %v4819 = vmul.f32 %v4686, %v4791
        %v4820 = vmul.f32 %v4691, %v4791
        %v4821 = vmul.f32 %v4696, %v4791
        %v4822 = vmul.f32 %v4701, %v4791
        %v4823 = vmul.f32 %v4706, %v4791
        %v4824 = vmul.f32 %v4711, %v4791
        %v4825 = vmul.f32 %v4716, %v4791
        %v4826 = vmul.f32 %v4721, %v4791
        %v4827 = vmul.f32 %v4726, %v4791
        %v4828 = vmul.f32 %v4731, %v4791
        %v4829 = vmul.f32 %v4736, %v4791
        %v4830 = vmul.f32 %v4741, %v4791
        %v4831 = vmul.f32 %v4746, %v4791
        %v4832 = vmul.f32 %v4751, %v4791
        %v4833 = vmul.f32 %v4756, %v4791
        %v4834 = vmul.f32 %v4761, %v4791
        %v4835 = vmul.f32 %v4766, %v4791
        %v4836 = vmul.f32 %v4771, %v4791
        %v4837 = vmul.f32 %v4776, %v4791
        %v4838 = vmul.f32 %v4781, %v4791
        %v4839 = vmul.f32 %v4786, %v4791
        %v4840 = vld [vmem:[#allocation2] sm:$0xff]
        %v4841 = vld [vmem:[#allocation2 + $0x8] sm:$0xff]
        %v4842 = vld [vmem:[#allocation2 + $0x10] sm:$0xff]
        %v4843 = vld [vmem:[#allocation2 + $0x18] sm:$0xff]
        %v4844 = vld [vmem:[#allocation2 + $0x20] sm:$0xff]
        %v4845 = vld [vmem:[#allocation2 + $0x28] sm:$0xff]
        %v4846 = vld [vmem:[#allocation2 + $0x30] sm:$0xff]
        %v4847 = vld [vmem:[#allocation2 + $0x38] sm:$0xff]
        %v4848 = vld [vmem:[#allocation2 + $0x40] sm:$0xff]
        %v4849 = vld [vmem:[#allocation2 + $0x48] sm:$0xff]
        %v4850 = vld [vmem:[#allocation2 + $0x50] sm:$0xff]
        %v4851 = vld [vmem:[#allocation2 + $0x58] sm:$0xff]
        %v4852 = vld [vmem:[#allocation2 + $0x60] sm:$0xff]
        %v4853 = vld [vmem:[#allocation2 + $0x68] sm:$0xff]
        %v4854 = vld [vmem:[#allocation2 + $0x70] sm:$0xff]
        %v4855 = vld [vmem:[#allocation2 + $0x78] sm:$0xff]
        %v4856 = vld [vmem:[#allocation2 + $0x80] sm:$0xff]
        %v4857 = vld [vmem:[#allocation2 + $0x88] sm:$0xff]
        %v4858 = vld [vmem:[#allocation2 + $0x90] sm:$0xff]
        %v4859 = vld [vmem:[#allocation2 + $0x98] sm:$0xff]
        %v4860 = vld [vmem:[#allocation2 + $0xa0] sm:$0xff]
        %v4861 = vld [vmem:[#allocation2 + $0xa8] sm:$0xff]
        %v4862 = vld [vmem:[#allocation2 + $0xb0] sm:$0xff]
        %v4863 = vld [vmem:[#allocation2 + $0xb8] sm:$0xff]
        %v4864 = vld [vmem:[#allocation2 + $0xc0] sm:$0xff]
        %v4865 = vld [vmem:[#allocation2 + $0xc8] sm:$0xff]
        %v4866 = vld [vmem:[#allocation2 + $0xd0] sm:$0xff]
        %v4867 = vld [vmem:[#allocation2 + $0xd8] sm:$0xff]
        %v4868 = vld [vmem:[#allocation2 + $0xe0] sm:$0xff]
        %v4869 = vld [vmem:[#allocation2 + $0xe8] sm:$0xff]
        %v4870 = vld [vmem:[#allocation2 + $0xf0] sm:$0xff]
        %v4871 = vld [vmem:[#allocation2 + $0xf8] sm:$0xff]
        %v4872 = vld [vmem:[#allocation2 + $0x100] sm:$0xff]
        %v4873 = vld [vmem:[#allocation2 + $0x108] sm:$0xff]
        %v4874 = vld [vmem:[#allocation2 + $0x110] sm:$0xff]
        %v4875 = vld [vmem:[#allocation2 + $0x118] sm:$0xff]
        %v4876 = vld [vmem:[#allocation2 + $0x120] sm:$0xff]
        %v4877 = vld [vmem:[#allocation2 + $0x128] sm:$0xff]
        %v4878 = vld [vmem:[#allocation2 + $0x130] sm:$0xff]
        %v4879 = vld [vmem:[#allocation2 + $0x138] sm:$0xff]
        %v4880 = vld [vmem:[#allocation2 + $0x140] sm:$0xff]
        %v4881 = vld [vmem:[#allocation2 + $0x148] sm:$0xff]
        %v4882 = vld [vmem:[#allocation2 + $0x150] sm:$0xff]
        %v4883 = vld [vmem:[#allocation2 + $0x158] sm:$0xff]
        %v4884 = vld [vmem:[#allocation2 + $0x160] sm:$0xff]
        %v4885 = vld [vmem:[#allocation2 + $0x168] sm:$0xff]
        %v4886 = vld [vmem:[#allocation2 + $0x170] sm:$0xff]
        %v4887 = vld [vmem:[#allocation2 + $0x178] sm:$0xff]
        %v4888 = vadd.f32 %v4840, %v4792
        %v4889 = vadd.f32 %v4841, %v4793
        %v4890 = vadd.f32 %v4842, %v4794
        %v4891 = vadd.f32 %v4843, %v4795
        %v4892 = vadd.f32 %v4844, %v4796
        %v4893 = vadd.f32 %v4845, %v4797
        %v4894 = vadd.f32 %v4846, %v4798
        %v4895 = vadd.f32 %v4847, %v4799
        %v4896 = vadd.f32 %v4848, %v4800
        %v4897 = vadd.f32 %v4849, %v4801
        %v4898 = vadd.f32 %v4850, %v4802
        %v4899 = vadd.f32 %v4851, %v4803
        %v4900 = vadd.f32 %v4852, %v4804
        %v4901 = vadd.f32 %v4853, %v4805
        %v4902 = vadd.f32 %v4854, %v4806
        %v4903 = vadd.f32 %v4855, %v4807
        %v4904 = vadd.f32 %v4856, %v4808
        %v4905 = vadd.f32 %v4857, %v4809
        %v4906 = vadd.f32 %v4858, %v4810
        %v4907 = vadd.f32 %v4859, %v4811
        %v4908 = vadd.f32 %v4860, %v4812
        %v4909 = vadd.f32 %v4861, %v4813
        %v4910 = vadd.f32 %v4862, %v4814
        %v4911 = vadd.f32 %v4863, %v4815
        %v4912 = vadd.f32 %v4864, %v4816
        %v4913 = vadd.f32 %v4865, %v4817
        %v4914 = vadd.f32 %v4866, %v4818
        %v4915 = vadd.f32 %v4867, %v4819
        %v4916 = vadd.f32 %v4868, %v4820
        %v4917 = vadd.f32 %v4869, %v4821
        %v4918 = vadd.f32 %v4870, %v4822
        %v4919 = vadd.f32 %v4871, %v4823
        %v4920 = vadd.f32 %v4872, %v4824
        %v4921 = vadd.f32 %v4873, %v4825
        %v4922 = vadd.f32 %v4874, %v4826
        %v4923 = vadd.f32 %v4875, %v4827
        %v4924 = vadd.f32 %v4876, %v4828
        %v4925 = vadd.f32 %v4877, %v4829
        %v4926 = vadd.f32 %v4878, %v4830
        %v4927 = vadd.f32 %v4879, %v4831
        %v4928 = vadd.f32 %v4880, %v4832
        %v4929 = vadd.f32 %v4881, %v4833
        %v4930 = vadd.f32 %v4882, %v4834
        %v4931 = vadd.f32 %v4883, %v4835
        %v4932 = vadd.f32 %v4884, %v4836
        %v4933 = vadd.f32 %v4885, %v4837
        %v4934 = vadd.f32 %v4886, %v4838
        %v4935 = vadd.f32 %v4887, %v4839
        %4936 = vst.msk [vmem:[#allocation2] sm:$0xff] %vm915, %v4888
        %4937 = vst.msk [vmem:[#allocation2 + $0x8] sm:$0xff] %vm915, %v4889
        %4938 = vst.msk [vmem:[#allocation2 + $0x10] sm:$0xff] %vm915, %v4890
        %4939 = vst.msk [vmem:[#allocation2 + $0x18] sm:$0xff] %vm915, %v4891
        %4940 = vst.msk [vmem:[#allocation2 + $0x20] sm:$0xff] %vm915, %v4892
        %4941 = vst.msk [vmem:[#allocation2 + $0x28] sm:$0xff] %vm915, %v4893
        %4942 = vst.msk [vmem:[#allocation2 + $0x30] sm:$0xff] %vm915, %v4894
        %4943 = vst.msk [vmem:[#allocation2 + $0x38] sm:$0xff] %vm915, %v4895
        %4944 = vst.msk [vmem:[#allocation2 + $0x40] sm:$0xff] %vm915, %v4896
        %4945 = vst.msk [vmem:[#allocation2 + $0x48] sm:$0xff] %vm915, %v4897
        %4946 = vst.msk [vmem:[#allocation2 + $0x50] sm:$0xff] %vm915, %v4898
        %4947 = vst.msk [vmem:[#allocation2 + $0x58] sm:$0xff] %vm915, %v4899
        %4948 = vst.msk [vmem:[#allocation2 + $0x60] sm:$0xff] %vm915, %v4900
        %4949 = vst.msk [vmem:[#allocation2 + $0x68] sm:$0xff] %vm915, %v4901
        %4950 = vst.msk [vmem:[#allocation2 + $0x70] sm:$0xff] %vm915, %v4902
        %4951 = vst.msk [vmem:[#allocation2 + $0x78] sm:$0xff] %vm915, %v4903
        %4952 = vst.msk [vmem:[#allocation2 + $0x80] sm:$0xff] %vm915, %v4904
        %4953 = vst.msk [vmem:[#allocation2 + $0x88] sm:$0xff] %vm915, %v4905
        %4954 = vst.msk [vmem:[#allocation2 + $0x90] sm:$0xff] %vm915, %v4906
        %4955 = vst.msk [vmem:[#allocation2 + $0x98] sm:$0xff] %vm915, %v4907
        %4956 = vst.msk [vmem:[#allocation2 + $0xa0] sm:$0xff] %vm915, %v4908
        %4957 = vst.msk [vmem:[#allocation2 + $0xa8] sm:$0xff] %vm915, %v4909
        %4958 = vst.msk [vmem:[#allocation2 + $0xb0] sm:$0xff] %vm915, %v4910
        %4959 = vst.msk [vmem:[#allocation2 + $0xb8] sm:$0xff] %vm915, %v4911
        %4960 = vst.msk [vmem:[#allocation2 + $0xc0] sm:$0xff] %vm915, %v4912
        %4961 = vst.msk [vmem:[#allocation2 + $0xc8] sm:$0xff] %vm915, %v4913
        %4962 = vst.msk [vmem:[#allocation2 + $0xd0] sm:$0xff] %vm915, %v4914
        %4963 = vst.msk [vmem:[#allocation2 + $0xd8] sm:$0xff] %vm915, %v4915
        %4964 = vst.msk [vmem:[#allocation2 + $0xe0] sm:$0xff] %vm915, %v4916
        %4965 = vst.msk [vmem:[#allocation2 + $0xe8] sm:$0xff] %vm915, %v4917
        %4966 = vst.msk [vmem:[#allocation2 + $0xf0] sm:$0xff] %vm915, %v4918
        %4967 = vst.msk [vmem:[#allocation2 + $0xf8] sm:$0xff] %vm915, %v4919
        %4968 = vst.msk [vmem:[#allocation2 + $0x100] sm:$0xff] %vm915, %v4920
        %4969 = vst.msk [vmem:[#allocation2 + $0x108] sm:$0xff] %vm915, %v4921
        %4970 = vst.msk [vmem:[#allocation2 + $0x110] sm:$0xff] %vm915, %v4922
        %4971 = vst.msk [vmem:[#allocation2 + $0x118] sm:$0xff] %vm915, %v4923
        %4972 = vst.msk [vmem:[#allocation2 + $0x120] sm:$0xff] %vm915, %v4924
        %4973 = vst.msk [vmem:[#allocation2 + $0x128] sm:$0xff] %vm915, %v4925
        %4974 = vst.msk [vmem:[#allocation2 + $0x130] sm:$0xff] %vm915, %v4926
        %4975 = vst.msk [vmem:[#allocation2 + $0x138] sm:$0xff] %vm915, %v4927
        %4976 = vst.msk [vmem:[#allocation2 + $0x140] sm:$0xff] %vm915, %v4928
        %4977 = vst.msk [vmem:[#allocation2 + $0x148] sm:$0xff] %vm915, %v4929
        %4978 = vst.msk [vmem:[#allocation2 + $0x150] sm:$0xff] %vm915, %v4930
        %4979 = vst.msk [vmem:[#allocation2 + $0x158] sm:$0xff] %vm915, %v4931
        %4980 = vst.msk [vmem:[#allocation2 + $0x160] sm:$0xff] %vm915, %v4932
        %4981 = vst.msk [vmem:[#allocation2 + $0x168] sm:$0xff] %vm915, %v4933
        %4982 = vst.msk [vmem:[#allocation2 + $0x170] sm:$0xff] %vm915, %v4934
        %4983 = vst.msk [vmem:[#allocation2 + $0x178] sm:$0xff] %vm915, %v4935
        %v4984 = vld [vmem:[%s523 + $0x18] sm:$0xf]
        %v4985 = vld [vmem:[%s523 + $0x1c] sm:$0xf]
        %v4986 = vld [vmem:[%s523 + $0x20] sm:$0xf]
        %v4987 = vld [vmem:[%s523 + $0x24] sm:$0xf]
        %v4988 = vld [vmem:[%s523 + $0x28] sm:$0xf]
        %v4989 = vld [vmem:[%s523 + $0x2c] sm:$0xf]
        %v4990 = vld [vmem:[%s523 + $0x30] sm:$0xf]
        %v4991 = vld [vmem:[%s523 + $0x34] sm:$0xf]
        %v4992 = vld [vmem:[%s523 + $0x38] sm:$0xf]
        %v4993 = vld [vmem:[%s523 + $0x3c] sm:$0xf]
        %v4994 = vld [vmem:[%s523 + $0x40] sm:$0xf]
        %v4995 = vld [vmem:[%s523 + $0x44] sm:$0xf]
        %v4996 = vld [vmem:[%s523 + $0x48] sm:$0xf]
        %v4997 = vld [vmem:[%s523 + $0x4c] sm:$0xf]
        %v4998 = vld [vmem:[%s523 + $0x50] sm:$0xf]
        %v4999 = vld [vmem:[%s523 + $0x54] sm:$0xf]
        %v5000 = vld [vmem:[%s523 + $0x58] sm:$0xf]
        %v5001 = vld [vmem:[%s523 + $0x5c] sm:$0xf]
        %v5002 = vld [vmem:[%s523 + $0x60] sm:$0xf]
        %v5003 = vld [vmem:[%s523 + $0x64] sm:$0xf]
        %v5004 = vld [vmem:[%s523 + $0x68] sm:$0xf]
        %v5005 = vld [vmem:[%s523 + $0x6c] sm:$0xf]
        %v5006 = vld [vmem:[%s523 + $0x70] sm:$0xf]
        %v5007 = vld [vmem:[%s523 + $0x74] sm:$0xf]
        %v5008 = vld [vmem:[%s523 + $0x78] sm:$0xf]
        %v5009 = vld [vmem:[%s523 + $0x7c] sm:$0xf]
        %v5010 = vld [vmem:[%s523 + $0x80] sm:$0xf]
        %v5011 = vld [vmem:[%s523 + $0x84] sm:$0xf]
        %v5012 = vld [vmem:[%s523 + $0x88] sm:$0xf]
        %v5013 = vld [vmem:[%s523 + $0x8c] sm:$0xf]
        %v5014 = vld [vmem:[%s523 + $0x90] sm:$0xf]
        %v5015 = vld [vmem:[%s523 + $0x94] sm:$0xf]
        %v5016 = vld [vmem:[%s523 + $0x98] sm:$0xf]
        %v5017 = vld [vmem:[%s523 + $0x9c] sm:$0xf]
        %v5018 = vld [vmem:[%s523 + $0xa0] sm:$0xf]
        %v5019 = vld [vmem:[%s523 + $0xa4] sm:$0xf]
        %v5020 = vld [vmem:[%s523 + $0xa8] sm:$0xf]
        %v5021 = vld [vmem:[%s523 + $0xac] sm:$0xf]
        %v5022 = vld [vmem:[%s523 + $0xb0] sm:$0xf]
        %v5023 = vld [vmem:[%s523 + $0xb4] sm:$0xf]
        %v5024 = vld [vmem:[%s523 + $0xb8] sm:$0xf]
        %v5025 = vld [vmem:[%s523 + $0xbc] sm:$0xf]
        %v5026 = vld [vmem:[%s523 + $0xc0] sm:$0xf]
        %v5027 = vld [vmem:[%s523 + $0xc4] sm:$0xf]
        %v5028 = vld [vmem:[%s523 + $0xc8] sm:$0xf]
        %v5029 = vld [vmem:[%s523 + $0xcc] sm:$0xf]
        %v5030 = vld [vmem:[%s523 + $0xd0] sm:$0xf]
        %v5031 = vld [vmem:[%s523 + $0xd4] sm:$0xf]
        %v5032 = vld [vmem:[%s523 + $0xd8] sm:$0x1]
        %v5033 = vunpack.c.l.bf16 %v4984
        %v5034 = vunpack.c.l.bf16 %v4985
        %v5035 = vunpack.c.l.bf16 %v4986
        %v5036 = vunpack.c.l.bf16 %v4987
        %v5037 = vunpack.c.l.bf16 %v4988
        %v5038 = vunpack.c.l.bf16 %v4989
        %v5039 = vunpack.c.l.bf16 %v4990
        %v5040 = vunpack.c.l.bf16 %v4991
        %v5041 = vunpack.c.l.bf16 %v4992
        %v5042 = vunpack.c.l.bf16 %v4993
        %v5043 = vunpack.c.l.bf16 %v4994
        %v5044 = vunpack.c.l.bf16 %v4995
        %v5045 = vunpack.c.l.bf16 %v4996
        %v5046 = vunpack.c.l.bf16 %v4997
        %v5047 = vunpack.c.l.bf16 %v4998
        %v5048 = vunpack.c.l.bf16 %v4999
        %v5049 = vunpack.c.l.bf16 %v5000
        %v5050 = vunpack.c.l.bf16 %v5001
        %v5051 = vunpack.c.l.bf16 %v5002
        %v5052 = vunpack.c.l.bf16 %v5003
        %v5053 = vunpack.c.l.bf16 %v5004
        %v5054 = vunpack.c.l.bf16 %v5005
        %v5055 = vunpack.c.l.bf16 %v5006
        %v5056 = vunpack.c.l.bf16 %v5007
        %v5057 = vunpack.c.l.bf16 %v5008
        %v5058 = vunpack.c.l.bf16 %v5009
        %v5059 = vunpack.c.l.bf16 %v5010
        %v5060 = vunpack.c.l.bf16 %v5011
        %v5061 = vunpack.c.l.bf16 %v5012
        %v5062 = vunpack.c.l.bf16 %v5013
        %v5063 = vunpack.c.l.bf16 %v5014
        %v5064 = vunpack.c.l.bf16 %v5015
        %v5065 = vunpack.c.l.bf16 %v5016
        %v5066 = vunpack.c.l.bf16 %v5017
        %v5067 = vunpack.c.l.bf16 %v5018
        %v5068 = vunpack.c.l.bf16 %v5019
        %v5069 = vunpack.c.l.bf16 %v5020
        %v5070 = vunpack.c.l.bf16 %v5021
        %v5071 = vunpack.c.l.bf16 %v5022
        %v5072 = vunpack.c.l.bf16 %v5023
        %v5073 = vunpack.c.l.bf16 %v5024
        %v5074 = vunpack.c.l.bf16 %v5025
        %v5075 = vunpack.c.l.bf16 %v5026
        %v5076 = vunpack.c.l.bf16 %v5027
        %v5077 = vunpack.c.l.bf16 %v5028
        %v5078 = vunpack.c.l.bf16 %v5029
        %v5079 = vunpack.c.l.bf16 %v5030
        %v5080 = vunpack.c.l.bf16 %v5031
        %v5081 = vunpack.c.l.bf16 %v5032
        %s5082 = scalar_lea.vmem %s1, 7
        %v5083 = vld [vmem:[%s5082] sm:$0x1]
        %v5084 = vunpack.c.l.bf16 %v5083
        %5086 = vset.pattern.permute.xlu0 0
        %5087 = vperm.xlu0 %5086, %v5033
        %v5088 = vpop.permute.xlu0 %5087
        %5091 = vset.pattern.permute.xlu0 0
        %5092 = vperm.xlu0 %5091, %v5034
        %v5093 = vpop.permute.xlu0 %5092
        %5096 = vset.pattern.permute.xlu0 0
        %5097 = vperm.xlu0 %5096, %v5035
        %v5098 = vpop.permute.xlu0 %5097
        %5101 = vset.pattern.permute.xlu0 0
        %5102 = vperm.xlu0 %5101, %v5036
        %v5103 = vpop.permute.xlu0 %5102
        %5106 = vset.pattern.permute.xlu0 0
        %5107 = vperm.xlu0 %5106, %v5037
        %v5108 = vpop.permute.xlu0 %5107
        %5111 = vset.pattern.permute.xlu0 0
        %5112 = vperm.xlu0 %5111, %v5038
        %v5113 = vpop.permute.xlu0 %5112
        %5116 = vset.pattern.permute.xlu0 0
        %5117 = vperm.xlu0 %5116, %v5039
        %v5118 = vpop.permute.xlu0 %5117
        %5121 = vset.pattern.permute.xlu0 0
        %5122 = vperm.xlu0 %5121, %v5040
        %v5123 = vpop.permute.xlu0 %5122
        %5126 = vset.pattern.permute.xlu0 0
        %5127 = vperm.xlu0 %5126, %v5041
        %v5128 = vpop.permute.xlu0 %5127
        %5131 = vset.pattern.permute.xlu0 0
        %5132 = vperm.xlu0 %5131, %v5042
        %v5133 = vpop.permute.xlu0 %5132
        %5136 = vset.pattern.permute.xlu0 0
        %5137 = vperm.xlu0 %5136, %v5043
        %v5138 = vpop.permute.xlu0 %5137
        %5141 = vset.pattern.permute.xlu0 0
        %5142 = vperm.xlu0 %5141, %v5044
        %v5143 = vpop.permute.xlu0 %5142
        %5146 = vset.pattern.permute.xlu0 0
        %5147 = vperm.xlu0 %5146, %v5045
        %v5148 = vpop.permute.xlu0 %5147
        %5151 = vset.pattern.permute.xlu0 0
        %5152 = vperm.xlu0 %5151, %v5046
        %v5153 = vpop.permute.xlu0 %5152
        %5156 = vset.pattern.permute.xlu0 0
        %5157 = vperm.xlu0 %5156, %v5047
        %v5158 = vpop.permute.xlu0 %5157
        %5161 = vset.pattern.permute.xlu0 0
        %5162 = vperm.xlu0 %5161, %v5048
        %v5163 = vpop.permute.xlu0 %5162
        %5166 = vset.pattern.permute.xlu0 0
        %5167 = vperm.xlu0 %5166, %v5049
        %v5168 = vpop.permute.xlu0 %5167
        %5171 = vset.pattern.permute.xlu0 0
        %5172 = vperm.xlu0 %5171, %v5050
        %v5173 = vpop.permute.xlu0 %5172
        %5176 = vset.pattern.permute.xlu0 0
        %5177 = vperm.xlu0 %5176, %v5051
        %v5178 = vpop.permute.xlu0 %5177
        %5181 = vset.pattern.permute.xlu0 0
        %5182 = vperm.xlu0 %5181, %v5052
        %v5183 = vpop.permute.xlu0 %5182
        %5186 = vset.pattern.permute.xlu0 0
        %5187 = vperm.xlu0 %5186, %v5053
        %v5188 = vpop.permute.xlu0 %5187
        %5191 = vset.pattern.permute.xlu0 0
        %5192 = vperm.xlu0 %5191, %v5054
        %v5193 = vpop.permute.xlu0 %5192
        %5196 = vset.pattern.permute.xlu0 0
        %5197 = vperm.xlu0 %5196, %v5055
        %v5198 = vpop.permute.xlu0 %5197
        %5201 = vset.pattern.permute.xlu0 0
        %5202 = vperm.xlu0 %5201, %v5056
        %v5203 = vpop.permute.xlu0 %5202
        %5206 = vset.pattern.permute.xlu0 0
        %5207 = vperm.xlu0 %5206, %v5057
        %v5208 = vpop.permute.xlu0 %5207
        %5211 = vset.pattern.permute.xlu0 0
        %5212 = vperm.xlu0 %5211, %v5058
        %v5213 = vpop.permute.xlu0 %5212
        %5216 = vset.pattern.permute.xlu0 0
        %5217 = vperm.xlu0 %5216, %v5059
        %v5218 = vpop.permute.xlu0 %5217
        %5221 = vset.pattern.permute.xlu0 0
        %5222 = vperm.xlu0 %5221, %v5060
        %v5223 = vpop.permute.xlu0 %5222
        %5226 = vset.pattern.permute.xlu0 0
        %5227 = vperm.xlu0 %5226, %v5061
        %v5228 = vpop.permute.xlu0 %5227
        %5231 = vset.pattern.permute.xlu0 0
        %5232 = vperm.xlu0 %5231, %v5062
        %v5233 = vpop.permute.xlu0 %5232
        %5236 = vset.pattern.permute.xlu0 0
        %5237 = vperm.xlu0 %5236, %v5063
        %v5238 = vpop.permute.xlu0 %5237
        %5241 = vset.pattern.permute.xlu0 0
        %5242 = vperm.xlu0 %5241, %v5064
        %v5243 = vpop.permute.xlu0 %5242
        %5246 = vset.pattern.permute.xlu0 0
        %5247 = vperm.xlu0 %5246, %v5065
        %v5248 = vpop.permute.xlu0 %5247
        %5251 = vset.pattern.permute.xlu0 0
        %5252 = vperm.xlu0 %5251, %v5066
        %v5253 = vpop.permute.xlu0 %5252
        %5256 = vset.pattern.permute.xlu0 0
        %5257 = vperm.xlu0 %5256, %v5067
        %v5258 = vpop.permute.xlu0 %5257
        %5261 = vset.pattern.permute.xlu0 0
        %5262 = vperm.xlu0 %5261, %v5068
        %v5263 = vpop.permute.xlu0 %5262
        %5266 = vset.pattern.permute.xlu0 0
        %5267 = vperm.xlu0 %5266, %v5069
        %v5268 = vpop.permute.xlu0 %5267
        %5271 = vset.pattern.permute.xlu0 0
        %5272 = vperm.xlu0 %5271, %v5070
        %v5273 = vpop.permute.xlu0 %5272
        %5276 = vset.pattern.permute.xlu0 0
        %5277 = vperm.xlu0 %5276, %v5071
        %v5278 = vpop.permute.xlu0 %5277
        %5281 = vset.pattern.permute.xlu0 0
        %5282 = vperm.xlu0 %5281, %v5072
        %v5283 = vpop.permute.xlu0 %5282
        %5286 = vset.pattern.permute.xlu0 0
        %5287 = vperm.xlu0 %5286, %v5073
        %v5288 = vpop.permute.xlu0 %5287
        %5291 = vset.pattern.permute.xlu0 0
        %5292 = vperm.xlu0 %5291, %v5074
        %v5293 = vpop.permute.xlu0 %5292
        %5296 = vset.pattern.permute.xlu0 0
        %5297 = vperm.xlu0 %5296, %v5075
        %v5298 = vpop.permute.xlu0 %5297
        %5301 = vset.pattern.permute.xlu0 0
        %5302 = vperm.xlu0 %5301, %v5076
        %v5303 = vpop.permute.xlu0 %5302
        %5306 = vset.pattern.permute.xlu0 0
        %5307 = vperm.xlu0 %5306, %v5077
        %v5308 = vpop.permute.xlu0 %5307
        %5311 = vset.pattern.permute.xlu0 0
        %5312 = vperm.xlu0 %5311, %v5078
        %v5313 = vpop.permute.xlu0 %5312
        %5316 = vset.pattern.permute.xlu0 0
        %5317 = vperm.xlu0 %5316, %v5079
        %v5318 = vpop.permute.xlu0 %5317
        %5321 = vset.pattern.permute.xlu0 0
        %5322 = vperm.xlu0 %5321, %v5080
        %v5323 = vpop.permute.xlu0 %5322
        %5326 = vset.pattern.permute.xlu0 0
        %5327 = vperm.xlu0 %5326, %v5081
        %v5328 = vpop.permute.xlu0 %5327
        %v5330 = vlaneseq
        %v5331 = vshrl.u32 %v5330, 7
        %v5332 = vsub.s32 0, %v5331
        %v5333 = vrot.slane %v5084, %v5332
        %v5334 = vmul.f32 %v5088, %v5333
        %v5335 = vmul.f32 %v5093, %v5333
        %v5336 = vmul.f32 %v5098, %v5333
        %v5337 = vmul.f32 %v5103, %v5333
        %v5338 = vmul.f32 %v5108, %v5333
        %v5339 = vmul.f32 %v5113, %v5333
        %v5340 = vmul.f32 %v5118, %v5333
        %v5341 = vmul.f32 %v5123, %v5333
        %v5342 = vmul.f32 %v5128, %v5333
        %v5343 = vmul.f32 %v5133, %v5333
        %v5344 = vmul.f32 %v5138, %v5333
        %v5345 = vmul.f32 %v5143, %v5333
        %v5346 = vmul.f32 %v5148, %v5333
        %v5347 = vmul.f32 %v5153, %v5333
        %v5348 = vmul.f32 %v5158, %v5333
        %v5349 = vmul.f32 %v5163, %v5333
        %v5350 = vmul.f32 %v5168, %v5333
        %v5351 = vmul.f32 %v5173, %v5333
        %v5352 = vmul.f32 %v5178, %v5333
        %v5353 = vmul.f32 %v5183, %v5333
        %v5354 = vmul.f32 %v5188, %v5333
        %v5355 = vmul.f32 %v5193, %v5333
        %v5356 = vmul.f32 %v5198, %v5333
        %v5357 = vmul.f32 %v5203, %v5333
        %v5358 = vmul.f32 %v5208, %v5333
        %v5359 = vmul.f32 %v5213, %v5333
        %v5360 = vmul.f32 %v5218, %v5333
        %v5361 = vmul.f32 %v5223, %v5333
        %v5362 = vmul.f32 %v5228, %v5333
        %v5363 = vmul.f32 %v5233, %v5333
        %v5364 = vmul.f32 %v5238, %v5333
        %v5365 = vmul.f32 %v5243, %v5333
        %v5366 = vmul.f32 %v5248, %v5333
        %v5367 = vmul.f32 %v5253, %v5333
        %v5368 = vmul.f32 %v5258, %v5333
        %v5369 = vmul.f32 %v5263, %v5333
        %v5370 = vmul.f32 %v5268, %v5333
        %v5371 = vmul.f32 %v5273, %v5333
        %v5372 = vmul.f32 %v5278, %v5333
        %v5373 = vmul.f32 %v5283, %v5333
        %v5374 = vmul.f32 %v5288, %v5333
        %v5375 = vmul.f32 %v5293, %v5333
        %v5376 = vmul.f32 %v5298, %v5333
        %v5377 = vmul.f32 %v5303, %v5333
        %v5378 = vmul.f32 %v5308, %v5333
        %v5379 = vmul.f32 %v5313, %v5333
        %v5380 = vmul.f32 %v5318, %v5333
        %v5381 = vmul.f32 %v5323, %v5333
        %v5382 = vmul.f32 %v5328, %v5333
        %v5383 = vld [vmem:[#allocation2] sm:$0xff]
        %v5384 = vld [vmem:[#allocation2 + $0x8] sm:$0xff]
        %v5385 = vld [vmem:[#allocation2 + $0x10] sm:$0xff]
        %v5386 = vld [vmem:[#allocation2 + $0x18] sm:$0xff]
        %v5387 = vld [vmem:[#allocation2 + $0x20] sm:$0xff]
        %v5388 = vld [vmem:[#allocation2 + $0x28] sm:$0xff]
        %v5389 = vld [vmem:[#allocation2 + $0x30] sm:$0xff]
        %v5390 = vld [vmem:[#allocation2 + $0x38] sm:$0xff]
        %v5391 = vld [vmem:[#allocation2 + $0x40] sm:$0xff]
        %v5392 = vld [vmem:[#allocation2 + $0x48] sm:$0xff]
        %v5393 = vld [vmem:[#allocation2 + $0x50] sm:$0xff]
        %v5394 = vld [vmem:[#allocation2 + $0x58] sm:$0xff]
        %v5395 = vld [vmem:[#allocation2 + $0x60] sm:$0xff]
        %v5396 = vld [vmem:[#allocation2 + $0x68] sm:$0xff]
        %v5397 = vld [vmem:[#allocation2 + $0x70] sm:$0xff]
        %v5398 = vld [vmem:[#allocation2 + $0x78] sm:$0xff]
        %v5399 = vld [vmem:[#allocation2 + $0x80] sm:$0xff]
        %v5400 = vld [vmem:[#allocation2 + $0x88] sm:$0xff]
        %v5401 = vld [vmem:[#allocation2 + $0x90] sm:$0xff]
        %v5402 = vld [vmem:[#allocation2 + $0x98] sm:$0xff]
        %v5403 = vld [vmem:[#allocation2 + $0xa0] sm:$0xff]
        %v5404 = vld [vmem:[#allocation2 + $0xa8] sm:$0xff]
        %v5405 = vld [vmem:[#allocation2 + $0xb0] sm:$0xff]
        %v5406 = vld [vmem:[#allocation2 + $0xb8] sm:$0xff]
        %v5407 = vld [vmem:[#allocation2 + $0xc0] sm:$0xff]
        %v5408 = vld [vmem:[#allocation2 + $0xc8] sm:$0xff]
        %v5409 = vld [vmem:[#allocation2 + $0xd0] sm:$0xff]
        %v5410 = vld [vmem:[#allocation2 + $0xd8] sm:$0xff]
        %v5411 = vld [vmem:[#allocation2 + $0xe0] sm:$0xff]
        %v5412 = vld [vmem:[#allocation2 + $0xe8] sm:$0xff]
        %v5413 = vld [vmem:[#allocation2 + $0xf0] sm:$0xff]
        %v5414 = vld [vmem:[#allocation2 + $0xf8] sm:$0xff]
        %v5415 = vld [vmem:[#allocation2 + $0x100] sm:$0xff]
        %v5416 = vld [vmem:[#allocation2 + $0x108] sm:$0xff]
        %v5417 = vld [vmem:[#allocation2 + $0x110] sm:$0xff]
        %v5418 = vld [vmem:[#allocation2 + $0x118] sm:$0xff]
        %v5419 = vld [vmem:[#allocation2 + $0x120] sm:$0xff]
        %v5420 = vld [vmem:[#allocation2 + $0x128] sm:$0xff]
        %v5421 = vld [vmem:[#allocation2 + $0x130] sm:$0xff]
        %v5422 = vld [vmem:[#allocation2 + $0x138] sm:$0xff]
        %v5423 = vld [vmem:[#allocation2 + $0x140] sm:$0xff]
        %v5424 = vld [vmem:[#allocation2 + $0x148] sm:$0xff]
        %v5425 = vld [vmem:[#allocation2 + $0x150] sm:$0xff]
        %v5426 = vld [vmem:[#allocation2 + $0x158] sm:$0xff]
        %v5427 = vld [vmem:[#allocation2 + $0x160] sm:$0xff]
        %v5428 = vld [vmem:[#allocation2 + $0x168] sm:$0xff]
        %v5429 = vld [vmem:[#allocation2 + $0x170] sm:$0xff]
        %v5430 = vld [vmem:[#allocation2 + $0x178] sm:$0xff]
        %v5480 = vrot.slane %v5334, 1
        %v5481 = vrot.slane %v5335, 1
        %v5482 = vsel %vm1460, %v5480, %v5481
        %v5483 = vrot.slane %v5336, 1
        %v5484 = vsel %vm1460, %v5481, %v5483
        %v5485 = vrot.slane %v5337, 1
        %v5486 = vsel %vm1460, %v5483, %v5485
        %v5487 = vrot.slane %v5338, 1
        %v5488 = vsel %vm1460, %v5485, %v5487
        %v5489 = vrot.slane %v5339, 1
        %v5490 = vsel %vm1460, %v5487, %v5489
        %v5491 = vrot.slane %v5340, 1
        %v5492 = vsel %vm1460, %v5489, %v5491
        %v5493 = vrot.slane %v5341, 1
        %v5494 = vsel %vm1460, %v5491, %v5493
        %v5495 = vrot.slane %v5342, 1
        %v5496 = vsel %vm1460, %v5493, %v5495
        %v5497 = vrot.slane %v5343, 1
        %v5498 = vsel %vm1460, %v5495, %v5497
        %v5499 = vrot.slane %v5344, 1
        %v5500 = vsel %vm1460, %v5497, %v5499
        %v5501 = vrot.slane %v5345, 1
        %v5502 = vsel %vm1460, %v5499, %v5501
        %v5503 = vrot.slane %v5346, 1
        %v5504 = vsel %vm1460, %v5501, %v5503
        %v5505 = vrot.slane %v5347, 1
        %v5506 = vsel %vm1460, %v5503, %v5505
        %v5507 = vrot.slane %v5348, 1
        %v5508 = vsel %vm1460, %v5505, %v5507
        %v5509 = vrot.slane %v5349, 1
        %v5510 = vsel %vm1460, %v5507, %v5509
        %v5511 = vrot.slane %v5350, 1
        %v5512 = vsel %vm1460, %v5509, %v5511
        %v5513 = vrot.slane %v5351, 1
        %v5514 = vsel %vm1460, %v5511, %v5513
        %v5515 = vrot.slane %v5352, 1
        %v5516 = vsel %vm1460, %v5513, %v5515
        %v5517 = vrot.slane %v5353, 1
        %v5518 = vsel %vm1460, %v5515, %v5517
        %v5519 = vrot.slane %v5354, 1
        %v5520 = vsel %vm1460, %v5517, %v5519
        %v5521 = vrot.slane %v5355, 1
        %v5522 = vsel %vm1460, %v5519, %v5521
        %v5523 = vrot.slane %v5356, 1
        %v5524 = vsel %vm1460, %v5521, %v5523
        %v5525 = vrot.slane %v5357, 1
        %v5526 = vsel %vm1460, %v5523, %v5525
        %v5527 = vrot.slane %v5358, 1
        %v5528 = vsel %vm1460, %v5525, %v5527
        %v5529 = vrot.slane %v5359, 1
        %v5530 = vsel %vm1460, %v5527, %v5529
        %v5531 = vrot.slane %v5360, 1
        %v5532 = vsel %vm1460, %v5529, %v5531
        %v5533 = vrot.slane %v5361, 1
        %v5534 = vsel %vm1460, %v5531, %v5533
        %v5535 = vrot.slane %v5362, 1
        %v5536 = vsel %vm1460, %v5533, %v5535
        %v5537 = vrot.slane %v5363, 1
        %v5538 = vsel %vm1460, %v5535, %v5537
        %v5539 = vrot.slane %v5364, 1
        %v5540 = vsel %vm1460, %v5537, %v5539
        %v5541 = vrot.slane %v5365, 1
        %v5542 = vsel %vm1460, %v5539, %v5541
        %v5543 = vrot.slane %v5366, 1
        %v5544 = vsel %vm1460, %v5541, %v5543
        %v5545 = vrot.slane %v5367, 1
        %v5546 = vsel %vm1460, %v5543, %v5545
        %v5547 = vrot.slane %v5368, 1
        %v5548 = vsel %vm1460, %v5545, %v5547
        %v5549 = vrot.slane %v5369, 1
        %v5550 = vsel %vm1460, %v5547, %v5549
        %v5551 = vrot.slane %v5370, 1
        %v5552 = vsel %vm1460, %v5549, %v5551
        %v5553 = vrot.slane %v5371, 1
        %v5554 = vsel %vm1460, %v5551, %v5553
        %v5555 = vrot.slane %v5372, 1
        %v5556 = vsel %vm1460, %v5553, %v5555
        %v5557 = vrot.slane %v5373, 1
        %v5558 = vsel %vm1460, %v5555, %v5557
        %v5559 = vrot.slane %v5374, 1
        %v5560 = vsel %vm1460, %v5557, %v5559
        %v5561 = vrot.slane %v5375, 1
        %v5562 = vsel %vm1460, %v5559, %v5561
        %v5563 = vrot.slane %v5376, 1
        %v5564 = vsel %vm1460, %v5561, %v5563
        %v5565 = vrot.slane %v5377, 1
        %v5566 = vsel %vm1460, %v5563, %v5565
        %v5567 = vrot.slane %v5378, 1
        %v5568 = vsel %vm1460, %v5565, %v5567
        %v5569 = vrot.slane %v5379, 1
        %v5570 = vsel %vm1460, %v5567, %v5569
        %v5571 = vrot.slane %v5380, 1
        %v5572 = vsel %vm1460, %v5569, %v5571
        %v5573 = vrot.slane %v5381, 1
        %v5574 = vsel %vm1460, %v5571, %v5573
        %v5575 = vrot.slane %v5382, 1
        %v5576 = vsel %vm1460, %v5573, %v5575
        %v5625 = vadd.f32 %v5383, %v5482
        %v5626 = vadd.f32 %v5384, %v5484
        %v5627 = vadd.f32 %v5385, %v5486
        %v5628 = vadd.f32 %v5386, %v5488
        %v5629 = vadd.f32 %v5387, %v5490
        %v5630 = vadd.f32 %v5388, %v5492
        %v5631 = vadd.f32 %v5389, %v5494
        %v5632 = vadd.f32 %v5390, %v5496
        %v5633 = vadd.f32 %v5391, %v5498
        %v5634 = vadd.f32 %v5392, %v5500
        %v5635 = vadd.f32 %v5393, %v5502
        %v5636 = vadd.f32 %v5394, %v5504
        %v5637 = vadd.f32 %v5395, %v5506
        %v5638 = vadd.f32 %v5396, %v5508
        %v5639 = vadd.f32 %v5397, %v5510
        %v5640 = vadd.f32 %v5398, %v5512
        %v5641 = vadd.f32 %v5399, %v5514
        %v5642 = vadd.f32 %v5400, %v5516
        %v5643 = vadd.f32 %v5401, %v5518
        %v5644 = vadd.f32 %v5402, %v5520
        %v5645 = vadd.f32 %v5403, %v5522
        %v5646 = vadd.f32 %v5404, %v5524
        %v5647 = vadd.f32 %v5405, %v5526
        %v5648 = vadd.f32 %v5406, %v5528
        %v5649 = vadd.f32 %v5407, %v5530
        %v5650 = vadd.f32 %v5408, %v5532
        %v5651 = vadd.f32 %v5409, %v5534
        %v5652 = vadd.f32 %v5410, %v5536
        %v5653 = vadd.f32 %v5411, %v5538
        %v5654 = vadd.f32 %v5412, %v5540
        %v5655 = vadd.f32 %v5413, %v5542
        %v5656 = vadd.f32 %v5414, %v5544
        %v5657 = vadd.f32 %v5415, %v5546
        %v5658 = vadd.f32 %v5416, %v5548
        %v5659 = vadd.f32 %v5417, %v5550
        %v5660 = vadd.f32 %v5418, %v5552
        %v5661 = vadd.f32 %v5419, %v5554
        %v5662 = vadd.f32 %v5420, %v5556
        %v5663 = vadd.f32 %v5421, %v5558
        %v5664 = vadd.f32 %v5422, %v5560
        %v5665 = vadd.f32 %v5423, %v5562
        %v5666 = vadd.f32 %v5424, %v5564
        %v5667 = vadd.f32 %v5425, %v5566
        %v5668 = vadd.f32 %v5426, %v5568
        %v5669 = vadd.f32 %v5427, %v5570
        %v5670 = vadd.f32 %v5428, %v5572
        %v5671 = vadd.f32 %v5429, %v5574
        %v5672 = vadd.f32 %v5430, %v5576
        %5673 = vst.msk [vmem:[#allocation2] sm:$0xff] %vm915, %v5625
        %5674 = vst.msk [vmem:[#allocation2 + $0x8] sm:$0xff] %vm915, %v5626
        %5675 = vst.msk [vmem:[#allocation2 + $0x10] sm:$0xff] %vm915, %v5627
        %5676 = vst.msk [vmem:[#allocation2 + $0x18] sm:$0xff] %vm915, %v5628
        %5677 = vst.msk [vmem:[#allocation2 + $0x20] sm:$0xff] %vm915, %v5629
        %5678 = vst.msk [vmem:[#allocation2 + $0x28] sm:$0xff] %vm915, %v5630
        %5679 = vst.msk [vmem:[#allocation2 + $0x30] sm:$0xff] %vm915, %v5631
        %5680 = vst.msk [vmem:[#allocation2 + $0x38] sm:$0xff] %vm915, %v5632
        %5681 = vst.msk [vmem:[#allocation2 + $0x40] sm:$0xff] %vm915, %v5633
        %5682 = vst.msk [vmem:[#allocation2 + $0x48] sm:$0xff] %vm915, %v5634
        %5683 = vst.msk [vmem:[#allocation2 + $0x50] sm:$0xff] %vm915, %v5635
        %5684 = vst.msk [vmem:[#allocation2 + $0x58] sm:$0xff] %vm915, %v5636
        %5685 = vst.msk [vmem:[#allocation2 + $0x60] sm:$0xff] %vm915, %v5637
        %5686 = vst.msk [vmem:[#allocation2 + $0x68] sm:$0xff] %vm915, %v5638
        %5687 = vst.msk [vmem:[#allocation2 + $0x70] sm:$0xff] %vm915, %v5639
        %5688 = vst.msk [vmem:[#allocation2 + $0x78] sm:$0xff] %vm915, %v5640
        %5689 = vst.msk [vmem:[#allocation2 + $0x80] sm:$0xff] %vm915, %v5641
        %5690 = vst.msk [vmem:[#allocation2 + $0x88] sm:$0xff] %vm915, %v5642
        %5691 = vst.msk [vmem:[#allocation2 + $0x90] sm:$0xff] %vm915, %v5643
        %5692 = vst.msk [vmem:[#allocation2 + $0x98] sm:$0xff] %vm915, %v5644
        %5693 = vst.msk [vmem:[#allocation2 + $0xa0] sm:$0xff] %vm915, %v5645
        %5694 = vst.msk [vmem:[#allocation2 + $0xa8] sm:$0xff] %vm915, %v5646
        %5695 = vst.msk [vmem:[#allocation2 + $0xb0] sm:$0xff] %vm915, %v5647
        %5696 = vst.msk [vmem:[#allocation2 + $0xb8] sm:$0xff] %vm915, %v5648
        %5697 = vst.msk [vmem:[#allocation2 + $0xc0] sm:$0xff] %vm915, %v5649
        %5698 = vst.msk [vmem:[#allocation2 + $0xc8] sm:$0xff] %vm915, %v5650
        %5699 = vst.msk [vmem:[#allocation2 + $0xd0] sm:$0xff] %vm915, %v5651
        %5700 = vst.msk [vmem:[#allocation2 + $0xd8] sm:$0xff] %vm915, %v5652
        %5701 = vst.msk [vmem:[#allocation2 + $0xe0] sm:$0xff] %vm915, %v5653
        %5702 = vst.msk [vmem:[#allocation2 + $0xe8] sm:$0xff] %vm915, %v5654
        %5703 = vst.msk [vmem:[#allocation2 + $0xf0] sm:$0xff] %vm915, %v5655
        %5704 = vst.msk [vmem:[#allocation2 + $0xf8] sm:$0xff] %vm915, %v5656
        %5705 = vst.msk [vmem:[#allocation2 + $0x100] sm:$0xff] %vm915, %v5657
        %5706 = vst.msk [vmem:[#allocation2 + $0x108] sm:$0xff] %vm915, %v5658
        %5707 = vst.msk [vmem:[#allocation2 + $0x110] sm:$0xff] %vm915, %v5659
        %5708 = vst.msk [vmem:[#allocation2 + $0x118] sm:$0xff] %vm915, %v5660
        %5709 = vst.msk [vmem:[#allocation2 + $0x120] sm:$0xff] %vm915, %v5661
        %5710 = vst.msk [vmem:[#allocation2 + $0x128] sm:$0xff] %vm915, %v5662
        %5711 = vst.msk [vmem:[#allocation2 + $0x130] sm:$0xff] %vm915, %v5663
        %5712 = vst.msk [vmem:[#allocation2 + $0x138] sm:$0xff] %vm915, %v5664
        %5713 = vst.msk [vmem:[#allocation2 + $0x140] sm:$0xff] %vm915, %v5665
        %5714 = vst.msk [vmem:[#allocation2 + $0x148] sm:$0xff] %vm915, %v5666
        %5715 = vst.msk [vmem:[#allocation2 + $0x150] sm:$0xff] %vm915, %v5667
        %5716 = vst.msk [vmem:[#allocation2 + $0x158] sm:$0xff] %vm915, %v5668
        %5717 = vst.msk [vmem:[#allocation2 + $0x160] sm:$0xff] %vm915, %v5669
        %5718 = vst.msk [vmem:[#allocation2 + $0x168] sm:$0xff] %vm915, %v5670
        %5719 = vst.msk [vmem:[#allocation2 + $0x170] sm:$0xff] %vm915, %v5671
        %5720 = vst.msk [vmem:[#allocation2 + $0x178] sm:$0xff] %vm915, %v5672
        %v5721 = vld [vmem:[%s523 + $0x18] sm:$0xe]
        %v5722 = vld [vmem:[%s523 + $0x1c] sm:$0xf]
        %v5723 = vld [vmem:[%s523 + $0x20] sm:$0xf]
        %v5724 = vld [vmem:[%s523 + $0x24] sm:$0xf]
        %v5725 = vld [vmem:[%s523 + $0x28] sm:$0xf]
        %v5726 = vld [vmem:[%s523 + $0x2c] sm:$0xf]
        %v5727 = vld [vmem:[%s523 + $0x30] sm:$0xf]
        %v5728 = vld [vmem:[%s523 + $0x34] sm:$0xf]
        %v5729 = vld [vmem:[%s523 + $0x38] sm:$0xf]
        %v5730 = vld [vmem:[%s523 + $0x3c] sm:$0xf]
        %v5731 = vld [vmem:[%s523 + $0x40] sm:$0xf]
        %v5732 = vld [vmem:[%s523 + $0x44] sm:$0xf]
        %v5733 = vld [vmem:[%s523 + $0x48] sm:$0xf]
        %v5734 = vld [vmem:[%s523 + $0x4c] sm:$0xf]
        %v5735 = vld [vmem:[%s523 + $0x50] sm:$0xf]
        %v5736 = vld [vmem:[%s523 + $0x54] sm:$0xf]
        %v5737 = vld [vmem:[%s523 + $0x58] sm:$0xf]
        %v5738 = vld [vmem:[%s523 + $0x5c] sm:$0xf]
        %v5739 = vld [vmem:[%s523 + $0x60] sm:$0xf]
        %v5740 = vld [vmem:[%s523 + $0x64] sm:$0xf]
        %v5741 = vld [vmem:[%s523 + $0x68] sm:$0xf]
        %v5742 = vld [vmem:[%s523 + $0x6c] sm:$0xf]
        %v5743 = vld [vmem:[%s523 + $0x70] sm:$0xf]
        %v5744 = vld [vmem:[%s523 + $0x74] sm:$0xf]
        %v5745 = vld [vmem:[%s523 + $0x78] sm:$0xf]
        %v5746 = vld [vmem:[%s523 + $0x7c] sm:$0xf]
        %v5747 = vld [vmem:[%s523 + $0x80] sm:$0xf]
        %v5748 = vld [vmem:[%s523 + $0x84] sm:$0xf]
        %v5749 = vld [vmem:[%s523 + $0x88] sm:$0xf]
        %v5750 = vld [vmem:[%s523 + $0x8c] sm:$0xf]
        %v5751 = vld [vmem:[%s523 + $0x90] sm:$0xf]
        %v5752 = vld [vmem:[%s523 + $0x94] sm:$0xf]
        %v5753 = vld [vmem:[%s523 + $0x98] sm:$0xf]
        %v5754 = vld [vmem:[%s523 + $0x9c] sm:$0xf]
        %v5755 = vld [vmem:[%s523 + $0xa0] sm:$0xf]
        %v5756 = vld [vmem:[%s523 + $0xa4] sm:$0xf]
        %v5757 = vld [vmem:[%s523 + $0xa8] sm:$0xf]
        %v5758 = vld [vmem:[%s523 + $0xac] sm:$0xf]
        %v5759 = vld [vmem:[%s523 + $0xb0] sm:$0xf]
        %v5760 = vld [vmem:[%s523 + $0xb4] sm:$0xf]
        %v5761 = vld [vmem:[%s523 + $0xb8] sm:$0xf]
        %v5762 = vld [vmem:[%s523 + $0xbc] sm:$0xf]
        %v5763 = vld [vmem:[%s523 + $0xc0] sm:$0xf]
        %v5764 = vld [vmem:[%s523 + $0xc4] sm:$0xf]
        %v5765 = vld [vmem:[%s523 + $0xc8] sm:$0xf]
        %v5766 = vld [vmem:[%s523 + $0xcc] sm:$0xf]
        %v5767 = vld [vmem:[%s523 + $0xd0] sm:$0xf]
        %v5768 = vld [vmem:[%s523 + $0xd4] sm:$0xf]
        %v5769 = vld [vmem:[%s523 + $0xd8] sm:$0x1]
        %v5770 = vunpack.c.l.bf16 %v5721
        %v5771 = vunpack.c.l.bf16 %v5722
        %v5772 = vunpack.c.l.bf16 %v5723
        %v5773 = vunpack.c.l.bf16 %v5724
        %v5774 = vunpack.c.l.bf16 %v5725
        %v5775 = vunpack.c.l.bf16 %v5726
        %v5776 = vunpack.c.l.bf16 %v5727
        %v5777 = vunpack.c.l.bf16 %v5728
        %v5778 = vunpack.c.l.bf16 %v5729
        %v5779 = vunpack.c.l.bf16 %v5730
        %v5780 = vunpack.c.l.bf16 %v5731
        %v5781 = vunpack.c.l.bf16 %v5732
        %v5782 = vunpack.c.l.bf16 %v5733
        %v5783 = vunpack.c.l.bf16 %v5734
        %v5784 = vunpack.c.l.bf16 %v5735
        %v5785 = vunpack.c.l.bf16 %v5736
        %v5786 = vunpack.c.l.bf16 %v5737
        %v5787 = vunpack.c.l.bf16 %v5738
        %v5788 = vunpack.c.l.bf16 %v5739
        %v5789 = vunpack.c.l.bf16 %v5740
        %v5790 = vunpack.c.l.bf16 %v5741
        %v5791 = vunpack.c.l.bf16 %v5742
        %v5792 = vunpack.c.l.bf16 %v5743
        %v5793 = vunpack.c.l.bf16 %v5744
        %v5794 = vunpack.c.l.bf16 %v5745
        %v5795 = vunpack.c.l.bf16 %v5746
        %v5796 = vunpack.c.l.bf16 %v5747
        %v5797 = vunpack.c.l.bf16 %v5748
        %v5798 = vunpack.c.l.bf16 %v5749
        %v5799 = vunpack.c.l.bf16 %v5750
        %v5800 = vunpack.c.l.bf16 %v5751
        %v5801 = vunpack.c.l.bf16 %v5752
        %v5802 = vunpack.c.l.bf16 %v5753
        %v5803 = vunpack.c.l.bf16 %v5754
        %v5804 = vunpack.c.l.bf16 %v5755
        %v5805 = vunpack.c.l.bf16 %v5756
        %v5806 = vunpack.c.l.bf16 %v5757
        %v5807 = vunpack.c.l.bf16 %v5758
        %v5808 = vunpack.c.l.bf16 %v5759
        %v5809 = vunpack.c.l.bf16 %v5760
        %v5810 = vunpack.c.l.bf16 %v5761
        %v5811 = vunpack.c.l.bf16 %v5762
        %v5812 = vunpack.c.l.bf16 %v5763
        %v5813 = vunpack.c.l.bf16 %v5764
        %v5814 = vunpack.c.l.bf16 %v5765
        %v5815 = vunpack.c.l.bf16 %v5766
        %v5816 = vunpack.c.l.bf16 %v5767
        %v5817 = vunpack.c.l.bf16 %v5768
        %v5818 = vunpack.c.l.bf16 %v5769
        %s5819 = scalar_lea.vmem %s1, 8
        %v5820 = vld [vmem:[%s5819] sm:$0x1]
        %v5821 = vunpack.c.l.bf16 %v5820
        %5823 = vset.pattern.permute.xlu0 0
        %5824 = vperm.xlu0 %5823, %v5770
        %v5825 = vpop.permute.xlu0 %5824
        %5828 = vset.pattern.permute.xlu0 0
        %5829 = vperm.xlu0 %5828, %v5771
        %v5830 = vpop.permute.xlu0 %5829
        %5833 = vset.pattern.permute.xlu0 0
        %5834 = vperm.xlu0 %5833, %v5772
        %v5835 = vpop.permute.xlu0 %5834
        %5838 = vset.pattern.permute.xlu0 0
        %5839 = vperm.xlu0 %5838, %v5773
        %v5840 = vpop.permute.xlu0 %5839
        %5843 = vset.pattern.permute.xlu0 0
        %5844 = vperm.xlu0 %5843, %v5774
        %v5845 = vpop.permute.xlu0 %5844
        %5848 = vset.pattern.permute.xlu0 0
        %5849 = vperm.xlu0 %5848, %v5775
        %v5850 = vpop.permute.xlu0 %5849
        %5853 = vset.pattern.permute.xlu0 0
        %5854 = vperm.xlu0 %5853, %v5776
        %v5855 = vpop.permute.xlu0 %5854
        %5858 = vset.pattern.permute.xlu0 0
        %5859 = vperm.xlu0 %5858, %v5777
        %v5860 = vpop.permute.xlu0 %5859
        %5863 = vset.pattern.permute.xlu0 0
        %5864 = vperm.xlu0 %5863, %v5778
        %v5865 = vpop.permute.xlu0 %5864
        %5868 = vset.pattern.permute.xlu0 0
        %5869 = vperm.xlu0 %5868, %v5779
        %v5870 = vpop.permute.xlu0 %5869
        %5873 = vset.pattern.permute.xlu0 0
        %5874 = vperm.xlu0 %5873, %v5780
        %v5875 = vpop.permute.xlu0 %5874
        %5878 = vset.pattern.permute.xlu0 0
        %5879 = vperm.xlu0 %5878, %v5781
        %v5880 = vpop.permute.xlu0 %5879
        %5883 = vset.pattern.permute.xlu0 0
        %5884 = vperm.xlu0 %5883, %v5782
        %v5885 = vpop.permute.xlu0 %5884
        %5888 = vset.pattern.permute.xlu0 0
        %5889 = vperm.xlu0 %5888, %v5783
        %v5890 = vpop.permute.xlu0 %5889
        %5893 = vset.pattern.permute.xlu0 0
        %5894 = vperm.xlu0 %5893, %v5784
        %v5895 = vpop.permute.xlu0 %5894
        %5898 = vset.pattern.permute.xlu0 0
        %5899 = vperm.xlu0 %5898, %v5785
        %v5900 = vpop.permute.xlu0 %5899
        %5903 = vset.pattern.permute.xlu0 0
        %5904 = vperm.xlu0 %5903, %v5786
        %v5905 = vpop.permute.xlu0 %5904
        %5908 = vset.pattern.permute.xlu0 0
        %5909 = vperm.xlu0 %5908, %v5787
        %v5910 = vpop.permute.xlu0 %5909
        %5913 = vset.pattern.permute.xlu0 0
        %5914 = vperm.xlu0 %5913, %v5788
        %v5915 = vpop.permute.xlu0 %5914
        %5918 = vset.pattern.permute.xlu0 0
        %5919 = vperm.xlu0 %5918, %v5789
        %v5920 = vpop.permute.xlu0 %5919
        %5923 = vset.pattern.permute.xlu0 0
        %5924 = vperm.xlu0 %5923, %v5790
        %v5925 = vpop.permute.xlu0 %5924
        %5928 = vset.pattern.permute.xlu0 0
        %5929 = vperm.xlu0 %5928, %v5791
        %v5930 = vpop.permute.xlu0 %5929
        %5933 = vset.pattern.permute.xlu0 0
        %5934 = vperm.xlu0 %5933, %v5792
        %v5935 = vpop.permute.xlu0 %5934
        %5938 = vset.pattern.permute.xlu0 0
        %5939 = vperm.xlu0 %5938, %v5793
        %v5940 = vpop.permute.xlu0 %5939
        %5943 = vset.pattern.permute.xlu0 0
        %5944 = vperm.xlu0 %5943, %v5794
        %v5945 = vpop.permute.xlu0 %5944
        %5948 = vset.pattern.permute.xlu0 0
        %5949 = vperm.xlu0 %5948, %v5795
        %v5950 = vpop.permute.xlu0 %5949
        %5953 = vset.pattern.permute.xlu0 0
        %5954 = vperm.xlu0 %5953, %v5796
        %v5955 = vpop.permute.xlu0 %5954
        %5958 = vset.pattern.permute.xlu0 0
        %5959 = vperm.xlu0 %5958, %v5797
        %v5960 = vpop.permute.xlu0 %5959
        %5963 = vset.pattern.permute.xlu0 0
        %5964 = vperm.xlu0 %5963, %v5798
        %v5965 = vpop.permute.xlu0 %5964
        %5968 = vset.pattern.permute.xlu0 0
        %5969 = vperm.xlu0 %5968, %v5799
        %v5970 = vpop.permute.xlu0 %5969
        %5973 = vset.pattern.permute.xlu0 0
        %5974 = vperm.xlu0 %5973, %v5800
        %v5975 = vpop.permute.xlu0 %5974
        %5978 = vset.pattern.permute.xlu0 0
        %5979 = vperm.xlu0 %5978, %v5801
        %v5980 = vpop.permute.xlu0 %5979
        %5983 = vset.pattern.permute.xlu0 0
        %5984 = vperm.xlu0 %5983, %v5802
        %v5985 = vpop.permute.xlu0 %5984
        %5988 = vset.pattern.permute.xlu0 0
        %5989 = vperm.xlu0 %5988, %v5803
        %v5990 = vpop.permute.xlu0 %5989
        %5993 = vset.pattern.permute.xlu0 0
        %5994 = vperm.xlu0 %5993, %v5804
        %v5995 = vpop.permute.xlu0 %5994
        %5998 = vset.pattern.permute.xlu0 0
        %5999 = vperm.xlu0 %5998, %v5805
        %v6000 = vpop.permute.xlu0 %5999
        %6003 = vset.pattern.permute.xlu0 0
        %6004 = vperm.xlu0 %6003, %v5806
        %v6005 = vpop.permute.xlu0 %6004
        %6008 = vset.pattern.permute.xlu0 0
        %6009 = vperm.xlu0 %6008, %v5807
        %v6010 = vpop.permute.xlu0 %6009
        %6013 = vset.pattern.permute.xlu0 0
        %6014 = vperm.xlu0 %6013, %v5808
        %v6015 = vpop.permute.xlu0 %6014
        %6018 = vset.pattern.permute.xlu0 0
        %6019 = vperm.xlu0 %6018, %v5809
        %v6020 = vpop.permute.xlu0 %6019
        %6023 = vset.pattern.permute.xlu0 0
        %6024 = vperm.xlu0 %6023, %v5810
        %v6025 = vpop.permute.xlu0 %6024
        %6028 = vset.pattern.permute.xlu0 0
        %6029 = vperm.xlu0 %6028, %v5811
        %v6030 = vpop.permute.xlu0 %6029
        %6033 = vset.pattern.permute.xlu0 0
        %6034 = vperm.xlu0 %6033, %v5812
        %v6035 = vpop.permute.xlu0 %6034
        %6038 = vset.pattern.permute.xlu0 0
        %6039 = vperm.xlu0 %6038, %v5813
        %v6040 = vpop.permute.xlu0 %6039
        %6043 = vset.pattern.permute.xlu0 0
        %6044 = vperm.xlu0 %6043, %v5814
        %v6045 = vpop.permute.xlu0 %6044
        %6048 = vset.pattern.permute.xlu0 0
        %6049 = vperm.xlu0 %6048, %v5815
        %v6050 = vpop.permute.xlu0 %6049
        %6053 = vset.pattern.permute.xlu0 0
        %6054 = vperm.xlu0 %6053, %v5816
        %v6055 = vpop.permute.xlu0 %6054
        %6058 = vset.pattern.permute.xlu0 0
        %6059 = vperm.xlu0 %6058, %v5817
        %v6060 = vpop.permute.xlu0 %6059
        %6063 = vset.pattern.permute.xlu0 0
        %6064 = vperm.xlu0 %6063, %v5818
        %v6065 = vpop.permute.xlu0 %6064
        %v6067 = vlaneseq
        %v6068 = vshrl.u32 %v6067, 7
        %v6069 = vsub.s32 0, %v6068
        %v6070 = vrot.slane %v5821, %v6069
        %v6071 = vmul.f32 %v5825, %v6070
        %v6072 = vmul.f32 %v5830, %v6070
        %v6073 = vmul.f32 %v5835, %v6070
        %v6074 = vmul.f32 %v5840, %v6070
        %v6075 = vmul.f32 %v5845, %v6070
        %v6076 = vmul.f32 %v5850, %v6070
        %v6077 = vmul.f32 %v5855, %v6070
        %v6078 = vmul.f32 %v5860, %v6070
        %v6079 = vmul.f32 %v5865, %v6070
        %v6080 = vmul.f32 %v5870, %v6070
        %v6081 = vmul.f32 %v5875, %v6070
        %v6082 = vmul.f32 %v5880, %v6070
        %v6083 = vmul.f32 %v5885, %v6070
        %v6084 = vmul.f32 %v5890, %v6070
        %v6085 = vmul.f32 %v5895, %v6070
        %v6086 = vmul.f32 %v5900, %v6070
        %v6087 = vmul.f32 %v5905, %v6070
        %v6088 = vmul.f32 %v5910, %v6070
        %v6089 = vmul.f32 %v5915, %v6070
        %v6090 = vmul.f32 %v5920, %v6070
        %v6091 = vmul.f32 %v5925, %v6070
        %v6092 = vmul.f32 %v5930, %v6070
        %v6093 = vmul.f32 %v5935, %v6070
        %v6094 = vmul.f32 %v5940, %v6070
        %v6095 = vmul.f32 %v5945, %v6070
        %v6096 = vmul.f32 %v5950, %v6070
        %v6097 = vmul.f32 %v5955, %v6070
        %v6098 = vmul.f32 %v5960, %v6070
        %v6099 = vmul.f32 %v5965, %v6070
        %v6100 = vmul.f32 %v5970, %v6070
        %v6101 = vmul.f32 %v5975, %v6070
        %v6102 = vmul.f32 %v5980, %v6070
        %v6103 = vmul.f32 %v5985, %v6070
        %v6104 = vmul.f32 %v5990, %v6070
        %v6105 = vmul.f32 %v5995, %v6070
        %v6106 = vmul.f32 %v6000, %v6070
        %v6107 = vmul.f32 %v6005, %v6070
        %v6108 = vmul.f32 %v6010, %v6070
        %v6109 = vmul.f32 %v6015, %v6070
        %v6110 = vmul.f32 %v6020, %v6070
        %v6111 = vmul.f32 %v6025, %v6070
        %v6112 = vmul.f32 %v6030, %v6070
        %v6113 = vmul.f32 %v6035, %v6070
        %v6114 = vmul.f32 %v6040, %v6070
        %v6115 = vmul.f32 %v6045, %v6070
        %v6116 = vmul.f32 %v6050, %v6070
        %v6117 = vmul.f32 %v6055, %v6070
        %v6118 = vmul.f32 %v6060, %v6070
        %v6119 = vmul.f32 %v6065, %v6070
        %v6120 = vld [vmem:[#allocation2] sm:$0xff]
        %v6121 = vld [vmem:[#allocation2 + $0x8] sm:$0xff]
        %v6122 = vld [vmem:[#allocation2 + $0x10] sm:$0xff]
        %v6123 = vld [vmem:[#allocation2 + $0x18] sm:$0xff]
        %v6124 = vld [vmem:[#allocation2 + $0x20] sm:$0xff]
        %v6125 = vld [vmem:[#allocation2 + $0x28] sm:$0xff]
        %v6126 = vld [vmem:[#allocation2 + $0x30] sm:$0xff]
        %v6127 = vld [vmem:[#allocation2 + $0x38] sm:$0xff]
        %v6128 = vld [vmem:[#allocation2 + $0x40] sm:$0xff]
        %v6129 = vld [vmem:[#allocation2 + $0x48] sm:$0xff]
        %v6130 = vld [vmem:[#allocation2 + $0x50] sm:$0xff]
        %v6131 = vld [vmem:[#allocation2 + $0x58] sm:$0xff]
        %v6132 = vld [vmem:[#allocation2 + $0x60] sm:$0xff]
        %v6133 = vld [vmem:[#allocation2 + $0x68] sm:$0xff]
        %v6134 = vld [vmem:[#allocation2 + $0x70] sm:$0xff]
        %v6135 = vld [vmem:[#allocation2 + $0x78] sm:$0xff]
        %v6136 = vld [vmem:[#allocation2 + $0x80] sm:$0xff]
        %v6137 = vld [vmem:[#allocation2 + $0x88] sm:$0xff]
        %v6138 = vld [vmem:[#allocation2 + $0x90] sm:$0xff]
        %v6139 = vld [vmem:[#allocation2 + $0x98] sm:$0xff]
        %v6140 = vld [vmem:[#allocation2 + $0xa0] sm:$0xff]
        %v6141 = vld [vmem:[#allocation2 + $0xa8] sm:$0xff]
        %v6142 = vld [vmem:[#allocation2 + $0xb0] sm:$0xff]
        %v6143 = vld [vmem:[#allocation2 + $0xb8] sm:$0xff]
        %v6144 = vld [vmem:[#allocation2 + $0xc0] sm:$0xff]
        %v6145 = vld [vmem:[#allocation2 + $0xc8] sm:$0xff]
        %v6146 = vld [vmem:[#allocation2 + $0xd0] sm:$0xff]
        %v6147 = vld [vmem:[#allocation2 + $0xd8] sm:$0xff]
        %v6148 = vld [vmem:[#allocation2 + $0xe0] sm:$0xff]
        %v6149 = vld [vmem:[#allocation2 + $0xe8] sm:$0xff]
        %v6150 = vld [vmem:[#allocation2 + $0xf0] sm:$0xff]
        %v6151 = vld [vmem:[#allocation2 + $0xf8] sm:$0xff]
        %v6152 = vld [vmem:[#allocation2 + $0x100] sm:$0xff]
        %v6153 = vld [vmem:[#allocation2 + $0x108] sm:$0xff]
        %v6154 = vld [vmem:[#allocation2 + $0x110] sm:$0xff]
        %v6155 = vld [vmem:[#allocation2 + $0x118] sm:$0xff]
        %v6156 = vld [vmem:[#allocation2 + $0x120] sm:$0xff]
        %v6157 = vld [vmem:[#allocation2 + $0x128] sm:$0xff]
        %v6158 = vld [vmem:[#allocation2 + $0x130] sm:$0xff]
        %v6159 = vld [vmem:[#allocation2 + $0x138] sm:$0xff]
        %v6160 = vld [vmem:[#allocation2 + $0x140] sm:$0xff]
        %v6161 = vld [vmem:[#allocation2 + $0x148] sm:$0xff]
        %v6162 = vld [vmem:[#allocation2 + $0x150] sm:$0xff]
        %v6163 = vld [vmem:[#allocation2 + $0x158] sm:$0xff]
        %v6164 = vld [vmem:[#allocation2 + $0x160] sm:$0xff]
        %v6165 = vld [vmem:[#allocation2 + $0x168] sm:$0xff]
        %v6166 = vld [vmem:[#allocation2 + $0x170] sm:$0xff]
        %v6167 = vld [vmem:[#allocation2 + $0x178] sm:$0xff]
        %v6217 = vrot.slane %v6071, 2
        %v6218 = vrot.slane %v6072, 2
        %v6219 = vsel %vm2198, %v6217, %v6218
        %v6220 = vrot.slane %v6073, 2
        %v6221 = vsel %vm2198, %v6218, %v6220
        %v6222 = vrot.slane %v6074, 2
        %v6223 = vsel %vm2198, %v6220, %v6222
        %v6224 = vrot.slane %v6075, 2
        %v6225 = vsel %vm2198, %v6222, %v6224
        %v6226 = vrot.slane %v6076, 2
        %v6227 = vsel %vm2198, %v6224, %v6226
        %v6228 = vrot.slane %v6077, 2
        %v6229 = vsel %vm2198, %v6226, %v6228
        %v6230 = vrot.slane %v6078, 2
        %v6231 = vsel %vm2198, %v6228, %v6230
        %v6232 = vrot.slane %v6079, 2
        %v6233 = vsel %vm2198, %v6230, %v6232
        %v6234 = vrot.slane %v6080, 2
        %v6235 = vsel %vm2198, %v6232, %v6234
        %v6236 = vrot.slane %v6081, 2
        %v6237 = vsel %vm2198, %v6234, %v6236
        %v6238 = vrot.slane %v6082, 2
        %v6239 = vsel %vm2198, %v6236, %v6238
        %v6240 = vrot.slane %v6083, 2
        %v6241 = vsel %vm2198, %v6238, %v6240
        %v6242 = vrot.slane %v6084, 2
        %v6243 = vsel %vm2198, %v6240, %v6242
        %v6244 = vrot.slane %v6085, 2
        %v6245 = vsel %vm2198, %v6242, %v6244
        %v6246 = vrot.slane %v6086, 2
        %v6247 = vsel %vm2198, %v6244, %v6246
        %v6248 = vrot.slane %v6087, 2
        %v6249 = vsel %vm2198, %v6246, %v6248
        %v6250 = vrot.slane %v6088, 2
        %v6251 = vsel %vm2198, %v6248, %v6250
        %v6252 = vrot.slane %v6089, 2
        %v6253 = vsel %vm2198, %v6250, %v6252
        %v6254 = vrot.slane %v6090, 2
        %v6255 = vsel %vm2198, %v6252, %v6254
        %v6256 = vrot.slane %v6091, 2
        %v6257 = vsel %vm2198, %v6254, %v6256
        %v6258 = vrot.slane %v6092, 2
        %v6259 = vsel %vm2198, %v6256, %v6258
        %v6260 = vrot.slane %v6093, 2
        %v6261 = vsel %vm2198, %v6258, %v6260
        %v6262 = vrot.slane %v6094, 2
        %v6263 = vsel %vm2198, %v6260, %v6262
        %v6264 = vrot.slane %v6095, 2
        %v6265 = vsel %vm2198, %v6262, %v6264
        %v6266 = vrot.slane %v6096, 2
        %v6267 = vsel %vm2198, %v6264, %v6266
        %v6268 = vrot.slane %v6097, 2
        %v6269 = vsel %vm2198, %v6266, %v6268
        %v6270 = vrot.slane %v6098, 2
        %v6271 = vsel %vm2198, %v6268, %v6270
        %v6272 = vrot.slane %v6099, 2
        %v6273 = vsel %vm2198, %v6270, %v6272
        %v6274 = vrot.slane %v6100, 2
        %v6275 = vsel %vm2198, %v6272, %v6274
        %v6276 = vrot.slane %v6101, 2
        %v6277 = vsel %vm2198, %v6274, %v6276
        %v6278 = vrot.slane %v6102, 2
        %v6279 = vsel %vm2198, %v6276, %v6278
        %v6280 = vrot.slane %v6103, 2
        %v6281 = vsel %vm2198, %v6278, %v6280
        %v6282 = vrot.slane %v6104, 2
        %v6283 = vsel %vm2198, %v6280, %v6282
        %v6284 = vrot.slane %v6105, 2
        %v6285 = vsel %vm2198, %v6282, %v6284
        %v6286 = vrot.slane %v6106, 2
        %v6287 = vsel %vm2198, %v6284, %v6286
        %v6288 = vrot.slane %v6107, 2
        %v6289 = vsel %vm2198, %v6286, %v6288
        %v6290 = vrot.slane %v6108, 2
        %v6291 = vsel %vm2198, %v6288, %v6290
        %v6292 = vrot.slane %v6109, 2
        %v6293 = vsel %vm2198, %v6290, %v6292
        %v6294 = vrot.slane %v6110, 2
        %v6295 = vsel %vm2198, %v6292, %v6294
        %v6296 = vrot.slane %v6111, 2
        %v6297 = vsel %vm2198, %v6294, %v6296
        %v6298 = vrot.slane %v6112, 2
        %v6299 = vsel %vm2198, %v6296, %v6298
        %v6300 = vrot.slane %v6113, 2
        %v6301 = vsel %vm2198, %v6298, %v6300
        %v6302 = vrot.slane %v6114, 2
        %v6303 = vsel %vm2198, %v6300, %v6302
        %v6304 = vrot.slane %v6115, 2
        %v6305 = vsel %vm2198, %v6302, %v6304
        %v6306 = vrot.slane %v6116, 2
        %v6307 = vsel %vm2198, %v6304, %v6306
        %v6308 = vrot.slane %v6117, 2
        %v6309 = vsel %vm2198, %v6306, %v6308
        %v6310 = vrot.slane %v6118, 2
        %v6311 = vsel %vm2198, %v6308, %v6310
        %v6312 = vrot.slane %v6119, 2
        %v6313 = vsel %vm2198, %v6310, %v6312
        %v6362 = vadd.f32 %v6120, %v6219
        %v6363 = vadd.f32 %v6121, %v6221
        %v6364 = vadd.f32 %v6122, %v6223
        %v6365 = vadd.f32 %v6123, %v6225
        %v6366 = vadd.f32 %v6124, %v6227
        %v6367 = vadd.f32 %v6125, %v6229
        %v6368 = vadd.f32 %v6126, %v6231
        %v6369 = vadd.f32 %v6127, %v6233
        %v6370 = vadd.f32 %v6128, %v6235
        %v6371 = vadd.f32 %v6129, %v6237
        %v6372 = vadd.f32 %v6130, %v6239
        %v6373 = vadd.f32 %v6131, %v6241
        %v6374 = vadd.f32 %v6132, %v6243
        %v6375 = vadd.f32 %v6133, %v6245
        %v6376 = vadd.f32 %v6134, %v6247
        %v6377 = vadd.f32 %v6135, %v6249
        %v6378 = vadd.f32 %v6136, %v6251
        %v6379 = vadd.f32 %v6137, %v6253
        %v6380 = vadd.f32 %v6138, %v6255
        %v6381 = vadd.f32 %v6139, %v6257
        %v6382 = vadd.f32 %v6140, %v6259
        %v6383 = vadd.f32 %v6141, %v6261
        %v6384 = vadd.f32 %v6142, %v6263
        %v6385 = vadd.f32 %v6143, %v6265
        %v6386 = vadd.f32 %v6144, %v6267
        %v6387 = vadd.f32 %v6145, %v6269
        %v6388 = vadd.f32 %v6146, %v6271
        %v6389 = vadd.f32 %v6147, %v6273
        %v6390 = vadd.f32 %v6148, %v6275
        %v6391 = vadd.f32 %v6149, %v6277
        %v6392 = vadd.f32 %v6150, %v6279
        %v6393 = vadd.f32 %v6151, %v6281
        %v6394 = vadd.f32 %v6152, %v6283
        %v6395 = vadd.f32 %v6153, %v6285
        %v6396 = vadd.f32 %v6154, %v6287
        %v6397 = vadd.f32 %v6155, %v6289
        %v6398 = vadd.f32 %v6156, %v6291
        %v6399 = vadd.f32 %v6157, %v6293
        %v6400 = vadd.f32 %v6158, %v6295
        %v6401 = vadd.f32 %v6159, %v6297
        %v6402 = vadd.f32 %v6160, %v6299
        %v6403 = vadd.f32 %v6161, %v6301
        %v6404 = vadd.f32 %v6162, %v6303
        %v6405 = vadd.f32 %v6163, %v6305
        %v6406 = vadd.f32 %v6164, %v6307
        %v6407 = vadd.f32 %v6165, %v6309
        %v6408 = vadd.f32 %v6166, %v6311
        %v6409 = vadd.f32 %v6167, %v6313
        %6410 = vst.msk [vmem:[#allocation2] sm:$0xff] %vm915, %v6362
        %6411 = vst.msk [vmem:[#allocation2 + $0x8] sm:$0xff] %vm915, %v6363
        %6412 = vst.msk [vmem:[#allocation2 + $0x10] sm:$0xff] %vm915, %v6364
        %6413 = vst.msk [vmem:[#allocation2 + $0x18] sm:$0xff] %vm915, %v6365
        %6414 = vst.msk [vmem:[#allocation2 + $0x20] sm:$0xff] %vm915, %v6366
        %6415 = vst.msk [vmem:[#allocation2 + $0x28] sm:$0xff] %vm915, %v6367
        %6416 = vst.msk [vmem:[#allocation2 + $0x30] sm:$0xff] %vm915, %v6368
        %6417 = vst.msk [vmem:[#allocation2 + $0x38] sm:$0xff] %vm915, %v6369
        %6418 = vst.msk [vmem:[#allocation2 + $0x40] sm:$0xff] %vm915, %v6370
        %6419 = vst.msk [vmem:[#allocation2 + $0x48] sm:$0xff] %vm915, %v6371
        %6420 = vst.msk [vmem:[#allocation2 + $0x50] sm:$0xff] %vm915, %v6372
        %6421 = vst.msk [vmem:[#allocation2 + $0x58] sm:$0xff] %vm915, %v6373
        %6422 = vst.msk [vmem:[#allocation2 + $0x60] sm:$0xff] %vm915, %v6374
        %6423 = vst.msk [vmem:[#allocation2 + $0x68] sm:$0xff] %vm915, %v6375
        %6424 = vst.msk [vmem:[#allocation2 + $0x70] sm:$0xff] %vm915, %v6376
        %6425 = vst.msk [vmem:[#allocation2 + $0x78] sm:$0xff] %vm915, %v6377
        %6426 = vst.msk [vmem:[#allocation2 + $0x80] sm:$0xff] %vm915, %v6378
        %6427 = vst.msk [vmem:[#allocation2 + $0x88] sm:$0xff] %vm915, %v6379
        %6428 = vst.msk [vmem:[#allocation2 + $0x90] sm:$0xff] %vm915, %v6380
        %6429 = vst.msk [vmem:[#allocation2 + $0x98] sm:$0xff] %vm915, %v6381
        %6430 = vst.msk [vmem:[#allocation2 + $0xa0] sm:$0xff] %vm915, %v6382
        %6431 = vst.msk [vmem:[#allocation2 + $0xa8] sm:$0xff] %vm915, %v6383
        %6432 = vst.msk [vmem:[#allocation2 + $0xb0] sm:$0xff] %vm915, %v6384
        %6433 = vst.msk [vmem:[#allocation2 + $0xb8] sm:$0xff] %vm915, %v6385
        %6434 = vst.msk [vmem:[#allocation2 + $0xc0] sm:$0xff] %vm915, %v6386
        %6435 = vst.msk [vmem:[#allocation2 + $0xc8] sm:$0xff] %vm915, %v6387
        %6436 = vst.msk [vmem:[#allocation2 + $0xd0] sm:$0xff] %vm915, %v6388
        %6437 = vst.msk [vmem:[#allocation2 + $0xd8] sm:$0xff] %vm915, %v6389
        %6438 = vst.msk [vmem:[#allocation2 + $0xe0] sm:$0xff] %vm915, %v6390
        %6439 = vst.msk [vmem:[#allocation2 + $0xe8] sm:$0xff] %vm915, %v6391
        %6440 = vst.msk [vmem:[#allocation2 + $0xf0] sm:$0xff] %vm915, %v6392
        %6441 = vst.msk [vmem:[#allocation2 + $0xf8] sm:$0xff] %vm915, %v6393
        %6442 = vst.msk [vmem:[#allocation2 + $0x100] sm:$0xff] %vm915, %v6394
        %6443 = vst.msk [vmem:[#allocation2 + $0x108] sm:$0xff] %vm915, %v6395
        %6444 = vst.msk [vmem:[#allocation2 + $0x110] sm:$0xff] %vm915, %v6396
        %6445 = vst.msk [vmem:[#allocation2 + $0x118] sm:$0xff] %vm915, %v6397
        %6446 = vst.msk [vmem:[#allocation2 + $0x120] sm:$0xff] %vm915, %v6398
        %6447 = vst.msk [vmem:[#allocation2 + $0x128] sm:$0xff] %vm915, %v6399
        %6448 = vst.msk [vmem:[#allocation2 + $0x130] sm:$0xff] %vm915, %v6400
        %6449 = vst.msk [vmem:[#allocation2 + $0x138] sm:$0xff] %vm915, %v6401
        %6450 = vst.msk [vmem:[#allocation2 + $0x140] sm:$0xff] %vm915, %v6402
        %6451 = vst.msk [vmem:[#allocation2 + $0x148] sm:$0xff] %vm915, %v6403
        %6452 = vst.msk [vmem:[#allocation2 + $0x150] sm:$0xff] %vm915, %v6404
        %6453 = vst.msk [vmem:[#allocation2 + $0x158] sm:$0xff] %vm915, %v6405
        %6454 = vst.msk [vmem:[#allocation2 + $0x160] sm:$0xff] %vm915, %v6406
        %6455 = vst.msk [vmem:[#allocation2 + $0x168] sm:$0xff] %vm915, %v6407
        %6456 = vst.msk [vmem:[#allocation2 + $0x170] sm:$0xff] %vm915, %v6408
        %6457 = vst.msk [vmem:[#allocation2 + $0x178] sm:$0xff] %vm915, %v6409
        %v6458 = vld [vmem:[#allocation2] sm:$0xff]
        %v6459 = vld [vmem:[#allocation2 + $0x8] sm:$0xff]
        %v6460 = vld [vmem:[#allocation2 + $0x10] sm:$0xff]
        %v6461 = vld [vmem:[#allocation2 + $0x18] sm:$0xff]
        %v6462 = vld [vmem:[#allocation2 + $0x20] sm:$0xff]
        %v6463 = vld [vmem:[#allocation2 + $0x28] sm:$0xff]
        %v6464 = vld [vmem:[#allocation2 + $0x30] sm:$0xff]
        %v6465 = vld [vmem:[#allocation2 + $0x38] sm:$0xff]
        %v6466 = vld [vmem:[#allocation2 + $0x40] sm:$0xff]
        %v6467 = vld [vmem:[#allocation2 + $0x48] sm:$0xff]
        %v6468 = vld [vmem:[#allocation2 + $0x50] sm:$0xff]
        %v6469 = vld [vmem:[#allocation2 + $0x58] sm:$0xff]
        %v6470 = vld [vmem:[#allocation2 + $0x60] sm:$0xff]
        %v6471 = vld [vmem:[#allocation2 + $0x68] sm:$0xff]
        %v6472 = vld [vmem:[#allocation2 + $0x70] sm:$0xff]
        %v6473 = vld [vmem:[#allocation2 + $0x78] sm:$0xff]
        %v6474 = vld [vmem:[#allocation2 + $0x80] sm:$0xff]
        %v6475 = vld [vmem:[#allocation2 + $0x88] sm:$0xff]
        %v6476 = vld [vmem:[#allocation2 + $0x90] sm:$0xff]
        %v6477 = vld [vmem:[#allocation2 + $0x98] sm:$0xff]
        %v6478 = vld [vmem:[#allocation2 + $0xa0] sm:$0xff]
        %v6479 = vld [vmem:[#allocation2 + $0xa8] sm:$0xff]
        %v6480 = vld [vmem:[#allocation2 + $0xb0] sm:$0xff]
        %v6481 = vld [vmem:[#allocation2 + $0xb8] sm:$0xff]
        %v6482 = vld [vmem:[#allocation2 + $0xc0] sm:$0xff]
        %v6483 = vld [vmem:[#allocation2 + $0xc8] sm:$0xff]
        %v6484 = vld [vmem:[#allocation2 + $0xd0] sm:$0xff]
        %v6485 = vld [vmem:[#allocation2 + $0xd8] sm:$0xff]
        %v6486 = vld [vmem:[#allocation2 + $0xe0] sm:$0xff]
        %v6487 = vld [vmem:[#allocation2 + $0xe8] sm:$0xff]
        %v6488 = vld [vmem:[#allocation2 + $0xf0] sm:$0xff]
        %v6489 = vld [vmem:[#allocation2 + $0xf8] sm:$0xff]
        %v6490 = vld [vmem:[#allocation2 + $0x100] sm:$0xff]
        %v6491 = vld [vmem:[#allocation2 + $0x108] sm:$0xff]
        %v6492 = vld [vmem:[#allocation2 + $0x110] sm:$0xff]
        %v6493 = vld [vmem:[#allocation2 + $0x118] sm:$0xff]
        %v6494 = vld [vmem:[#allocation2 + $0x120] sm:$0xff]
        %v6495 = vld [vmem:[#allocation2 + $0x128] sm:$0xff]
        %v6496 = vld [vmem:[#allocation2 + $0x130] sm:$0xff]
        %v6497 = vld [vmem:[#allocation2 + $0x138] sm:$0xff]
        %v6498 = vld [vmem:[#allocation2 + $0x140] sm:$0xff]
        %v6499 = vld [vmem:[#allocation2 + $0x148] sm:$0xff]
        %v6500 = vld [vmem:[#allocation2 + $0x150] sm:$0xff]
        %v6501 = vld [vmem:[#allocation2 + $0x158] sm:$0xff]
        %v6502 = vld [vmem:[#allocation2 + $0x160] sm:$0xff]
        %v6503 = vld [vmem:[#allocation2 + $0x168] sm:$0xff]
        %v6504 = vld [vmem:[#allocation2 + $0x170] sm:$0xff]
        %v6505 = vld [vmem:[#allocation2 + $0x178] sm:$0xff]
        %v6506 = vld [vmem:[%s2] sm:$0x1]
        %v6508 = vlaneseq
        %v6509 = vshrl.u32 %v6508, 7
        %v6510 = vsub.s32 0, %v6509
        %v6511 = vrot.slane %v6506, %v6510
        %v6513 = vadd.f32 %v6458, %v6511
        %v6514 = vadd.f32 %v6459, %v6511
        %v6515 = vadd.f32 %v6460, %v6511
        %v6516 = vadd.f32 %v6461, %v6511
        %v6517 = vadd.f32 %v6462, %v6511
        %v6518 = vadd.f32 %v6463, %v6511
        %v6519 = vadd.f32 %v6464, %v6511
        %v6520 = vadd.f32 %v6465, %v6511
        %v6521 = vadd.f32 %v6466, %v6511
        %v6522 = vadd.f32 %v6467, %v6511
        %v6523 = vadd.f32 %v6468, %v6511
        %v6524 = vadd.f32 %v6469, %v6511
        %v6525 = vadd.f32 %v6470, %v6511
        %v6526 = vadd.f32 %v6471, %v6511
        %v6527 = vadd.f32 %v6472, %v6511
        %v6528 = vadd.f32 %v6473, %v6511
        %v6529 = vadd.f32 %v6474, %v6511
        %v6530 = vadd.f32 %v6475, %v6511
        %v6531 = vadd.f32 %v6476, %v6511
        %v6532 = vadd.f32 %v6477, %v6511
        %v6533 = vadd.f32 %v6478, %v6511
        %v6534 = vadd.f32 %v6479, %v6511
        %v6535 = vadd.f32 %v6480, %v6511
        %v6536 = vadd.f32 %v6481, %v6511
        %v6537 = vadd.f32 %v6482, %v6511
        %v6538 = vadd.f32 %v6483, %v6511
        %v6539 = vadd.f32 %v6484, %v6511
        %v6540 = vadd.f32 %v6485, %v6511
        %v6541 = vadd.f32 %v6486, %v6511
        %v6542 = vadd.f32 %v6487, %v6511
        %v6543 = vadd.f32 %v6488, %v6511
        %v6544 = vadd.f32 %v6489, %v6511
        %v6545 = vadd.f32 %v6490, %v6511
        %v6546 = vadd.f32 %v6491, %v6511
        %v6547 = vadd.f32 %v6492, %v6511
        %v6548 = vadd.f32 %v6493, %v6511
        %v6549 = vadd.f32 %v6494, %v6511
        %v6550 = vadd.f32 %v6495, %v6511
        %v6551 = vadd.f32 %v6496, %v6511
        %v6552 = vadd.f32 %v6497, %v6511
        %v6553 = vadd.f32 %v6498, %v6511
        %v6554 = vadd.f32 %v6499, %v6511
        %v6555 = vadd.f32 %v6500, %v6511
        %v6556 = vadd.f32 %v6501, %v6511
        %v6557 = vadd.f32 %v6502, %v6511
        %v6558 = vadd.f32 %v6503, %v6511
        %v6559 = vadd.f32 %v6504, %v6511
        %v6560 = vadd.f32 %v6505, %v6511
        %v6561 = vmax.f32 %v6513, 0.0
        %v6562 = vmax.f32 %v6514, 0.0
        %v6563 = vmax.f32 %v6515, 0.0
        %v6564 = vmax.f32 %v6516, 0.0
        %v6565 = vmax.f32 %v6517, 0.0
        %v6566 = vmax.f32 %v6518, 0.0
        %v6567 = vmax.f32 %v6519, 0.0
        %v6568 = vmax.f32 %v6520, 0.0
        %v6569 = vmax.f32 %v6521, 0.0
        %v6570 = vmax.f32 %v6522, 0.0
        %v6571 = vmax.f32 %v6523, 0.0
        %v6572 = vmax.f32 %v6524, 0.0
        %v6573 = vmax.f32 %v6525, 0.0
        %v6574 = vmax.f32 %v6526, 0.0
        %v6575 = vmax.f32 %v6527, 0.0
        %v6576 = vmax.f32 %v6528, 0.0
        %v6577 = vmax.f32 %v6529, 0.0
        %v6578 = vmax.f32 %v6530, 0.0
        %v6579 = vmax.f32 %v6531, 0.0
        %v6580 = vmax.f32 %v6532, 0.0
        %v6581 = vmax.f32 %v6533, 0.0
        %v6582 = vmax.f32 %v6534, 0.0
        %v6583 = vmax.f32 %v6535, 0.0
        %v6584 = vmax.f32 %v6536, 0.0
        %v6585 = vmax.f32 %v6537, 0.0
        %v6586 = vmax.f32 %v6538, 0.0
        %v6587 = vmax.f32 %v6539, 0.0
        %v6588 = vmax.f32 %v6540, 0.0
        %v6589 = vmax.f32 %v6541, 0.0
        %v6590 = vmax.f32 %v6542, 0.0
        %v6591 = vmax.f32 %v6543, 0.0
        %v6592 = vmax.f32 %v6544, 0.0
        %v6593 = vmax.f32 %v6545, 0.0
        %v6594 = vmax.f32 %v6546, 0.0
        %v6595 = vmax.f32 %v6547, 0.0
        %v6596 = vmax.f32 %v6548, 0.0
        %v6597 = vmax.f32 %v6549, 0.0
        %v6598 = vmax.f32 %v6550, 0.0
        %v6599 = vmax.f32 %v6551, 0.0
        %v6600 = vmax.f32 %v6552, 0.0
        %v6601 = vmax.f32 %v6553, 0.0
        %v6602 = vmax.f32 %v6554, 0.0
        %v6603 = vmax.f32 %v6555, 0.0
        %v6604 = vmax.f32 %v6556, 0.0
        %v6605 = vmax.f32 %v6557, 0.0
        %v6606 = vmax.f32 %v6558, 0.0
        %v6607 = vmax.f32 %v6559, 0.0
        %v6608 = vmax.f32 %v6560, 0.0
        %6609 = vst.msk [vmem:[#allocation2] sm:$0xff] %vm915, %v6561
        %6610 = vst.msk [vmem:[#allocation2 + $0x8] sm:$0xff] %vm915, %v6562
        %6611 = vst.msk [vmem:[#allocation2 + $0x10] sm:$0xff] %vm915, %v6563
        %6612 = vst.msk [vmem:[#allocation2 + $0x18] sm:$0xff] %vm915, %v6564
        %6613 = vst.msk [vmem:[#allocation2 + $0x20] sm:$0xff] %vm915, %v6565
        %6614 = vst.msk [vmem:[#allocation2 + $0x28] sm:$0xff] %vm915, %v6566
        %6615 = vst.msk [vmem:[#allocation2 + $0x30] sm:$0xff] %vm915, %v6567
        %6616 = vst.msk [vmem:[#allocation2 + $0x38] sm:$0xff] %vm915, %v6568
        %6617 = vst.msk [vmem:[#allocation2 + $0x40] sm:$0xff] %vm915, %v6569
        %6618 = vst.msk [vmem:[#allocation2 + $0x48] sm:$0xff] %vm915, %v6570
        %6619 = vst.msk [vmem:[#allocation2 + $0x50] sm:$0xff] %vm915, %v6571
        %6620 = vst.msk [vmem:[#allocation2 + $0x58] sm:$0xff] %vm915, %v6572
        %6621 = vst.msk [vmem:[#allocation2 + $0x60] sm:$0xff] %vm915, %v6573
        %6622 = vst.msk [vmem:[#allocation2 + $0x68] sm:$0xff] %vm915, %v6574
        %6623 = vst.msk [vmem:[#allocation2 + $0x70] sm:$0xff] %vm915, %v6575
        %6624 = vst.msk [vmem:[#allocation2 + $0x78] sm:$0xff] %vm915, %v6576
        %6625 = vst.msk [vmem:[#allocation2 + $0x80] sm:$0xff] %vm915, %v6577
        %6626 = vst.msk [vmem:[#allocation2 + $0x88] sm:$0xff] %vm915, %v6578
        %6627 = vst.msk [vmem:[#allocation2 + $0x90] sm:$0xff] %vm915, %v6579
        %6628 = vst.msk [vmem:[#allocation2 + $0x98] sm:$0xff] %vm915, %v6580
        %6629 = vst.msk [vmem:[#allocation2 + $0xa0] sm:$0xff] %vm915, %v6581
        %6630 = vst.msk [vmem:[#allocation2 + $0xa8] sm:$0xff] %vm915, %v6582
        %6631 = vst.msk [vmem:[#allocation2 + $0xb0] sm:$0xff] %vm915, %v6583
        %6632 = vst.msk [vmem:[#allocation2 + $0xb8] sm:$0xff] %vm915, %v6584
        %6633 = vst.msk [vmem:[#allocation2 + $0xc0] sm:$0xff] %vm915, %v6585
        %6634 = vst.msk [vmem:[#allocation2 + $0xc8] sm:$0xff] %vm915, %v6586
        %6635 = vst.msk [vmem:[#allocation2 + $0xd0] sm:$0xff] %vm915, %v6587
        %6636 = vst.msk [vmem:[#allocation2 + $0xd8] sm:$0xff] %vm915, %v6588
        %6637 = vst.msk [vmem:[#allocation2 + $0xe0] sm:$0xff] %vm915, %v6589
        %6638 = vst.msk [vmem:[#allocation2 + $0xe8] sm:$0xff] %vm915, %v6590
        %6639 = vst.msk [vmem:[#allocation2 + $0xf0] sm:$0xff] %vm915, %v6591
        %6640 = vst.msk [vmem:[#allocation2 + $0xf8] sm:$0xff] %vm915, %v6592
        %6641 = vst.msk [vmem:[#allocation2 + $0x100] sm:$0xff] %vm915, %v6593
        %6642 = vst.msk [vmem:[#allocation2 + $0x108] sm:$0xff] %vm915, %v6594
        %6643 = vst.msk [vmem:[#allocation2 + $0x110] sm:$0xff] %vm915, %v6595
        %6644 = vst.msk [vmem:[#allocation2 + $0x118] sm:$0xff] %vm915, %v6596
        %6645 = vst.msk [vmem:[#allocation2 + $0x120] sm:$0xff] %vm915, %v6597
        %6646 = vst.msk [vmem:[#allocation2 + $0x128] sm:$0xff] %vm915, %v6598
        %6647 = vst.msk [vmem:[#allocation2 + $0x130] sm:$0xff] %vm915, %v6599
        %6648 = vst.msk [vmem:[#allocation2 + $0x138] sm:$0xff] %vm915, %v6600
        %6649 = vst.msk [vmem:[#allocation2 + $0x140] sm:$0xff] %vm915, %v6601
        %6650 = vst.msk [vmem:[#allocation2 + $0x148] sm:$0xff] %vm915, %v6602
        %6651 = vst.msk [vmem:[#allocation2 + $0x150] sm:$0xff] %vm915, %v6603
        %6652 = vst.msk [vmem:[#allocation2 + $0x158] sm:$0xff] %vm915, %v6604
        %6653 = vst.msk [vmem:[#allocation2 + $0x160] sm:$0xff] %vm915, %v6605
        %6654 = vst.msk [vmem:[#allocation2 + $0x168] sm:$0xff] %vm915, %v6606
        %6655 = vst.msk [vmem:[#allocation2 + $0x170] sm:$0xff] %vm915, %v6607
        %6656 = vst.msk [vmem:[#allocation2 + $0x178] sm:$0xff] %vm915, %v6608
        %v6657 = vld [vmem:[#allocation2] sm:$0xff]
        %v6658 = vld [vmem:[#allocation2 + $0x8] sm:$0xff]
        %v6659 = vld [vmem:[#allocation2 + $0x10] sm:$0xff]
        %v6660 = vld [vmem:[#allocation2 + $0x18] sm:$0xff]
        %v6661 = vld [vmem:[#allocation2 + $0x20] sm:$0xff]
        %v6662 = vld [vmem:[#allocation2 + $0x28] sm:$0xff]
        %v6663 = vld [vmem:[#allocation2 + $0x30] sm:$0xff]
        %v6664 = vld [vmem:[#allocation2 + $0x38] sm:$0xff]
        %v6665 = vld [vmem:[#allocation2 + $0x40] sm:$0xff]
        %v6666 = vld [vmem:[#allocation2 + $0x48] sm:$0xff]
        %v6667 = vld [vmem:[#allocation2 + $0x50] sm:$0xff]
        %v6668 = vld [vmem:[#allocation2 + $0x58] sm:$0xff]
        %v6669 = vld [vmem:[#allocation2 + $0x60] sm:$0xff]
        %v6670 = vld [vmem:[#allocation2 + $0x68] sm:$0xff]
        %v6671 = vld [vmem:[#allocation2 + $0x70] sm:$0xff]
        %v6672 = vld [vmem:[#allocation2 + $0x78] sm:$0xff]
        %v6673 = vld [vmem:[#allocation2 + $0x80] sm:$0xff]
        %v6674 = vld [vmem:[#allocation2 + $0x88] sm:$0xff]
        %v6675 = vld [vmem:[#allocation2 + $0x90] sm:$0xff]
        %v6676 = vld [vmem:[#allocation2 + $0x98] sm:$0xff]
        %v6677 = vld [vmem:[#allocation2 + $0xa0] sm:$0xff]
        %v6678 = vld [vmem:[#allocation2 + $0xa8] sm:$0xff]
        %v6679 = vld [vmem:[#allocation2 + $0xb0] sm:$0xff]
        %v6680 = vld [vmem:[#allocation2 + $0xb8] sm:$0xff]
        %v6681 = vld [vmem:[#allocation2 + $0xc0] sm:$0xff]
        %v6682 = vld [vmem:[#allocation2 + $0xc8] sm:$0xff]
        %v6683 = vld [vmem:[#allocation2 + $0xd0] sm:$0xff]
        %v6684 = vld [vmem:[#allocation2 + $0xd8] sm:$0xff]
        %v6685 = vld [vmem:[#allocation2 + $0xe0] sm:$0xff]
        %v6686 = vld [vmem:[#allocation2 + $0xe8] sm:$0xff]
        %v6687 = vld [vmem:[#allocation2 + $0xf0] sm:$0xff]
        %v6688 = vld [vmem:[#allocation2 + $0xf8] sm:$0xff]
        %v6689 = vld [vmem:[#allocation2 + $0x100] sm:$0xff]
        %v6690 = vld [vmem:[#allocation2 + $0x108] sm:$0xff]
        %v6691 = vld [vmem:[#allocation2 + $0x110] sm:$0xff]
        %v6692 = vld [vmem:[#allocation2 + $0x118] sm:$0xff]
        %v6693 = vld [vmem:[#allocation2 + $0x120] sm:$0xff]
        %v6694 = vld [vmem:[#allocation2 + $0x128] sm:$0xff]
        %v6695 = vld [vmem:[#allocation2 + $0x130] sm:$0xff]
        %v6696 = vld [vmem:[#allocation2 + $0x138] sm:$0xff]
        %v6697 = vld [vmem:[#allocation2 + $0x140] sm:$0xff]
        %v6698 = vld [vmem:[#allocation2 + $0x148] sm:$0xff]
        %v6699 = vld [vmem:[#allocation2 + $0x150] sm:$0xff]
        %v6700 = vld [vmem:[#allocation2 + $0x158] sm:$0xff]
        %v6701 = vld [vmem:[#allocation2 + $0x160] sm:$0xff]
        %v6702 = vld [vmem:[#allocation2 + $0x168] sm:$0xff]
        %v6703 = vld [vmem:[#allocation2 + $0x170] sm:$0xff]
        %v6704 = vld [vmem:[#allocation2 + $0x178] sm:$0x7f]
        %v6705 = vld [vmem:[#allocation2 + $0x1] sm:$0xff]
        %v6706 = vld [vmem:[#allocation2 + $0x9] sm:$0xff]
        %v6707 = vld [vmem:[#allocation2 + $0x11] sm:$0xff]
        %v6708 = vld [vmem:[#allocation2 + $0x19] sm:$0xff]
        %v6709 = vld [vmem:[#allocation2 + $0x21] sm:$0xff]
        %v6710 = vld [vmem:[#allocation2 + $0x29] sm:$0xff]
        %v6711 = vld [vmem:[#allocation2 + $0x31] sm:$0xff]
        %v6712 = vld [vmem:[#allocation2 + $0x39] sm:$0xff]
        %v6713 = vld [vmem:[#allocation2 + $0x41] sm:$0xff]
        %v6714 = vld [vmem:[#allocation2 + $0x49] sm:$0xff]
        %v6715 = vld [vmem:[#allocation2 + $0x51] sm:$0xff]
        %v6716 = vld [vmem:[#allocation2 + $0x59] sm:$0xff]
        %v6717 = vld [vmem:[#allocation2 + $0x61] sm:$0xff]
        %v6718 = vld [vmem:[#allocation2 + $0x69] sm:$0xff]
        %v6719 = vld [vmem:[#allocation2 + $0x71] sm:$0xff]
        %v6720 = vld [vmem:[#allocation2 + $0x79] sm:$0xff]
        %v6721 = vld [vmem:[#allocation2 + $0x81] sm:$0xff]
        %v6722 = vld [vmem:[#allocation2 + $0x89] sm:$0xff]
        %v6723 = vld [vmem:[#allocation2 + $0x91] sm:$0xff]
        %v6724 = vld [vmem:[#allocation2 + $0x99] sm:$0xff]
        %v6725 = vld [vmem:[#allocation2 + $0xa1] sm:$0xff]
        %v6726 = vld [vmem:[#allocation2 + $0xa9] sm:$0xff]
        %v6727 = vld [vmem:[#allocation2 + $0xb1] sm:$0xff]
        %v6728 = vld [vmem:[#allocation2 + $0xb9] sm:$0xff]
        %v6729 = vld [vmem:[#allocation2 + $0xc1] sm:$0xff]
        %v6730 = vld [vmem:[#allocation2 + $0xc9] sm:$0xff]
        %v6731 = vld [vmem:[#allocation2 + $0xd1] sm:$0xff]
        %v6732 = vld [vmem:[#allocation2 + $0xd9] sm:$0xff]
        %v6733 = vld [vmem:[#allocation2 + $0xe1] sm:$0xff]
        %v6734 = vld [vmem:[#allocation2 + $0xe9] sm:$0xff]
        %v6735 = vld [vmem:[#allocation2 + $0xf1] sm:$0xff]
        %v6736 = vld [vmem:[#allocation2 + $0xf9] sm:$0xff]
        %v6737 = vld [vmem:[#allocation2 + $0x101] sm:$0xff]
        %v6738 = vld [vmem:[#allocation2 + $0x109] sm:$0xff]
        %v6739 = vld [vmem:[#allocation2 + $0x111] sm:$0xff]
        %v6740 = vld [vmem:[#allocation2 + $0x119] sm:$0xff]
        %v6741 = vld [vmem:[#allocation2 + $0x121] sm:$0xff]
        %v6742 = vld [vmem:[#allocation2 + $0x129] sm:$0xff]
        %v6743 = vld [vmem:[#allocation2 + $0x131] sm:$0xff]
        %v6744 = vld [vmem:[#allocation2 + $0x139] sm:$0xff]
        %v6745 = vld [vmem:[#allocation2 + $0x141] sm:$0xff]
        %v6746 = vld [vmem:[#allocation2 + $0x149] sm:$0xff]
        %v6747 = vld [vmem:[#allocation2 + $0x151] sm:$0xff]
        %v6748 = vld [vmem:[#allocation2 + $0x159] sm:$0xff]
        %v6749 = vld [vmem:[#allocation2 + $0x161] sm:$0xff]
        %v6750 = vld [vmem:[#allocation2 + $0x169] sm:$0xff]
        %v6751 = vld [vmem:[#allocation2 + $0x171] sm:$0xff]
        %v6752 = vld [vmem:[#allocation2 + $0x179] sm:$0x7f]
        %v6753 = vmax.f32 %v6657, %v6705
        %v6754 = vmax.f32 %v6658, %v6706
        %v6755 = vmax.f32 %v6659, %v6707
        %v6756 = vmax.f32 %v6660, %v6708
        %v6757 = vmax.f32 %v6661, %v6709
        %v6758 = vmax.f32 %v6662, %v6710
        %v6759 = vmax.f32 %v6663, %v6711
        %v6760 = vmax.f32 %v6664, %v6712
        %v6761 = vmax.f32 %v6665, %v6713
        %v6762 = vmax.f32 %v6666, %v6714
        %v6763 = vmax.f32 %v6667, %v6715
        %v6764 = vmax.f32 %v6668, %v6716
        %v6765 = vmax.f32 %v6669, %v6717
        %v6766 = vmax.f32 %v6670, %v6718
        %v6767 = vmax.f32 %v6671, %v6719
        %v6768 = vmax.f32 %v6672, %v6720
        %v6769 = vmax.f32 %v6673, %v6721
        %v6770 = vmax.f32 %v6674, %v6722
        %v6771 = vmax.f32 %v6675, %v6723
        %v6772 = vmax.f32 %v6676, %v6724
        %v6773 = vmax.f32 %v6677, %v6725
        %v6774 = vmax.f32 %v6678, %v6726
        %v6775 = vmax.f32 %v6679, %v6727
        %v6776 = vmax.f32 %v6680, %v6728
        %v6777 = vmax.f32 %v6681, %v6729
        %v6778 = vmax.f32 %v6682, %v6730
        %v6779 = vmax.f32 %v6683, %v6731
        %v6780 = vmax.f32 %v6684, %v6732
        %v6781 = vmax.f32 %v6685, %v6733
        %v6782 = vmax.f32 %v6686, %v6734
        %v6783 = vmax.f32 %v6687, %v6735
        %v6784 = vmax.f32 %v6688, %v6736
        %v6785 = vmax.f32 %v6689, %v6737
        %v6786 = vmax.f32 %v6690, %v6738
        %v6787 = vmax.f32 %v6691, %v6739
        %v6788 = vmax.f32 %v6692, %v6740
        %v6789 = vmax.f32 %v6693, %v6741
        %v6790 = vmax.f32 %v6694, %v6742
        %v6791 = vmax.f32 %v6695, %v6743
        %v6792 = vmax.f32 %v6696, %v6744
        %v6793 = vmax.f32 %v6697, %v6745
        %v6794 = vmax.f32 %v6698, %v6746
        %v6795 = vmax.f32 %v6699, %v6747
        %v6796 = vmax.f32 %v6700, %v6748
        %v6797 = vmax.f32 %v6701, %v6749
        %v6798 = vmax.f32 %v6702, %v6750
        %v6799 = vmax.f32 %v6703, %v6751
        %v6800 = vmax.f32 %v6704, %v6752
        %v6801 = vmax.f32 %v6753, %v6756
        %v6802 = vmax.f32 %v6754, %v6757
        %v6803 = vmax.f32 %v6755, %v6758
        %v6804 = vmax.f32 %v6756, %v6759
        %v6805 = vmax.f32 %v6757, %v6760
        %v6806 = vmax.f32 %v6758, %v6761
        %v6807 = vmax.f32 %v6759, %v6762
        %v6808 = vmax.f32 %v6760, %v6763
        %v6809 = vmax.f32 %v6761, %v6764
        %v6810 = vmax.f32 %v6762, %v6765
        %v6811 = vmax.f32 %v6763, %v6766
        %v6812 = vmax.f32 %v6764, %v6767
        %v6813 = vmax.f32 %v6765, %v6768
        %v6814 = vmax.f32 %v6766, %v6769
        %v6815 = vmax.f32 %v6767, %v6770
        %v6816 = vmax.f32 %v6768, %v6771
        %v6817 = vmax.f32 %v6769, %v6772
        %v6818 = vmax.f32 %v6770, %v6773
        %v6819 = vmax.f32 %v6771, %v6774
        %v6820 = vmax.f32 %v6772, %v6775
        %v6821 = vmax.f32 %v6773, %v6776
        %v6822 = vmax.f32 %v6774, %v6777
        %v6823 = vmax.f32 %v6775, %v6778
        %v6824 = vmax.f32 %v6776, %v6779
        %v6825 = vmax.f32 %v6777, %v6780
        %v6826 = vmax.f32 %v6778, %v6781
        %v6827 = vmax.f32 %v6779, %v6782
        %v6828 = vmax.f32 %v6780, %v6783
        %v6829 = vmax.f32 %v6781, %v6784
        %v6830 = vmax.f32 %v6782, %v6785
        %v6831 = vmax.f32 %v6783, %v6786
        %v6832 = vmax.f32 %v6784, %v6787
        %v6833 = vmax.f32 %v6785, %v6788
        %v6834 = vmax.f32 %v6786, %v6789
        %v6835 = vmax.f32 %v6787, %v6790
        %v6836 = vmax.f32 %v6788, %v6791
        %v6837 = vmax.f32 %v6789, %v6792
        %v6838 = vmax.f32 %v6790, %v6793
        %v6839 = vmax.f32 %v6791, %v6794
        %v6840 = vmax.f32 %v6792, %v6795
        %v6841 = vmax.f32 %v6793, %v6796
        %v6842 = vmax.f32 %v6794, %v6797
        %v6843 = vmax.f32 %v6795, %v6798
        %v6844 = vmax.f32 %v6796, %v6799
        %v6845 = vmax.f32 %v6797, %v6800
        %v6846 = vld [vmem:[#allocation5] sm:$0xff]
        %v6847 = vld [vmem:[#allocation5 + $0x8] sm:$0xf]
        %v6848 = vld [vmem:[#allocation5 + $0xc] sm:$0xff]
        %v6849 = vld [vmem:[#allocation5 + $0x14] sm:$0xf]
        %v6850 = vld [vmem:[#allocation5 + $0x18] sm:$0xff]
        %v6851 = vld [vmem:[#allocation5 + $0x20] sm:$0xf]
        %v6852 = vld [vmem:[#allocation5 + $0x24] sm:$0xff]
        %v6853 = vld [vmem:[#allocation5 + $0x2c] sm:$0xf]
        %v6854 = vld [vmem:[#allocation5 + $0x30] sm:$0xff]
        %v6855 = vld [vmem:[#allocation5 + $0x38] sm:$0xf]
        %v6856 = vld [vmem:[#allocation5 + $0x3c] sm:$0xff]
        %v6857 = vld [vmem:[#allocation5 + $0x44] sm:$0xf]
        %v6858 = vld [vmem:[#allocation5 + $0x48] sm:$0xff]
        %v6859 = vld [vmem:[#allocation5 + $0x50] sm:$0xf]
        %v6860 = vld [vmem:[#allocation5 + $0x54] sm:$0xff]
        %v6861 = vld [vmem:[#allocation5 + $0x5c] sm:$0xf]
        %v6862 = vld [vmem:[#allocation5 + $0x60] sm:$0xff]
        %v6863 = vld [vmem:[#allocation5 + $0x68] sm:$0xf]
        %v6864 = vld [vmem:[#allocation5 + $0x6c] sm:$0xff]
        %v6865 = vld [vmem:[#allocation5 + $0x74] sm:$0xf]
        %v6866 = vld [vmem:[#allocation5 + $0x78] sm:$0xff]
        %v6867 = vld [vmem:[#allocation5 + $0x80] sm:$0xf]
        %v6868 = vld [vmem:[#allocation5 + $0x84] sm:$0xff]
        %v6869 = vld [vmem:[#allocation5 + $0x8c] sm:$0xf]
        %v6870 = vld [vmem:[#allocation5 + $0x90] sm:$0xff]
        %v6871 = vld [vmem:[#allocation5 + $0x98] sm:$0xf]
        %v6872 = vld [vmem:[#allocation5 + $0x9c] sm:$0xff]
        %v6873 = vld [vmem:[#allocation5 + $0xa4] sm:$0xf]
        %v6874 = vld [vmem:[#allocation5 + $0xa8] sm:$0xff]
        %v6875 = vld [vmem:[#allocation5 + $0xb0] sm:$0xf]
        %v6876 = vld [vmem:[#allocation5 + $0xb4] sm:$0xff]
        %v6877 = vld [vmem:[#allocation5 + $0xbc] sm:$0xf]
        %v6878 = vld [vmem:[#allocation5 + $0xc0] sm:$0xff]
        %v6879 = vld [vmem:[#allocation5 + $0xc8] sm:$0xf]
        %v6880 = vld [vmem:[#allocation5 + $0xcc] sm:$0xff]
        %v6881 = vld [vmem:[#allocation5 + $0xd4] sm:$0xf]
        %v6882 = vld [vmem:[#allocation5 + $0xd8] sm:$0xff]
        %v6883 = vld [vmem:[#allocation5 + $0xe0] sm:$0xf]
        %v6884 = vld [vmem:[#allocation5 + $0xe4] sm:$0xff]
        %v6885 = vld [vmem:[#allocation5 + $0xec] sm:$0xf]
        %v6886 = vld [vmem:[#allocation5 + $0xf0] sm:$0xff]
        %v6887 = vld [vmem:[#allocation5 + $0xf8] sm:$0xf]
        %v6888 = vld [vmem:[#allocation5 + $0xfc] sm:$0xff]
        %v6889 = vld [vmem:[#allocation5 + $0x104] sm:$0xf]
        %v6890 = vpack.c.bf16 %v6802, %v6801
        %v6891 = vpack.c.bf16 %v6804, %v6803
        %v6892 = vpack.c.bf16 %v6806, %v6805
        %v6893 = vpack.c.bf16 %v6808, %v6807
        %v6894 = vpack.c.bf16 %v6810, %v6809
        %v6895 = vpack.c.bf16 %v6812, %v6811
        %v6896 = vpack.c.bf16 %v6814, %v6813
        %v6897 = vpack.c.bf16 %v6816, %v6815
        %v6898 = vpack.c.bf16 %v6818, %v6817
        %v6899 = vpack.c.bf16 %v6820, %v6819
        %v6900 = vpack.c.bf16 %v6822, %v6821
        %v6901 = vpack.c.bf16 %v6824, %v6823
        %v6902 = vpack.c.bf16 %v6826, %v6825
        %v6903 = vpack.c.bf16 %v6828, %v6827
        %v6904 = vpack.c.bf16 %v6830, %v6829
        %v6905 = vpack.c.bf16 %v6832, %v6831
        %v6906 = vpack.c.bf16 %v6834, %v6833
        %v6907 = vpack.c.bf16 %v6836, %v6835
        %v6908 = vpack.c.bf16 %v6838, %v6837
        %v6909 = vpack.c.bf16 %v6840, %v6839
        %v6910 = vpack.c.bf16 %v6842, %v6841
        %v6911 = vpack.c.bf16 %v6844, %v6843
        %v6912 = vpack.c.bf16 %v6845, %v6845
        %v6957 = vunpack.c.l.b16 %v6846
        %v6958 = vunpack.c.h.b16 %v6846
        %v6959 = vunpack.c.l.b16 %v6847
        %v6960 = vunpack.c.l.b16 %v6848
        %v6961 = vunpack.c.h.b16 %v6848
        %v6962 = vunpack.c.l.b16 %v6849
        %v6963 = vunpack.c.l.b16 %v6850
        %v6964 = vunpack.c.h.b16 %v6850
        %v6965 = vunpack.c.l.b16 %v6851
        %v6966 = vunpack.c.l.b16 %v6852
        %v6967 = vunpack.c.h.b16 %v6852
        %v6968 = vunpack.c.l.b16 %v6853
        %v6969 = vunpack.c.l.b16 %v6854
        %v6970 = vunpack.c.h.b16 %v6854
        %v6971 = vunpack.c.l.b16 %v6855
        %v6972 = vunpack.c.l.b16 %v6856
        %v6973 = vunpack.c.h.b16 %v6856
        %v6974 = vunpack.c.l.b16 %v6857
        %v6975 = vunpack.c.l.b16 %v6858
        %v6976 = vunpack.c.h.b16 %v6858
        %v6977 = vunpack.c.l.b16 %v6859
        %v6978 = vunpack.c.l.b16 %v6860
        %v6979 = vunpack.c.h.b16 %v6860
        %v6980 = vunpack.c.l.b16 %v6861
        %v6981 = vunpack.c.l.b16 %v6862
        %v6982 = vunpack.c.h.b16 %v6862
        %v6983 = vunpack.c.l.b16 %v6863
        %v6984 = vunpack.c.l.b16 %v6864
        %v6985 = vunpack.c.h.b16 %v6864
        %v6986 = vunpack.c.l.b16 %v6865
        %v6987 = vunpack.c.l.b16 %v6866
        %v6988 = vunpack.c.h.b16 %v6866
        %v6989 = vunpack.c.l.b16 %v6867
        %v6990 = vunpack.c.l.b16 %v6868
        %v6991 = vunpack.c.h.b16 %v6868
        %v6992 = vunpack.c.l.b16 %v6869
        %v6993 = vunpack.c.l.b16 %v6870
        %v6994 = vunpack.c.h.b16 %v6870
        %v6995 = vunpack.c.l.b16 %v6871
        %v6996 = vunpack.c.l.b16 %v6872
        %v6997 = vunpack.c.h.b16 %v6872
        %v6998 = vunpack.c.l.b16 %v6873
        %v6999 = vunpack.c.l.b16 %v6874
        %v7000 = vunpack.c.h.b16 %v6874
        %v7001 = vunpack.c.l.b16 %v6875
        %v7002 = vunpack.c.l.b16 %v6876
        %v7003 = vunpack.c.h.b16 %v6876
        %v7004 = vunpack.c.l.b16 %v6877
        %v7005 = vunpack.c.l.b16 %v6878
        %v7006 = vunpack.c.h.b16 %v6878
        %v7007 = vunpack.c.l.b16 %v6879
        %v7008 = vunpack.c.l.b16 %v6880
        %v7009 = vunpack.c.h.b16 %v6880
        %v7010 = vunpack.c.l.b16 %v6881
        %v7011 = vunpack.c.l.b16 %v6882
        %v7012 = vunpack.c.h.b16 %v6882
        %v7013 = vunpack.c.l.b16 %v6883
        %v7014 = vunpack.c.l.b16 %v6884
        %v7015 = vunpack.c.h.b16 %v6884
        %v7016 = vunpack.c.l.b16 %v6885
        %v7017 = vunpack.c.l.b16 %v6886
        %v7018 = vunpack.c.h.b16 %v6886
        %v7019 = vunpack.c.l.b16 %v6887
        %v7020 = vunpack.c.l.b16 %v6888
        %v7021 = vunpack.c.h.b16 %v6888
        %v7022 = vunpack.c.l.b16 %v6889
        %v7023 = vpack.c.b16 %v6960, %v6957
        %v7024 = vpack.c.b16 %v6961, %v6958
        %v7025 = vpack.c.b16 %v6962, %v6959
        %v7026 = vpack.c.b16 %v6966, %v6963
        %v7027 = vpack.c.b16 %v6967, %v6964
        %v7028 = vpack.c.b16 %v6968, %v6965
        %v7029 = vpack.c.b16 %v6972, %v6969
        %v7030 = vpack.c.b16 %v6973, %v6970
        %v7031 = vpack.c.b16 %v6974, %v6971
        %v7032 = vpack.c.b16 %v6978, %v6975
        %v7033 = vpack.c.b16 %v6979, %v6976
        %v7034 = vpack.c.b16 %v6980, %v6977
        %v7035 = vpack.c.b16 %v6984, %v6981
        %v7036 = vpack.c.b16 %v6985, %v6982
        %v7037 = vpack.c.b16 %v6986, %v6983
        %v7038 = vpack.c.b16 %v6990, %v6987
        %v7039 = vpack.c.b16 %v6991, %v6988
        %v7040 = vpack.c.b16 %v6992, %v6989
        %v7041 = vpack.c.b16 %v6996, %v6993
        %v7042 = vpack.c.b16 %v6997, %v6994
        %v7043 = vpack.c.b16 %v6998, %v6995
        %v7044 = vpack.c.b16 %v7002, %v6999
        %v7045 = vpack.c.b16 %v7003, %v7000
        %v7046 = vpack.c.b16 %v7004, %v7001
        %v7047 = vpack.c.b16 %v7008, %v7005
        %v7048 = vpack.c.b16 %v7009, %v7006
        %v7049 = vpack.c.b16 %v7010, %v7007
        %v7050 = vpack.c.b16 %v7014, %v7011
        %v7051 = vpack.c.b16 %v7015, %v7012
        %v7052 = vpack.c.b16 %v7016, %v7013
        %v7053 = vpack.c.b16 %v7020, %v7017
        %v7054 = vpack.c.b16 %v7021, %v7018
        %v7055 = vpack.c.b16 %v7022, %v7019
        %vm7078 = vcmask 842752
        %v7080 = vsel %vm7078, %v7025, 0
        %v7083 = vsel %vm7078, %v7028, 0
        %v7086 = vsel %vm7078, %v7031, 0
        %v7089 = vsel %vm7078, %v7034, 0
        %v7092 = vsel %vm7078, %v7037, 0
        %v7095 = vsel %vm7078, %v7040, 0
        %v7098 = vsel %vm7078, %v7043, 0
        %v7101 = vsel %vm7078, %v7046, 0
        %v7104 = vsel %vm7078, %v7049, 0
        %v7107 = vsel %vm7078, %v7052, 0
        %v7110 = vsel %vm7078, %v7055, 0
        %vm7112 = vcmask 1042432
        %vm7113 = vcmask 1043456
        %v7114 = vsel %vm7112, 4294967295, 65535
        %v7115 = vsel %vm7113, %v7114, 0
        %v7117 = vand.u32 %v6912, %v7115
        %7119 = vmatprep.subr.bf16.mxu0 0
        %7120 = vmatpush1.bf16.msra.mxu0 %v6897
        %7121 = vmatprep.subr.bf16.mxu0 0
        %7122 = vmatpush1.bf16.msra.mxu0 %v6896
        %7123 = vmatprep.subr.bf16.mxu0 0
        %7124 = vmatpush1.bf16.msra.mxu0 %v6895
        %7125 = vmatprep.subr.bf16.mxu0 0
        %7126 = vmatpush1.bf16.msra.mxu0 %v6894
        %7127 = vmatprep.subr.bf16.mxu0 0
        %7128 = vmatpush1.bf16.msra.mxu0 %v6893
        %7129 = vmatprep.subr.bf16.mxu0 0
        %7130 = vmatpush1.bf16.msra.mxu0 %v6892
        %7131 = vmatprep.subr.bf16.mxu0 0
        %7132 = vmatpush1.bf16.msra.mxu0 %v6891
        %7133 = vmatprep.subr.bf16.mxu0 0
        %7134 = vmatpush1.bf16.msra.mxu0 %v6890
        %7135 = vmatprep.subr.bf16.mxu0 0
        %7136 = vmatpush2.bf16.msra.mxu0 %v6905
        %7137 = vmatprep.subr.bf16.mxu0 0
        %7138 = vmatpush2.bf16.msra.mxu0 %v6904
        %7139 = vmatprep.subr.bf16.mxu0 0
        %7140 = vmatpush2.bf16.msra.mxu0 %v6903
        %7141 = vmatprep.subr.bf16.mxu0 0
        %7142 = vmatpush2.bf16.msra.mxu0 %v6902
        %7143 = vmatprep.subr.bf16.mxu0 0
        %7144 = vmatpush2.bf16.msra.mxu0 %v6901
        %7145 = vmatprep.subr.bf16.mxu0 0
        %7146 = vmatpush2.bf16.msra.mxu0 %v6900
        %7147 = vmatprep.subr.bf16.mxu0 0
        %7148 = vmatpush2.bf16.msra.mxu0 %v6899
        %7149 = vmatprep.subr.bf16.mxu0 0
        %7150 = vmatpush2.bf16.msra.mxu0 %v6898
        %7151 = vmatprep.mubr.bf16.mxu0 %v7024
        %7152 = vmatmul.mubr.bf16.gmra.mxu0 %v7023
        %v7153 = vpop.f32.mrf.mxu0
        %v7154 = vadd.f32 0.0, %v7153
        %v7155 = vpop.f32.mrf.mxu0
        %v7156 = vpop.f32.mrf.mxu0
        %v7157 = vadd.f32 0.0, %v7156
        %v7158 = vpop.f32.mrf.mxu0
        %7159 = vmatprep.mubr.bf16.mxu0 %v7027
        %7160 = vmatmul.mubr.bf16.gmra.mxu0 %v7026
        %v7161 = vpop.f32.mrf.mxu0
        %v7162 = vadd.f32 0.0, %v7161
        %v7163 = vpop.f32.mrf.mxu0
        %v7164 = vpop.f32.mrf.mxu0
        %v7165 = vadd.f32 0.0, %v7164
        %v7166 = vpop.f32.mrf.mxu0
        %7167 = vmatprep.mubr.bf16.mxu0 %v7030
        %7168 = vmatmul.mubr.bf16.gmra.mxu0 %v7029
        %v7169 = vpop.f32.mrf.mxu0
        %v7170 = vadd.f32 0.0, %v7169
        %v7171 = vpop.f32.mrf.mxu0
        %v7172 = vpop.f32.mrf.mxu0
        %v7173 = vadd.f32 0.0, %v7172
        %v7174 = vpop.f32.mrf.mxu0
        %7175 = vmatprep.mubr.bf16.mxu0 %v7033
        %7176 = vmatmul.mubr.bf16.gmra.mxu0 %v7032
        %v7177 = vpop.f32.mrf.mxu0
        %v7178 = vadd.f32 0.0, %v7177
        %v7179 = vpop.f32.mrf.mxu0
        %v7180 = vpop.f32.mrf.mxu0
        %v7181 = vadd.f32 0.0, %v7180
        %v7182 = vpop.f32.mrf.mxu0
        %7183 = vmatprep.mubr.bf16.mxu0 %v7036
        %7184 = vmatmul.mubr.bf16.gmra.mxu0 %v7035
        %v7185 = vpop.f32.mrf.mxu0
        %v7186 = vadd.f32 0.0, %v7185
        %v7187 = vpop.f32.mrf.mxu0
        %v7188 = vpop.f32.mrf.mxu0
        %v7189 = vadd.f32 0.0, %v7188
        %v7190 = vpop.f32.mrf.mxu0
        %7191 = vmatprep.mubr.bf16.mxu0 %v7039
        %7192 = vmatmul.mubr.bf16.gmra.mxu0 %v7038
        %v7193 = vpop.f32.mrf.mxu0
        %v7194 = vadd.f32 0.0, %v7193
        %v7195 = vpop.f32.mrf.mxu0
        %v7196 = vpop.f32.mrf.mxu0
        %v7197 = vadd.f32 0.0, %v7196
        %v7198 = vpop.f32.mrf.mxu0
        %7199 = vmatprep.mubr.bf16.mxu0 %v7042
        %7200 = vmatmul.mubr.bf16.gmra.mxu0 %v7041
        %v7201 = vpop.f32.mrf.mxu0
        %v7202 = vadd.f32 0.0, %v7201
        %v7203 = vpop.f32.mrf.mxu0
        %v7204 = vpop.f32.mrf.mxu0
        %v7205 = vadd.f32 0.0, %v7204
        %v7206 = vpop.f32.mrf.mxu0
        %7207 = vmatprep.mubr.bf16.mxu0 %v7045
        %7208 = vmatmul.mubr.bf16.gmra.mxu0 %v7044
        %v7209 = vpop.f32.mrf.mxu0
        %v7210 = vadd.f32 0.0, %v7209
        %v7211 = vpop.f32.mrf.mxu0
        %v7212 = vpop.f32.mrf.mxu0
        %v7213 = vadd.f32 0.0, %v7212
        %v7214 = vpop.f32.mrf.mxu0
        %7215 = vmatprep.mubr.bf16.mxu0 %v7048
        %7216 = vmatmul.mubr.bf16.gmra.mxu0 %v7047
        %v7217 = vpop.f32.mrf.mxu0
        %v7218 = vadd.f32 0.0, %v7217
        %v7219 = vpop.f32.mrf.mxu0
        %v7220 = vpop.f32.mrf.mxu0
        %v7221 = vadd.f32 0.0, %v7220
        %v7222 = vpop.f32.mrf.mxu0
        %7223 = vmatprep.mubr.bf16.mxu0 %v7051
        %7224 = vmatmul.mubr.bf16.gmra.mxu0 %v7050
        %v7225 = vpop.f32.mrf.mxu0
        %v7226 = vadd.f32 0.0, %v7225
        %v7227 = vpop.f32.mrf.mxu0
        %v7228 = vpop.f32.mrf.mxu0
        %v7229 = vadd.f32 0.0, %v7228
        %v7230 = vpop.f32.mrf.mxu0
        %7231 = vmatprep.mubr.bf16.mxu0 %v7054
        %7232 = vmatmul.mubr.bf16.gmra.mxu0 %v7053
        %v7233 = vpop.f32.mrf.mxu0
        %v7234 = vadd.f32 0.0, %v7233
        %v7235 = vpop.f32.mrf.mxu0
        %v7236 = vpop.f32.mrf.mxu0
        %v7237 = vadd.f32 0.0, %v7236
        %v7238 = vpop.f32.mrf.mxu0
        %7239 = vdwg.mxu0
        %7240 = vmatprep.subr.bf16.mxu0 0
        %7241 = vmatpush1.bf16.msra.mxu0 0
        %7242 = vmatprep.subr.bf16.mxu0 0
        %7243 = vmatpush1.bf16.msra.mxu0 %v7117
        %7244 = vmatprep.subr.bf16.mxu0 0
        %7245 = vmatpush1.bf16.msra.mxu0 %v6911
        %7246 = vmatprep.subr.bf16.mxu0 0
        %7247 = vmatpush1.bf16.msra.mxu0 %v6910
        %7248 = vmatprep.subr.bf16.mxu0 0
        %7249 = vmatpush1.bf16.msra.mxu0 %v6909
        %7250 = vmatprep.subr.bf16.mxu0 0
        %7251 = vmatpush1.bf16.msra.mxu0 %v6908
        %7252 = vmatprep.subr.bf16.mxu0 0
        %7253 = vmatpush1.bf16.msra.mxu0 %v6907
        %7254 = vmatprep.subr.bf16.mxu0 0
        %7255 = vmatpush1.bf16.msra.mxu0 %v6906
        %7256 = vmatprep.subr.bf16.mxu0 0
        %7257 = vmatpush2.bf16.msra.mxu0 0
        %7258 = vmatprep.subr.bf16.mxu0 0
        %7259 = vmatpush2.bf16.msra.mxu0 0
        %7260 = vmatprep.subr.bf16.mxu0 0
        %7261 = vmatpush2.bf16.msra.mxu0 0
        %7262 = vmatprep.subr.bf16.mxu0 0
        %7263 = vmatpush2.bf16.msra.mxu0 0
        %7264 = vmatprep.subr.bf16.mxu0 0
        %7265 = vmatpush2.bf16.msra.mxu0 0
        %7266 = vmatprep.subr.bf16.mxu0 0
        %7267 = vmatpush2.bf16.msra.mxu0 0
        %7268 = vmatprep.subr.bf16.mxu0 0
        %7269 = vmatpush2.bf16.msra.mxu0 0
        %7270 = vmatprep.subr.bf16.mxu0 0
        %7271 = vmatpush2.bf16.msra.mxu0 0
        %7272 = vmatprep.mubr.bf16.mxu0 0
        %7273 = vmatmul.mubr.bf16.gmra.mxu0 %v7080
        %v7274 = vpop.f32.mrf.mxu0
        %v7275 = vadd.f32 %v7154, %v7274
        %v7276 = vpop.f32.mrf.mxu0
        %v7277 = vpop.f32.mrf.mxu0
        %v7278 = vadd.f32 %v7157, %v7277
        %v7279 = vpop.f32.mrf.mxu0
        %7280 = vmatprep.mubr.bf16.mxu0 0
        %7281 = vmatmul.mubr.bf16.gmra.mxu0 %v7083
        %v7282 = vpop.f32.mrf.mxu0
        %v7283 = vadd.f32 %v7162, %v7282
        %v7284 = vpop.f32.mrf.mxu0
        %v7285 = vpop.f32.mrf.mxu0
        %v7286 = vadd.f32 %v7165, %v7285
        %v7287 = vpop.f32.mrf.mxu0
        %7288 = vmatprep.mubr.bf16.mxu0 0
        %7289 = vmatmul.mubr.bf16.gmra.mxu0 %v7086
        %v7290 = vpop.f32.mrf.mxu0
        %v7291 = vadd.f32 %v7170, %v7290
        %v7292 = vpop.f32.mrf.mxu0
        %v7293 = vpop.f32.mrf.mxu0
        %v7294 = vadd.f32 %v7173, %v7293
        %v7295 = vpop.f32.mrf.mxu0
        %7296 = vmatprep.mubr.bf16.mxu0 0
        %7297 = vmatmul.mubr.bf16.gmra.mxu0 %v7089
        %v7298 = vpop.f32.mrf.mxu0
        %v7299 = vadd.f32 %v7178, %v7298
        %v7300 = vpop.f32.mrf.mxu0
        %v7301 = vpop.f32.mrf.mxu0
        %v7302 = vadd.f32 %v7181, %v7301
        %v7303 = vpop.f32.mrf.mxu0
        %7304 = vmatprep.mubr.bf16.mxu0 0
        %7305 = vmatmul.mubr.bf16.gmra.mxu0 %v7092
        %v7306 = vpop.f32.mrf.mxu0
        %v7307 = vadd.f32 %v7186, %v7306
        %v7308 = vpop.f32.mrf.mxu0
        %v7309 = vpop.f32.mrf.mxu0
        %v7310 = vadd.f32 %v7189, %v7309
        %v7311 = vpop.f32.mrf.mxu0
        %7312 = vmatprep.mubr.bf16.mxu0 0
        %7313 = vmatmul.mubr.bf16.gmra.mxu0 %v7095
        %v7314 = vpop.f32.mrf.mxu0
        %v7315 = vadd.f32 %v7194, %v7314
        %v7316 = vpop.f32.mrf.mxu0
        %v7317 = vpop.f32.mrf.mxu0
        %v7318 = vadd.f32 %v7197, %v7317
        %v7319 = vpop.f32.mrf.mxu0
        %7320 = vmatprep.mubr.bf16.mxu0 0
        %7321 = vmatmul.mubr.bf16.gmra.mxu0 %v7098
        %v7322 = vpop.f32.mrf.mxu0
        %v7323 = vadd.f32 %v7202, %v7322
        %v7324 = vpop.f32.mrf.mxu0
        %v7325 = vpop.f32.mrf.mxu0
        %v7326 = vadd.f32 %v7205, %v7325
        %v7327 = vpop.f32.mrf.mxu0
        %7328 = vmatprep.mubr.bf16.mxu0 0
        %7329 = vmatmul.mubr.bf16.gmra.mxu0 %v7101
        %v7330 = vpop.f32.mrf.mxu0
        %v7331 = vadd.f32 %v7210, %v7330
        %v7332 = vpop.f32.mrf.mxu0
        %v7333 = vpop.f32.mrf.mxu0
        %v7334 = vadd.f32 %v7213, %v7333
        %v7335 = vpop.f32.mrf.mxu0
        %7336 = vmatprep.mubr.bf16.mxu0 0
        %7337 = vmatmul.mubr.bf16.gmra.mxu0 %v7104
        %v7338 = vpop.f32.mrf.mxu0
        %v7339 = vadd.f32 %v7218, %v7338
        %v7340 = vpop.f32.mrf.mxu0
        %v7341 = vpop.f32.mrf.mxu0
        %v7342 = vadd.f32 %v7221, %v7341
        %v7343 = vpop.f32.mrf.mxu0
        %7344 = vmatprep.mubr.bf16.mxu0 0
        %7345 = vmatmul.mubr.bf16.gmra.mxu0 %v7107
        %v7346 = vpop.f32.mrf.mxu0
        %v7347 = vadd.f32 %v7226, %v7346
        %v7348 = vpop.f32.mrf.mxu0
        %v7349 = vpop.f32.mrf.mxu0
        %v7350 = vadd.f32 %v7229, %v7349
        %v7351 = vpop.f32.mrf.mxu0
        %7352 = vmatprep.mubr.bf16.mxu0 0
        %7353 = vmatmul.mubr.bf16.gmra.mxu0 %v7110
        %v7354 = vpop.f32.mrf.mxu0
        %v7355 = vadd.f32 %v7234, %v7354
        %v7356 = vpop.f32.mrf.mxu0
        %v7357 = vpop.f32.mrf.mxu0
        %v7358 = vadd.f32 %v7237, %v7357
        %v7359 = vpop.f32.mrf.mxu0
        %7360 = vdwg.mxu0
        %v7361 = vpack.c.bf16 %v7278, %v7275
        %v7362 = vpack.c.bf16 %v7286, %v7283
        %v7363 = vpack.c.bf16 %v7294, %v7291
        %v7364 = vpack.c.bf16 %v7302, %v7299
        %v7365 = vpack.c.bf16 %v7310, %v7307
        %v7366 = vpack.c.bf16 %v7318, %v7315
        %v7367 = vpack.c.bf16 %v7326, %v7323
        %v7368 = vpack.c.bf16 %v7334, %v7331
        %v7369 = vpack.c.bf16 %v7342, %v7339
        %v7370 = vpack.c.bf16 %v7350, %v7347
        %v7371 = vpack.c.bf16 %v7358, %v7355
        %v7383 = vunpack.c.l.b16 %v7361
        %v7384 = vunpack.c.h.b16 %v7361
        %v7385 = vunpack.c.l.b16 %v7362
        %v7386 = vunpack.c.h.b16 %v7362
        %v7387 = vunpack.c.l.b16 %v7363
        %v7388 = vunpack.c.h.b16 %v7363
        %v7389 = vunpack.c.l.b16 %v7364
        %v7390 = vunpack.c.h.b16 %v7364
        %v7391 = vunpack.c.l.b16 %v7365
        %v7392 = vunpack.c.h.b16 %v7365
        %v7393 = vunpack.c.l.b16 %v7366
        %v7394 = vunpack.c.h.b16 %v7366
        %v7395 = vunpack.c.l.b16 %v7367
        %v7396 = vunpack.c.h.b16 %v7367
        %v7397 = vunpack.c.l.b16 %v7368
        %v7398 = vunpack.c.h.b16 %v7368
        %v7399 = vunpack.c.l.b16 %v7369
        %v7400 = vunpack.c.h.b16 %v7369
        %v7401 = vunpack.c.l.b16 %v7370
        %v7402 = vunpack.c.h.b16 %v7370
        %v7403 = vunpack.c.l.b16 %v7371
        %v7404 = vunpack.c.h.b16 %v7371
        %v7405 = vpack.c.b16 %v7383, %v7383
        %v7406 = vpack.c.b16 %v7384, %v7384
        %v7407 = vpack.c.b16 %v7385, %v7385
        %v7408 = vpack.c.b16 %v7386, %v7386
        %v7409 = vpack.c.b16 %v7387, %v7387
        %v7410 = vpack.c.b16 %v7388, %v7388
        %v7411 = vpack.c.b16 %v7389, %v7389
        %v7412 = vpack.c.b16 %v7390, %v7390
        %v7413 = vpack.c.b16 %v7391, %v7391
        %v7414 = vpack.c.b16 %v7392, %v7392
        %v7415 = vpack.c.b16 %v7393, %v7393
        %v7416 = vpack.c.b16 %v7394, %v7394
        %v7417 = vpack.c.b16 %v7395, %v7395
        %v7418 = vpack.c.b16 %v7396, %v7396
        %v7419 = vpack.c.b16 %v7397, %v7397
        %v7420 = vpack.c.b16 %v7398, %v7398
        %v7421 = vpack.c.b16 %v7399, %v7399
        %v7422 = vpack.c.b16 %v7400, %v7400
        %v7423 = vpack.c.b16 %v7401, %v7401
        %v7424 = vpack.c.b16 %v7402, %v7402
        %v7425 = vpack.c.b16 %v7403, %v7403
        %v7426 = vpack.c.b16 %v7404, %v7404
        %vm7449 = vcmask 257024
        %7450 = vst.msk [vmem:[#allocation3] sm:$0xf] %vm7449, %v7405
        %7451 = vst.msk [vmem:[#allocation3 + $0x4] sm:$0xf] %vm7449, %v7406
        %7452 = vst.msk [vmem:[#allocation3 + $0x8] sm:$0xf] %vm7449, %v7407
        %7453 = vst.msk [vmem:[#allocation3 + $0xc] sm:$0xf] %vm7449, %v7408
        %7454 = vst.msk [vmem:[#allocation3 + $0x10] sm:$0xf] %vm7449, %v7409
        %7455 = vst.msk [vmem:[#allocation3 + $0x14] sm:$0xf] %vm7449, %v7410
        %7456 = vst.msk [vmem:[#allocation3 + $0x18] sm:$0xf] %vm7449, %v7411
        %7457 = vst.msk [vmem:[#allocation3 + $0x1c] sm:$0xf] %vm7449, %v7412
        %7458 = vst.msk [vmem:[#allocation3 + $0x20] sm:$0xf] %vm7449, %v7413
        %7459 = vst.msk [vmem:[#allocation3 + $0x24] sm:$0xf] %vm7449, %v7414
        %7460 = vst.msk [vmem:[#allocation3 + $0x28] sm:$0xf] %vm7449, %v7415
        %7461 = vst.msk [vmem:[#allocation3 + $0x2c] sm:$0xf] %vm7449, %v7416
        %7462 = vst.msk [vmem:[#allocation3 + $0x30] sm:$0xf] %vm7449, %v7417
        %7463 = vst.msk [vmem:[#allocation3 + $0x34] sm:$0xf] %vm7449, %v7418
        %7464 = vst.msk [vmem:[#allocation3 + $0x38] sm:$0xf] %vm7449, %v7419
        %7465 = vst.msk [vmem:[#allocation3 + $0x3c] sm:$0xf] %vm7449, %v7420
        %7466 = vst.msk [vmem:[#allocation3 + $0x40] sm:$0xf] %vm7449, %v7421
        %7467 = vst.msk [vmem:[#allocation3 + $0x44] sm:$0xf] %vm7449, %v7422
        %7468 = vst.msk [vmem:[#allocation3 + $0x48] sm:$0xf] %vm7449, %v7423
        %7469 = vst.msk [vmem:[#allocation3 + $0x4c] sm:$0xf] %vm7449, %v7424
        %7470 = vst.msk [vmem:[#allocation3 + $0x50] sm:$0xf] %vm7449, %v7425
        %7471 = vst.msk [vmem:[#allocation3 + $0x54] sm:$0xf] %vm7449, %v7426
        %v7472 = vld [vmem:[#allocation3] sm:$0xf]
        %v7473 = vld [vmem:[#allocation3 + $0x4] sm:$0xf]
        %v7474 = vld [vmem:[#allocation3 + $0x8] sm:$0xf]
        %v7475 = vld [vmem:[#allocation3 + $0xc] sm:$0xf]
        %v7476 = vld [vmem:[#allocation3 + $0x10] sm:$0xf]
        %v7477 = vld [vmem:[#allocation3 + $0x14] sm:$0xf]
        %v7478 = vld [vmem:[#allocation3 + $0x18] sm:$0xf]
        %v7479 = vld [vmem:[#allocation3 + $0x1c] sm:$0xf]
        %v7480 = vld [vmem:[#allocation3 + $0x20] sm:$0xf]
        %v7481 = vld [vmem:[#allocation3 + $0x24] sm:$0xf]
        %v7482 = vld [vmem:[#allocation3 + $0x28] sm:$0xf]
        %v7483 = vld [vmem:[#allocation3 + $0x2c] sm:$0xf]
        %v7484 = vld [vmem:[#allocation3 + $0x30] sm:$0xf]
        %v7485 = vld [vmem:[#allocation3 + $0x34] sm:$0xf]
        %v7486 = vld [vmem:[#allocation3 + $0x38] sm:$0xf]
        %v7487 = vld [vmem:[#allocation3 + $0x3c] sm:$0xf]
        %v7488 = vld [vmem:[#allocation8] sm:$0xf]
        %v7489 = vld [vmem:[#allocation8 + $0x4] sm:$0xf]
        %v7490 = vld [vmem:[#allocation8 + $0x8] sm:$0xf]
        %v7491 = vld [vmem:[#allocation8 + $0xc] sm:$0xf]
        %v7492 = vld [vmem:[#allocation3 + $0x40] sm:$0x1]
        %s7493 = scalar_lea.vmem [#allocation8], 16
        %v7494 = vld [vmem:[%s7493] sm:$0xf]
        %v7495 = vld [vmem:[%s7493 + $0x4] sm:$0xf]
        %v7496 = vld [vmem:[%s7493 + $0x8] sm:$0xf]
        %v7497 = vld [vmem:[%s7493 + $0xc] sm:$0xf]
        %v7515 = vunpack.c.l.b16 %v7472
        %v7516 = vunpack.c.l.b16 %v7473
        %v7517 = vunpack.c.l.b16 %v7474
        %v7518 = vunpack.c.l.b16 %v7475
        %v7519 = vunpack.c.l.b16 %v7476
        %v7520 = vunpack.c.l.b16 %v7477
        %v7521 = vunpack.c.l.b16 %v7478
        %v7522 = vunpack.c.l.b16 %v7479
        %v7523 = vunpack.c.l.b16 %v7480
        %v7524 = vunpack.c.l.b16 %v7481
        %v7525 = vunpack.c.l.b16 %v7482
        %v7526 = vunpack.c.l.b16 %v7483
        %v7527 = vunpack.c.l.b16 %v7484
        %v7528 = vunpack.c.l.b16 %v7485
        %v7529 = vunpack.c.l.b16 %v7486
        %v7530 = vunpack.c.l.b16 %v7487
        %v7531 = vunpack.c.l.b16 %v7492
        %v7532 = vpack.c.b16 %v7516, %v7515
        %v7533 = vpack.c.b16 %v7518, %v7517
        %v7534 = vpack.c.b16 %v7520, %v7519
        %v7535 = vpack.c.b16 %v7522, %v7521
        %v7536 = vpack.c.b16 %v7524, %v7523
        %v7537 = vpack.c.b16 %v7526, %v7525
        %v7538 = vpack.c.b16 %v7528, %v7527
        %v7539 = vpack.c.b16 %v7530, %v7529
        %v7540 = vpack.c.b16 %v7531, %v7531
        %vm7541 = vsmask.f32 7424
        %v7543 = vshrl.u32 %v7532, 16
        %v7545 = vshll.u32 %v7532, 16
        %v7547 = vrot.slane %v7545, 1
        %v7548 = vor.u32 %v7543, %v7547
        %v7550 = vshll.u32 %v7533, 16
        %v7552 = vrot.slane %v7550, 1
        %v7553 = vsel %vm7541, %v7548, %v7552
        %v7554 = vshrl.u32 %v7533, 16
        %v7556 = vor.u32 %v7554, %v7552
        %v7558 = vshll.u32 %v7534, 16
        %v7560 = vrot.slane %v7558, 1
        %v7561 = vsel %vm7541, %v7556, %v7560
        %v7562 = vshrl.u32 %v7534, 16
        %v7564 = vor.u32 %v7562, %v7560
        %v7566 = vshll.u32 %v7535, 16
        %v7568 = vrot.slane %v7566, 1
        %v7569 = vsel %vm7541, %v7564, %v7568
        %v7570 = vshrl.u32 %v7535, 16
        %v7572 = vor.u32 %v7570, %v7568
        %v7574 = vshll.u32 %v7536, 16
        %v7576 = vrot.slane %v7574, 1
        %v7577 = vsel %vm7541, %v7572, %v7576
        %v7578 = vshrl.u32 %v7536, 16
        %v7580 = vor.u32 %v7578, %v7576
        %v7582 = vshll.u32 %v7537, 16
        %v7584 = vrot.slane %v7582, 1
        %v7585 = vsel %vm7541, %v7580, %v7584
        %v7586 = vshrl.u32 %v7537, 16
        %v7588 = vor.u32 %v7586, %v7584
        %v7590 = vshll.u32 %v7538, 16
        %v7592 = vrot.slane %v7590, 1
        %v7593 = vsel %vm7541, %v7588, %v7592
        %v7594 = vshrl.u32 %v7538, 16
        %v7596 = vor.u32 %v7594, %v7592
        %v7598 = vshll.u32 %v7539, 16
        %v7600 = vrot.slane %v7598, 1
        %v7601 = vsel %vm7541, %v7596, %v7600
        %v7602 = vshrl.u32 %v7539, 16
        %v7604 = vor.u32 %v7602, %v7600
        %v7606 = vshll.u32 %v7540, 16
        %v7608 = vrot.slane %v7606, 1
        %v7609 = vsel %vm7541, %v7604, %v7608
        %v7614 = vunpack.c.l.b16 %v7494
        %v7615 = vunpack.c.l.b16 %v7495
        %v7616 = vunpack.c.l.b16 %v7496
        %v7617 = vunpack.c.l.b16 %v7497
        %v7618 = vpack.c.b16 %v7615, %v7614
        %v7619 = vpack.c.b16 %v7617, %v7616
        %v7623 = vsel %vm915, %v7553, 0
        %v7626 = vsel %vm915, %v7561, 0
        %v7629 = vsel %vm915, %v7569, 0
        %v7632 = vsel %vm915, %v7577, 0
        %v7635 = vsel %vm915, %v7585, 0
        %v7638 = vsel %vm915, %v7593, 0
        %v7641 = vsel %vm915, %v7601, 0
        %v7644 = vsel %vm915, %v7609, 0
        %7646 = vmatprep.subr.bf16.mxu0 0
        %7647 = vmatpush1.bf16.msra.mxu0 0
        %7648 = vmatprep.subr.bf16.mxu0 0
        %7649 = vmatpush1.bf16.msra.mxu0 0
        %7650 = vmatprep.subr.bf16.mxu0 0
        %7651 = vmatpush1.bf16.msra.mxu0 0
        %7652 = vmatprep.subr.bf16.mxu0 0
        %7653 = vmatpush1.bf16.msra.mxu0 0
        %7654 = vmatprep.subr.bf16.mxu0 0
        %7655 = vmatpush1.bf16.msra.mxu0 0
        %7656 = vmatprep.subr.bf16.mxu0 0
        %7657 = vmatpush1.bf16.msra.mxu0 0
        %7658 = vmatprep.subr.bf16.mxu0 0
        %7659 = vmatpush1.bf16.msra.mxu0 %v7619
        %7660 = vmatprep.subr.bf16.mxu0 0
        %7661 = vmatpush1.bf16.msra.mxu0 %v7618
        %7662 = vmatprep.subr.bf16.mxu0 0
        %7663 = vmatpush2.bf16.msra.mxu0 0
        %7664 = vmatprep.subr.bf16.mxu0 0
        %7665 = vmatpush2.bf16.msra.mxu0 0
        %7666 = vmatprep.subr.bf16.mxu0 0
        %7667 = vmatpush2.bf16.msra.mxu0 0
        %7668 = vmatprep.subr.bf16.mxu0 0
        %7669 = vmatpush2.bf16.msra.mxu0 0
        %7670 = vmatprep.subr.bf16.mxu0 0
        %7671 = vmatpush2.bf16.msra.mxu0 0
        %7672 = vmatprep.subr.bf16.mxu0 0
        %7673 = vmatpush2.bf16.msra.mxu0 0
        %7674 = vmatprep.subr.bf16.mxu0 0
        %7675 = vmatpush2.bf16.msra.mxu0 0
        %7676 = vmatprep.subr.bf16.mxu0 0
        %7677 = vmatpush2.bf16.msra.mxu0 0
        %7678 = vmatprep.mubr.bf16.mxu0 0
        %7679 = vmatmul.mubr.bf16.gmra.mxu0 %v7623
        %v7680 = vpop.f32.mrf.mxu0
        %v7681 = vadd.f32 0.0, %v7680
        %v7682 = vpop.f32.mrf.mxu0
        %v7683 = vpop.f32.mrf.mxu0
        %v7684 = vadd.f32 0.0, %v7683
        %v7685 = vpop.f32.mrf.mxu0
        %7686 = vmatprep.mubr.bf16.mxu0 0
        %7687 = vmatmul.mubr.bf16.gmra.mxu0 %v7626
        %v7688 = vpop.f32.mrf.mxu0
        %v7689 = vadd.f32 0.0, %v7688
        %v7690 = vpop.f32.mrf.mxu0
        %v7691 = vpop.f32.mrf.mxu0
        %v7692 = vadd.f32 0.0, %v7691
        %v7693 = vpop.f32.mrf.mxu0
        %7694 = vmatprep.mubr.bf16.mxu0 0
        %7695 = vmatmul.mubr.bf16.gmra.mxu0 %v7629
        %v7696 = vpop.f32.mrf.mxu0
        %v7697 = vadd.f32 0.0, %v7696
        %v7698 = vpop.f32.mrf.mxu0
        %v7699 = vpop.f32.mrf.mxu0
        %v7700 = vadd.f32 0.0, %v7699
        %v7701 = vpop.f32.mrf.mxu0
        %7702 = vmatprep.mubr.bf16.mxu0 0
        %7703 = vmatmul.mubr.bf16.gmra.mxu0 %v7632
        %v7704 = vpop.f32.mrf.mxu0
        %v7705 = vadd.f32 0.0, %v7704
        %v7706 = vpop.f32.mrf.mxu0
        %v7707 = vpop.f32.mrf.mxu0
        %v7708 = vadd.f32 0.0, %v7707
        %v7709 = vpop.f32.mrf.mxu0
        %7710 = vmatprep.mubr.bf16.mxu0 0
        %7711 = vmatmul.mubr.bf16.gmra.mxu0 %v7635
        %v7712 = vpop.f32.mrf.mxu0
        %v7713 = vadd.f32 0.0, %v7712
        %v7714 = vpop.f32.mrf.mxu0
        %v7715 = vpop.f32.mrf.mxu0
        %v7716 = vadd.f32 0.0, %v7715
        %v7717 = vpop.f32.mrf.mxu0
        %7718 = vmatprep.mubr.bf16.mxu0 0
        %7719 = vmatmul.mubr.bf16.gmra.mxu0 %v7638
        %v7720 = vpop.f32.mrf.mxu0
        %v7721 = vadd.f32 0.0, %v7720
        %v7722 = vpop.f32.mrf.mxu0
        %v7723 = vpop.f32.mrf.mxu0
        %v7724 = vadd.f32 0.0, %v7723
        %v7725 = vpop.f32.mrf.mxu0
        %7726 = vmatprep.mubr.bf16.mxu0 0
        %7727 = vmatmul.mubr.bf16.gmra.mxu0 %v7641
        %v7728 = vpop.f32.mrf.mxu0
        %v7729 = vadd.f32 0.0, %v7728
        %v7730 = vpop.f32.mrf.mxu0
        %v7731 = vpop.f32.mrf.mxu0
        %v7732 = vadd.f32 0.0, %v7731
        %v7733 = vpop.f32.mrf.mxu0
        %7734 = vmatprep.mubr.bf16.mxu0 0
        %7735 = vmatmul.mubr.bf16.gmra.mxu0 %v7644
        %v7736 = vpop.f32.mrf.mxu0
        %v7737 = vadd.f32 0.0, %v7736
        %v7738 = vpop.f32.mrf.mxu0
        %v7739 = vpop.f32.mrf.mxu0
        %v7740 = vadd.f32 0.0, %v7739
        %v7741 = vpop.f32.mrf.mxu0
        %7742 = vdwg.mxu0
        %v7747 = vunpack.c.l.b16 %v7488
        %v7748 = vunpack.c.l.b16 %v7489
        %v7749 = vunpack.c.l.b16 %v7490
        %v7750 = vunpack.c.l.b16 %v7491
        %v7751 = vpack.c.b16 %v7748, %v7747
        %v7752 = vpack.c.b16 %v7750, %v7749
        %v7755 = vsel %vm915, %v7532, 0
        %v7757 = vsel %vm915, %v7533, 0
        %v7759 = vsel %vm915, %v7534, 0
        %v7761 = vsel %vm915, %v7535, 0
        %v7763 = vsel %vm915, %v7536, 0
        %v7765 = vsel %vm915, %v7537, 0
        %v7767 = vsel %vm915, %v7538, 0
        %v7769 = vsel %vm915, %v7539, 0
        %7771 = vmatprep.subr.bf16.mxu0 0
        %7772 = vmatpush1.bf16.msra.mxu0 0
        %7773 = vmatprep.subr.bf16.mxu0 0
        %7774 = vmatpush1.bf16.msra.mxu0 0
        %7775 = vmatprep.subr.bf16.mxu0 0
        %7776 = vmatpush1.bf16.msra.mxu0 0
        %7777 = vmatprep.subr.bf16.mxu0 0
        %7778 = vmatpush1.bf16.msra.mxu0 0
        %7779 = vmatprep.subr.bf16.mxu0 0
        %7780 = vmatpush1.bf16.msra.mxu0 0
        %7781 = vmatprep.subr.bf16.mxu0 0
        %7782 = vmatpush1.bf16.msra.mxu0 0
        %7783 = vmatprep.subr.bf16.mxu0 0
        %7784 = vmatpush1.bf16.msra.mxu0 %v7752
        %7785 = vmatprep.subr.bf16.mxu0 0
        %7786 = vmatpush1.bf16.msra.mxu0 %v7751
        %7787 = vmatprep.subr.bf16.mxu0 0
        %7788 = vmatpush2.bf16.msra.mxu0 0
        %7789 = vmatprep.subr.bf16.mxu0 0
        %7790 = vmatpush2.bf16.msra.mxu0 0
        %7791 = vmatprep.subr.bf16.mxu0 0
        %7792 = vmatpush2.bf16.msra.mxu0 0
        %7793 = vmatprep.subr.bf16.mxu0 0
        %7794 = vmatpush2.bf16.msra.mxu0 0
        %7795 = vmatprep.subr.bf16.mxu0 0
        %7796 = vmatpush2.bf16.msra.mxu0 0
        %7797 = vmatprep.subr.bf16.mxu0 0
        %7798 = vmatpush2.bf16.msra.mxu0 0
        %7799 = vmatprep.subr.bf16.mxu0 0
        %7800 = vmatpush2.bf16.msra.mxu0 0
        %7801 = vmatprep.subr.bf16.mxu0 0
        %7802 = vmatpush2.bf16.msra.mxu0 0
        %7803 = vmatprep.mubr.bf16.mxu0 0
        %7804 = vmatmul.mubr.bf16.gmra.mxu0 %v7755
        %v7805 = vpop.f32.mrf.mxu0
        %v7806 = vadd.f32 %v7681, %v7805
        %v7807 = vpop.f32.mrf.mxu0
        %v7808 = vpop.f32.mrf.mxu0
        %v7809 = vadd.f32 %v7684, %v7808
        %v7810 = vpop.f32.mrf.mxu0
        %7811 = vmatprep.mubr.bf16.mxu0 0
        %7812 = vmatmul.mubr.bf16.gmra.mxu0 %v7757
        %v7813 = vpop.f32.mrf.mxu0
        %v7814 = vadd.f32 %v7689, %v7813
        %v7815 = vpop.f32.mrf.mxu0
        %v7816 = vpop.f32.mrf.mxu0
        %v7817 = vadd.f32 %v7692, %v7816
        %v7818 = vpop.f32.mrf.mxu0
        %7819 = vmatprep.mubr.bf16.mxu0 0
        %7820 = vmatmul.mubr.bf16.gmra.mxu0 %v7759
        %v7821 = vpop.f32.mrf.mxu0
        %v7822 = vadd.f32 %v7697, %v7821
        %v7823 = vpop.f32.mrf.mxu0
        %v7824 = vpop.f32.mrf.mxu0
        %v7825 = vadd.f32 %v7700, %v7824
        %v7826 = vpop.f32.mrf.mxu0
        %7827 = vmatprep.mubr.bf16.mxu0 0
        %7828 = vmatmul.mubr.bf16.gmra.mxu0 %v7761
        %v7829 = vpop.f32.mrf.mxu0
        %v7830 = vadd.f32 %v7705, %v7829
        %v7831 = vpop.f32.mrf.mxu0
        %v7832 = vpop.f32.mrf.mxu0
        %v7833 = vadd.f32 %v7708, %v7832
        %v7834 = vpop.f32.mrf.mxu0
        %7835 = vmatprep.mubr.bf16.mxu0 0
        %7836 = vmatmul.mubr.bf16.gmra.mxu0 %v7763
        %v7837 = vpop.f32.mrf.mxu0
        %v7838 = vadd.f32 %v7713, %v7837
        %v7839 = vpop.f32.mrf.mxu0
        %v7840 = vpop.f32.mrf.mxu0
        %v7841 = vadd.f32 %v7716, %v7840
        %v7842 = vpop.f32.mrf.mxu0
        %7843 = vmatprep.mubr.bf16.mxu0 0
        %7844 = vmatmul.mubr.bf16.gmra.mxu0 %v7765
        %v7845 = vpop.f32.mrf.mxu0
        %v7846 = vadd.f32 %v7721, %v7845
        %v7847 = vpop.f32.mrf.mxu0
        %v7848 = vpop.f32.mrf.mxu0
        %v7849 = vadd.f32 %v7724, %v7848
        %v7850 = vpop.f32.mrf.mxu0
        %7851 = vmatprep.mubr.bf16.mxu0 0
        %7852 = vmatmul.mubr.bf16.gmra.mxu0 %v7767
        %v7853 = vpop.f32.mrf.mxu0
        %v7854 = vadd.f32 %v7729, %v7853
        %v7855 = vpop.f32.mrf.mxu0
        %v7856 = vpop.f32.mrf.mxu0
        %v7857 = vadd.f32 %v7732, %v7856
        %v7858 = vpop.f32.mrf.mxu0
        %7859 = vmatprep.mubr.bf16.mxu0 0
        %7860 = vmatmul.mubr.bf16.gmra.mxu0 %v7769
        %v7861 = vpop.f32.mrf.mxu0
        %v7862 = vadd.f32 %v7737, %v7861
        %v7863 = vpop.f32.mrf.mxu0
        %v7864 = vpop.f32.mrf.mxu0
        %v7865 = vadd.f32 %v7740, %v7864
        %v7866 = vpop.f32.mrf.mxu0
        %7867 = vdwg.mxu0
        %v7868 = vld [vmem:[#allocation3] sm:$0xe]
        %s7869 = scalar_lea.vmem [#allocation8], 32
        %v7870 = vld [vmem:[%s7869] sm:$0xf]
        %v7871 = vld [vmem:[%s7869 + $0x4] sm:$0xf]
        %v7872 = vld [vmem:[%s7869 + $0x8] sm:$0xf]
        %v7873 = vld [vmem:[%s7869 + $0xc] sm:$0xf]
        %v7875 = vunpack.c.l.b16 %v7868
        %v7876 = vpack.c.b16 %v7516, %v7875
        %vm7877 = vcmask 1046528
        %v7878 = vrot.slane %v7876, 1
        %v7879 = vrot.slane %v7533, 1
        %v7880 = vsel %vm7877, %v7878, %v7879
        %v7881 = vrot.slane %v7534, 1
        %v7882 = vsel %vm7877, %v7879, %v7881
        %v7883 = vrot.slane %v7535, 1
        %v7884 = vsel %vm7877, %v7881, %v7883
        %v7885 = vrot.slane %v7536, 1
        %v7886 = vsel %vm7877, %v7883, %v7885
        %v7887 = vrot.slane %v7537, 1
        %v7888 = vsel %vm7877, %v7885, %v7887
        %v7889 = vrot.slane %v7538, 1
        %v7890 = vsel %vm7877, %v7887, %v7889
        %v7891 = vrot.slane %v7539, 1
        %v7892 = vsel %vm7877, %v7889, %v7891
        %v7893 = vrot.slane %v7540, 1
        %v7894 = vsel %vm7877, %v7891, %v7893
        %v7899 = vunpack.c.l.b16 %v7870
        %v7900 = vunpack.c.l.b16 %v7871
        %v7901 = vunpack.c.l.b16 %v7872
        %v7902 = vunpack.c.l.b16 %v7873
        %v7903 = vpack.c.b16 %v7900, %v7899
        %v7904 = vpack.c.b16 %v7902, %v7901
        %v7908 = vsel %vm915, %v7880, 0
        %v7911 = vsel %vm915, %v7882, 0
        %v7914 = vsel %vm915, %v7884, 0
        %v7917 = vsel %vm915, %v7886, 0
        %v7920 = vsel %vm915, %v7888, 0
        %v7923 = vsel %vm915, %v7890, 0
        %v7926 = vsel %vm915, %v7892, 0
        %v7929 = vsel %vm915, %v7894, 0
        %7931 = vmatprep.subr.bf16.mxu0 0
        %7932 = vmatpush1.bf16.msra.mxu0 0
        %7933 = vmatprep.subr.bf16.mxu0 0
        %7934 = vmatpush1.bf16.msra.mxu0 0
        %7935 = vmatprep.subr.bf16.mxu0 0
        %7936 = vmatpush1.bf16.msra.mxu0 0
        %7937 = vmatprep.subr.bf16.mxu0 0
        %7938 = vmatpush1.bf16.msra.mxu0 0
        %7939 = vmatprep.subr.bf16.mxu0 0
        %7940 = vmatpush1.bf16.msra.mxu0 0
        %7941 = vmatprep.subr.bf16.mxu0 0
        %7942 = vmatpush1.bf16.msra.mxu0 0
        %7943 = vmatprep.subr.bf16.mxu0 0
        %7944 = vmatpush1.bf16.msra.mxu0 %v7904
        %7945 = vmatprep.subr.bf16.mxu0 0
        %7946 = vmatpush1.bf16.msra.mxu0 %v7903
        %7947 = vmatprep.subr.bf16.mxu0 0
        %7948 = vmatpush2.bf16.msra.mxu0 0
        %7949 = vmatprep.subr.bf16.mxu0 0
        %7950 = vmatpush2.bf16.msra.mxu0 0
        %7951 = vmatprep.subr.bf16.mxu0 0
        %7952 = vmatpush2.bf16.msra.mxu0 0
        %7953 = vmatprep.subr.bf16.mxu0 0
        %7954 = vmatpush2.bf16.msra.mxu0 0
        %7955 = vmatprep.subr.bf16.mxu0 0
        %7956 = vmatpush2.bf16.msra.mxu0 0
        %7957 = vmatprep.subr.bf16.mxu0 0
        %7958 = vmatpush2.bf16.msra.mxu0 0
        %7959 = vmatprep.subr.bf16.mxu0 0
        %7960 = vmatpush2.bf16.msra.mxu0 0
        %7961 = vmatprep.subr.bf16.mxu0 0
        %7962 = vmatpush2.bf16.msra.mxu0 0
        %7963 = vmatprep.mubr.bf16.mxu0 0
        %7964 = vmatmul.mubr.bf16.gmra.mxu0 %v7908
        %v7965 = vpop.f32.mrf.mxu0
        %v7966 = vadd.f32 0.0, %v7965
        %v7967 = vpop.f32.mrf.mxu0
        %v7968 = vpop.f32.mrf.mxu0
        %v7969 = vadd.f32 0.0, %v7968
        %v7970 = vpop.f32.mrf.mxu0
        %7971 = vmatprep.mubr.bf16.mxu0 0
        %7972 = vmatmul.mubr.bf16.gmra.mxu0 %v7911
        %v7973 = vpop.f32.mrf.mxu0
        %v7974 = vadd.f32 0.0, %v7973
        %v7975 = vpop.f32.mrf.mxu0
        %v7976 = vpop.f32.mrf.mxu0
        %v7977 = vadd.f32 0.0, %v7976
        %v7978 = vpop.f32.mrf.mxu0
        %7979 = vmatprep.mubr.bf16.mxu0 0
        %7980 = vmatmul.mubr.bf16.gmra.mxu0 %v7914
        %v7981 = vpop.f32.mrf.mxu0
        %v7982 = vadd.f32 0.0, %v7981
        %v7983 = vpop.f32.mrf.mxu0
        %v7984 = vpop.f32.mrf.mxu0
        %v7985 = vadd.f32 0.0, %v7984
        %v7986 = vpop.f32.mrf.mxu0
        %7987 = vmatprep.mubr.bf16.mxu0 0
        %7988 = vmatmul.mubr.bf16.gmra.mxu0 %v7917
        %v7989 = vpop.f32.mrf.mxu0
        %v7990 = vadd.f32 0.0, %v7989
        %v7991 = vpop.f32.mrf.mxu0
        %v7992 = vpop.f32.mrf.mxu0
        %v7993 = vadd.f32 0.0, %v7992
        %v7994 = vpop.f32.mrf.mxu0
        %7995 = vmatprep.mubr.bf16.mxu0 0
        %7996 = vmatmul.mubr.bf16.gmra.mxu0 %v7920
        %v7997 = vpop.f32.mrf.mxu0
        %v7998 = vadd.f32 0.0, %v7997
        %v7999 = vpop.f32.mrf.mxu0
        %v8000 = vpop.f32.mrf.mxu0
        %v8001 = vadd.f32 0.0, %v8000
        %v8002 = vpop.f32.mrf.mxu0
        %8003 = vmatprep.mubr.bf16.mxu0 0
        %8004 = vmatmul.mubr.bf16.gmra.mxu0 %v7923
        %v8005 = vpop.f32.mrf.mxu0
        %v8006 = vadd.f32 0.0, %v8005
        %v8007 = vpop.f32.mrf.mxu0
        %v8008 = vpop.f32.mrf.mxu0
        %v8009 = vadd.f32 0.0, %v8008
        %v8010 = vpop.f32.mrf.mxu0
        %8011 = vmatprep.mubr.bf16.mxu0 0
        %8012 = vmatmul.mubr.bf16.gmra.mxu0 %v7926
        %v8013 = vpop.f32.mrf.mxu0
        %v8014 = vadd.f32 0.0, %v8013
        %v8015 = vpop.f32.mrf.mxu0
        %v8016 = vpop.f32.mrf.mxu0
        %v8017 = vadd.f32 0.0, %v8016
        %v8018 = vpop.f32.mrf.mxu0
        %8019 = vmatprep.mubr.bf16.mxu0 0
        %8020 = vmatmul.mubr.bf16.gmra.mxu0 %v7929
        %v8021 = vpop.f32.mrf.mxu0
        %v8022 = vadd.f32 0.0, %v8021
        %v8023 = vpop.f32.mrf.mxu0
        %v8024 = vpop.f32.mrf.mxu0
        %v8025 = vadd.f32 0.0, %v8024
        %v8026 = vpop.f32.mrf.mxu0
        %8027 = vdwg.mxu0
        %v8028 = vadd.f32 %v7806, %v7966
        %v8029 = vadd.f32 %v7809, %v7969
        %v8030 = vadd.f32 %v7814, %v7974
        %v8031 = vadd.f32 %v7817, %v7977
        %v8032 = vadd.f32 %v7822, %v7982
        %v8033 = vadd.f32 %v7825, %v7985
        %v8034 = vadd.f32 %v7830, %v7990
        %v8035 = vadd.f32 %v7833, %v7993
        %v8036 = vadd.f32 %v7838, %v7998
        %v8037 = vadd.f32 %v7841, %v8001
        %v8038 = vadd.f32 %v7846, %v8006
        %v8039 = vadd.f32 %v7849, %v8009
        %v8040 = vadd.f32 %v7854, %v8014
        %v8041 = vadd.f32 %v7857, %v8017
        %v8042 = vadd.f32 %v7862, %v8022
        %v8043 = vadd.f32 %v7865, %v8025
        %v8044 = vld [vmem:[#allocation3 + $0x8] sm:$0xf]
        %v8045 = vld [vmem:[#allocation3 + $0xc] sm:$0xf]
        %v8046 = vld [vmem:[#allocation3 + $0x10] sm:$0xf]
        %v8047 = vld [vmem:[#allocation3 + $0x14] sm:$0xf]
        %v8048 = vld [vmem:[#allocation3 + $0x18] sm:$0xf]
        %v8049 = vld [vmem:[#allocation3 + $0x1c] sm:$0xf]
        %v8050 = vld [vmem:[#allocation3 + $0x20] sm:$0xf]
        %v8051 = vld [vmem:[#allocation3 + $0x24] sm:$0xf]
        %v8052 = vld [vmem:[#allocation3 + $0x28] sm:$0xf]
        %v8053 = vld [vmem:[#allocation3 + $0x2c] sm:$0xf]
        %v8054 = vld [vmem:[#allocation3 + $0x30] sm:$0xf]
        %v8055 = vld [vmem:[#allocation3 + $0x34] sm:$0xf]
        %v8056 = vld [vmem:[#allocation3 + $0x38] sm:$0xf]
        %v8057 = vld [vmem:[#allocation3 + $0x3c] sm:$0xf]
        %v8058 = vld [vmem:[#allocation3 + $0x40] sm:$0xf]
        %v8059 = vld [vmem:[#allocation3 + $0x44] sm:$0xf]
        %s8060 = scalar_lea.vmem [#allocation8], 48
        %v8061 = vld [vmem:[%s8060] sm:$0xf]
        %v8062 = vld [vmem:[%s8060 + $0x4] sm:$0xf]
        %v8063 = vld [vmem:[%s8060 + $0x8] sm:$0xf]
        %v8064 = vld [vmem:[%s8060 + $0xc] sm:$0xf]
        %v8081 = vunpack.c.l.b16 %v8044
        %v8082 = vunpack.c.l.b16 %v8045
        %v8083 = vunpack.c.l.b16 %v8046
        %v8084 = vunpack.c.l.b16 %v8047
        %v8085 = vunpack.c.l.b16 %v8048
        %v8086 = vunpack.c.l.b16 %v8049
        %v8087 = vunpack.c.l.b16 %v8050
        %v8088 = vunpack.c.l.b16 %v8051
        %v8089 = vunpack.c.l.b16 %v8052
        %v8090 = vunpack.c.l.b16 %v8053
        %v8091 = vunpack.c.l.b16 %v8054
        %v8092 = vunpack.c.l.b16 %v8055
        %v8093 = vunpack.c.l.b16 %v8056
        %v8094 = vunpack.c.l.b16 %v8057
        %v8095 = vunpack.c.l.b16 %v8058
        %v8096 = vunpack.c.l.b16 %v8059
        %v8097 = vpack.c.b16 %v8082, %v8081
        %v8098 = vpack.c.b16 %v8084, %v8083
        %v8099 = vpack.c.b16 %v8086, %v8085
        %v8100 = vpack.c.b16 %v8088, %v8087
        %v8101 = vpack.c.b16 %v8090, %v8089
        %v8102 = vpack.c.b16 %v8092, %v8091
        %v8103 = vpack.c.b16 %v8094, %v8093
        %v8104 = vpack.c.b16 %v8096, %v8095
        %v8109 = vunpack.c.l.b16 %v8061
        %v8110 = vunpack.c.l.b16 %v8062
        %v8111 = vunpack.c.l.b16 %v8063
        %v8112 = vunpack.c.l.b16 %v8064
        %v8113 = vpack.c.b16 %v8110, %v8109
        %v8114 = vpack.c.b16 %v8112, %v8111
        %v8118 = vsel %vm915, %v8097, 0
        %v8121 = vsel %vm915, %v8098, 0
        %v8124 = vsel %vm915, %v8099, 0
        %v8127 = vsel %vm915, %v8100, 0
        %v8130 = vsel %vm915, %v8101, 0
        %v8133 = vsel %vm915, %v8102, 0
        %v8136 = vsel %vm915, %v8103, 0
        %v8139 = vsel %vm915, %v8104, 0
        %8141 = vmatprep.subr.bf16.mxu0 0
        %8142 = vmatpush1.bf16.msra.mxu0 0
        %8143 = vmatprep.subr.bf16.mxu0 0
        %8144 = vmatpush1.bf16.msra.mxu0 0
        %8145 = vmatprep.subr.bf16.mxu0 0
        %8146 = vmatpush1.bf16.msra.mxu0 0
        %8147 = vmatprep.subr.bf16.mxu0 0
        %8148 = vmatpush1.bf16.msra.mxu0 0
        %8149 = vmatprep.subr.bf16.mxu0 0
        %8150 = vmatpush1.bf16.msra.mxu0 0
        %8151 = vmatprep.subr.bf16.mxu0 0
        %8152 = vmatpush1.bf16.msra.mxu0 0
        %8153 = vmatprep.subr.bf16.mxu0 0
        %8154 = vmatpush1.bf16.msra.mxu0 %v8114
        %8155 = vmatprep.subr.bf16.mxu0 0
        %8156 = vmatpush1.bf16.msra.mxu0 %v8113
        %8157 = vmatprep.subr.bf16.mxu0 0
        %8158 = vmatpush2.bf16.msra.mxu0 0
        %8159 = vmatprep.subr.bf16.mxu0 0
        %8160 = vmatpush2.bf16.msra.mxu0 0
        %8161 = vmatprep.subr.bf16.mxu0 0
        %8162 = vmatpush2.bf16.msra.mxu0 0
        %8163 = vmatprep.subr.bf16.mxu0 0
        %8164 = vmatpush2.bf16.msra.mxu0 0
        %8165 = vmatprep.subr.bf16.mxu0 0
        %8166 = vmatpush2.bf16.msra.mxu0 0
        %8167 = vmatprep.subr.bf16.mxu0 0
        %8168 = vmatpush2.bf16.msra.mxu0 0
        %8169 = vmatprep.subr.bf16.mxu0 0
        %8170 = vmatpush2.bf16.msra.mxu0 0
        %8171 = vmatprep.subr.bf16.mxu0 0
        %8172 = vmatpush2.bf16.msra.mxu0 0
        %8173 = vmatprep.mubr.bf16.mxu0 0
        %8174 = vmatmul.mubr.bf16.gmra.mxu0 %v8118
        %v8175 = vpop.f32.mrf.mxu0
        %v8176 = vadd.f32 0.0, %v8175
        %v8177 = vpop.f32.mrf.mxu0
        %v8178 = vpop.f32.mrf.mxu0
        %v8179 = vadd.f32 0.0, %v8178
        %v8180 = vpop.f32.mrf.mxu0
        %8181 = vmatprep.mubr.bf16.mxu0 0
        %8182 = vmatmul.mubr.bf16.gmra.mxu0 %v8121
        %v8183 = vpop.f32.mrf.mxu0
        %v8184 = vadd.f32 0.0, %v8183
        %v8185 = vpop.f32.mrf.mxu0
        %v8186 = vpop.f32.mrf.mxu0
        %v8187 = vadd.f32 0.0, %v8186
        %v8188 = vpop.f32.mrf.mxu0
        %8189 = vmatprep.mubr.bf16.mxu0 0
        %8190 = vmatmul.mubr.bf16.gmra.mxu0 %v8124
        %v8191 = vpop.f32.mrf.mxu0
        %v8192 = vadd.f32 0.0, %v8191
        %v8193 = vpop.f32.mrf.mxu0
        %v8194 = vpop.f32.mrf.mxu0
        %v8195 = vadd.f32 0.0, %v8194
        %v8196 = vpop.f32.mrf.mxu0
        %8197 = vmatprep.mubr.bf16.mxu0 0
        %8198 = vmatmul.mubr.bf16.gmra.mxu0 %v8127
        %v8199 = vpop.f32.mrf.mxu0
        %v8200 = vadd.f32 0.0, %v8199
        %v8201 = vpop.f32.mrf.mxu0
        %v8202 = vpop.f32.mrf.mxu0
        %v8203 = vadd.f32 0.0, %v8202
        %v8204 = vpop.f32.mrf.mxu0
        %8205 = vmatprep.mubr.bf16.mxu0 0
        %8206 = vmatmul.mubr.bf16.gmra.mxu0 %v8130
        %v8207 = vpop.f32.mrf.mxu0
        %v8208 = vadd.f32 0.0, %v8207
        %v8209 = vpop.f32.mrf.mxu0
        %v8210 = vpop.f32.mrf.mxu0
        %v8211 = vadd.f32 0.0, %v8210
        %v8212 = vpop.f32.mrf.mxu0
        %8213 = vmatprep.mubr.bf16.mxu0 0
        %8214 = vmatmul.mubr.bf16.gmra.mxu0 %v8133
        %v8215 = vpop.f32.mrf.mxu0
        %v8216 = vadd.f32 0.0, %v8215
        %v8217 = vpop.f32.mrf.mxu0
        %v8218 = vpop.f32.mrf.mxu0
        %v8219 = vadd.f32 0.0, %v8218
        %v8220 = vpop.f32.mrf.mxu0
        %8221 = vmatprep.mubr.bf16.mxu0 0
        %8222 = vmatmul.mubr.bf16.gmra.mxu0 %v8136
        %v8223 = vpop.f32.mrf.mxu0
        %v8224 = vadd.f32 0.0, %v8223
        %v8225 = vpop.f32.mrf.mxu0
        %v8226 = vpop.f32.mrf.mxu0
        %v8227 = vadd.f32 0.0, %v8226
        %v8228 = vpop.f32.mrf.mxu0
        %8229 = vmatprep.mubr.bf16.mxu0 0
        %8230 = vmatmul.mubr.bf16.gmra.mxu0 %v8139
        %v8231 = vpop.f32.mrf.mxu0
        %v8232 = vadd.f32 0.0, %v8231
        %v8233 = vpop.f32.mrf.mxu0
        %v8234 = vpop.f32.mrf.mxu0
        %v8235 = vadd.f32 0.0, %v8234
        %v8236 = vpop.f32.mrf.mxu0
        %8237 = vdwg.mxu0
        %v8238 = vadd.f32 %v8028, %v8176
        %v8239 = vadd.f32 %v8029, %v8179
        %v8240 = vadd.f32 %v8030, %v8184
        %v8241 = vadd.f32 %v8031, %v8187
        %v8242 = vadd.f32 %v8032, %v8192
        %v8243 = vadd.f32 %v8033, %v8195
        %v8244 = vadd.f32 %v8034, %v8200
        %v8245 = vadd.f32 %v8035, %v8203
        %v8246 = vadd.f32 %v8036, %v8208
        %v8247 = vadd.f32 %v8037, %v8211
        %v8248 = vadd.f32 %v8038, %v8216
        %v8249 = vadd.f32 %v8039, %v8219
        %v8250 = vadd.f32 %v8040, %v8224
        %v8251 = vadd.f32 %v8041, %v8227
        %v8252 = vadd.f32 %v8042, %v8232
        %v8253 = vadd.f32 %v8043, %v8235
        %v8254 = vld [vmem:[#allocation3 + $0x8] sm:$0xf]
        %v8255 = vld [vmem:[#allocation3 + $0xc] sm:$0xf]
        %v8256 = vld [vmem:[#allocation3 + $0x10] sm:$0xf]
        %v8257 = vld [vmem:[#allocation3 + $0x14] sm:$0xf]
        %v8258 = vld [vmem:[#allocation3 + $0x18] sm:$0xf]
        %v8259 = vld [vmem:[#allocation3 + $0x1c] sm:$0xf]
        %v8260 = vld [vmem:[#allocation3 + $0x20] sm:$0xf]
        %v8261 = vld [vmem:[#allocation3 + $0x24] sm:$0xf]
        %v8262 = vld [vmem:[#allocation3 + $0x28] sm:$0xf]
        %v8263 = vld [vmem:[#allocation3 + $0x2c] sm:$0xf]
        %v8264 = vld [vmem:[#allocation3 + $0x30] sm:$0xf]
        %v8265 = vld [vmem:[#allocation3 + $0x34] sm:$0xf]
        %v8266 = vld [vmem:[#allocation3 + $0x38] sm:$0xf]
        %v8267 = vld [vmem:[#allocation3 + $0x3c] sm:$0xf]
        %v8268 = vld [vmem:[#allocation3 + $0x40] sm:$0xf]
        %v8269 = vld [vmem:[#allocation3 + $0x44] sm:$0xf]
        %v8270 = vld [vmem:[#allocation3 + $0x48] sm:$0x1]
        %s8271 = scalar_lea.vmem [#allocation8], 64
        %v8272 = vld [vmem:[%s8271] sm:$0xf]
        %v8273 = vld [vmem:[%s8271 + $0x4] sm:$0xf]
        %v8274 = vld [vmem:[%s8271 + $0x8] sm:$0xf]
        %v8275 = vld [vmem:[%s8271 + $0xc] sm:$0xf]
        %v8293 = vunpack.c.l.b16 %v8254
        %v8294 = vunpack.c.l.b16 %v8255
        %v8295 = vunpack.c.l.b16 %v8256
        %v8296 = vunpack.c.l.b16 %v8257
        %v8297 = vunpack.c.l.b16 %v8258
        %v8298 = vunpack.c.l.b16 %v8259
        %v8299 = vunpack.c.l.b16 %v8260
        %v8300 = vunpack.c.l.b16 %v8261
        %v8301 = vunpack.c.l.b16 %v8262
        %v8302 = vunpack.c.l.b16 %v8263
        %v8303 = vunpack.c.l.b16 %v8264
        %v8304 = vunpack.c.l.b16 %v8265
        %v8305 = vunpack.c.l.b16 %v8266
        %v8306 = vunpack.c.l.b16 %v8267
        %v8307 = vunpack.c.l.b16 %v8268
        %v8308 = vunpack.c.l.b16 %v8269
        %v8309 = vunpack.c.l.b16 %v8270
        %v8310 = vpack.c.b16 %v8294, %v8293
        %v8311 = vpack.c.b16 %v8296, %v8295
        %v8312 = vpack.c.b16 %v8298, %v8297
        %v8313 = vpack.c.b16 %v8300, %v8299
        %v8314 = vpack.c.b16 %v8302, %v8301
        %v8315 = vpack.c.b16 %v8304, %v8303
        %v8316 = vpack.c.b16 %v8306, %v8305
        %v8317 = vpack.c.b16 %v8308, %v8307
        %v8318 = vpack.c.b16 %v8309, %v8309
        %v8320 = vshrl.u32 %v8310, 16
        %v8322 = vshll.u32 %v8310, 16
        %v8324 = vrot.slane %v8322, 1
        %v8325 = vor.u32 %v8320, %v8324
        %v8327 = vshll.u32 %v8311, 16
        %v8329 = vrot.slane %v8327, 1
        %v8330 = vsel %vm7541, %v8325, %v8329
        %v8331 = vshrl.u32 %v8311, 16
        %v8333 = vor.u32 %v8331, %v8329
        %v8335 = vshll.u32 %v8312, 16
        %v8337 = vrot.slane %v8335, 1
        %v8338 = vsel %vm7541, %v8333, %v8337
        %v8339 = vshrl.u32 %v8312, 16
        %v8341 = vor.u32 %v8339, %v8337
        %v8343 = vshll.u32 %v8313, 16
        %v8345 = vrot.slane %v8343, 1
        %v8346 = vsel %vm7541, %v8341, %v8345
        %v8347 = vshrl.u32 %v8313, 16
        %v8349 = vor.u32 %v8347, %v8345
        %v8351 = vshll.u32 %v8314, 16
        %v8353 = vrot.slane %v8351, 1
        %v8354 = vsel %vm7541, %v8349, %v8353
        %v8355 = vshrl.u32 %v8314, 16
        %v8357 = vor.u32 %v8355, %v8353
        %v8359 = vshll.u32 %v8315, 16
        %v8361 = vrot.slane %v8359, 1
        %v8362 = vsel %vm7541, %v8357, %v8361
        %v8363 = vshrl.u32 %v8315, 16
        %v8365 = vor.u32 %v8363, %v8361
        %v8367 = vshll.u32 %v8316, 16
        %v8369 = vrot.slane %v8367, 1
        %v8370 = vsel %vm7541, %v8365, %v8369
        %v8371 = vshrl.u32 %v8316, 16
        %v8373 = vor.u32 %v8371, %v8369
        %v8375 = vshll.u32 %v8317, 16
        %v8377 = vrot.slane %v8375, 1
        %v8378 = vsel %vm7541, %v8373, %v8377
        %v8379 = vshrl.u32 %v8317, 16
        %v8381 = vor.u32 %v8379, %v8377
        %v8383 = vshll.u32 %v8318, 16
        %v8385 = vrot.slane %v8383, 1
        %v8386 = vsel %vm7541, %v8381, %v8385
        %v8391 = vunpack.c.l.b16 %v8272
        %v8392 = vunpack.c.l.b16 %v8273
        %v8393 = vunpack.c.l.b16 %v8274
        %v8394 = vunpack.c.l.b16 %v8275
        %v8395 = vpack.c.b16 %v8392, %v8391
        %v8396 = vpack.c.b16 %v8394, %v8393
        %v8400 = vsel %vm915, %v8330, 0
        %v8403 = vsel %vm915, %v8338, 0
        %v8406 = vsel %vm915, %v8346, 0
        %v8409 = vsel %vm915, %v8354, 0
        %v8412 = vsel %vm915, %v8362, 0
        %v8415 = vsel %vm915, %v8370, 0
        %v8418 = vsel %vm915, %v8378, 0
        %v8421 = vsel %vm915, %v8386, 0
        %8423 = vmatprep.subr.bf16.mxu0 0
        %8424 = vmatpush1.bf16.msra.mxu0 0
        %8425 = vmatprep.subr.bf16.mxu0 0
        %8426 = vmatpush1.bf16.msra.mxu0 0
        %8427 = vmatprep.subr.bf16.mxu0 0
        %8428 = vmatpush1.bf16.msra.mxu0 0
        %8429 = vmatprep.subr.bf16.mxu0 0
        %8430 = vmatpush1.bf16.msra.mxu0 0
        %8431 = vmatprep.subr.bf16.mxu0 0
        %8432 = vmatpush1.bf16.msra.mxu0 0
        %8433 = vmatprep.subr.bf16.mxu0 0
        %8434 = vmatpush1.bf16.msra.mxu0 0
        %8435 = vmatprep.subr.bf16.mxu0 0
        %8436 = vmatpush1.bf16.msra.mxu0 %v8396
        %8437 = vmatprep.subr.bf16.mxu0 0
        %8438 = vmatpush1.bf16.msra.mxu0 %v8395
        %8439 = vmatprep.subr.bf16.mxu0 0
        %8440 = vmatpush2.bf16.msra.mxu0 0
        %8441 = vmatprep.subr.bf16.mxu0 0
        %8442 = vmatpush2.bf16.msra.mxu0 0
        %8443 = vmatprep.subr.bf16.mxu0 0
        %8444 = vmatpush2.bf16.msra.mxu0 0
        %8445 = vmatprep.subr.bf16.mxu0 0
        %8446 = vmatpush2.bf16.msra.mxu0 0
        %8447 = vmatprep.subr.bf16.mxu0 0
        %8448 = vmatpush2.bf16.msra.mxu0 0
        %8449 = vmatprep.subr.bf16.mxu0 0
        %8450 = vmatpush2.bf16.msra.mxu0 0
        %8451 = vmatprep.subr.bf16.mxu0 0
        %8452 = vmatpush2.bf16.msra.mxu0 0
        %8453 = vmatprep.subr.bf16.mxu0 0
        %8454 = vmatpush2.bf16.msra.mxu0 0
        %8455 = vmatprep.mubr.bf16.mxu0 0
        %8456 = vmatmul.mubr.bf16.gmra.mxu0 %v8400
        %v8457 = vpop.f32.mrf.mxu0
        %v8458 = vadd.f32 0.0, %v8457
        %v8459 = vpop.f32.mrf.mxu0
        %v8460 = vpop.f32.mrf.mxu0
        %v8461 = vadd.f32 0.0, %v8460
        %v8462 = vpop.f32.mrf.mxu0
        %8463 = vmatprep.mubr.bf16.mxu0 0
        %8464 = vmatmul.mubr.bf16.gmra.mxu0 %v8403
        %v8465 = vpop.f32.mrf.mxu0
        %v8466 = vadd.f32 0.0, %v8465
        %v8467 = vpop.f32.mrf.mxu0
        %v8468 = vpop.f32.mrf.mxu0
        %v8469 = vadd.f32 0.0, %v8468
        %v8470 = vpop.f32.mrf.mxu0
        %8471 = vmatprep.mubr.bf16.mxu0 0
        %8472 = vmatmul.mubr.bf16.gmra.mxu0 %v8406
        %v8473 = vpop.f32.mrf.mxu0
        %v8474 = vadd.f32 0.0, %v8473
        %v8475 = vpop.f32.mrf.mxu0
        %v8476 = vpop.f32.mrf.mxu0
        %v8477 = vadd.f32 0.0, %v8476
        %v8478 = vpop.f32.mrf.mxu0
        %8479 = vmatprep.mubr.bf16.mxu0 0
        %8480 = vmatmul.mubr.bf16.gmra.mxu0 %v8409
        %v8481 = vpop.f32.mrf.mxu0
        %v8482 = vadd.f32 0.0, %v8481
        %v8483 = vpop.f32.mrf.mxu0
        %v8484 = vpop.f32.mrf.mxu0
        %v8485 = vadd.f32 0.0, %v8484
        %v8486 = vpop.f32.mrf.mxu0
        %8487 = vmatprep.mubr.bf16.mxu0 0
        %8488 = vmatmul.mubr.bf16.gmra.mxu0 %v8412
        %v8489 = vpop.f32.mrf.mxu0
        %v8490 = vadd.f32 0.0, %v8489
        %v8491 = vpop.f32.mrf.mxu0
        %v8492 = vpop.f32.mrf.mxu0
        %v8493 = vadd.f32 0.0, %v8492
        %v8494 = vpop.f32.mrf.mxu0
        %8495 = vmatprep.mubr.bf16.mxu0 0
        %8496 = vmatmul.mubr.bf16.gmra.mxu0 %v8415
        %v8497 = vpop.f32.mrf.mxu0
        %v8498 = vadd.f32 0.0, %v8497
        %v8499 = vpop.f32.mrf.mxu0
        %v8500 = vpop.f32.mrf.mxu0
        %v8501 = vadd.f32 0.0, %v8500
        %v8502 = vpop.f32.mrf.mxu0
        %8503 = vmatprep.mubr.bf16.mxu0 0
        %8504 = vmatmul.mubr.bf16.gmra.mxu0 %v8418
        %v8505 = vpop.f32.mrf.mxu0
        %v8506 = vadd.f32 0.0, %v8505
        %v8507 = vpop.f32.mrf.mxu0
        %v8508 = vpop.f32.mrf.mxu0
        %v8509 = vadd.f32 0.0, %v8508
        %v8510 = vpop.f32.mrf.mxu0
        %8511 = vmatprep.mubr.bf16.mxu0 0
        %8512 = vmatmul.mubr.bf16.gmra.mxu0 %v8421
        %v8513 = vpop.f32.mrf.mxu0
        %v8514 = vadd.f32 0.0, %v8513
        %v8515 = vpop.f32.mrf.mxu0
        %v8516 = vpop.f32.mrf.mxu0
        %v8517 = vadd.f32 0.0, %v8516
        %v8518 = vpop.f32.mrf.mxu0
        %8519 = vdwg.mxu0
        %v8520 = vadd.f32 %v8238, %v8458
        %v8521 = vadd.f32 %v8239, %v8461
        %v8522 = vadd.f32 %v8240, %v8466
        %v8523 = vadd.f32 %v8241, %v8469
        %v8524 = vadd.f32 %v8242, %v8474
        %v8525 = vadd.f32 %v8243, %v8477
        %v8526 = vadd.f32 %v8244, %v8482
        %v8527 = vadd.f32 %v8245, %v8485
        %v8528 = vadd.f32 %v8246, %v8490
        %v8529 = vadd.f32 %v8247, %v8493
        %v8530 = vadd.f32 %v8248, %v8498
        %v8531 = vadd.f32 %v8249, %v8501
        %v8532 = vadd.f32 %v8250, %v8506
        %v8533 = vadd.f32 %v8251, %v8509
        %v8534 = vadd.f32 %v8252, %v8514
        %v8535 = vadd.f32 %v8253, %v8517
        %v8536 = vld [vmem:[#allocation3 + $0x8] sm:$0xe]
        %s8537 = scalar_lea.vmem [#allocation8], 80
        %v8538 = vld [vmem:[%s8537] sm:$0xf]
        %v8539 = vld [vmem:[%s8537 + $0x4] sm:$0xf]
        %v8540 = vld [vmem:[%s8537 + $0x8] sm:$0xf]
        %v8541 = vld [vmem:[%s8537 + $0xc] sm:$0xf]
        %v8543 = vunpack.c.l.b16 %v8536
        %v8544 = vpack.c.b16 %v8294, %v8543
        %v8545 = vrot.slane %v8544, 1
        %v8546 = vrot.slane %v8311, 1
        %v8547 = vsel %vm7877, %v8545, %v8546
        %v8548 = vrot.slane %v8312, 1
        %v8549 = vsel %vm7877, %v8546, %v8548
        %v8550 = vrot.slane %v8313, 1
        %v8551 = vsel %vm7877, %v8548, %v8550
        %v8552 = vrot.slane %v8314, 1
        %v8553 = vsel %vm7877, %v8550, %v8552
        %v8554 = vrot.slane %v8315, 1
        %v8555 = vsel %vm7877, %v8552, %v8554
        %v8556 = vrot.slane %v8316, 1
        %v8557 = vsel %vm7877, %v8554, %v8556
        %v8558 = vrot.slane %v8317, 1
        %v8559 = vsel %vm7877, %v8556, %v8558
        %v8560 = vrot.slane %v8318, 1
        %v8561 = vsel %vm7877, %v8558, %v8560
        %v8566 = vunpack.c.l.b16 %v8538
        %v8567 = vunpack.c.l.b16 %v8539
        %v8568 = vunpack.c.l.b16 %v8540
        %v8569 = vunpack.c.l.b16 %v8541
        %v8570 = vpack.c.b16 %v8567, %v8566
        %v8571 = vpack.c.b16 %v8569, %v8568
        %v8575 = vsel %vm915, %v8547, 0
        %v8578 = vsel %vm915, %v8549, 0
        %v8581 = vsel %vm915, %v8551, 0
        %v8584 = vsel %vm915, %v8553, 0
        %v8587 = vsel %vm915, %v8555, 0
        %v8590 = vsel %vm915, %v8557, 0
        %v8593 = vsel %vm915, %v8559, 0
        %v8596 = vsel %vm915, %v8561, 0
        %8598 = vmatprep.subr.bf16.mxu0 0
        %8599 = vmatpush1.bf16.msra.mxu0 0
        %8600 = vmatprep.subr.bf16.mxu0 0
        %8601 = vmatpush1.bf16.msra.mxu0 0
        %8602 = vmatprep.subr.bf16.mxu0 0
        %8603 = vmatpush1.bf16.msra.mxu0 0
        %8604 = vmatprep.subr.bf16.mxu0 0
        %8605 = vmatpush1.bf16.msra.mxu0 0
        %8606 = vmatprep.subr.bf16.mxu0 0
        %8607 = vmatpush1.bf16.msra.mxu0 0
        %8608 = vmatprep.subr.bf16.mxu0 0
        %8609 = vmatpush1.bf16.msra.mxu0 0
        %8610 = vmatprep.subr.bf16.mxu0 0
        %8611 = vmatpush1.bf16.msra.mxu0 %v8571
        %8612 = vmatprep.subr.bf16.mxu0 0
        %8613 = vmatpush1.bf16.msra.mxu0 %v8570
        %8614 = vmatprep.subr.bf16.mxu0 0
        %8615 = vmatpush2.bf16.msra.mxu0 0
        %8616 = vmatprep.subr.bf16.mxu0 0
        %8617 = vmatpush2.bf16.msra.mxu0 0
        %8618 = vmatprep.subr.bf16.mxu0 0
        %8619 = vmatpush2.bf16.msra.mxu0 0
        %8620 = vmatprep.subr.bf16.mxu0 0
        %8621 = vmatpush2.bf16.msra.mxu0 0
        %8622 = vmatprep.subr.bf16.mxu0 0
        %8623 = vmatpush2.bf16.msra.mxu0 0
        %8624 = vmatprep.subr.bf16.mxu0 0
        %8625 = vmatpush2.bf16.msra.mxu0 0
        %8626 = vmatprep.subr.bf16.mxu0 0
        %8627 = vmatpush2.bf16.msra.mxu0 0
        %8628 = vmatprep.subr.bf16.mxu0 0
        %8629 = vmatpush2.bf16.msra.mxu0 0
        %8630 = vmatprep.mubr.bf16.mxu0 0
        %8631 = vmatmul.mubr.bf16.gmra.mxu0 %v8575
        %v8632 = vpop.f32.mrf.mxu0
        %v8633 = vadd.f32 0.0, %v8632
        %v8634 = vpop.f32.mrf.mxu0
        %v8635 = vpop.f32.mrf.mxu0
        %v8636 = vadd.f32 0.0, %v8635
        %v8637 = vpop.f32.mrf.mxu0
        %8638 = vmatprep.mubr.bf16.mxu0 0
        %8639 = vmatmul.mubr.bf16.gmra.mxu0 %v8578
        %v8640 = vpop.f32.mrf.mxu0
        %v8641 = vadd.f32 0.0, %v8640
        %v8642 = vpop.f32.mrf.mxu0
        %v8643 = vpop.f32.mrf.mxu0
        %v8644 = vadd.f32 0.0, %v8643
        %v8645 = vpop.f32.mrf.mxu0
        %8646 = vmatprep.mubr.bf16.mxu0 0
        %8647 = vmatmul.mubr.bf16.gmra.mxu0 %v8581
        %v8648 = vpop.f32.mrf.mxu0
        %v8649 = vadd.f32 0.0, %v8648
        %v8650 = vpop.f32.mrf.mxu0
        %v8651 = vpop.f32.mrf.mxu0
        %v8652 = vadd.f32 0.0, %v8651
        %v8653 = vpop.f32.mrf.mxu0
        %8654 = vmatprep.mubr.bf16.mxu0 0
        %8655 = vmatmul.mubr.bf16.gmra.mxu0 %v8584
        %v8656 = vpop.f32.mrf.mxu0
        %v8657 = vadd.f32 0.0, %v8656
        %v8658 = vpop.f32.mrf.mxu0
        %v8659 = vpop.f32.mrf.mxu0
        %v8660 = vadd.f32 0.0, %v8659
        %v8661 = vpop.f32.mrf.mxu0
        %8662 = vmatprep.mubr.bf16.mxu0 0
        %8663 = vmatmul.mubr.bf16.gmra.mxu0 %v8587
        %v8664 = vpop.f32.mrf.mxu0
        %v8665 = vadd.f32 0.0, %v8664
        %v8666 = vpop.f32.mrf.mxu0
        %v8667 = vpop.f32.mrf.mxu0
        %v8668 = vadd.f32 0.0, %v8667
        %v8669 = vpop.f32.mrf.mxu0
        %8670 = vmatprep.mubr.bf16.mxu0 0
        %8671 = vmatmul.mubr.bf16.gmra.mxu0 %v8590
        %v8672 = vpop.f32.mrf.mxu0
        %v8673 = vadd.f32 0.0, %v8672
        %v8674 = vpop.f32.mrf.mxu0
        %v8675 = vpop.f32.mrf.mxu0
        %v8676 = vadd.f32 0.0, %v8675
        %v8677 = vpop.f32.mrf.mxu0
        %8678 = vmatprep.mubr.bf16.mxu0 0
        %8679 = vmatmul.mubr.bf16.gmra.mxu0 %v8593
        %v8680 = vpop.f32.mrf.mxu0
        %v8681 = vadd.f32 0.0, %v8680
        %v8682 = vpop.f32.mrf.mxu0
        %v8683 = vpop.f32.mrf.mxu0
        %v8684 = vadd.f32 0.0, %v8683
        %v8685 = vpop.f32.mrf.mxu0
        %8686 = vmatprep.mubr.bf16.mxu0 0
        %8687 = vmatmul.mubr.bf16.gmra.mxu0 %v8596
        %v8688 = vpop.f32.mrf.mxu0
        %v8689 = vadd.f32 0.0, %v8688
        %v8690 = vpop.f32.mrf.mxu0
        %v8691 = vpop.f32.mrf.mxu0
        %v8692 = vadd.f32 0.0, %v8691
        %v8693 = vpop.f32.mrf.mxu0
        %8694 = vdwg.mxu0
        %v8695 = vadd.f32 %v8520, %v8633
        %v8696 = vadd.f32 %v8521, %v8636
        %v8697 = vadd.f32 %v8522, %v8641
        %v8698 = vadd.f32 %v8523, %v8644
        %v8699 = vadd.f32 %v8524, %v8649
        %v8700 = vadd.f32 %v8525, %v8652
        %v8701 = vadd.f32 %v8526, %v8657
        %v8702 = vadd.f32 %v8527, %v8660
        %v8703 = vadd.f32 %v8528, %v8665
        %v8704 = vadd.f32 %v8529, %v8668
        %v8705 = vadd.f32 %v8530, %v8673
        %v8706 = vadd.f32 %v8531, %v8676
        %v8707 = vadd.f32 %v8532, %v8681
        %v8708 = vadd.f32 %v8533, %v8684
        %v8709 = vadd.f32 %v8534, %v8689
        %v8710 = vadd.f32 %v8535, %v8692
        %v8711 = vld [vmem:[#allocation3 + $0x10] sm:$0xf]
        %v8712 = vld [vmem:[#allocation3 + $0x14] sm:$0xf]
        %v8713 = vld [vmem:[#allocation3 + $0x18] sm:$0xf]
        %v8714 = vld [vmem:[#allocation3 + $0x1c] sm:$0xf]
        %v8715 = vld [vmem:[#allocation3 + $0x20] sm:$0xf]
        %v8716 = vld [vmem:[#allocation3 + $0x24] sm:$0xf]
        %v8717 = vld [vmem:[#allocation3 + $0x28] sm:$0xf]
        %v8718 = vld [vmem:[#allocation3 + $0x2c] sm:$0xf]
        %v8719 = vld [vmem:[#allocation3 + $0x30] sm:$0xf]
        %v8720 = vld [vmem:[#allocation3 + $0x34] sm:$0xf]
        %v8721 = vld [vmem:[#allocation3 + $0x38] sm:$0xf]
        %v8722 = vld [vmem:[#allocation3 + $0x3c] sm:$0xf]
        %v8723 = vld [vmem:[#allocation3 + $0x40] sm:$0xf]
        %v8724 = vld [vmem:[#allocation3 + $0x44] sm:$0xf]
        %v8725 = vld [vmem:[#allocation3 + $0x48] sm:$0xf]
        %v8726 = vld [vmem:[#allocation3 + $0x4c] sm:$0xf]
        %s8727 = scalar_lea.vmem [#allocation8], 96
        %v8728 = vld [vmem:[%s8727] sm:$0xf]
        %v8729 = vld [vmem:[%s8727 + $0x4] sm:$0xf]
        %v8730 = vld [vmem:[%s8727 + $0x8] sm:$0xf]
        %v8731 = vld [vmem:[%s8727 + $0xc] sm:$0xf]
        %v8748 = vunpack.c.l.b16 %v8711
        %v8749 = vunpack.c.l.b16 %v8712
        %v8750 = vunpack.c.l.b16 %v8713
        %v8751 = vunpack.c.l.b16 %v8714
        %v8752 = vunpack.c.l.b16 %v8715
        %v8753 = vunpack.c.l.b16 %v8716
        %v8754 = vunpack.c.l.b16 %v8717
        %v8755 = vunpack.c.l.b16 %v8718
        %v8756 = vunpack.c.l.b16 %v8719
        %v8757 = vunpack.c.l.b16 %v8720
        %v8758 = vunpack.c.l.b16 %v8721
        %v8759 = vunpack.c.l.b16 %v8722
        %v8760 = vunpack.c.l.b16 %v8723
        %v8761 = vunpack.c.l.b16 %v8724
        %v8762 = vunpack.c.l.b16 %v8725
        %v8763 = vunpack.c.l.b16 %v8726
        %v8764 = vpack.c.b16 %v8749, %v8748
        %v8765 = vpack.c.b16 %v8751, %v8750
        %v8766 = vpack.c.b16 %v8753, %v8752
        %v8767 = vpack.c.b16 %v8755, %v8754
        %v8768 = vpack.c.b16 %v8757, %v8756
        %v8769 = vpack.c.b16 %v8759, %v8758
        %v8770 = vpack.c.b16 %v8761, %v8760
        %v8771 = vpack.c.b16 %v8763, %v8762
        %v8776 = vunpack.c.l.b16 %v8728
        %v8777 = vunpack.c.l.b16 %v8729
        %v8778 = vunpack.c.l.b16 %v8730
        %v8779 = vunpack.c.l.b16 %v8731
        %v8780 = vpack.c.b16 %v8777, %v8776
        %v8781 = vpack.c.b16 %v8779, %v8778
        %v8785 = vsel %vm915, %v8764, 0
        %v8788 = vsel %vm915, %v8765, 0
        %v8791 = vsel %vm915, %v8766, 0
        %v8794 = vsel %vm915, %v8767, 0
        %v8797 = vsel %vm915, %v8768, 0
        %v8800 = vsel %vm915, %v8769, 0
        %v8803 = vsel %vm915, %v8770, 0
        %v8806 = vsel %vm915, %v8771, 0
        %8808 = vmatprep.subr.bf16.mxu0 0
        %8809 = vmatpush1.bf16.msra.mxu0 0
        %8810 = vmatprep.subr.bf16.mxu0 0
        %8811 = vmatpush1.bf16.msra.mxu0 0
        %8812 = vmatprep.subr.bf16.mxu0 0
        %8813 = vmatpush1.bf16.msra.mxu0 0
        %8814 = vmatprep.subr.bf16.mxu0 0
        %8815 = vmatpush1.bf16.msra.mxu0 0
        %8816 = vmatprep.subr.bf16.mxu0 0
        %8817 = vmatpush1.bf16.msra.mxu0 0
        %8818 = vmatprep.subr.bf16.mxu0 0
        %8819 = vmatpush1.bf16.msra.mxu0 0
        %8820 = vmatprep.subr.bf16.mxu0 0
        %8821 = vmatpush1.bf16.msra.mxu0 %v8781
        %8822 = vmatprep.subr.bf16.mxu0 0
        %8823 = vmatpush1.bf16.msra.mxu0 %v8780
        %8824 = vmatprep.subr.bf16.mxu0 0
        %8825 = vmatpush2.bf16.msra.mxu0 0
        %8826 = vmatprep.subr.bf16.mxu0 0
        %8827 = vmatpush2.bf16.msra.mxu0 0
        %8828 = vmatprep.subr.bf16.mxu0 0
        %8829 = vmatpush2.bf16.msra.mxu0 0
        %8830 = vmatprep.subr.bf16.mxu0 0
        %8831 = vmatpush2.bf16.msra.mxu0 0
        %8832 = vmatprep.subr.bf16.mxu0 0
        %8833 = vmatpush2.bf16.msra.mxu0 0
        %8834 = vmatprep.subr.bf16.mxu0 0
        %8835 = vmatpush2.bf16.msra.mxu0 0
        %8836 = vmatprep.subr.bf16.mxu0 0
        %8837 = vmatpush2.bf16.msra.mxu0 0
        %8838 = vmatprep.subr.bf16.mxu0 0
        %8839 = vmatpush2.bf16.msra.mxu0 0
        %8840 = vmatprep.mubr.bf16.mxu0 0
        %8841 = vmatmul.mubr.bf16.gmra.mxu0 %v8785
        %v8842 = vpop.f32.mrf.mxu0
        %v8843 = vadd.f32 0.0, %v8842
        %v8844 = vpop.f32.mrf.mxu0
        %v8845 = vpop.f32.mrf.mxu0
        %v8846 = vadd.f32 0.0, %v8845
        %v8847 = vpop.f32.mrf.mxu0
        %8848 = vmatprep.mubr.bf16.mxu0 0
        %8849 = vmatmul.mubr.bf16.gmra.mxu0 %v8788
        %v8850 = vpop.f32.mrf.mxu0
        %v8851 = vadd.f32 0.0, %v8850
        %v8852 = vpop.f32.mrf.mxu0
        %v8853 = vpop.f32.mrf.mxu0
        %v8854 = vadd.f32 0.0, %v8853
        %v8855 = vpop.f32.mrf.mxu0
        %8856 = vmatprep.mubr.bf16.mxu0 0
        %8857 = vmatmul.mubr.bf16.gmra.mxu0 %v8791
        %v8858 = vpop.f32.mrf.mxu0
        %v8859 = vadd.f32 0.0, %v8858
        %v8860 = vpop.f32.mrf.mxu0
        %v8861 = vpop.f32.mrf.mxu0
        %v8862 = vadd.f32 0.0, %v8861
        %v8863 = vpop.f32.mrf.mxu0
        %8864 = vmatprep.mubr.bf16.mxu0 0
        %8865 = vmatmul.mubr.bf16.gmra.mxu0 %v8794
        %v8866 = vpop.f32.mrf.mxu0
        %v8867 = vadd.f32 0.0, %v8866
        %v8868 = vpop.f32.mrf.mxu0
        %v8869 = vpop.f32.mrf.mxu0
        %v8870 = vadd.f32 0.0, %v8869
        %v8871 = vpop.f32.mrf.mxu0
        %8872 = vmatprep.mubr.bf16.mxu0 0
        %8873 = vmatmul.mubr.bf16.gmra.mxu0 %v8797
        %v8874 = vpop.f32.mrf.mxu0
        %v8875 = vadd.f32 0.0, %v8874
        %v8876 = vpop.f32.mrf.mxu0
        %v8877 = vpop.f32.mrf.mxu0
        %v8878 = vadd.f32 0.0, %v8877
        %v8879 = vpop.f32.mrf.mxu0
        %8880 = vmatprep.mubr.bf16.mxu0 0
        %8881 = vmatmul.mubr.bf16.gmra.mxu0 %v8800
        %v8882 = vpop.f32.mrf.mxu0
        %v8883 = vadd.f32 0.0, %v8882
        %v8884 = vpop.f32.mrf.mxu0
        %v8885 = vpop.f32.mrf.mxu0
        %v8886 = vadd.f32 0.0, %v8885
        %v8887 = vpop.f32.mrf.mxu0
        %8888 = vmatprep.mubr.bf16.mxu0 0
        %8889 = vmatmul.mubr.bf16.gmra.mxu0 %v8803
        %v8890 = vpop.f32.mrf.mxu0
        %v8891 = vadd.f32 0.0, %v8890
        %v8892 = vpop.f32.mrf.mxu0
        %v8893 = vpop.f32.mrf.mxu0
        %v8894 = vadd.f32 0.0, %v8893
        %v8895 = vpop.f32.mrf.mxu0
        %8896 = vmatprep.mubr.bf16.mxu0 0
        %8897 = vmatmul.mubr.bf16.gmra.mxu0 %v8806
        %v8898 = vpop.f32.mrf.mxu0
        %v8899 = vadd.f32 0.0, %v8898
        %v8900 = vpop.f32.mrf.mxu0
        %v8901 = vpop.f32.mrf.mxu0
        %v8902 = vadd.f32 0.0, %v8901
        %v8903 = vpop.f32.mrf.mxu0
        %8904 = vdwg.mxu0
        %v8905 = vadd.f32 %v8695, %v8843
        %v8906 = vadd.f32 %v8696, %v8846
        %v8907 = vadd.f32 %v8697, %v8851
        %v8908 = vadd.f32 %v8698, %v8854
        %v8909 = vadd.f32 %v8699, %v8859
        %v8910 = vadd.f32 %v8700, %v8862
        %v8911 = vadd.f32 %v8701, %v8867
        %v8912 = vadd.f32 %v8702, %v8870
        %v8913 = vadd.f32 %v8703, %v8875
        %v8914 = vadd.f32 %v8704, %v8878
        %v8915 = vadd.f32 %v8705, %v8883
        %v8916 = vadd.f32 %v8706, %v8886
        %v8917 = vadd.f32 %v8707, %v8891
        %v8918 = vadd.f32 %v8708, %v8894
        %v8919 = vadd.f32 %v8709, %v8899
        %v8920 = vadd.f32 %v8710, %v8902
        %v8921 = vld [vmem:[#allocation3 + $0x10] sm:$0xf]
        %v8922 = vld [vmem:[#allocation3 + $0x14] sm:$0xf]
        %v8923 = vld [vmem:[#allocation3 + $0x18] sm:$0xf]
        %v8924 = vld [vmem:[#allocation3 + $0x1c] sm:$0xf]
        %v8925 = vld [vmem:[#allocation3 + $0x20] sm:$0xf]
        %v8926 = vld [vmem:[#allocation3 + $0x24] sm:$0xf]
        %v8927 = vld [vmem:[#allocation3 + $0x28] sm:$0xf]
        %v8928 = vld [vmem:[#allocation3 + $0x2c] sm:$0xf]
        %v8929 = vld [vmem:[#allocation3 + $0x30] sm:$0xf]
        %v8930 = vld [vmem:[#allocation3 + $0x34] sm:$0xf]
        %v8931 = vld [vmem:[#allocation3 + $0x38] sm:$0xf]
        %v8932 = vld [vmem:[#allocation3 + $0x3c] sm:$0xf]
        %v8933 = vld [vmem:[#allocation3 + $0x40] sm:$0xf]
        %v8934 = vld [vmem:[#allocation3 + $0x44] sm:$0xf]
        %v8935 = vld [vmem:[#allocation3 + $0x48] sm:$0xf]
        %v8936 = vld [vmem:[#allocation3 + $0x4c] sm:$0xf]
        %v8937 = vld [vmem:[#allocation3 + $0x50] sm:$0x1]
        %s8938 = scalar_lea.vmem [#allocation8], 112
        %v8939 = vld [vmem:[%s8938] sm:$0xf]
        %v8940 = vld [vmem:[%s8938 + $0x4] sm:$0xf]
        %v8941 = vld [vmem:[%s8938 + $0x8] sm:$0xf]
        %v8942 = vld [vmem:[%s8938 + $0xc] sm:$0xf]
        %v8960 = vunpack.c.l.b16 %v8921
        %v8961 = vunpack.c.l.b16 %v8922
        %v8962 = vunpack.c.l.b16 %v8923
        %v8963 = vunpack.c.l.b16 %v8924
        %v8964 = vunpack.c.l.b16 %v8925
        %v8965 = vunpack.c.l.b16 %v8926
        %v8966 = vunpack.c.l.b16 %v8927
        %v8967 = vunpack.c.l.b16 %v8928
        %v8968 = vunpack.c.l.b16 %v8929
        %v8969 = vunpack.c.l.b16 %v8930
        %v8970 = vunpack.c.l.b16 %v8931
        %v8971 = vunpack.c.l.b16 %v8932
        %v8972 = vunpack.c.l.b16 %v8933
        %v8973 = vunpack.c.l.b16 %v8934
        %v8974 = vunpack.c.l.b16 %v8935
        %v8975 = vunpack.c.l.b16 %v8936
        %v8976 = vunpack.c.l.b16 %v8937
        %v8977 = vpack.c.b16 %v8961, %v8960
        %v8978 = vpack.c.b16 %v8963, %v8962
        %v8979 = vpack.c.b16 %v8965, %v8964
        %v8980 = vpack.c.b16 %v8967, %v8966
        %v8981 = vpack.c.b16 %v8969, %v8968
        %v8982 = vpack.c.b16 %v8971, %v8970
        %v8983 = vpack.c.b16 %v8973, %v8972
        %v8984 = vpack.c.b16 %v8975, %v8974
        %v8985 = vpack.c.b16 %v8976, %v8976
        %v8987 = vshrl.u32 %v8977, 16
        %v8989 = vshll.u32 %v8977, 16
        %v8991 = vrot.slane %v8989, 1
        %v8992 = vor.u32 %v8987, %v8991
        %v8994 = vshll.u32 %v8978, 16
        %v8996 = vrot.slane %v8994, 1
        %v8997 = vsel %vm7541, %v8992, %v8996
        %v8998 = vshrl.u32 %v8978, 16
        %v9000 = vor.u32 %v8998, %v8996
        %v9002 = vshll.u32 %v8979, 16
        %v9004 = vrot.slane %v9002, 1
        %v9005 = vsel %vm7541, %v9000, %v9004
        %v9006 = vshrl.u32 %v8979, 16
        %v9008 = vor.u32 %v9006, %v9004
        %v9010 = vshll.u32 %v8980, 16
        %v9012 = vrot.slane %v9010, 1
        %v9013 = vsel %vm7541, %v9008, %v9012
        %v9014 = vshrl.u32 %v8980, 16
        %v9016 = vor.u32 %v9014, %v9012
        %v9018 = vshll.u32 %v8981, 16
        %v9020 = vrot.slane %v9018, 1
        %v9021 = vsel %vm7541, %v9016, %v9020
        %v9022 = vshrl.u32 %v8981, 16
        %v9024 = vor.u32 %v9022, %v9020
        %v9026 = vshll.u32 %v8982, 16
        %v9028 = vrot.slane %v9026, 1
        %v9029 = vsel %vm7541, %v9024, %v9028
        %v9030 = vshrl.u32 %v8982, 16
        %v9032 = vor.u32 %v9030, %v9028
        %v9034 = vshll.u32 %v8983, 16
        %v9036 = vrot.slane %v9034, 1
        %v9037 = vsel %vm7541, %v9032, %v9036
        %v9038 = vshrl.u32 %v8983, 16
        %v9040 = vor.u32 %v9038, %v9036
        %v9042 = vshll.u32 %v8984, 16
        %v9044 = vrot.slane %v9042, 1
        %v9045 = vsel %vm7541, %v9040, %v9044
        %v9046 = vshrl.u32 %v8984, 16
        %v9048 = vor.u32 %v9046, %v9044
        %v9050 = vshll.u32 %v8985, 16
        %v9052 = vrot.slane %v9050, 1
        %v9053 = vsel %vm7541, %v9048, %v9052
        %v9058 = vunpack.c.l.b16 %v8939
        %v9059 = vunpack.c.l.b16 %v8940
        %v9060 = vunpack.c.l.b16 %v8941
        %v9061 = vunpack.c.l.b16 %v8942
        %v9062 = vpack.c.b16 %v9059, %v9058
        %v9063 = vpack.c.b16 %v9061, %v9060
        %v9067 = vsel %vm915, %v8997, 0
        %v9070 = vsel %vm915, %v9005, 0
        %v9073 = vsel %vm915, %v9013, 0
        %v9076 = vsel %vm915, %v9021, 0
        %v9079 = vsel %vm915, %v9029, 0
        %v9082 = vsel %vm915, %v9037, 0
        %v9085 = vsel %vm915, %v9045, 0
        %v9088 = vsel %vm915, %v9053, 0
        %9090 = vmatprep.subr.bf16.mxu0 0
        %9091 = vmatpush1.bf16.msra.mxu0 0
        %9092 = vmatprep.subr.bf16.mxu0 0
        %9093 = vmatpush1.bf16.msra.mxu0 0
        %9094 = vmatprep.subr.bf16.mxu0 0
        %9095 = vmatpush1.bf16.msra.mxu0 0
        %9096 = vmatprep.subr.bf16.mxu0 0
        %9097 = vmatpush1.bf16.msra.mxu0 0
        %9098 = vmatprep.subr.bf16.mxu0 0
        %9099 = vmatpush1.bf16.msra.mxu0 0
        %9100 = vmatprep.subr.bf16.mxu0 0
        %9101 = vmatpush1.bf16.msra.mxu0 0
        %9102 = vmatprep.subr.bf16.mxu0 0
        %9103 = vmatpush1.bf16.msra.mxu0 %v9063
        %9104 = vmatprep.subr.bf16.mxu0 0
        %9105 = vmatpush1.bf16.msra.mxu0 %v9062
        %9106 = vmatprep.subr.bf16.mxu0 0
        %9107 = vmatpush2.bf16.msra.mxu0 0
        %9108 = vmatprep.subr.bf16.mxu0 0
        %9109 = vmatpush2.bf16.msra.mxu0 0
        %9110 = vmatprep.subr.bf16.mxu0 0
        %9111 = vmatpush2.bf16.msra.mxu0 0
        %9112 = vmatprep.subr.bf16.mxu0 0
        %9113 = vmatpush2.bf16.msra.mxu0 0
        %9114 = vmatprep.subr.bf16.mxu0 0
        %9115 = vmatpush2.bf16.msra.mxu0 0
        %9116 = vmatprep.subr.bf16.mxu0 0
        %9117 = vmatpush2.bf16.msra.mxu0 0
        %9118 = vmatprep.subr.bf16.mxu0 0
        %9119 = vmatpush2.bf16.msra.mxu0 0
        %9120 = vmatprep.subr.bf16.mxu0 0
        %9121 = vmatpush2.bf16.msra.mxu0 0
        %9122 = vmatprep.mubr.bf16.mxu0 0
        %9123 = vmatmul.mubr.bf16.gmra.mxu0 %v9067
        %v9124 = vpop.f32.mrf.mxu0
        %v9125 = vadd.f32 0.0, %v9124
        %v9126 = vpop.f32.mrf.mxu0
        %v9127 = vpop.f32.mrf.mxu0
        %v9128 = vadd.f32 0.0, %v9127
        %v9129 = vpop.f32.mrf.mxu0
        %9130 = vmatprep.mubr.bf16.mxu0 0
        %9131 = vmatmul.mubr.bf16.gmra.mxu0 %v9070
        %v9132 = vpop.f32.mrf.mxu0
        %v9133 = vadd.f32 0.0, %v9132
        %v9134 = vpop.f32.mrf.mxu0
        %v9135 = vpop.f32.mrf.mxu0
        %v9136 = vadd.f32 0.0, %v9135
        %v9137 = vpop.f32.mrf.mxu0
        %9138 = vmatprep.mubr.bf16.mxu0 0
        %9139 = vmatmul.mubr.bf16.gmra.mxu0 %v9073
        %v9140 = vpop.f32.mrf.mxu0
        %v9141 = vadd.f32 0.0, %v9140
        %v9142 = vpop.f32.mrf.mxu0
        %v9143 = vpop.f32.mrf.mxu0
        %v9144 = vadd.f32 0.0, %v9143
        %v9145 = vpop.f32.mrf.mxu0
        %9146 = vmatprep.mubr.bf16.mxu0 0
        %9147 = vmatmul.mubr.bf16.gmra.mxu0 %v9076
        %v9148 = vpop.f32.mrf.mxu0
        %v9149 = vadd.f32 0.0, %v9148
        %v9150 = vpop.f32.mrf.mxu0
        %v9151 = vpop.f32.mrf.mxu0
        %v9152 = vadd.f32 0.0, %v9151
        %v9153 = vpop.f32.mrf.mxu0
        %9154 = vmatprep.mubr.bf16.mxu0 0
        %9155 = vmatmul.mubr.bf16.gmra.mxu0 %v9079
        %v9156 = vpop.f32.mrf.mxu0
        %v9157 = vadd.f32 0.0, %v9156
        %v9158 = vpop.f32.mrf.mxu0
        %v9159 = vpop.f32.mrf.mxu0
        %v9160 = vadd.f32 0.0, %v9159
        %v9161 = vpop.f32.mrf.mxu0
        %9162 = vmatprep.mubr.bf16.mxu0 0
        %9163 = vmatmul.mubr.bf16.gmra.mxu0 %v9082
        %v9164 = vpop.f32.mrf.mxu0
        %v9165 = vadd.f32 0.0, %v9164
        %v9166 = vpop.f32.mrf.mxu0
        %v9167 = vpop.f32.mrf.mxu0
        %v9168 = vadd.f32 0.0, %v9167
        %v9169 = vpop.f32.mrf.mxu0
        %9170 = vmatprep.mubr.bf16.mxu0 0
        %9171 = vmatmul.mubr.bf16.gmra.mxu0 %v9085
        %v9172 = vpop.f32.mrf.mxu0
        %v9173 = vadd.f32 0.0, %v9172
        %v9174 = vpop.f32.mrf.mxu0
        %v9175 = vpop.f32.mrf.mxu0
        %v9176 = vadd.f32 0.0, %v9175
        %v9177 = vpop.f32.mrf.mxu0
        %9178 = vmatprep.mubr.bf16.mxu0 0
        %9179 = vmatmul.mubr.bf16.gmra.mxu0 %v9088
        %v9180 = vpop.f32.mrf.mxu0
        %v9181 = vadd.f32 0.0, %v9180
        %v9182 = vpop.f32.mrf.mxu0
        %v9183 = vpop.f32.mrf.mxu0
        %v9184 = vadd.f32 0.0, %v9183
        %v9185 = vpop.f32.mrf.mxu0
        %9186 = vdwg.mxu0
        %v9187 = vadd.f32 %v8905, %v9125
        %v9188 = vadd.f32 %v8906, %v9128
        %v9189 = vadd.f32 %v8907, %v9133
        %v9190 = vadd.f32 %v8908, %v9136
        %v9191 = vadd.f32 %v8909, %v9141
        %v9192 = vadd.f32 %v8910, %v9144
        %v9193 = vadd.f32 %v8911, %v9149
        %v9194 = vadd.f32 %v8912, %v9152
        %v9195 = vadd.f32 %v8913, %v9157
        %v9196 = vadd.f32 %v8914, %v9160
        %v9197 = vadd.f32 %v8915, %v9165
        %v9198 = vadd.f32 %v8916, %v9168
        %v9199 = vadd.f32 %v8917, %v9173
        %v9200 = vadd.f32 %v8918, %v9176
        %v9201 = vadd.f32 %v8919, %v9181
        %v9202 = vadd.f32 %v8920, %v9184
        %v9203 = vld [vmem:[#allocation3 + $0x10] sm:$0xe]
        %s9204 = scalar_lea.vmem [#allocation8], 128
        %v9205 = vld [vmem:[%s9204] sm:$0xf]
        %v9206 = vld [vmem:[%s9204 + $0x4] sm:$0xf]
        %v9207 = vld [vmem:[%s9204 + $0x8] sm:$0xf]
        %v9208 = vld [vmem:[%s9204 + $0xc] sm:$0xf]
        %v9210 = vunpack.c.l.b16 %v9203
        %v9211 = vpack.c.b16 %v8961, %v9210
        %v9212 = vrot.slane %v9211, 1
        %v9213 = vrot.slane %v8978, 1
        %v9214 = vsel %vm7877, %v9212, %v9213
        %v9215 = vrot.slane %v8979, 1
        %v9216 = vsel %vm7877, %v9213, %v9215
        %v9217 = vrot.slane %v8980, 1
        %v9218 = vsel %vm7877, %v9215, %v9217
        %v9219 = vrot.slane %v8981, 1
        %v9220 = vsel %vm7877, %v9217, %v9219
        %v9221 = vrot.slane %v8982, 1
        %v9222 = vsel %vm7877, %v9219, %v9221
        %v9223 = vrot.slane %v8983, 1
        %v9224 = vsel %vm7877, %v9221, %v9223
        %v9225 = vrot.slane %v8984, 1
        %v9226 = vsel %vm7877, %v9223, %v9225
        %v9227 = vrot.slane %v8985, 1
        %v9228 = vsel %vm7877, %v9225, %v9227
        %v9233 = vunpack.c.l.b16 %v9205
        %v9234 = vunpack.c.l.b16 %v9206
        %v9235 = vunpack.c.l.b16 %v9207
        %v9236 = vunpack.c.l.b16 %v9208
        %v9237 = vpack.c.b16 %v9234, %v9233
        %v9238 = vpack.c.b16 %v9236, %v9235
        %v9242 = vsel %vm915, %v9214, 0
        %v9245 = vsel %vm915, %v9216, 0
        %v9248 = vsel %vm915, %v9218, 0
        %v9251 = vsel %vm915, %v9220, 0
        %v9254 = vsel %vm915, %v9222, 0
        %v9257 = vsel %vm915, %v9224, 0
        %v9260 = vsel %vm915, %v9226, 0
        %v9263 = vsel %vm915, %v9228, 0
        %9265 = vmatprep.subr.bf16.mxu0 0
        %9266 = vmatpush1.bf16.msra.mxu0 0
        %9267 = vmatprep.subr.bf16.mxu0 0
        %9268 = vmatpush1.bf16.msra.mxu0 0
        %9269 = vmatprep.subr.bf16.mxu0 0
        %9270 = vmatpush1.bf16.msra.mxu0 0
        %9271 = vmatprep.subr.bf16.mxu0 0
        %9272 = vmatpush1.bf16.msra.mxu0 0
        %9273 = vmatprep.subr.bf16.mxu0 0
        %9274 = vmatpush1.bf16.msra.mxu0 0
        %9275 = vmatprep.subr.bf16.mxu0 0
        %9276 = vmatpush1.bf16.msra.mxu0 0
        %9277 = vmatprep.subr.bf16.mxu0 0
        %9278 = vmatpush1.bf16.msra.mxu0 %v9238
        %9279 = vmatprep.subr.bf16.mxu0 0
        %9280 = vmatpush1.bf16.msra.mxu0 %v9237
        %9281 = vmatprep.subr.bf16.mxu0 0
        %9282 = vmatpush2.bf16.msra.mxu0 0
        %9283 = vmatprep.subr.bf16.mxu0 0
        %9284 = vmatpush2.bf16.msra.mxu0 0
        %9285 = vmatprep.subr.bf16.mxu0 0
        %9286 = vmatpush2.bf16.msra.mxu0 0
        %9287 = vmatprep.subr.bf16.mxu0 0
        %9288 = vmatpush2.bf16.msra.mxu0 0
        %9289 = vmatprep.subr.bf16.mxu0 0
        %9290 = vmatpush2.bf16.msra.mxu0 0
        %9291 = vmatprep.subr.bf16.mxu0 0
        %9292 = vmatpush2.bf16.msra.mxu0 0
        %9293 = vmatprep.subr.bf16.mxu0 0
        %9294 = vmatpush2.bf16.msra.mxu0 0
        %9295 = vmatprep.subr.bf16.mxu0 0
        %9296 = vmatpush2.bf16.msra.mxu0 0
        %9297 = vmatprep.mubr.bf16.mxu0 0
        %9298 = vmatmul.mubr.bf16.gmra.mxu0 %v9242
        %v9299 = vpop.f32.mrf.mxu0
        %v9300 = vadd.f32 0.0, %v9299
        %v9301 = vpop.f32.mrf.mxu0
        %v9302 = vpop.f32.mrf.mxu0
        %v9303 = vadd.f32 0.0, %v9302
        %v9304 = vpop.f32.mrf.mxu0
        %9305 = vmatprep.mubr.bf16.mxu0 0
        %9306 = vmatmul.mubr.bf16.gmra.mxu0 %v9245
        %v9307 = vpop.f32.mrf.mxu0
        %v9308 = vadd.f32 0.0, %v9307
        %v9309 = vpop.f32.mrf.mxu0
        %v9310 = vpop.f32.mrf.mxu0
        %v9311 = vadd.f32 0.0, %v9310
        %v9312 = vpop.f32.mrf.mxu0
        %9313 = vmatprep.mubr.bf16.mxu0 0
        %9314 = vmatmul.mubr.bf16.gmra.mxu0 %v9248
        %v9315 = vpop.f32.mrf.mxu0
        %v9316 = vadd.f32 0.0, %v9315
        %v9317 = vpop.f32.mrf.mxu0
        %v9318 = vpop.f32.mrf.mxu0
        %v9319 = vadd.f32 0.0, %v9318
        %v9320 = vpop.f32.mrf.mxu0
        %9321 = vmatprep.mubr.bf16.mxu0 0
        %9322 = vmatmul.mubr.bf16.gmra.mxu0 %v9251
        %v9323 = vpop.f32.mrf.mxu0
        %v9324 = vadd.f32 0.0, %v9323
        %v9325 = vpop.f32.mrf.mxu0
        %v9326 = vpop.f32.mrf.mxu0
        %v9327 = vadd.f32 0.0, %v9326
        %v9328 = vpop.f32.mrf.mxu0
        %9329 = vmatprep.mubr.bf16.mxu0 0
        %9330 = vmatmul.mubr.bf16.gmra.mxu0 %v9254
        %v9331 = vpop.f32.mrf.mxu0
        %v9332 = vadd.f32 0.0, %v9331
        %v9333 = vpop.f32.mrf.mxu0
        %v9334 = vpop.f32.mrf.mxu0
        %v9335 = vadd.f32 0.0, %v9334
        %v9336 = vpop.f32.mrf.mxu0
        %9337 = vmatprep.mubr.bf16.mxu0 0
        %9338 = vmatmul.mubr.bf16.gmra.mxu0 %v9257
        %v9339 = vpop.f32.mrf.mxu0
        %v9340 = vadd.f32 0.0, %v9339
        %v9341 = vpop.f32.mrf.mxu0
        %v9342 = vpop.f32.mrf.mxu0
        %v9343 = vadd.f32 0.0, %v9342
        %v9344 = vpop.f32.mrf.mxu0
        %9345 = vmatprep.mubr.bf16.mxu0 0
        %9346 = vmatmul.mubr.bf16.gmra.mxu0 %v9260
        %v9347 = vpop.f32.mrf.mxu0
        %v9348 = vadd.f32 0.0, %v9347
        %v9349 = vpop.f32.mrf.mxu0
        %v9350 = vpop.f32.mrf.mxu0
        %v9351 = vadd.f32 0.0, %v9350
        %v9352 = vpop.f32.mrf.mxu0
        %9353 = vmatprep.mubr.bf16.mxu0 0
        %9354 = vmatmul.mubr.bf16.gmra.mxu0 %v9263
        %v9355 = vpop.f32.mrf.mxu0
        %v9356 = vadd.f32 0.0, %v9355
        %v9357 = vpop.f32.mrf.mxu0
        %v9358 = vpop.f32.mrf.mxu0
        %v9359 = vadd.f32 0.0, %v9358
        %v9360 = vpop.f32.mrf.mxu0
        %9361 = vdwg.mxu0
        %v9362 = vadd.f32 %v9187, %v9300
        %v9363 = vadd.f32 %v9188, %v9303
        %v9364 = vadd.f32 %v9189, %v9308
        %v9365 = vadd.f32 %v9190, %v9311
        %v9366 = vadd.f32 %v9191, %v9316
        %v9367 = vadd.f32 %v9192, %v9319
        %v9368 = vadd.f32 %v9193, %v9324
        %v9369 = vadd.f32 %v9194, %v9327
        %v9370 = vadd.f32 %v9195, %v9332
        %v9371 = vadd.f32 %v9196, %v9335
        %v9372 = vadd.f32 %v9197, %v9340
        %v9373 = vadd.f32 %v9198, %v9343
        %v9374 = vadd.f32 %v9199, %v9348
        %v9375 = vadd.f32 %v9200, %v9351
        %v9376 = vadd.f32 %v9201, %v9356
        %v9377 = vadd.f32 %v9202, %v9359
        %v9378 = vld [vmem:[%s5] sm:$0x1]
        %v9380 = vlaneseq
        %v9381 = vshrl.u32 %v9380, 7
        %v9382 = vsub.s32 0, %v9381
        %v9383 = vrot.slane %v9378, %v9382
        %v9385 = vadd.f32 %v9362, %v9383
        %v9386 = vadd.f32 %v9363, %v9383
        %v9387 = vadd.f32 %v9364, %v9383
        %v9388 = vadd.f32 %v9365, %v9383
        %v9389 = vadd.f32 %v9366, %v9383
        %v9390 = vadd.f32 %v9367, %v9383
        %v9391 = vadd.f32 %v9368, %v9383
        %v9392 = vadd.f32 %v9369, %v9383
        %v9393 = vadd.f32 %v9370, %v9383
        %v9394 = vadd.f32 %v9371, %v9383
        %v9395 = vadd.f32 %v9372, %v9383
        %v9396 = vadd.f32 %v9373, %v9383
        %v9397 = vadd.f32 %v9374, %v9383
        %v9398 = vadd.f32 %v9375, %v9383
        %v9399 = vadd.f32 %v9376, %v9383
        %v9400 = vadd.f32 %v9377, %v9383
        %v9401 = vmax.f32 %v9385, 0.0
        %v9402 = vmax.f32 %v9386, 0.0
        %v9403 = vmax.f32 %v9387, 0.0
        %v9404 = vmax.f32 %v9388, 0.0
        %v9405 = vmax.f32 %v9389, 0.0
        %v9406 = vmax.f32 %v9390, 0.0
        %v9407 = vmax.f32 %v9391, 0.0
        %v9408 = vmax.f32 %v9392, 0.0
        %v9409 = vmax.f32 %v9393, 0.0
        %v9410 = vmax.f32 %v9394, 0.0
        %v9411 = vmax.f32 %v9395, 0.0
        %v9412 = vmax.f32 %v9396, 0.0
        %v9413 = vmax.f32 %v9397, 0.0
        %v9414 = vmax.f32 %v9398, 0.0
        %v9415 = vmax.f32 %v9399, 0.0
        %v9416 = vmax.f32 %v9400, 0.0
        %v9433 = vrot.slane %v9401, 1
        %v9434 = vrot.slane %v9402, 1
        %v9435 = vsel %vm1460, %v9433, %v9434
        %v9436 = vrot.slane %v9403, 1
        %v9437 = vsel %vm1460, %v9434, %v9436
        %v9438 = vrot.slane %v9404, 1
        %v9439 = vsel %vm1460, %v9436, %v9438
        %v9440 = vrot.slane %v9405, 1
        %v9441 = vsel %vm1460, %v9438, %v9440
        %v9442 = vrot.slane %v9406, 1
        %v9443 = vsel %vm1460, %v9440, %v9442
        %v9444 = vrot.slane %v9407, 1
        %v9445 = vsel %vm1460, %v9442, %v9444
        %v9446 = vrot.slane %v9408, 1
        %v9447 = vsel %vm1460, %v9444, %v9446
        %v9448 = vrot.slane %v9409, 1
        %v9449 = vsel %vm1460, %v9446, %v9448
        %v9450 = vrot.slane %v9410, 1
        %v9451 = vsel %vm1460, %v9448, %v9450
        %v9452 = vrot.slane %v9411, 1
        %v9453 = vsel %vm1460, %v9450, %v9452
        %v9454 = vrot.slane %v9412, 1
        %v9455 = vsel %vm1460, %v9452, %v9454
        %v9456 = vrot.slane %v9413, 1
        %v9457 = vsel %vm1460, %v9454, %v9456
        %v9458 = vrot.slane %v9414, 1
        %v9459 = vsel %vm1460, %v9456, %v9458
        %v9460 = vrot.slane %v9415, 1
        %v9461 = vsel %vm1460, %v9458, %v9460
        %v9462 = vrot.slane %v9416, 1
        %v9463 = vsel %vm1460, %v9460, %v9462
        %v9480 = vmax.f32 %v9401, %v9435
        %v9481 = vmax.f32 %v9402, %v9437
        %v9482 = vmax.f32 %v9403, %v9439
        %v9483 = vmax.f32 %v9404, %v9441
        %v9484 = vmax.f32 %v9405, %v9443
        %v9485 = vmax.f32 %v9406, %v9445
        %v9486 = vmax.f32 %v9407, %v9447
        %v9487 = vmax.f32 %v9408, %v9449
        %v9488 = vmax.f32 %v9409, %v9451
        %v9489 = vmax.f32 %v9410, %v9453
        %v9490 = vmax.f32 %v9411, %v9455
        %v9491 = vmax.f32 %v9412, %v9457
        %v9492 = vmax.f32 %v9413, %v9459
        %v9493 = vmax.f32 %v9414, %v9461
        %v9494 = vmax.f32 %v9415, %v9463
        %v9495 = vmax.f32 %v9416, %v9462
        %v9496 = vmax.f32 %v9480, %v9482
        %v9497 = vmax.f32 %v9481, %v9483
        %v9498 = vmax.f32 %v9482, %v9484
        %v9499 = vmax.f32 %v9483, %v9485
        %v9500 = vmax.f32 %v9484, %v9486
        %v9501 = vmax.f32 %v9485, %v9487
        %v9502 = vmax.f32 %v9486, %v9488
        %v9503 = vmax.f32 %v9487, %v9489
        %v9504 = vmax.f32 %v9488, %v9490
        %v9505 = vmax.f32 %v9489, %v9491
        %v9506 = vmax.f32 %v9490, %v9492
        %v9507 = vmax.f32 %v9491, %v9493
        %v9508 = vmax.f32 %v9492, %v9494
        %v9509 = vmax.f32 %v9493, %v9495
        %v9510 = vld [vmem:[%s6] sm:$0xf]
        %v9511 = vld [vmem:[%s6 + $0x4] sm:$0xf]
        %v9512 = vld [vmem:[%s6 + $0x8] sm:$0xf]
        %v9513 = vld [vmem:[%s6 + $0xc] sm:$0xf]
        %v9514 = vld [vmem:[%s6 + $0x10] sm:$0xf]
        %v9515 = vld [vmem:[%s6 + $0x14] sm:$0xf]
        %v9516 = vld [vmem:[%s6 + $0x18] sm:$0xf]
        %v9517 = vpack.c.bf16 %v9497, %v9496
        %v9518 = vpack.c.bf16 %v9499, %v9498
        %v9519 = vpack.c.bf16 %v9501, %v9500
        %v9520 = vpack.c.bf16 %v9503, %v9502
        %v9521 = vpack.c.bf16 %v9505, %v9504
        %v9522 = vpack.c.bf16 %v9507, %v9506
        %v9523 = vpack.c.bf16 %v9509, %v9508
        %v9531 = vunpack.c.l.b16 %v9510
        %v9532 = vunpack.c.l.b16 %v9511
        %v9533 = vunpack.c.l.b16 %v9512
        %v9534 = vunpack.c.l.b16 %v9513
        %v9535 = vunpack.c.l.b16 %v9514
        %v9536 = vunpack.c.l.b16 %v9515
        %v9537 = vunpack.c.l.b16 %v9516
        %v9538 = vpack.c.b16 %v9532, %v9531
        %v9539 = vpack.c.b16 %v9534, %v9533
        %v9540 = vpack.c.b16 %v9536, %v9535
        %v9541 = vpack.c.b16 %v9537, %v9537
        %vm9542 = vcmask 908288
        %v9544 = vsel %vm9542, %v9538, 0
        %v9547 = vsel %vm9542, %v9539, 0
        %v9550 = vsel %vm9542, %v9540, 0
        %v9553 = vsel %vm9542, %v9541, 0
        %vm9555 = vcmask 1047552
        %v9556 = vsel %vm1460, 4294967295, 65535
        %v9557 = vsel %vm9555, %v9556, 0
        %v9559 = vand.u32 %v9523, %v9557
        %9561 = vmatprep.subr.bf16.mxu0 0
        %9562 = vmatpush1.bf16.msra.mxu0 0
        %9563 = vmatprep.subr.bf16.mxu0 0
        %9564 = vmatpush1.bf16.msra.mxu0 %v9559
        %9565 = vmatprep.subr.bf16.mxu0 0
        %9566 = vmatpush1.bf16.msra.mxu0 %v9522
        %9567 = vmatprep.subr.bf16.mxu0 0
        %9568 = vmatpush1.bf16.msra.mxu0 %v9521
        %9569 = vmatprep.subr.bf16.mxu0 0
        %9570 = vmatpush1.bf16.msra.mxu0 %v9520
        %9571 = vmatprep.subr.bf16.mxu0 0
        %9572 = vmatpush1.bf16.msra.mxu0 %v9519
        %9573 = vmatprep.subr.bf16.mxu0 0
        %9574 = vmatpush1.bf16.msra.mxu0 %v9518
        %9575 = vmatprep.subr.bf16.mxu0 0
        %9576 = vmatpush1.bf16.msra.mxu0 %v9517
        %9577 = vmatprep.subr.bf16.mxu0 0
        %9578 = vmatpush2.bf16.msra.mxu0 0
        %9579 = vmatprep.subr.bf16.mxu0 0
        %9580 = vmatpush2.bf16.msra.mxu0 0
        %9581 = vmatprep.subr.bf16.mxu0 0
        %9582 = vmatpush2.bf16.msra.mxu0 0
        %9583 = vmatprep.subr.bf16.mxu0 0
        %9584 = vmatpush2.bf16.msra.mxu0 0
        %9585 = vmatprep.subr.bf16.mxu0 0
        %9586 = vmatpush2.bf16.msra.mxu0 0
        %9587 = vmatprep.subr.bf16.mxu0 0
        %9588 = vmatpush2.bf16.msra.mxu0 0
        %9589 = vmatprep.subr.bf16.mxu0 0
        %9590 = vmatpush2.bf16.msra.mxu0 0
        %9591 = vmatprep.subr.bf16.mxu0 0
        %9592 = vmatpush2.bf16.msra.mxu0 0
        %9593 = vmatprep.mubr.bf16.mxu0 0
        %9594 = vmatmul.mubr.bf16.gmra.mxu0 %v9544
        %v9595 = vpop.f32.mrf.mxu0
        %v9596 = vadd.f32 0.0, %v9595
        %v9597 = vpop.f32.mrf.mxu0
        %v9598 = vpop.f32.mrf.mxu0
        %v9599 = vadd.f32 0.0, %v9598
        %v9600 = vpop.f32.mrf.mxu0
        %9601 = vmatprep.mubr.bf16.mxu0 0
        %9602 = vmatmul.mubr.bf16.gmra.mxu0 %v9547
        %v9603 = vpop.f32.mrf.mxu0
        %v9604 = vadd.f32 0.0, %v9603
        %v9605 = vpop.f32.mrf.mxu0
        %v9606 = vpop.f32.mrf.mxu0
        %v9607 = vadd.f32 0.0, %v9606
        %v9608 = vpop.f32.mrf.mxu0
        %9609 = vmatprep.mubr.bf16.mxu0 0
        %9610 = vmatmul.mubr.bf16.gmra.mxu0 %v9550
        %v9611 = vpop.f32.mrf.mxu0
        %v9612 = vadd.f32 0.0, %v9611
        %v9613 = vpop.f32.mrf.mxu0
        %v9614 = vpop.f32.mrf.mxu0
        %v9615 = vadd.f32 0.0, %v9614
        %v9616 = vpop.f32.mrf.mxu0
        %9617 = vmatprep.mubr.bf16.mxu0 0
        %9618 = vmatmul.mubr.bf16.gmra.mxu0 %v9553
        %v9619 = vpop.f32.mrf.mxu0
        %v9620 = vadd.f32 0.0, %v9619
        %v9621 = vpop.f32.mrf.mxu0
        %v9622 = vpop.f32.mrf.mxu0
        %v9623 = vpop.f32.mrf.mxu0
        %9624 = vdwg.mxu0
        %v9625 = vpack.c.bf16 %v9599, %v9596
        %v9626 = vpack.c.bf16 %v9607, %v9604
        %v9627 = vpack.c.bf16 %v9615, %v9612
        %v9628 = vpack.c.bf16 %v9620, %v9620
        %v9633 = vunpack.c.l.b16 %v9625
        %v9634 = vunpack.c.h.b16 %v9625
        %v9635 = vunpack.c.l.b16 %v9626
        %v9636 = vunpack.c.h.b16 %v9626
        %v9637 = vunpack.c.l.b16 %v9627
        %v9638 = vunpack.c.h.b16 %v9627
        %v9639 = vunpack.c.l.b16 %v9628
        %v9640 = vpack.c.b16 %v9633, %v9633
        %v9641 = vpack.c.b16 %v9634, %v9634
        %v9642 = vpack.c.b16 %v9635, %v9635
        %v9643 = vpack.c.b16 %v9636, %v9636
        %v9644 = vpack.c.b16 %v9637, %v9637
        %v9645 = vpack.c.b16 %v9638, %v9638
        %v9646 = vpack.c.b16 %v9639, %v9639
        %vm9654 = vcmask 519168
        %9655 = vst.msk [vmem:[#allocation4] sm:$0xf] %vm9654, %v9640
        %9656 = vst.msk [vmem:[#allocation4 + $0x4] sm:$0xf] %vm9654, %v9641
        %9657 = vst.msk [vmem:[#allocation4 + $0x8] sm:$0xf] %vm9654, %v9642
        %9658 = vst.msk [vmem:[#allocation4 + $0xc] sm:$0xf] %vm9654, %v9643
        %9659 = vst.msk [vmem:[#allocation4 + $0x10] sm:$0xf] %vm9654, %v9644
        %9660 = vst.msk [vmem:[#allocation4 + $0x14] sm:$0xf] %vm9654, %v9645
        %9661 = vst.msk [vmem:[#allocation4 + $0x18] sm:$0xf] %vm9654, %v9646
        %v9662 = vld [vmem:[#allocation4] sm:$0xf]
        %v9663 = vld [vmem:[#allocation4 + $0x4] sm:$0xf]
        %v9664 = vld [vmem:[#allocation4 + $0x8] sm:$0xf]
        %v9665 = vld [vmem:[#allocation4 + $0xc] sm:$0xf]
        %v9666 = vld [vmem:[#allocation10] sm:$0xf]
        %v9667 = vld [vmem:[#allocation10 + $0x4] sm:$0xf]
        %v9668 = vld [vmem:[#allocation10 + $0x8] sm:$0xf]
        %v9669 = vld [vmem:[#allocation10 + $0xc] sm:$0xf]
        %v9670 = vld [vmem:[#allocation10 + $0x10] sm:$0xf]
        %v9671 = vld [vmem:[#allocation10 + $0x14] sm:$0xf]
        %v9672 = vld [vmem:[#allocation10 + $0x18] sm:$0xf]
        %v9673 = vld [vmem:[#allocation10 + $0x1c] sm:$0xf]
        %v9674 = vld [vmem:[#allocation4 + $0x10] sm:$0x1]
        %s9675 = scalar_lea.vmem [#allocation10], 32
        %v9676 = vld [vmem:[%s9675] sm:$0xf]
        %v9677 = vld [vmem:[%s9675 + $0x4] sm:$0xf]
        %v9678 = vld [vmem:[%s9675 + $0x8] sm:$0xf]
        %v9679 = vld [vmem:[%s9675 + $0xc] sm:$0xf]
        %v9680 = vld [vmem:[%s9675 + $0x10] sm:$0xf]
        %v9681 = vld [vmem:[%s9675 + $0x14] sm:$0xf]
        %v9682 = vld [vmem:[%s9675 + $0x18] sm:$0xf]
        %v9683 = vld [vmem:[%s9675 + $0x1c] sm:$0xf]
        %v9689 = vunpack.c.l.b16 %v9662
        %v9690 = vunpack.c.l.b16 %v9663
        %v9691 = vunpack.c.l.b16 %v9664
        %v9692 = vunpack.c.l.b16 %v9665
        %v9693 = vunpack.c.l.b16 %v9674
        %v9694 = vpack.c.b16 %v9690, %v9689
        %v9695 = vpack.c.b16 %v9692, %v9691
        %v9696 = vpack.c.b16 %v9693, %v9693
        %v9698 = vshrl.u32 %v9694, 16
        %v9700 = vshll.u32 %v9694, 16
        %v9702 = vrot.slane %v9700, 1
        %v9703 = vor.u32 %v9698, %v9702
        %v9705 = vshll.u32 %v9695, 16
        %v9707 = vrot.slane %v9705, 1
        %v9708 = vsel %vm7541, %v9703, %v9707
        %v9709 = vshrl.u32 %v9695, 16
        %v9711 = vor.u32 %v9709, %v9707
        %v9713 = vshll.u32 %v9696, 16
        %v9715 = vrot.slane %v9713, 1
        %v9716 = vsel %vm7541, %v9711, %v9715
        %v9725 = vunpack.c.l.b16 %v9676
        %v9726 = vunpack.c.l.b16 %v9677
        %v9727 = vunpack.c.l.b16 %v9678
        %v9728 = vunpack.c.l.b16 %v9679
        %v9729 = vunpack.c.l.b16 %v9680
        %v9730 = vunpack.c.l.b16 %v9681
        %v9731 = vunpack.c.l.b16 %v9682
        %v9732 = vunpack.c.l.b16 %v9683
        %v9733 = vpack.c.b16 %v9726, %v9725
        %v9734 = vpack.c.b16 %v9728, %v9727
        %v9735 = vpack.c.b16 %v9730, %v9729
        %v9736 = vpack.c.b16 %v9732, %v9731
        %vm9741 = vcmask 523264
        %v9743 = vsel %vm9741, %v9708, 0
        %v9746 = vsel %vm9741, %v9716, 0
        %9748 = vmatprep.subr.bf16.mxu0 0
        %9749 = vmatpush1.bf16.msra.mxu0 0
        %9750 = vmatprep.subr.bf16.mxu0 0
        %9751 = vmatpush1.bf16.msra.mxu0 0
        %9752 = vmatprep.subr.bf16.mxu0 0
        %9753 = vmatpush1.bf16.msra.mxu0 0
        %9754 = vmatprep.subr.bf16.mxu0 0
        %9755 = vmatpush1.bf16.msra.mxu0 0
        %9756 = vmatprep.subr.bf16.mxu0 0
        %9757 = vmatpush1.bf16.msra.mxu0 %v9736
        %9758 = vmatprep.subr.bf16.mxu0 0
        %9759 = vmatpush1.bf16.msra.mxu0 %v9735
        %9760 = vmatprep.subr.bf16.mxu0 0
        %9761 = vmatpush1.bf16.msra.mxu0 %v9734
        %9762 = vmatprep.subr.bf16.mxu0 0
        %9763 = vmatpush1.bf16.msra.mxu0 %v9733
        %9764 = vmatprep.subr.bf16.mxu0 0
        %9765 = vmatpush2.bf16.msra.mxu0 0
        %9766 = vmatprep.subr.bf16.mxu0 0
        %9767 = vmatpush2.bf16.msra.mxu0 0
        %9768 = vmatprep.subr.bf16.mxu0 0
        %9769 = vmatpush2.bf16.msra.mxu0 0
        %9770 = vmatprep.subr.bf16.mxu0 0
        %9771 = vmatpush2.bf16.msra.mxu0 0
        %9772 = vmatprep.subr.bf16.mxu0 0
        %9773 = vmatpush2.bf16.msra.mxu0 0
        %9774 = vmatprep.subr.bf16.mxu0 0
        %9775 = vmatpush2.bf16.msra.mxu0 0
        %9776 = vmatprep.subr.bf16.mxu0 0
        %9777 = vmatpush2.bf16.msra.mxu0 0
        %9778 = vmatprep.subr.bf16.mxu0 0
        %9779 = vmatpush2.bf16.msra.mxu0 0
        %9780 = vmatprep.mubr.bf16.mxu0 0
        %9781 = vmatmul.mubr.bf16.gmra.mxu0 %v9743
        %v9782 = vpop.f32.mrf.mxu0
        %v9783 = vadd.f32 0.0, %v9782
        %v9784 = vpop.f32.mrf.mxu0
        %v9785 = vpop.f32.mrf.mxu0
        %v9786 = vadd.f32 0.0, %v9785
        %v9787 = vpop.f32.mrf.mxu0
        %9788 = vmatprep.mubr.bf16.mxu0 0
        %9789 = vmatmul.mubr.bf16.gmra.mxu0 %v9746
        %v9790 = vpop.f32.mrf.mxu0
        %v9791 = vadd.f32 0.0, %v9790
        %v9792 = vpop.f32.mrf.mxu0
        %v9793 = vpop.f32.mrf.mxu0
        %v9794 = vadd.f32 0.0, %v9793
        %v9795 = vpop.f32.mrf.mxu0
        %9796 = vdwg.mxu0
        %v9805 = vunpack.c.l.b16 %v9666
        %v9806 = vunpack.c.l.b16 %v9667
        %v9807 = vunpack.c.l.b16 %v9668
        %v9808 = vunpack.c.l.b16 %v9669
        %v9809 = vunpack.c.l.b16 %v9670
        %v9810 = vunpack.c.l.b16 %v9671
        %v9811 = vunpack.c.l.b16 %v9672
        %v9812 = vunpack.c.l.b16 %v9673
        %v9813 = vpack.c.b16 %v9806, %v9805
        %v9814 = vpack.c.b16 %v9808, %v9807
        %v9815 = vpack.c.b16 %v9810, %v9809
        %v9816 = vpack.c.b16 %v9812, %v9811
        %v9821 = vsel %vm9741, %v9694, 0
        %v9823 = vsel %vm9741, %v9695, 0
        %9825 = vmatprep.subr.bf16.mxu0 0
        %9826 = vmatpush1.bf16.msra.mxu0 0
        %9827 = vmatprep.subr.bf16.mxu0 0
        %9828 = vmatpush1.bf16.msra.mxu0 0
        %9829 = vmatprep.subr.bf16.mxu0 0
        %9830 = vmatpush1.bf16.msra.mxu0 0
        %9831 = vmatprep.subr.bf16.mxu0 0
        %9832 = vmatpush1.bf16.msra.mxu0 0
        %9833 = vmatprep.subr.bf16.mxu0 0
        %9834 = vmatpush1.bf16.msra.mxu0 %v9816
        %9835 = vmatprep.subr.bf16.mxu0 0
        %9836 = vmatpush1.bf16.msra.mxu0 %v9815
        %9837 = vmatprep.subr.bf16.mxu0 0
        %9838 = vmatpush1.bf16.msra.mxu0 %v9814
        %9839 = vmatprep.subr.bf16.mxu0 0
        %9840 = vmatpush1.bf16.msra.mxu0 %v9813
        %9841 = vmatprep.subr.bf16.mxu0 0
        %9842 = vmatpush2.bf16.msra.mxu0 0
        %9843 = vmatprep.subr.bf16.mxu0 0
        %9844 = vmatpush2.bf16.msra.mxu0 0
        %9845 = vmatprep.subr.bf16.mxu0 0
        %9846 = vmatpush2.bf16.msra.mxu0 0
        %9847 = vmatprep.subr.bf16.mxu0 0
        %9848 = vmatpush2.bf16.msra.mxu0 0
        %9849 = vmatprep.subr.bf16.mxu0 0
        %9850 = vmatpush2.bf16.msra.mxu0 0
        %9851 = vmatprep.subr.bf16.mxu0 0
        %9852 = vmatpush2.bf16.msra.mxu0 0
        %9853 = vmatprep.subr.bf16.mxu0 0
        %9854 = vmatpush2.bf16.msra.mxu0 0
        %9855 = vmatprep.subr.bf16.mxu0 0
        %9856 = vmatpush2.bf16.msra.mxu0 0
        %9857 = vmatprep.mubr.bf16.mxu0 0
        %9858 = vmatmul.mubr.bf16.gmra.mxu0 %v9821
        %v9859 = vpop.f32.mrf.mxu0
        %v9860 = vadd.f32 %v9783, %v9859
        %v9861 = vpop.f32.mrf.mxu0
        %v9862 = vpop.f32.mrf.mxu0
        %v9863 = vadd.f32 %v9786, %v9862
        %v9864 = vpop.f32.mrf.mxu0
        %9865 = vmatprep.mubr.bf16.mxu0 0
        %9866 = vmatmul.mubr.bf16.gmra.mxu0 %v9823
        %v9867 = vpop.f32.mrf.mxu0
        %v9868 = vadd.f32 %v9791, %v9867
        %v9869 = vpop.f32.mrf.mxu0
        %v9870 = vpop.f32.mrf.mxu0
        %v9871 = vadd.f32 %v9794, %v9870
        %v9872 = vpop.f32.mrf.mxu0
        %9873 = vdwg.mxu0
        %v9874 = vld [vmem:[#allocation4] sm:$0xe]
        %s9875 = scalar_lea.vmem [#allocation10], 64
        %v9876 = vld [vmem:[%s9875] sm:$0xf]
        %v9877 = vld [vmem:[%s9875 + $0x4] sm:$0xf]
        %v9878 = vld [vmem:[%s9875 + $0x8] sm:$0xf]
        %v9879 = vld [vmem:[%s9875 + $0xc] sm:$0xf]
        %v9880 = vld [vmem:[%s9875 + $0x10] sm:$0xf]
        %v9881 = vld [vmem:[%s9875 + $0x14] sm:$0xf]
        %v9882 = vld [vmem:[%s9875 + $0x18] sm:$0xf]
        %v9883 = vld [vmem:[%s9875 + $0x1c] sm:$0xf]
        %v9885 = vunpack.c.l.b16 %v9874
        %v9886 = vpack.c.b16 %v9690, %v9885
        %v9887 = vrot.slane %v9886, 1
        %v9888 = vrot.slane %v9695, 1
        %v9889 = vsel %vm7877, %v9887, %v9888
        %v9890 = vrot.slane %v9696, 1
        %v9891 = vsel %vm7877, %v9888, %v9890
        %v9900 = vunpack.c.l.b16 %v9876
        %v9901 = vunpack.c.l.b16 %v9877
        %v9902 = vunpack.c.l.b16 %v9878
        %v9903 = vunpack.c.l.b16 %v9879
        %v9904 = vunpack.c.l.b16 %v9880
        %v9905 = vunpack.c.l.b16 %v9881
        %v9906 = vunpack.c.l.b16 %v9882
        %v9907 = vunpack.c.l.b16 %v9883
        %v9908 = vpack.c.b16 %v9901, %v9900
        %v9909 = vpack.c.b16 %v9903, %v9902
        %v9910 = vpack.c.b16 %v9905, %v9904
        %v9911 = vpack.c.b16 %v9907, %v9906
        %v9917 = vsel %vm9741, %v9889, 0
        %v9920 = vsel %vm9741, %v9891, 0
        %9922 = vmatprep.subr.bf16.mxu0 0
        %9923 = vmatpush1.bf16.msra.mxu0 0
        %9924 = vmatprep.subr.bf16.mxu0 0
        %9925 = vmatpush1.bf16.msra.mxu0 0
        %9926 = vmatprep.subr.bf16.mxu0 0
        %9927 = vmatpush1.bf16.msra.mxu0 0
        %9928 = vmatprep.subr.bf16.mxu0 0
        %9929 = vmatpush1.bf16.msra.mxu0 0
        %9930 = vmatprep.subr.bf16.mxu0 0
        %9931 = vmatpush1.bf16.msra.mxu0 %v9911
        %9932 = vmatprep.subr.bf16.mxu0 0
        %9933 = vmatpush1.bf16.msra.mxu0 %v9910
        %9934 = vmatprep.subr.bf16.mxu0 0
        %9935 = vmatpush1.bf16.msra.mxu0 %v9909
        %9936 = vmatprep.subr.bf16.mxu0 0
        %9937 = vmatpush1.bf16.msra.mxu0 %v9908
        %9938 = vmatprep.subr.bf16.mxu0 0
        %9939 = vmatpush2.bf16.msra.mxu0 0
        %9940 = vmatprep.subr.bf16.mxu0 0
        %9941 = vmatpush2.bf16.msra.mxu0 0
        %9942 = vmatprep.subr.bf16.mxu0 0
        %9943 = vmatpush2.bf16.msra.mxu0 0
        %9944 = vmatprep.subr.bf16.mxu0 0
        %9945 = vmatpush2.bf16.msra.mxu0 0
        %9946 = vmatprep.subr.bf16.mxu0 0
        %9947 = vmatpush2.bf16.msra.mxu0 0
        %9948 = vmatprep.subr.bf16.mxu0 0
        %9949 = vmatpush2.bf16.msra.mxu0 0
        %9950 = vmatprep.subr.bf16.mxu0 0
        %9951 = vmatpush2.bf16.msra.mxu0 0
        %9952 = vmatprep.subr.bf16.mxu0 0
        %9953 = vmatpush2.bf16.msra.mxu0 0
        %9954 = vmatprep.mubr.bf16.mxu0 0
        %9955 = vmatmul.mubr.bf16.gmra.mxu0 %v9917
        %v9956 = vpop.f32.mrf.mxu0
        %v9957 = vadd.f32 0.0, %v9956
        %v9958 = vpop.f32.mrf.mxu0
        %v9959 = vpop.f32.mrf.mxu0
        %v9960 = vadd.f32 0.0, %v9959
        %v9961 = vpop.f32.mrf.mxu0
        %9962 = vmatprep.mubr.bf16.mxu0 0
        %9963 = vmatmul.mubr.bf16.gmra.mxu0 %v9920
        %v9964 = vpop.f32.mrf.mxu0
        %v9965 = vadd.f32 0.0, %v9964
        %v9966 = vpop.f32.mrf.mxu0
        %v9967 = vpop.f32.mrf.mxu0
        %v9968 = vadd.f32 0.0, %v9967
        %v9969 = vpop.f32.mrf.mxu0
        %9970 = vdwg.mxu0
        %v9971 = vadd.f32 %v9860, %v9957
        %v9972 = vadd.f32 %v9863, %v9960
        %v9973 = vadd.f32 %v9868, %v9965
        %v9974 = vadd.f32 %v9871, %v9968
        %v9975 = vld [vmem:[#allocation4 + $0x10] sm:$0xf]
        %s9976 = scalar_lea.vmem [#allocation10], 96
        %v9977 = vld [vmem:[%s9976] sm:$0xf]
        %v9978 = vld [vmem:[%s9976 + $0x4] sm:$0xf]
        %v9979 = vld [vmem:[%s9976 + $0x8] sm:$0xf]
        %v9980 = vld [vmem:[%s9976 + $0xc] sm:$0xf]
        %v9981 = vld [vmem:[%s9976 + $0x10] sm:$0xf]
        %v9982 = vld [vmem:[%s9976 + $0x14] sm:$0xf]
        %v9983 = vld [vmem:[%s9976 + $0x18] sm:$0xf]
        %v9984 = vld [vmem:[%s9976 + $0x1c] sm:$0xf]
        %v9986 = vunpack.c.l.b16 %v9975
        %v9987 = vpack.c.b16 %v9691, %v9690
        %v9988 = vpack.c.b16 %v9986, %v9692
        %v9997 = vunpack.c.l.b16 %v9977
        %v9998 = vunpack.c.l.b16 %v9978
        %v9999 = vunpack.c.l.b16 %v9979
        %v10000 = vunpack.c.l.b16 %v9980
        %v10001 = vunpack.c.l.b16 %v9981
        %v10002 = vunpack.c.l.b16 %v9982
        %v10003 = vunpack.c.l.b16 %v9983
        %v10004 = vunpack.c.l.b16 %v9984
        %v10005 = vpack.c.b16 %v9998, %v9997
        %v10006 = vpack.c.b16 %v10000, %v9999
        %v10007 = vpack.c.b16 %v10002, %v10001
        %v10008 = vpack.c.b16 %v10004, %v10003
        %v10014 = vsel %vm9741, %v9987, 0
        %v10017 = vsel %vm9741, %v9988, 0
        %10019 = vmatprep.subr.bf16.mxu0 0
        %10020 = vmatpush1.bf16.msra.mxu0 0
        %10021 = vmatprep.subr.bf16.mxu0 0
        %10022 = vmatpush1.bf16.msra.mxu0 0
        %10023 = vmatprep.subr.bf16.mxu0 0
        %10024 = vmatpush1.bf16.msra.mxu0 0
        %10025 = vmatprep.subr.bf16.mxu0 0
        %10026 = vmatpush1.bf16.msra.mxu0 0
        %10027 = vmatprep.subr.bf16.mxu0 0
        %10028 = vmatpush1.bf16.msra.mxu0 %v10008
        %10029 = vmatprep.subr.bf16.mxu0 0
        %10030 = vmatpush1.bf16.msra.mxu0 %v10007
        %10031 = vmatprep.subr.bf16.mxu0 0
        %10032 = vmatpush1.bf16.msra.mxu0 %v10006
        %10033 = vmatprep.subr.bf16.mxu0 0
        %10034 = vmatpush1.bf16.msra.mxu0 %v10005
        %10035 = vmatprep.subr.bf16.mxu0 0
        %10036 = vmatpush2.bf16.msra.mxu0 0
        %10037 = vmatprep.subr.bf16.mxu0 0
        %10038 = vmatpush2.bf16.msra.mxu0 0
        %10039 = vmatprep.subr.bf16.mxu0 0
        %10040 = vmatpush2.bf16.msra.mxu0 0
        %10041 = vmatprep.subr.bf16.mxu0 0
        %10042 = vmatpush2.bf16.msra.mxu0 0
        %10043 = vmatprep.subr.bf16.mxu0 0
        %10044 = vmatpush2.bf16.msra.mxu0 0
        %10045 = vmatprep.subr.bf16.mxu0 0
        %10046 = vmatpush2.bf16.msra.mxu0 0
        %10047 = vmatprep.subr.bf16.mxu0 0
        %10048 = vmatpush2.bf16.msra.mxu0 0
        %10049 = vmatprep.subr.bf16.mxu0 0
        %10050 = vmatpush2.bf16.msra.mxu0 0
        %10051 = vmatprep.mubr.bf16.mxu0 0
        %10052 = vmatmul.mubr.bf16.gmra.mxu0 %v10014
        %v10053 = vpop.f32.mrf.mxu0
        %v10054 = vadd.f32 0.0, %v10053
        %v10055 = vpop.f32.mrf.mxu0
        %v10056 = vpop.f32.mrf.mxu0
        %v10057 = vadd.f32 0.0, %v10056
        %v10058 = vpop.f32.mrf.mxu0
        %10059 = vmatprep.mubr.bf16.mxu0 0
        %10060 = vmatmul.mubr.bf16.gmra.mxu0 %v10017
        %v10061 = vpop.f32.mrf.mxu0
        %v10062 = vadd.f32 0.0, %v10061
        %v10063 = vpop.f32.mrf.mxu0
        %v10064 = vpop.f32.mrf.mxu0
        %v10065 = vadd.f32 0.0, %v10064
        %v10066 = vpop.f32.mrf.mxu0
        %10067 = vdwg.mxu0
        %v10068 = vadd.f32 %v9971, %v10054
        %v10069 = vadd.f32 %v9972, %v10057
        %v10070 = vadd.f32 %v9973, %v10062
        %v10071 = vadd.f32 %v9974, %v10065
        %v10072 = vld [vmem:[#allocation4 + $0x4] sm:$0xf]
        %v10073 = vld [vmem:[#allocation4 + $0x8] sm:$0xf]
        %v10074 = vld [vmem:[#allocation4 + $0xc] sm:$0xf]
        %v10075 = vld [vmem:[#allocation4 + $0x10] sm:$0xf]
        %v10076 = vld [vmem:[#allocation4 + $0x14] sm:$0x1]
        %s10077 = scalar_lea.vmem [#allocation10], 128
        %v10078 = vld [vmem:[%s10077] sm:$0xf]
        %v10079 = vld [vmem:[%s10077 + $0x4] sm:$0xf]
        %v10080 = vld [vmem:[%s10077 + $0x8] sm:$0xf]
        %v10081 = vld [vmem:[%s10077 + $0xc] sm:$0xf]
        %v10082 = vld [vmem:[%s10077 + $0x10] sm:$0xf]
        %v10083 = vld [vmem:[%s10077 + $0x14] sm:$0xf]
        %v10084 = vld [vmem:[%s10077 + $0x18] sm:$0xf]
        %v10085 = vld [vmem:[%s10077 + $0x1c] sm:$0xf]
        %v10091 = vunpack.c.l.b16 %v10072
        %v10092 = vunpack.c.l.b16 %v10073
        %v10093 = vunpack.c.l.b16 %v10074
        %v10094 = vunpack.c.l.b16 %v10075
        %v10095 = vunpack.c.l.b16 %v10076
        %v10096 = vpack.c.b16 %v10092, %v10091
        %v10097 = vpack.c.b16 %v10094, %v10093
        %v10098 = vpack.c.b16 %v10095, %v10095
        %v10100 = vshrl.u32 %v10096, 16
        %v10102 = vshll.u32 %v10096, 16
        %v10104 = vrot.slane %v10102, 1
        %v10105 = vor.u32 %v10100, %v10104
        %v10107 = vshll.u32 %v10097, 16
        %v10109 = vrot.slane %v10107, 1
        %v10110 = vsel %vm7541, %v10105, %v10109
        %v10111 = vshrl.u32 %v10097, 16
        %v10113 = vor.u32 %v10111, %v10109
        %v10115 = vshll.u32 %v10098, 16
        %v10117 = vrot.slane %v10115, 1
        %v10118 = vsel %vm7541, %v10113, %v10117
        %v10127 = vunpack.c.l.b16 %v10078
        %v10128 = vunpack.c.l.b16 %v10079
        %v10129 = vunpack.c.l.b16 %v10080
        %v10130 = vunpack.c.l.b16 %v10081
        %v10131 = vunpack.c.l.b16 %v10082
        %v10132 = vunpack.c.l.b16 %v10083
        %v10133 = vunpack.c.l.b16 %v10084
        %v10134 = vunpack.c.l.b16 %v10085
        %v10135 = vpack.c.b16 %v10128, %v10127
        %v10136 = vpack.c.b16 %v10130, %v10129
        %v10137 = vpack.c.b16 %v10132, %v10131
        %v10138 = vpack.c.b16 %v10134, %v10133
        %v10144 = vsel %vm9741, %v10110, 0
        %v10147 = vsel %vm9741, %v10118, 0
        %10149 = vmatprep.subr.bf16.mxu0 0
        %10150 = vmatpush1.bf16.msra.mxu0 0
        %10151 = vmatprep.subr.bf16.mxu0 0
        %10152 = vmatpush1.bf16.msra.mxu0 0
        %10153 = vmatprep.subr.bf16.mxu0 0
        %10154 = vmatpush1.bf16.msra.mxu0 0
        %10155 = vmatprep.subr.bf16.mxu0 0
        %10156 = vmatpush1.bf16.msra.mxu0 0
        %10157 = vmatprep.subr.bf16.mxu0 0
        %10158 = vmatpush1.bf16.msra.mxu0 %v10138
        %10159 = vmatprep.subr.bf16.mxu0 0
        %10160 = vmatpush1.bf16.msra.mxu0 %v10137
        %10161 = vmatprep.subr.bf16.mxu0 0
        %10162 = vmatpush1.bf16.msra.mxu0 %v10136
        %10163 = vmatprep.subr.bf16.mxu0 0
        %10164 = vmatpush1.bf16.msra.mxu0 %v10135
        %10165 = vmatprep.subr.bf16.mxu0 0
        %10166 = vmatpush2.bf16.msra.mxu0 0
        %10167 = vmatprep.subr.bf16.mxu0 0
        %10168 = vmatpush2.bf16.msra.mxu0 0
        %10169 = vmatprep.subr.bf16.mxu0 0
        %10170 = vmatpush2.bf16.msra.mxu0 0
        %10171 = vmatprep.subr.bf16.mxu0 0
        %10172 = vmatpush2.bf16.msra.mxu0 0
        %10173 = vmatprep.subr.bf16.mxu0 0
        %10174 = vmatpush2.bf16.msra.mxu0 0
        %10175 = vmatprep.subr.bf16.mxu0 0
        %10176 = vmatpush2.bf16.msra.mxu0 0
        %10177 = vmatprep.subr.bf16.mxu0 0
        %10178 = vmatpush2.bf16.msra.mxu0 0
        %10179 = vmatprep.subr.bf16.mxu0 0
        %10180 = vmatpush2.bf16.msra.mxu0 0
        %10181 = vmatprep.mubr.bf16.mxu0 0
        %10182 = vmatmul.mubr.bf16.gmra.mxu0 %v10144
        %v10183 = vpop.f32.mrf.mxu0
        %v10184 = vadd.f32 0.0, %v10183
        %v10185 = vpop.f32.mrf.mxu0
        %v10186 = vpop.f32.mrf.mxu0
        %v10187 = vadd.f32 0.0, %v10186
        %v10188 = vpop.f32.mrf.mxu0
        %10189 = vmatprep.mubr.bf16.mxu0 0
        %10190 = vmatmul.mubr.bf16.gmra.mxu0 %v10147
        %v10191 = vpop.f32.mrf.mxu0
        %v10192 = vadd.f32 0.0, %v10191
        %v10193 = vpop.f32.mrf.mxu0
        %v10194 = vpop.f32.mrf.mxu0
        %v10195 = vadd.f32 0.0, %v10194
        %v10196 = vpop.f32.mrf.mxu0
        %10197 = vdwg.mxu0
        %v10198 = vadd.f32 %v10068, %v10184
        %v10199 = vadd.f32 %v10069, %v10187
        %v10200 = vadd.f32 %v10070, %v10192
        %v10201 = vadd.f32 %v10071, %v10195
        %v10202 = vld [vmem:[#allocation4 + $0x4] sm:$0xe]
        %s10203 = scalar_lea.vmem [#allocation10], 160
        %v10204 = vld [vmem:[%s10203] sm:$0xf]
        %v10205 = vld [vmem:[%s10203 + $0x4] sm:$0xf]
        %v10206 = vld [vmem:[%s10203 + $0x8] sm:$0xf]
        %v10207 = vld [vmem:[%s10203 + $0xc] sm:$0xf]
        %v10208 = vld [vmem:[%s10203 + $0x10] sm:$0xf]
        %v10209 = vld [vmem:[%s10203 + $0x14] sm:$0xf]
        %v10210 = vld [vmem:[%s10203 + $0x18] sm:$0xf]
        %v10211 = vld [vmem:[%s10203 + $0x1c] sm:$0xf]
        %v10213 = vunpack.c.l.b16 %v10202
        %v10214 = vpack.c.b16 %v10092, %v10213
        %v10215 = vrot.slane %v10214, 1
        %v10216 = vrot.slane %v10097, 1
        %v10217 = vsel %vm7877, %v10215, %v10216
        %v10218 = vrot.slane %v10098, 1
        %v10219 = vsel %vm7877, %v10216, %v10218
        %v10228 = vunpack.c.l.b16 %v10204
        %v10229 = vunpack.c.l.b16 %v10205
        %v10230 = vunpack.c.l.b16 %v10206
        %v10231 = vunpack.c.l.b16 %v10207
        %v10232 = vunpack.c.l.b16 %v10208
        %v10233 = vunpack.c.l.b16 %v10209
        %v10234 = vunpack.c.l.b16 %v10210
        %v10235 = vunpack.c.l.b16 %v10211
        %v10236 = vpack.c.b16 %v10229, %v10228
        %v10237 = vpack.c.b16 %v10231, %v10230
        %v10238 = vpack.c.b16 %v10233, %v10232
        %v10239 = vpack.c.b16 %v10235, %v10234
        %v10245 = vsel %vm9741, %v10217, 0
        %v10248 = vsel %vm9741, %v10219, 0
        %10250 = vmatprep.subr.bf16.mxu0 0
        %10251 = vmatpush1.bf16.msra.mxu0 0
        %10252 = vmatprep.subr.bf16.mxu0 0
        %10253 = vmatpush1.bf16.msra.mxu0 0
        %10254 = vmatprep.subr.bf16.mxu0 0
        %10255 = vmatpush1.bf16.msra.mxu0 0
        %10256 = vmatprep.subr.bf16.mxu0 0
        %10257 = vmatpush1.bf16.msra.mxu0 0
        %10258 = vmatprep.subr.bf16.mxu0 0
        %10259 = vmatpush1.bf16.msra.mxu0 %v10239
        %10260 = vmatprep.subr.bf16.mxu0 0
        %10261 = vmatpush1.bf16.msra.mxu0 %v10238
        %10262 = vmatprep.subr.bf16.mxu0 0
        %10263 = vmatpush1.bf16.msra.mxu0 %v10237
        %10264 = vmatprep.subr.bf16.mxu0 0
        %10265 = vmatpush1.bf16.msra.mxu0 %v10236
        %10266 = vmatprep.subr.bf16.mxu0 0
        %10267 = vmatpush2.bf16.msra.mxu0 0
        %10268 = vmatprep.subr.bf16.mxu0 0
        %10269 = vmatpush2.bf16.msra.mxu0 0
        %10270 = vmatprep.subr.bf16.mxu0 0
        %10271 = vmatpush2.bf16.msra.mxu0 0
        %10272 = vmatprep.subr.bf16.mxu0 0
        %10273 = vmatpush2.bf16.msra.mxu0 0
        %10274 = vmatprep.subr.bf16.mxu0 0
        %10275 = vmatpush2.bf16.msra.mxu0 0
        %10276 = vmatprep.subr.bf16.mxu0 0
        %10277 = vmatpush2.bf16.msra.mxu0 0
        %10278 = vmatprep.subr.bf16.mxu0 0
        %10279 = vmatpush2.bf16.msra.mxu0 0
        %10280 = vmatprep.subr.bf16.mxu0 0
        %10281 = vmatpush2.bf16.msra.mxu0 0
        %10282 = vmatprep.mubr.bf16.mxu0 0
        %10283 = vmatmul.mubr.bf16.gmra.mxu0 %v10245
        %v10284 = vpop.f32.mrf.mxu0
        %v10285 = vadd.f32 0.0, %v10284
        %v10286 = vpop.f32.mrf.mxu0
        %v10287 = vpop.f32.mrf.mxu0
        %v10288 = vadd.f32 0.0, %v10287
        %v10289 = vpop.f32.mrf.mxu0
        %10290 = vmatprep.mubr.bf16.mxu0 0
        %10291 = vmatmul.mubr.bf16.gmra.mxu0 %v10248
        %v10292 = vpop.f32.mrf.mxu0
        %v10293 = vadd.f32 0.0, %v10292
        %v10294 = vpop.f32.mrf.mxu0
        %v10295 = vpop.f32.mrf.mxu0
        %v10296 = vadd.f32 0.0, %v10295
        %v10297 = vpop.f32.mrf.mxu0
        %10298 = vdwg.mxu0
        %v10299 = vadd.f32 %v10198, %v10285
        %v10300 = vadd.f32 %v10199, %v10288
        %v10301 = vadd.f32 %v10200, %v10293
        %v10302 = vadd.f32 %v10201, %v10296
        %v10303 = vld [vmem:[#allocation4 + $0x14] sm:$0xf]
        %s10304 = scalar_lea.vmem [#allocation10], 192
        %v10305 = vld [vmem:[%s10304] sm:$0xf]
        %v10306 = vld [vmem:[%s10304 + $0x4] sm:$0xf]
        %v10307 = vld [vmem:[%s10304 + $0x8] sm:$0xf]
        %v10308 = vld [vmem:[%s10304 + $0xc] sm:$0xf]
        %v10309 = vld [vmem:[%s10304 + $0x10] sm:$0xf]
        %v10310 = vld [vmem:[%s10304 + $0x14] sm:$0xf]
        %v10311 = vld [vmem:[%s10304 + $0x18] sm:$0xf]
        %v10312 = vld [vmem:[%s10304 + $0x1c] sm:$0xf]
        %v10314 = vunpack.c.l.b16 %v10303
        %v10315 = vpack.c.b16 %v10093, %v10092
        %v10316 = vpack.c.b16 %v10314, %v10094
        %v10325 = vunpack.c.l.b16 %v10305
        %v10326 = vunpack.c.l.b16 %v10306
        %v10327 = vunpack.c.l.b16 %v10307
        %v10328 = vunpack.c.l.b16 %v10308
        %v10329 = vunpack.c.l.b16 %v10309
        %v10330 = vunpack.c.l.b16 %v10310
        %v10331 = vunpack.c.l.b16 %v10311
        %v10332 = vunpack.c.l.b16 %v10312
        %v10333 = vpack.c.b16 %v10326, %v10325
        %v10334 = vpack.c.b16 %v10328, %v10327
        %v10335 = vpack.c.b16 %v10330, %v10329
        %v10336 = vpack.c.b16 %v10332, %v10331
        %v10342 = vsel %vm9741, %v10315, 0
        %v10345 = vsel %vm9741, %v10316, 0
        %10347 = vmatprep.subr.bf16.mxu0 0
        %10348 = vmatpush1.bf16.msra.mxu0 0
        %10349 = vmatprep.subr.bf16.mxu0 0
        %10350 = vmatpush1.bf16.msra.mxu0 0
        %10351 = vmatprep.subr.bf16.mxu0 0
        %10352 = vmatpush1.bf16.msra.mxu0 0
        %10353 = vmatprep.subr.bf16.mxu0 0
        %10354 = vmatpush1.bf16.msra.mxu0 0
        %10355 = vmatprep.subr.bf16.mxu0 0
        %10356 = vmatpush1.bf16.msra.mxu0 %v10336
        %10357 = vmatprep.subr.bf16.mxu0 0
        %10358 = vmatpush1.bf16.msra.mxu0 %v10335
        %10359 = vmatprep.subr.bf16.mxu0 0
        %10360 = vmatpush1.bf16.msra.mxu0 %v10334
        %10361 = vmatprep.subr.bf16.mxu0 0
        %10362 = vmatpush1.bf16.msra.mxu0 %v10333
        %10363 = vmatprep.subr.bf16.mxu0 0
        %10364 = vmatpush2.bf16.msra.mxu0 0
        %10365 = vmatprep.subr.bf16.mxu0 0
        %10366 = vmatpush2.bf16.msra.mxu0 0
        %10367 = vmatprep.subr.bf16.mxu0 0
        %10368 = vmatpush2.bf16.msra.mxu0 0
        %10369 = vmatprep.subr.bf16.mxu0 0
        %10370 = vmatpush2.bf16.msra.mxu0 0
        %10371 = vmatprep.subr.bf16.mxu0 0
        %10372 = vmatpush2.bf16.msra.mxu0 0
        %10373 = vmatprep.subr.bf16.mxu0 0
        %10374 = vmatpush2.bf16.msra.mxu0 0
        %10375 = vmatprep.subr.bf16.mxu0 0
        %10376 = vmatpush2.bf16.msra.mxu0 0
        %10377 = vmatprep.subr.bf16.mxu0 0
        %10378 = vmatpush2.bf16.msra.mxu0 0
        %10379 = vmatprep.mubr.bf16.mxu0 0
        %10380 = vmatmul.mubr.bf16.gmra.mxu0 %v10342
        %v10381 = vpop.f32.mrf.mxu0
        %v10382 = vadd.f32 0.0, %v10381
        %v10383 = vpop.f32.mrf.mxu0
        %v10384 = vpop.f32.mrf.mxu0
        %v10385 = vadd.f32 0.0, %v10384
        %v10386 = vpop.f32.mrf.mxu0
        %10387 = vmatprep.mubr.bf16.mxu0 0
        %10388 = vmatmul.mubr.bf16.gmra.mxu0 %v10345
        %v10389 = vpop.f32.mrf.mxu0
        %v10390 = vadd.f32 0.0, %v10389
        %v10391 = vpop.f32.mrf.mxu0
        %v10392 = vpop.f32.mrf.mxu0
        %v10393 = vadd.f32 0.0, %v10392
        %v10394 = vpop.f32.mrf.mxu0
        %10395 = vdwg.mxu0
        %v10396 = vadd.f32 %v10299, %v10382
        %v10397 = vadd.f32 %v10300, %v10385
        %v10398 = vadd.f32 %v10301, %v10390
        %v10399 = vadd.f32 %v10302, %v10393
        %v10400 = vld [vmem:[#allocation4 + $0x8] sm:$0xf]
        %v10401 = vld [vmem:[#allocation4 + $0xc] sm:$0xf]
        %v10402 = vld [vmem:[#allocation4 + $0x10] sm:$0xf]
        %v10403 = vld [vmem:[#allocation4 + $0x14] sm:$0xf]
        %v10404 = vld [vmem:[#allocation4 + $0x18] sm:$0x1]
        %s10405 = scalar_lea.vmem [#allocation10], 224
        %v10406 = vld [vmem:[%s10405] sm:$0xf]
        %v10407 = vld [vmem:[%s10405 + $0x4] sm:$0xf]
        %v10408 = vld [vmem:[%s10405 + $0x8] sm:$0xf]
        %v10409 = vld [vmem:[%s10405 + $0xc] sm:$0xf]
        %v10410 = vld [vmem:[%s10405 + $0x10] sm:$0xf]
        %v10411 = vld [vmem:[%s10405 + $0x14] sm:$0xf]
        %v10412 = vld [vmem:[%s10405 + $0x18] sm:$0xf]
        %v10413 = vld [vmem:[%s10405 + $0x1c] sm:$0xf]
        %v10419 = vunpack.c.l.b16 %v10400
        %v10420 = vunpack.c.l.b16 %v10401
        %v10421 = vunpack.c.l.b16 %v10402
        %v10422 = vunpack.c.l.b16 %v10403
        %v10423 = vunpack.c.l.b16 %v10404
        %v10424 = vpack.c.b16 %v10420, %v10419
        %v10425 = vpack.c.b16 %v10422, %v10421
        %v10426 = vpack.c.b16 %v10423, %v10423
        %v10428 = vshrl.u32 %v10424, 16
        %v10430 = vshll.u32 %v10424, 16
        %v10432 = vrot.slane %v10430, 1
        %v10433 = vor.u32 %v10428, %v10432
        %v10435 = vshll.u32 %v10425, 16
        %v10437 = vrot.slane %v10435, 1
        %v10438 = vsel %vm7541, %v10433, %v10437
        %v10439 = vshrl.u32 %v10425, 16
        %v10441 = vor.u32 %v10439, %v10437
        %v10443 = vshll.u32 %v10426, 16
        %v10445 = vrot.slane %v10443, 1
        %v10446 = vsel %vm7541, %v10441, %v10445
        %v10455 = vunpack.c.l.b16 %v10406
        %v10456 = vunpack.c.l.b16 %v10407
        %v10457 = vunpack.c.l.b16 %v10408
        %v10458 = vunpack.c.l.b16 %v10409
        %v10459 = vunpack.c.l.b16 %v10410
        %v10460 = vunpack.c.l.b16 %v10411
        %v10461 = vunpack.c.l.b16 %v10412
        %v10462 = vunpack.c.l.b16 %v10413
        %v10463 = vpack.c.b16 %v10456, %v10455
        %v10464 = vpack.c.b16 %v10458, %v10457
        %v10465 = vpack.c.b16 %v10460, %v10459
        %v10466 = vpack.c.b16 %v10462, %v10461
        %v10472 = vsel %vm9741, %v10438, 0
        %v10475 = vsel %vm9741, %v10446, 0
        %10477 = vmatprep.subr.bf16.mxu0 0
        %10478 = vmatpush1.bf16.msra.mxu0 0
        %10479 = vmatprep.subr.bf16.mxu0 0
        %10480 = vmatpush1.bf16.msra.mxu0 0
        %10481 = vmatprep.subr.bf16.mxu0 0
        %10482 = vmatpush1.bf16.msra.mxu0 0
        %10483 = vmatprep.subr.bf16.mxu0 0
        %10484 = vmatpush1.bf16.msra.mxu0 0
        %10485 = vmatprep.subr.bf16.mxu0 0
        %10486 = vmatpush1.bf16.msra.mxu0 %v10466
        %10487 = vmatprep.subr.bf16.mxu0 0
        %10488 = vmatpush1.bf16.msra.mxu0 %v10465
        %10489 = vmatprep.subr.bf16.mxu0 0
        %10490 = vmatpush1.bf16.msra.mxu0 %v10464
        %10491 = vmatprep.subr.bf16.mxu0 0
        %10492 = vmatpush1.bf16.msra.mxu0 %v10463
        %10493 = vmatprep.subr.bf16.mxu0 0
        %10494 = vmatpush2.bf16.msra.mxu0 0
        %10495 = vmatprep.subr.bf16.mxu0 0
        %10496 = vmatpush2.bf16.msra.mxu0 0
        %10497 = vmatprep.subr.bf16.mxu0 0
        %10498 = vmatpush2.bf16.msra.mxu0 0
        %10499 = vmatprep.subr.bf16.mxu0 0
        %10500 = vmatpush2.bf16.msra.mxu0 0
        %10501 = vmatprep.subr.bf16.mxu0 0
        %10502 = vmatpush2.bf16.msra.mxu0 0
        %10503 = vmatprep.subr.bf16.mxu0 0
        %10504 = vmatpush2.bf16.msra.mxu0 0
        %10505 = vmatprep.subr.bf16.mxu0 0
        %10506 = vmatpush2.bf16.msra.mxu0 0
        %10507 = vmatprep.subr.bf16.mxu0 0
        %10508 = vmatpush2.bf16.msra.mxu0 0
        %10509 = vmatprep.mubr.bf16.mxu0 0
        %10510 = vmatmul.mubr.bf16.gmra.mxu0 %v10472
        %v10511 = vpop.f32.mrf.mxu0
        %v10512 = vadd.f32 0.0, %v10511
        %v10513 = vpop.f32.mrf.mxu0
        %v10514 = vpop.f32.mrf.mxu0
        %v10515 = vadd.f32 0.0, %v10514
        %v10516 = vpop.f32.mrf.mxu0
        %10517 = vmatprep.mubr.bf16.mxu0 0
        %10518 = vmatmul.mubr.bf16.gmra.mxu0 %v10475
        %v10519 = vpop.f32.mrf.mxu0
        %v10520 = vadd.f32 0.0, %v10519
        %v10521 = vpop.f32.mrf.mxu0
        %v10522 = vpop.f32.mrf.mxu0
        %v10523 = vadd.f32 0.0, %v10522
        %v10524 = vpop.f32.mrf.mxu0
        %10525 = vdwg.mxu0
        %v10526 = vadd.f32 %v10396, %v10512
        %v10527 = vadd.f32 %v10397, %v10515
        %v10528 = vadd.f32 %v10398, %v10520
        %v10529 = vadd.f32 %v10399, %v10523
        %v10530 = vld [vmem:[#allocation4 + $0x8] sm:$0xe]
        %s10531 = scalar_lea.vmem [#allocation10], 256
        %v10532 = vld [vmem:[%s10531] sm:$0xf]
        %v10533 = vld [vmem:[%s10531 + $0x4] sm:$0xf]
        %v10534 = vld [vmem:[%s10531 + $0x8] sm:$0xf]
        %v10535 = vld [vmem:[%s10531 + $0xc] sm:$0xf]
        %v10536 = vld [vmem:[%s10531 + $0x10] sm:$0xf]
        %v10537 = vld [vmem:[%s10531 + $0x14] sm:$0xf]
        %v10538 = vld [vmem:[%s10531 + $0x18] sm:$0xf]
        %v10539 = vld [vmem:[%s10531 + $0x1c] sm:$0xf]
        %v10541 = vunpack.c.l.b16 %v10530
        %v10542 = vpack.c.b16 %v10420, %v10541
        %v10543 = vrot.slane %v10542, 1
        %v10544 = vrot.slane %v10425, 1
        %v10545 = vsel %vm7877, %v10543, %v10544
        %v10546 = vrot.slane %v10426, 1
        %v10547 = vsel %vm7877, %v10544, %v10546
        %v10556 = vunpack.c.l.b16 %v10532
        %v10557 = vunpack.c.l.b16 %v10533
        %v10558 = vunpack.c.l.b16 %v10534
        %v10559 = vunpack.c.l.b16 %v10535
        %v10560 = vunpack.c.l.b16 %v10536
        %v10561 = vunpack.c.l.b16 %v10537
        %v10562 = vunpack.c.l.b16 %v10538
        %v10563 = vunpack.c.l.b16 %v10539
        %v10564 = vpack.c.b16 %v10557, %v10556
        %v10565 = vpack.c.b16 %v10559, %v10558
        %v10566 = vpack.c.b16 %v10561, %v10560
        %v10567 = vpack.c.b16 %v10563, %v10562
        %v10573 = vsel %vm9741, %v10545, 0
        %v10576 = vsel %vm9741, %v10547, 0
        %10578 = vmatprep.subr.bf16.mxu0 0
        %10579 = vmatpush1.bf16.msra.mxu0 0
        %10580 = vmatprep.subr.bf16.mxu0 0
        %10581 = vmatpush1.bf16.msra.mxu0 0
        %10582 = vmatprep.subr.bf16.mxu0 0
        %10583 = vmatpush1.bf16.msra.mxu0 0
        %10584 = vmatprep.subr.bf16.mxu0 0
        %10585 = vmatpush1.bf16.msra.mxu0 0
        %10586 = vmatprep.subr.bf16.mxu0 0
        %10587 = vmatpush1.bf16.msra.mxu0 %v10567
        %10588 = vmatprep.subr.bf16.mxu0 0
        %10589 = vmatpush1.bf16.msra.mxu0 %v10566
        %10590 = vmatprep.subr.bf16.mxu0 0
        %10591 = vmatpush1.bf16.msra.mxu0 %v10565
        %10592 = vmatprep.subr.bf16.mxu0 0
        %10593 = vmatpush1.bf16.msra.mxu0 %v10564
        %10594 = vmatprep.subr.bf16.mxu0 0
        %10595 = vmatpush2.bf16.msra.mxu0 0
        %10596 = vmatprep.subr.bf16.mxu0 0
        %10597 = vmatpush2.bf16.msra.mxu0 0
        %10598 = vmatprep.subr.bf16.mxu0 0
        %10599 = vmatpush2.bf16.msra.mxu0 0
        %10600 = vmatprep.subr.bf16.mxu0 0
        %10601 = vmatpush2.bf16.msra.mxu0 0
        %10602 = vmatprep.subr.bf16.mxu0 0
        %10603 = vmatpush2.bf16.msra.mxu0 0
        %10604 = vmatprep.subr.bf16.mxu0 0
        %10605 = vmatpush2.bf16.msra.mxu0 0
        %10606 = vmatprep.subr.bf16.mxu0 0
        %10607 = vmatpush2.bf16.msra.mxu0 0
        %10608 = vmatprep.subr.bf16.mxu0 0
        %10609 = vmatpush2.bf16.msra.mxu0 0
        %10610 = vmatprep.mubr.bf16.mxu0 0
        %10611 = vmatmul.mubr.bf16.gmra.mxu0 %v10573
        %v10612 = vpop.f32.mrf.mxu0
        %v10613 = vadd.f32 0.0, %v10612
        %v10614 = vpop.f32.mrf.mxu0
        %v10615 = vpop.f32.mrf.mxu0
        %v10616 = vadd.f32 0.0, %v10615
        %v10617 = vpop.f32.mrf.mxu0
        %10618 = vmatprep.mubr.bf16.mxu0 0
        %10619 = vmatmul.mubr.bf16.gmra.mxu0 %v10576
        %v10620 = vpop.f32.mrf.mxu0
        %v10621 = vadd.f32 0.0, %v10620
        %v10622 = vpop.f32.mrf.mxu0
        %v10623 = vpop.f32.mrf.mxu0
        %v10624 = vadd.f32 0.0, %v10623
        %v10625 = vpop.f32.mrf.mxu0
        %10626 = vdwg.mxu0
        %v10627 = vadd.f32 %v10526, %v10613
        %v10628 = vadd.f32 %v10527, %v10616
        %v10629 = vadd.f32 %v10528, %v10621
        %v10630 = vadd.f32 %v10529, %v10624
        %v10631 = vld [vmem:[%s8] sm:$0x1]
        %v10633 = vlaneseq
        %v10634 = vshrl.u32 %v10633, 7
        %v10635 = vsub.s32 0, %v10634
        %v10636 = vrot.slane %v10631, %v10635
        %v10638 = vadd.f32 %v10627, %v10636
        %v10639 = vadd.f32 %v10628, %v10636
        %v10640 = vadd.f32 %v10629, %v10636
        %v10641 = vadd.f32 %v10630, %v10636
        %v10642 = vmax.f32 %v10638, 0.0
        %v10643 = vmax.f32 %v10639, 0.0
        %v10644 = vmax.f32 %v10640, 0.0
        %v10645 = vmax.f32 %v10641, 0.0
        %v10646 = vld [vmem:[%s9] sm:$0x3]
        %v10647 = vpack.c.bf16 %v10643, %v10642
        %v10648 = vpack.c.bf16 %v10645, %v10644
        %v10650 = vsel %vm915, %v10646, 0
        %10652 = vmatprep.subr.bf16.mxu0 0
        %10653 = vmatpush1.bf16.msra.mxu0 0
        %10654 = vmatprep.subr.bf16.mxu0 0
        %10655 = vmatpush1.bf16.msra.mxu0 0
        %10656 = vmatprep.subr.bf16.mxu0 0
        %10657 = vmatpush1.bf16.msra.mxu0 0
        %10658 = vmatprep.subr.bf16.mxu0 0
        %10659 = vmatpush1.bf16.msra.mxu0 0
        %10660 = vmatprep.subr.bf16.mxu0 0
        %10661 = vmatpush1.bf16.msra.mxu0 0
        %10662 = vmatprep.subr.bf16.mxu0 0
        %10663 = vmatpush1.bf16.msra.mxu0 0
        %10664 = vmatprep.subr.bf16.mxu0 0
        %10665 = vmatpush1.bf16.msra.mxu0 %v10648
        %10666 = vmatprep.subr.bf16.mxu0 0
        %10667 = vmatpush1.bf16.msra.mxu0 %v10647
        %10668 = vmatprep.subr.bf16.mxu0 0
        %10669 = vmatpush2.bf16.msra.mxu0 0
        %10670 = vmatprep.subr.bf16.mxu0 0
        %10671 = vmatpush2.bf16.msra.mxu0 0
        %10672 = vmatprep.subr.bf16.mxu0 0
        %10673 = vmatpush2.bf16.msra.mxu0 0
        %10674 = vmatprep.subr.bf16.mxu0 0
        %10675 = vmatpush2.bf16.msra.mxu0 0
        %10676 = vmatprep.subr.bf16.mxu0 0
        %10677 = vmatpush2.bf16.msra.mxu0 0
        %10678 = vmatprep.subr.bf16.mxu0 0
        %10679 = vmatpush2.bf16.msra.mxu0 0
        %10680 = vmatprep.subr.bf16.mxu0 0
        %10681 = vmatpush2.bf16.msra.mxu0 0
        %10682 = vmatprep.subr.bf16.mxu0 0
        %10683 = vmatpush2.bf16.msra.mxu0 0
        %10684 = vmatprep.mubr.bf16.mxu0 0
        %10685 = vmatmul.mubr.bf16.gmra.mxu0 %v10650
        %v10686 = vpop.f32.mrf.mxu0
        %v10687 = vadd.f32 0.0, %v10686
        %v10688 = vpop.f32.mrf.mxu0
        %v10689 = vpop.f32.mrf.mxu0
        %v10690 = vpop.f32.mrf.mxu0
        %10691 = vdwg.mxu0
        %v10692 = vld [vmem:[%s11] sm:$0x3]
        %v10693 = vpack.c.bf16 %v10687, %v10687
        %v10694 = vld [vmem:[%s10] sm:$0xff]
        %v10695 = vld [vmem:[%s10 + $0x8] sm:$0xff]
        %v10696 = vld [vmem:[%s10 + $0x10] sm:$0xff]
        %v10697 = vld [vmem:[%s10 + $0x18] sm:$0xff]
        %v10698 = vld [vmem:[%s10 + $0x20] sm:$0xff]
        %v10699 = vld [vmem:[%s10 + $0x28] sm:$0xff]
        %v10700 = vld [vmem:[%s10 + $0x30] sm:$0xff]
        %v10701 = vld [vmem:[%s10 + $0x38] sm:$0xff]
        %v10702 = vld [vmem:[%s10 + $0x40] sm:$0xff]
        %v10703 = vld [vmem:[%s10 + $0x48] sm:$0xff]
        %v10704 = vld [vmem:[%s10 + $0x50] sm:$0xff]
        %v10705 = vld [vmem:[%s10 + $0x58] sm:$0xff]
        %v10706 = vld [vmem:[%s10 + $0x60] sm:$0xff]
        %v10707 = vld [vmem:[%s10 + $0x68] sm:$0xff]
        %v10708 = vld [vmem:[%s10 + $0x70] sm:$0xff]
        %v10709 = vld [vmem:[%s10 + $0x78] sm:$0xff]
        %v10726 = vunpack.c.l.b16 %v10694
        %v10727 = vunpack.c.h.b16 %v10694
        %v10728 = vunpack.c.l.b16 %v10695
        %v10729 = vunpack.c.h.b16 %v10695
        %v10730 = vunpack.c.l.b16 %v10696
        %v10731 = vunpack.c.h.b16 %v10696
        %v10732 = vunpack.c.l.b16 %v10697
        %v10733 = vunpack.c.h.b16 %v10697
        %v10734 = vunpack.c.l.b16 %v10698
        %v10735 = vunpack.c.h.b16 %v10698
        %v10736 = vunpack.c.l.b16 %v10699
        %v10737 = vunpack.c.h.b16 %v10699
        %v10738 = vunpack.c.l.b16 %v10700
        %v10739 = vunpack.c.h.b16 %v10700
        %v10740 = vunpack.c.l.b16 %v10701
        %v10741 = vunpack.c.h.b16 %v10701
        %v10742 = vunpack.c.l.b16 %v10702
        %v10743 = vunpack.c.h.b16 %v10702
        %v10744 = vunpack.c.l.b16 %v10703
        %v10745 = vunpack.c.h.b16 %v10703
        %v10746 = vunpack.c.l.b16 %v10704
        %v10747 = vunpack.c.h.b16 %v10704
        %v10748 = vunpack.c.l.b16 %v10705
        %v10749 = vunpack.c.h.b16 %v10705
        %v10750 = vunpack.c.l.b16 %v10706
        %v10751 = vunpack.c.h.b16 %v10706
        %v10752 = vunpack.c.l.b16 %v10707
        %v10753 = vunpack.c.h.b16 %v10707
        %v10754 = vunpack.c.l.b16 %v10708
        %v10755 = vunpack.c.h.b16 %v10708
        %v10756 = vunpack.c.l.b16 %v10709
        %v10757 = vunpack.c.h.b16 %v10709
        %v10758 = vpack.c.b16 %v10728, %v10726
        %v10759 = vpack.c.b16 %v10729, %v10727
        %v10760 = vpack.c.b16 %v10732, %v10730
        %v10761 = vpack.c.b16 %v10733, %v10731
        %v10762 = vpack.c.b16 %v10736, %v10734
        %v10763 = vpack.c.b16 %v10737, %v10735
        %v10764 = vpack.c.b16 %v10740, %v10738
        %v10765 = vpack.c.b16 %v10741, %v10739
        %v10766 = vpack.c.b16 %v10744, %v10742
        %v10767 = vpack.c.b16 %v10745, %v10743
        %v10768 = vpack.c.b16 %v10748, %v10746
        %v10769 = vpack.c.b16 %v10749, %v10747
        %v10770 = vpack.c.b16 %v10752, %v10750
        %v10771 = vpack.c.b16 %v10753, %v10751
        %v10772 = vpack.c.b16 %v10756, %v10754
        %v10773 = vpack.c.b16 %v10757, %v10755
        %10790 = vmatprep.subr.bf16.mxu0 %v10773
        %10791 = vmatpush1.bf16.msra.mxu0 %v10772
        %10792 = vmatprep.subr.bf16.mxu0 %v10771
        %10793 = vmatpush1.bf16.msra.mxu0 %v10770
        %10794 = vmatprep.subr.bf16.mxu0 %v10769
        %10795 = vmatpush1.bf16.msra.mxu0 %v10768
        %10796 = vmatprep.subr.bf16.mxu0 %v10767
        %10797 = vmatpush1.bf16.msra.mxu0 %v10766
        %10798 = vmatprep.subr.bf16.mxu0 %v10765
        %10799 = vmatpush1.bf16.msra.mxu0 %v10764
        %10800 = vmatprep.subr.bf16.mxu0 %v10763
        %10801 = vmatpush1.bf16.msra.mxu0 %v10762
        %10802 = vmatprep.subr.bf16.mxu0 %v10761
        %10803 = vmatpush1.bf16.msra.mxu0 %v10760
        %10804 = vmatprep.subr.bf16.mxu0 %v10759
        %10805 = vmatpush1.bf16.msra.mxu0 %v10758
        %10806 = vmatprep.subr.bf16.mxu0 0
        %10807 = vmatpush2.bf16.msra.mxu0 0
        %10808 = vmatprep.subr.bf16.mxu0 0
        %10809 = vmatpush2.bf16.msra.mxu0 0
        %10810 = vmatprep.subr.bf16.mxu0 0
        %10811 = vmatpush2.bf16.msra.mxu0 0
        %10812 = vmatprep.subr.bf16.mxu0 0
        %10813 = vmatpush2.bf16.msra.mxu0 0
        %10814 = vmatprep.subr.bf16.mxu0 0
        %10815 = vmatpush2.bf16.msra.mxu0 0
        %10816 = vmatprep.subr.bf16.mxu0 0
        %10817 = vmatpush2.bf16.msra.mxu0 0
        %10818 = vmatprep.subr.bf16.mxu0 0
        %10819 = vmatpush2.bf16.msra.mxu0 0
        %10820 = vmatprep.subr.bf16.mxu0 0
        %10821 = vmatpush2.bf16.msra.mxu0 0
        %10822 = vmatprep.mubr.bf16.mxu0 0
        %10823 = vmatmul.mubr.bf16.gmra.mxu0 %v10693
        %v10824 = vpop.f32.mrf.mxu0
        %v10825 = vadd.f32 0.0, %v10824
        %v10826 = vpop.f32.mrf.mxu0
        %v10827 = vadd.f32 0.0, %v10826
        %v10828 = vpop.f32.mrf.mxu0
        %v10829 = vpop.f32.mrf.mxu0
        %10830 = vdwg.mxu0
        %v10833 = vcombine.low %v10825, %v10827
        %v10835 = vunpack.c.l.s4 1966171168
        %v10836 = vunpack.c.0.s8 %v10835
        %v10837 = vlaneseq
        %v10838 = vshrl.u32 %v10837, 7
        %v10839 = vsub.s32 %v10836, %v10838
        %v10840 = vrot.slane %v10833, %v10839
        %v10842 = vunpack.c.l.s4 1966171168
        %v10843 = vunpack.c.0.s8 %v10842
        %v10844 = vlaneseq
        %v10845 = vshrl.u32 %v10844, 7
        %v10846 = vsub.s32 %v10843, %v10845
        %v10847 = vrot.slane %v10840, %v10846
        %v10849 = vadd.f32 %v10692, %v10847
        %s10850 = scalar_lea.vmem %s10, 128
        %v10851 = vld [vmem:[%s10850] sm:$0xff]
        %v10852 = vld [vmem:[%s10850 + $0x8] sm:$0xff]
        %v10853 = vld [vmem:[%s10850 + $0x10] sm:$0xff]
        %v10854 = vld [vmem:[%s10850 + $0x18] sm:$0xff]
        %v10855 = vld [vmem:[%s10850 + $0x20] sm:$0xff]
        %v10856 = vld [vmem:[%s10850 + $0x28] sm:$0xff]
        %v10857 = vld [vmem:[%s10850 + $0x30] sm:$0xff]
        %v10858 = vld [vmem:[%s10850 + $0x38] sm:$0xff]
        %v10859 = vld [vmem:[%s10850 + $0x40] sm:$0xff]
        %v10860 = vld [vmem:[%s10850 + $0x48] sm:$0xff]
        %v10861 = vld [vmem:[%s10850 + $0x50] sm:$0xff]
        %v10862 = vld [vmem:[%s10850 + $0x58] sm:$0xff]
        %v10863 = vld [vmem:[%s10850 + $0x60] sm:$0xff]
        %v10864 = vld [vmem:[%s10850 + $0x68] sm:$0xff]
        %v10865 = vld [vmem:[%s10850 + $0x70] sm:$0xff]
        %v10866 = vld [vmem:[%s10850 + $0x78] sm:$0xff]
        %v10868 = vshrl.u32 %v10693, 16
        %v10887 = vunpack.c.l.b16 %v10851
        %v10888 = vunpack.c.h.b16 %v10851
        %v10889 = vunpack.c.l.b16 %v10852
        %v10890 = vunpack.c.h.b16 %v10852
        %v10891 = vunpack.c.l.b16 %v10853
        %v10892 = vunpack.c.h.b16 %v10853
        %v10893 = vunpack.c.l.b16 %v10854
        %v10894 = vunpack.c.h.b16 %v10854
        %v10895 = vunpack.c.l.b16 %v10855
        %v10896 = vunpack.c.h.b16 %v10855
        %v10897 = vunpack.c.l.b16 %v10856
        %v10898 = vunpack.c.h.b16 %v10856
        %v10899 = vunpack.c.l.b16 %v10857
        %v10900 = vunpack.c.h.b16 %v10857
        %v10901 = vunpack.c.l.b16 %v10858
        %v10902 = vunpack.c.h.b16 %v10858
        %v10903 = vunpack.c.l.b16 %v10859
        %v10904 = vunpack.c.h.b16 %v10859
        %v10905 = vunpack.c.l.b16 %v10860
        %v10906 = vunpack.c.h.b16 %v10860
        %v10907 = vunpack.c.l.b16 %v10861
        %v10908 = vunpack.c.h.b16 %v10861
        %v10909 = vunpack.c.l.b16 %v10862
        %v10910 = vunpack.c.h.b16 %v10862
        %v10911 = vunpack.c.l.b16 %v10863
        %v10912 = vunpack.c.h.b16 %v10863
        %v10913 = vunpack.c.l.b16 %v10864
        %v10914 = vunpack.c.h.b16 %v10864
        %v10915 = vunpack.c.l.b16 %v10865
        %v10916 = vunpack.c.h.b16 %v10865
        %v10917 = vunpack.c.l.b16 %v10866
        %v10918 = vunpack.c.h.b16 %v10866
        %v10919 = vpack.c.b16 %v10889, %v10887
        %v10920 = vpack.c.b16 %v10890, %v10888
        %v10921 = vpack.c.b16 %v10893, %v10891
        %v10922 = vpack.c.b16 %v10894, %v10892
        %v10923 = vpack.c.b16 %v10897, %v10895
        %v10924 = vpack.c.b16 %v10898, %v10896
        %v10925 = vpack.c.b16 %v10901, %v10899
        %v10926 = vpack.c.b16 %v10902, %v10900
        %v10927 = vpack.c.b16 %v10905, %v10903
        %v10928 = vpack.c.b16 %v10906, %v10904
        %v10929 = vpack.c.b16 %v10909, %v10907
        %v10930 = vpack.c.b16 %v10910, %v10908
        %v10931 = vpack.c.b16 %v10913, %v10911
        %v10932 = vpack.c.b16 %v10914, %v10912
        %v10933 = vpack.c.b16 %v10917, %v10915
        %v10934 = vpack.c.b16 %v10918, %v10916
        %10951 = vmatprep.subr.bf16.mxu0 %v10934
        %10952 = vmatpush1.bf16.msra.mxu0 %v10933
        %10953 = vmatprep.subr.bf16.mxu0 %v10932
        %10954 = vmatpush1.bf16.msra.mxu0 %v10931
        %10955 = vmatprep.subr.bf16.mxu0 %v10930
        %10956 = vmatpush1.bf16.msra.mxu0 %v10929
        %10957 = vmatprep.subr.bf16.mxu0 %v10928
        %10958 = vmatpush1.bf16.msra.mxu0 %v10927
        %10959 = vmatprep.subr.bf16.mxu0 %v10926
        %10960 = vmatpush1.bf16.msra.mxu0 %v10925
        %10961 = vmatprep.subr.bf16.mxu0 %v10924
        %10962 = vmatpush1.bf16.msra.mxu0 %v10923
        %10963 = vmatprep.subr.bf16.mxu0 %v10922
        %10964 = vmatpush1.bf16.msra.mxu0 %v10921
        %10965 = vmatprep.subr.bf16.mxu0 %v10920
        %10966 = vmatpush1.bf16.msra.mxu0 %v10919
        %10967 = vmatprep.subr.bf16.mxu0 0
        %10968 = vmatpush2.bf16.msra.mxu0 0
        %10969 = vmatprep.subr.bf16.mxu0 0
        %10970 = vmatpush2.bf16.msra.mxu0 0
        %10971 = vmatprep.subr.bf16.mxu0 0
        %10972 = vmatpush2.bf16.msra.mxu0 0
        %10973 = vmatprep.subr.bf16.mxu0 0
        %10974 = vmatpush2.bf16.msra.mxu0 0
        %10975 = vmatprep.subr.bf16.mxu0 0
        %10976 = vmatpush2.bf16.msra.mxu0 0
        %10977 = vmatprep.subr.bf16.mxu0 0
        %10978 = vmatpush2.bf16.msra.mxu0 0
        %10979 = vmatprep.subr.bf16.mxu0 0
        %10980 = vmatpush2.bf16.msra.mxu0 0
        %10981 = vmatprep.subr.bf16.mxu0 0
        %10982 = vmatpush2.bf16.msra.mxu0 0
        %10983 = vmatprep.mubr.bf16.mxu0 0
        %10984 = vmatmul.mubr.bf16.gmra.mxu0 %v10868
        %v10985 = vpop.f32.mrf.mxu0
        %v10986 = vadd.f32 0.0, %v10985
        %v10987 = vpop.f32.mrf.mxu0
        %v10988 = vadd.f32 0.0, %v10987
        %v10989 = vpop.f32.mrf.mxu0
        %v10990 = vpop.f32.mrf.mxu0
        %10991 = vdwg.mxu0
        %v10994 = vcombine.low %v10986, %v10988
        %v10996 = vunpack.c.l.s4 1966171168
        %v10997 = vunpack.c.0.s8 %v10996
        %v10998 = vlaneseq
        %v10999 = vshrl.u32 %v10998, 7
        %v11000 = vsub.s32 %v10997, %v10999
        %v11001 = vrot.slane %v10994, %v11000
        %v11003 = vunpack.c.l.s4 1966171168
        %v11004 = vunpack.c.0.s8 %v11003
        %v11005 = vlaneseq
        %v11006 = vshrl.u32 %v11005, 7
        %v11007 = vsub.s32 %v11004, %v11006
        %v11008 = vrot.slane %v11001, %v11007
        %v11010 = vadd.f32 %v10849, %v11008
        %s11011 = scalar_lea.vmem %s10, 256
        %v11012 = vld [vmem:[%s11011] sm:$0xff]
        %v11013 = vld [vmem:[%s11011 + $0x8] sm:$0xff]
        %v11014 = vld [vmem:[%s11011 + $0x10] sm:$0xff]
        %v11015 = vld [vmem:[%s11011 + $0x18] sm:$0xff]
        %v11016 = vld [vmem:[%s11011 + $0x20] sm:$0xff]
        %v11017 = vld [vmem:[%s11011 + $0x28] sm:$0xff]
        %v11018 = vld [vmem:[%s11011 + $0x30] sm:$0xff]
        %v11019 = vld [vmem:[%s11011 + $0x38] sm:$0xff]
        %v11020 = vld [vmem:[%s11011 + $0x40] sm:$0xff]
        %v11021 = vld [vmem:[%s11011 + $0x48] sm:$0xff]
        %v11022 = vld [vmem:[%s11011 + $0x50] sm:$0xff]
        %v11023 = vld [vmem:[%s11011 + $0x58] sm:$0xff]
        %v11024 = vld [vmem:[%s11011 + $0x60] sm:$0xff]
        %v11025 = vld [vmem:[%s11011 + $0x68] sm:$0xff]
        %v11026 = vld [vmem:[%s11011 + $0x70] sm:$0xff]
        %v11027 = vld [vmem:[%s11011 + $0x78] sm:$0xff]
        %v11029 = vrot.slane %v10693, 1
        %v11047 = vunpack.c.l.b16 %v11012
        %v11048 = vunpack.c.h.b16 %v11012
        %v11049 = vunpack.c.l.b16 %v11013
        %v11050 = vunpack.c.h.b16 %v11013
        %v11051 = vunpack.c.l.b16 %v11014
        %v11052 = vunpack.c.h.b16 %v11014
        %v11053 = vunpack.c.l.b16 %v11015
        %v11054 = vunpack.c.h.b16 %v11015
        %v11055 = vunpack.c.l.b16 %v11016
        %v11056 = vunpack.c.h.b16 %v11016
        %v11057 = vunpack.c.l.b16 %v11017
        %v11058 = vunpack.c.h.b16 %v11017
        %v11059 = vunpack.c.l.b16 %v11018
        %v11060 = vunpack.c.h.b16 %v11018
        %v11061 = vunpack.c.l.b16 %v11019
        %v11062 = vunpack.c.h.b16 %v11019
        %v11063 = vunpack.c.l.b16 %v11020
        %v11064 = vunpack.c.h.b16 %v11020
        %v11065 = vunpack.c.l.b16 %v11021
        %v11066 = vunpack.c.h.b16 %v11021
        %v11067 = vunpack.c.l.b16 %v11022
        %v11068 = vunpack.c.h.b16 %v11022
        %v11069 = vunpack.c.l.b16 %v11023
        %v11070 = vunpack.c.h.b16 %v11023
        %v11071 = vunpack.c.l.b16 %v11024
        %v11072 = vunpack.c.h.b16 %v11024
        %v11073 = vunpack.c.l.b16 %v11025
        %v11074 = vunpack.c.h.b16 %v11025
        %v11075 = vunpack.c.l.b16 %v11026
        %v11076 = vunpack.c.h.b16 %v11026
        %v11077 = vunpack.c.l.b16 %v11027
        %v11078 = vunpack.c.h.b16 %v11027
        %v11079 = vpack.c.b16 %v11049, %v11047
        %v11080 = vpack.c.b16 %v11050, %v11048
        %v11081 = vpack.c.b16 %v11053, %v11051
        %v11082 = vpack.c.b16 %v11054, %v11052
        %v11083 = vpack.c.b16 %v11057, %v11055
        %v11084 = vpack.c.b16 %v11058, %v11056
        %v11085 = vpack.c.b16 %v11061, %v11059
        %v11086 = vpack.c.b16 %v11062, %v11060
        %v11087 = vpack.c.b16 %v11065, %v11063
        %v11088 = vpack.c.b16 %v11066, %v11064
        %v11089 = vpack.c.b16 %v11069, %v11067
        %v11090 = vpack.c.b16 %v11070, %v11068
        %v11091 = vpack.c.b16 %v11073, %v11071
        %v11092 = vpack.c.b16 %v11074, %v11072
        %v11093 = vpack.c.b16 %v11077, %v11075
        %v11094 = vpack.c.b16 %v11078, %v11076
        %11111 = vmatprep.subr.bf16.mxu0 %v11094
        %11112 = vmatpush1.bf16.msra.mxu0 %v11093
        %11113 = vmatprep.subr.bf16.mxu0 %v11092
        %11114 = vmatpush1.bf16.msra.mxu0 %v11091
        %11115 = vmatprep.subr.bf16.mxu0 %v11090
        %11116 = vmatpush1.bf16.msra.mxu0 %v11089
        %11117 = vmatprep.subr.bf16.mxu0 %v11088
        %11118 = vmatpush1.bf16.msra.mxu0 %v11087
        %11119 = vmatprep.subr.bf16.mxu0 %v11086
        %11120 = vmatpush1.bf16.msra.mxu0 %v11085
        %11121 = vmatprep.subr.bf16.mxu0 %v11084
        %11122 = vmatpush1.bf16.msra.mxu0 %v11083
        %11123 = vmatprep.subr.bf16.mxu0 %v11082
        %11124 = vmatpush1.bf16.msra.mxu0 %v11081
        %11125 = vmatprep.subr.bf16.mxu0 %v11080
        %11126 = vmatpush1.bf16.msra.mxu0 %v11079
        %11127 = vmatprep.subr.bf16.mxu0 0
        %11128 = vmatpush2.bf16.msra.mxu0 0
        %11129 = vmatprep.subr.bf16.mxu0 0
        %11130 = vmatpush2.bf16.msra.mxu0 0
        %11131 = vmatprep.subr.bf16.mxu0 0
        %11132 = vmatpush2.bf16.msra.mxu0 0
        %11133 = vmatprep.subr.bf16.mxu0 0
        %11134 = vmatpush2.bf16.msra.mxu0 0
        %11135 = vmatprep.subr.bf16.mxu0 0
        %11136 = vmatpush2.bf16.msra.mxu0 0
        %11137 = vmatprep.subr.bf16.mxu0 0
        %11138 = vmatpush2.bf16.msra.mxu0 0
        %11139 = vmatprep.subr.bf16.mxu0 0
        %11140 = vmatpush2.bf16.msra.mxu0 0
        %11141 = vmatprep.subr.bf16.mxu0 0
        %11142 = vmatpush2.bf16.msra.mxu0 0
        %11143 = vmatprep.mubr.bf16.mxu0 0
        %11144 = vmatmul.mubr.bf16.gmra.mxu0 %v11029
        %v11145 = vpop.f32.mrf.mxu0
        %v11146 = vadd.f32 0.0, %v11145
        %v11147 = vpop.f32.mrf.mxu0
        %v11148 = vadd.f32 0.0, %v11147
        %v11149 = vpop.f32.mrf.mxu0
        %v11150 = vpop.f32.mrf.mxu0
        %11151 = vdwg.mxu0
        %v11154 = vcombine.low %v11146, %v11148
        %v11156 = vunpack.c.l.s4 1966171168
        %v11157 = vunpack.c.0.s8 %v11156
        %v11158 = vlaneseq
        %v11159 = vshrl.u32 %v11158, 7
        %v11160 = vsub.s32 %v11157, %v11159
        %v11161 = vrot.slane %v11154, %v11160
        %v11163 = vunpack.c.l.s4 1966171168
        %v11164 = vunpack.c.0.s8 %v11163
        %v11165 = vlaneseq
        %v11166 = vshrl.u32 %v11165, 7
        %v11167 = vsub.s32 %v11164, %v11166
        %v11168 = vrot.slane %v11161, %v11167
        %v11170 = vadd.f32 %v11010, %v11168
        %s11171 = scalar_lea.vmem %s10, 384
        %v11172 = vld [vmem:[%s11171] sm:$0xff]
        %v11173 = vld [vmem:[%s11171 + $0x8] sm:$0xff]
        %v11174 = vld [vmem:[%s11171 + $0x10] sm:$0xff]
        %v11175 = vld [vmem:[%s11171 + $0x18] sm:$0xff]
        %v11176 = vld [vmem:[%s11171 + $0x20] sm:$0xff]
        %v11177 = vld [vmem:[%s11171 + $0x28] sm:$0xff]
        %v11178 = vld [vmem:[%s11171 + $0x30] sm:$0xff]
        %v11179 = vld [vmem:[%s11171 + $0x38] sm:$0xff]
        %v11180 = vld [vmem:[%s11171 + $0x40] sm:$0xff]
        %v11181 = vld [vmem:[%s11171 + $0x48] sm:$0xff]
        %v11182 = vld [vmem:[%s11171 + $0x50] sm:$0xff]
        %v11183 = vld [vmem:[%s11171 + $0x58] sm:$0xff]
        %v11184 = vld [vmem:[%s11171 + $0x60] sm:$0xff]
        %v11185 = vld [vmem:[%s11171 + $0x68] sm:$0xff]
        %v11186 = vld [vmem:[%s11171 + $0x70] sm:$0xff]
        %v11187 = vld [vmem:[%s11171 + $0x78] sm:$0xff]
        %v11188 = vrot.slane %v10868, 1
        %v11206 = vunpack.c.l.b16 %v11172
        %v11207 = vunpack.c.h.b16 %v11172
        %v11208 = vunpack.c.l.b16 %v11173
        %v11209 = vunpack.c.h.b16 %v11173
        %v11210 = vunpack.c.l.b16 %v11174
        %v11211 = vunpack.c.h.b16 %v11174
        %v11212 = vunpack.c.l.b16 %v11175
        %v11213 = vunpack.c.h.b16 %v11175
        %v11214 = vunpack.c.l.b16 %v11176
        %v11215 = vunpack.c.h.b16 %v11176
        %v11216 = vunpack.c.l.b16 %v11177
        %v11217 = vunpack.c.h.b16 %v11177
        %v11218 = vunpack.c.l.b16 %v11178
        %v11219 = vunpack.c.h.b16 %v11178
        %v11220 = vunpack.c.l.b16 %v11179
        %v11221 = vunpack.c.h.b16 %v11179
        %v11222 = vunpack.c.l.b16 %v11180
        %v11223 = vunpack.c.h.b16 %v11180
        %v11224 = vunpack.c.l.b16 %v11181
        %v11225 = vunpack.c.h.b16 %v11181
        %v11226 = vunpack.c.l.b16 %v11182
        %v11227 = vunpack.c.h.b16 %v11182
        %v11228 = vunpack.c.l.b16 %v11183
        %v11229 = vunpack.c.h.b16 %v11183
        %v11230 = vunpack.c.l.b16 %v11184
        %v11231 = vunpack.c.h.b16 %v11184
        %v11232 = vunpack.c.l.b16 %v11185
        %v11233 = vunpack.c.h.b16 %v11185
        %v11234 = vunpack.c.l.b16 %v11186
        %v11235 = vunpack.c.h.b16 %v11186
        %v11236 = vunpack.c.l.b16 %v11187
        %v11237 = vunpack.c.h.b16 %v11187
        %v11238 = vpack.c.b16 %v11208, %v11206
        %v11239 = vpack.c.b16 %v11209, %v11207
        %v11240 = vpack.c.b16 %v11212, %v11210
        %v11241 = vpack.c.b16 %v11213, %v11211
        %v11242 = vpack.c.b16 %v11216, %v11214
        %v11243 = vpack.c.b16 %v11217, %v11215
        %v11244 = vpack.c.b16 %v11220, %v11218
        %v11245 = vpack.c.b16 %v11221, %v11219
        %v11246 = vpack.c.b16 %v11224, %v11222
        %v11247 = vpack.c.b16 %v11225, %v11223
        %v11248 = vpack.c.b16 %v11228, %v11226
        %v11249 = vpack.c.b16 %v11229, %v11227
        %v11250 = vpack.c.b16 %v11232, %v11230
        %v11251 = vpack.c.b16 %v11233, %v11231
        %v11252 = vpack.c.b16 %v11236, %v11234
        %v11253 = vpack.c.b16 %v11237, %v11235
        %11270 = vmatprep.subr.bf16.mxu0 %v11253
        %11271 = vmatpush1.bf16.msra.mxu0 %v11252
        %11272 = vmatprep.subr.bf16.mxu0 %v11251
        %11273 = vmatpush1.bf16.msra.mxu0 %v11250
        %11274 = vmatprep.subr.bf16.mxu0 %v11249
        %11275 = vmatpush1.bf16.msra.mxu0 %v11248
        %11276 = vmatprep.subr.bf16.mxu0 %v11247
        %11277 = vmatpush1.bf16.msra.mxu0 %v11246
        %11278 = vmatprep.subr.bf16.mxu0 %v11245
        %11279 = vmatpush1.bf16.msra.mxu0 %v11244
        %11280 = vmatprep.subr.bf16.mxu0 %v11243
        %11281 = vmatpush1.bf16.msra.mxu0 %v11242
        %11282 = vmatprep.subr.bf16.mxu0 %v11241
        %11283 = vmatpush1.bf16.msra.mxu0 %v11240
        %11284 = vmatprep.subr.bf16.mxu0 %v11239
        %11285 = vmatpush1.bf16.msra.mxu0 %v11238
        %11286 = vmatprep.subr.bf16.mxu0 0
        %11287 = vmatpush2.bf16.msra.mxu0 0
        %11288 = vmatprep.subr.bf16.mxu0 0
        %11289 = vmatpush2.bf16.msra.mxu0 0
        %11290 = vmatprep.subr.bf16.mxu0 0
        %11291 = vmatpush2.bf16.msra.mxu0 0
        %11292 = vmatprep.subr.bf16.mxu0 0
        %11293 = vmatpush2.bf16.msra.mxu0 0
        %11294 = vmatprep.subr.bf16.mxu0 0
        %11295 = vmatpush2.bf16.msra.mxu0 0
        %11296 = vmatprep.subr.bf16.mxu0 0
        %11297 = vmatpush2.bf16.msra.mxu0 0
        %11298 = vmatprep.subr.bf16.mxu0 0
        %11299 = vmatpush2.bf16.msra.mxu0 0
        %11300 = vmatprep.subr.bf16.mxu0 0
        %11301 = vmatpush2.bf16.msra.mxu0 0
        %11302 = vmatprep.mubr.bf16.mxu0 0
        %11303 = vmatmul.mubr.bf16.gmra.mxu0 %v11188
        %v11304 = vpop.f32.mrf.mxu0
        %v11305 = vadd.f32 0.0, %v11304
        %v11306 = vpop.f32.mrf.mxu0
        %v11307 = vadd.f32 0.0, %v11306
        %v11308 = vpop.f32.mrf.mxu0
        %v11309 = vpop.f32.mrf.mxu0
        %11310 = vdwg.mxu0
        %v11313 = vcombine.low %v11305, %v11307
        %v11315 = vunpack.c.l.s4 1966171168
        %v11316 = vunpack.c.0.s8 %v11315
        %v11317 = vlaneseq
        %v11318 = vshrl.u32 %v11317, 7
        %v11319 = vsub.s32 %v11316, %v11318
        %v11320 = vrot.slane %v11313, %v11319
        %v11322 = vunpack.c.l.s4 1966171168
        %v11323 = vunpack.c.0.s8 %v11322
        %v11324 = vlaneseq
        %v11325 = vshrl.u32 %v11324, 7
        %v11326 = vsub.s32 %v11323, %v11325
        %v11327 = vrot.slane %v11320, %v11326
        %v11329 = vadd.f32 %v11170, %v11327
        %v11330 = vmax.f32 %v11329, 0.0
        %v11332 = vlaneseq
        %v11333 = vshrl.u32 %v11332, 7
        %v11334 = vsub.s32 0, %v11333
        %v11335 = vrot.slane %v11330, %v11334
        %v11336 = vlaneseq
        %v11337 = vshrl.u32 %v11336, 7
        %v11338 = vsub.s32 1, %v11337
        %v11339 = vrot.slane %v11330, %v11338
        %v11342 = vpack.c.bf16 %v11335, %v11335
        %v11343 = vpack.c.bf16 %v11339, %v11339
        %v11344 = vld [vmem:[#allocation11] sm:$0xf]
        %v11345 = vld [vmem:[#allocation11 + $0x4] sm:$0xf]
        %v11346 = vld [vmem:[#allocation11 + $0x8] sm:$0xf]
        %v11347 = vld [vmem:[#allocation11 + $0xc] sm:$0xf]
        %v11348 = vld [vmem:[#allocation11 + $0x10] sm:$0xf]
        %v11349 = vld [vmem:[#allocation11 + $0x14] sm:$0xf]
        %v11350 = vld [vmem:[#allocation11 + $0x18] sm:$0xf]
        %v11351 = vld [vmem:[#allocation11 + $0x1c] sm:$0xf]
        %v11352 = vld [vmem:[#allocation11 + $0x20] sm:$0xf]
        %v11353 = vld [vmem:[#allocation11 + $0x24] sm:$0xf]
        %v11354 = vld [vmem:[#allocation11 + $0x28] sm:$0xf]
        %v11355 = vld [vmem:[#allocation11 + $0x2c] sm:$0xf]
        %v11356 = vld [vmem:[#allocation11 + $0x30] sm:$0xf]
        %v11357 = vld [vmem:[#allocation11 + $0x34] sm:$0xf]
        %v11358 = vld [vmem:[#allocation11 + $0x38] sm:$0xf]
        %v11359 = vld [vmem:[#allocation11 + $0x3c] sm:$0xf]
        %v11360 = vld [vmem:[#allocation11 + $0x40] sm:$0xf]
        %v11361 = vld [vmem:[#allocation11 + $0x44] sm:$0xf]
        %v11362 = vld [vmem:[#allocation11 + $0x48] sm:$0xf]
        %v11363 = vld [vmem:[#allocation11 + $0x4c] sm:$0xf]
        %v11364 = vld [vmem:[#allocation11 + $0x50] sm:$0xf]
        %v11365 = vld [vmem:[#allocation11 + $0x54] sm:$0xf]
        %v11366 = vld [vmem:[#allocation11 + $0x58] sm:$0xf]
        %v11367 = vld [vmem:[#allocation11 + $0x5c] sm:$0xf]
        %v11368 = vld [vmem:[#allocation11 + $0x60] sm:$0xf]
        %v11369 = vld [vmem:[#allocation11 + $0x64] sm:$0xf]
        %v11370 = vld [vmem:[#allocation11 + $0x68] sm:$0xf]
        %v11371 = vld [vmem:[#allocation11 + $0x6c] sm:$0xf]
        %v11372 = vld [vmem:[#allocation11 + $0x70] sm:$0xf]
        %v11373 = vld [vmem:[#allocation11 + $0x74] sm:$0xf]
        %v11374 = vld [vmem:[#allocation11 + $0x78] sm:$0xf]
        %v11375 = vld [vmem:[#allocation11 + $0x7c] sm:$0xf]
        %v11376 = vld [vmem:[%s13] sm:$0x1]
        %v11409 = vunpack.c.l.b16 %v11344
        %v11410 = vunpack.c.l.b16 %v11345
        %v11411 = vunpack.c.l.b16 %v11346
        %v11412 = vunpack.c.l.b16 %v11347
        %v11413 = vunpack.c.l.b16 %v11348
        %v11414 = vunpack.c.l.b16 %v11349
        %v11415 = vunpack.c.l.b16 %v11350
        %v11416 = vunpack.c.l.b16 %v11351
        %v11417 = vunpack.c.l.b16 %v11352
        %v11418 = vunpack.c.l.b16 %v11353
        %v11419 = vunpack.c.l.b16 %v11354
        %v11420 = vunpack.c.l.b16 %v11355
        %v11421 = vunpack.c.l.b16 %v11356
        %v11422 = vunpack.c.l.b16 %v11357
        %v11423 = vunpack.c.l.b16 %v11358
        %v11424 = vunpack.c.l.b16 %v11359
        %v11425 = vunpack.c.l.b16 %v11360
        %v11426 = vunpack.c.l.b16 %v11361
        %v11427 = vunpack.c.l.b16 %v11362
        %v11428 = vunpack.c.l.b16 %v11363
        %v11429 = vunpack.c.l.b16 %v11364
        %v11430 = vunpack.c.l.b16 %v11365
        %v11431 = vunpack.c.l.b16 %v11366
        %v11432 = vunpack.c.l.b16 %v11367
        %v11433 = vunpack.c.l.b16 %v11368
        %v11434 = vunpack.c.l.b16 %v11369
        %v11435 = vunpack.c.l.b16 %v11370
        %v11436 = vunpack.c.l.b16 %v11371
        %v11437 = vunpack.c.l.b16 %v11372
        %v11438 = vunpack.c.l.b16 %v11373
        %v11439 = vunpack.c.l.b16 %v11374
        %v11440 = vunpack.c.l.b16 %v11375
        %v11441 = vpack.c.b16 %v11410, %v11409
        %v11442 = vpack.c.b16 %v11412, %v11411
        %v11443 = vpack.c.b16 %v11414, %v11413
        %v11444 = vpack.c.b16 %v11416, %v11415
        %v11445 = vpack.c.b16 %v11418, %v11417
        %v11446 = vpack.c.b16 %v11420, %v11419
        %v11447 = vpack.c.b16 %v11422, %v11421
        %v11448 = vpack.c.b16 %v11424, %v11423
        %v11449 = vpack.c.b16 %v11426, %v11425
        %v11450 = vpack.c.b16 %v11428, %v11427
        %v11451 = vpack.c.b16 %v11430, %v11429
        %v11452 = vpack.c.b16 %v11432, %v11431
        %v11453 = vpack.c.b16 %v11434, %v11433
        %v11454 = vpack.c.b16 %v11436, %v11435
        %v11455 = vpack.c.b16 %v11438, %v11437
        %v11456 = vpack.c.b16 %v11440, %v11439
        %11473 = vmatprep.subr.bf16.mxu0 0
        %11474 = vmatpush1.bf16.msra.mxu0 %v11448
        %11475 = vmatprep.subr.bf16.mxu0 0
        %11476 = vmatpush1.bf16.msra.mxu0 %v11447
        %11477 = vmatprep.subr.bf16.mxu0 0
        %11478 = vmatpush1.bf16.msra.mxu0 %v11446
        %11479 = vmatprep.subr.bf16.mxu0 0
        %11480 = vmatpush1.bf16.msra.mxu0 %v11445
        %11481 = vmatprep.subr.bf16.mxu0 0
        %11482 = vmatpush1.bf16.msra.mxu0 %v11444
        %11483 = vmatprep.subr.bf16.mxu0 0
        %11484 = vmatpush1.bf16.msra.mxu0 %v11443
        %11485 = vmatprep.subr.bf16.mxu0 0
        %11486 = vmatpush1.bf16.msra.mxu0 %v11442
        %11487 = vmatprep.subr.bf16.mxu0 0
        %11488 = vmatpush1.bf16.msra.mxu0 %v11441
        %11489 = vmatprep.subr.bf16.mxu0 0
        %11490 = vmatpush2.bf16.msra.mxu0 %v11456
        %11491 = vmatprep.subr.bf16.mxu0 0
        %11492 = vmatpush2.bf16.msra.mxu0 %v11455
        %11493 = vmatprep.subr.bf16.mxu0 0
        %11494 = vmatpush2.bf16.msra.mxu0 %v11454
        %11495 = vmatprep.subr.bf16.mxu0 0
        %11496 = vmatpush2.bf16.msra.mxu0 %v11453
        %11497 = vmatprep.subr.bf16.mxu0 0
        %11498 = vmatpush2.bf16.msra.mxu0 %v11452
        %11499 = vmatprep.subr.bf16.mxu0 0
        %11500 = vmatpush2.bf16.msra.mxu0 %v11451
        %11501 = vmatprep.subr.bf16.mxu0 0
        %11502 = vmatpush2.bf16.msra.mxu0 %v11450
        %11503 = vmatprep.subr.bf16.mxu0 0
        %11504 = vmatpush2.bf16.msra.mxu0 %v11449
        %11505 = vmatprep.mubr.bf16.mxu0 %v11343
        %11506 = vmatmul.mubr.bf16.gmra.mxu0 %v11342
        %v11507 = vpop.f32.mrf.mxu0
        %v11508 = vadd.f32 %v11376, %v11507
        %v11509 = vpop.f32.mrf.mxu0
        %v11510 = vpop.f32.mrf.mxu0
        %v11511 = vpop.f32.mrf.mxu0
        %11512 = vdwg.mxu0
        %vm11513 = vcmask 57344
        %11514 = vst.msk [vmem:[%s518] sm:$0x1] %vm11513, %v11508
        %s11515 = sand.u32 %s338, 1
        %s11516 = scalar_lea.sflag [#allocation7], %s11515
        %s11517 = sand.u32 %s338, 1
        %s11518 = scalar_lea.vmem [#allocation13], %s11517
        // Predicated region
        $region93: #{_lambda_.1} parent=75 // pred_check
          %p11519 = pneg %p348
        $region94: #{_lambda_.1} parent=75 // pred_check_branch
          %11521 = sbr.rel (%p11519) target = $region96
        $region95: #{_lambda_.1} parent=75 // pred_region
          %s11523 = ssub.s32 16, 16
          %11524 = vsyncadd %s11516, %s11523
          %s11525 = smul.addr %s31, 16
          %s11526 = scalar_lea.hbm %s14, %s11525
          %s11528 = sshll.u32 %s11518, 4
          %s11529 = int_to_ptr.vmem [resolvable:$true] %s11528
          %11531 = dma.vmem_to_hbm [thread:$0]  %s11529, 16, %s11526, %s11516
        $region96: #{_lambda_.1} parent=75 // pred_fallthru
          _
      $region76: #{_lambda_.1} parent=5 // pred_fallthru
        _
      %p11532 = scmp.le.s32.totalorder 2, %s26
      // Predicated region
      $region97: #{_lambda_.1} parent=5 // pred_check
        %p11533 = pneg %p11532
      $region98: #{_lambda_.1} parent=5 // pred_check_branch
        %11535 = sbr.rel (%p11533) target = $region100
      $region99: #{_lambda_.1} parent=5 // pred_region
        %s11536 = ssub.s32 %s26, 2
        // Predicated region
        $region101: #{_lambda_.1} parent=99 // pred_check
          %p11537 = pneg %p354
        $region102: #{_lambda_.1} parent=99 // pred_check_branch
          %11539 = sbr.rel (%p11537) target = $region104
        $region103: #{_lambda_.1} parent=99 // pred_region
          %s11540 = sand.u32 %s339, 1
          %s11541 = scalar_lea.sflag [#allocation7], %s11540
          %s11542 = sand.u32 %s339, 1
          %s11543 = scalar_lea.vmem [#allocation13], %s11542
          %11544 = dma.done %s11541, 16
        $region104: #{_lambda_.1} parent=99 // pred_fallthru
          _
      $region100: #{_lambda_.1} parent=5 // pred_fallthru
        _
    $region6: #{_lambda_.1} parent=1 // loop_footer
      %s30 = sadd.s32 1, %s26
    $region7: #{_lambda_.1} parent=1 // loop_footer_branch
      %25 = sbr.rel target = $region3
    $region8: #{_lambda_.1} parent=1 // loop_exit
      _
    %11545 = vsyncpa [#allocation6], 1
    %s11546 = scalar_lea.sflag [#allocation6], 1
    %11547 = vsyncpa %s11546, 1
    %11548 = vsyncpa [#allocation9], 1
    %11549 = vsyncpa [#allocation12], 1
    %11550 = vsyncpa [#allocation7], 1
    %s11551 = scalar_lea.sflag [#allocation7], 1
    %11552 = vsyncpa %s11551, 1

</llo_original>
